<compile_context>
chip_gen: v6e
topology: v6e:2x2x1
jax: 0.10.0
libtpu: 0.0.40
codegen_flags: <defaults>
</compile_context>

<pallas_src>
import functools

import jax
import jax.numpy as jnp
from jax import lax
from jax.experimental import pallas as pl
from jax.experimental.pallas import tpu as pltpu

LANE = 128        # pad every channel dimension to the TPU lane width
BN_EPS = 1e-5     # PyTorch BatchNorm2d default eps


# ----------------------------------------------------------------------------
# Fused kernel: conv1+bn1+relu -> conv2(3x3)+bn2+relu -> conv3+bn3 -> +id -> relu
# ----------------------------------------------------------------------------
def _residual_block_kernel(x_ref, w1_ref, w2_ref, w3_ref, bn_ref, o_ref,
                           pad_ref, acc_ref, *, N, H, W, C):
    # x_ref  : (M, C)      flattened NHWC input, channels zero-padded to C=128
    # w1_ref : (C, C)      1x1 conv1 weight as (cin, cout), zero-padded
    # w2_ref : (9, C, C)   3x3 conv2 weight per tap (dy*3+dx), (cin, cout), padded
    # w3_ref : (C, C)      1x1 conv3 weight as (cin, cout), zero-padded
    # bn_ref : (8, C)      rows 0..5 = gamma1, beta1, gamma2, beta2, gamma3, beta3
    # o_ref  : (M, C)      output, lane-dense (sliced back to real channels outside)
    # pad_ref: (N, H+2, W+16, C) VMEM scratch: zero-padded conv2 input
    #                      (interior at sublane-aligned W offset 8)
    # acc_ref: (M, C)      VMEM accumulator for the 9 shifted-window matmuls
    M = N * H * W
    bnv = bn_ref[...]

    def batchnorm(y, idx):
        # Training-mode BatchNorm2d: per-channel batch stats over (N, H, W).
        gamma = bnv[2 * idx:2 * idx + 1, :]
        beta = bnv[2 * idx + 1:2 * idx + 2, :]
        mean = jnp.mean(y, axis=0, keepdims=True)
        var = jnp.mean(jnp.square(y - mean), axis=0, keepdims=True)
        return (y - mean) * lax.rsqrt(var + BN_EPS) * gamma + beta

    # --- conv1 (1x1) -> bn1 -> relu (single lane-dense MXU matmul) -------------
    h1 = jnp.dot(x_ref[...], w1_ref[...], preferred_element_type=jnp.float32)
    h1 = jnp.maximum(batchnorm(h1, 0), 0.0)

    # --- conv2 (3x3, stride 1, pad 1): in-VMEM shifted-window accumulation -----
    pad_ref[...] = jnp.zeros_like(pad_ref)
    pad_ref[:, 1:H + 1, 8:8 + W, :] = h1.reshape(N, H, W, C)   # aligned interior store
    acc_ref[...] = jnp.zeros_like(acc_ref)
    for dy in range(3):
        for dx in range(3):
            tap = pad_ref[:, dy:dy + H, 7 + dx:7 + dx + W, :].reshape(M, C)
            acc_ref[...] += jnp.dot(tap, w2_ref[dy * 3 + dx],
                                    preferred_element_type=jnp.float32)
    h2 = jnp.maximum(batchnorm(acc_ref[...], 1), 0.0)

    # --- conv3 (1x1) -> bn3 ----------------------------------------------------
    h3 = jnp.dot(h2, w3_ref[...], preferred_element_type=jnp.float32)
    h3 = batchnorm(h3, 2)

    # --- residual add (downsample=None -> identity) + relu ---------------------
    o_ref[...] = jnp.maximum(h3 + x_ref[...], 0.0)


# ----------------------------------------------------------------------------
# Parameter packing (done ONCE at init: lane-padded matmul operands)
# ----------------------------------------------------------------------------
def _pad2d(a, rows, cols):
    out = jnp.zeros((rows, cols), jnp.float32)
    return out.at[:a.shape[0], :a.shape[1]].set(a)


def init_params(key, in_planes, planes):
    ks = jax.random.split(key, 3)

    def conv_w(k, cout, cin, ksz):
        bound = 1.0 / jnp.sqrt(cin * ksz * ksz)
        return jax.random.uniform(k, (cout, cin, ksz, ksz), jnp.float32,
                                  -bound, bound)

    w1 = conv_w(ks[0], planes, in_planes, 1)          # (planes, in_planes, 1, 1)
    w2 = conv_w(ks[1], planes, planes, 3)             # (planes, planes, 3, 3)
    w3 = conv_w(ks[2], planes * 4, planes, 1)         # (planes*4, planes, 1, 1)

    # Pre-pack to lane-dense (cin, cout) matrices, zero-padded to 128x128.
    w1m = _pad2d(w1[:, :, 0, 0].T, LANE, LANE)
    w2m = jnp.stack([_pad2d(w2[:, :, dy, dx].T, LANE, LANE)
                     for dy in range(3) for dx in range(3)], axis=0)   # (9,128,128)
    w3m = _pad2d(w3[:, :, 0, 0].T, LANE, LANE)

    # BatchNorm affine params at PyTorch init (gamma=1, beta=0); padded lanes = 0.
    bn = jnp.zeros((8, LANE), jnp.float32)
    bn = bn.at[0, :planes].set(1.0)          # gamma1
    bn = bn.at[2, :planes].set(1.0)          # gamma2
    bn = bn.at[4, :planes * 4].set(1.0)      # gamma3
    return {"w1": w1m, "w2": w2m, "w3": w3m, "bn": bn}


# ----------------------------------------------------------------------------
# Forward wrapper (layout glue only: NCHW <-> lane-padded flattened NHWC)
# ----------------------------------------------------------------------------
@jax.jit
def residual_block_forward(x, params):
    N, Cin, H, W = x.shape          # default config: Cout = planes*4 == Cin
    M = N * H * W
    C = LANE

    xf = jnp.transpose(x, (0, 2, 3, 1)).reshape(M, Cin)
    xf = jnp.pad(xf, ((0, 0), (0, C - Cin)))

    kern = functools.partial(_residual_block_kernel, N=N, H=H, W=W, C=C)
    out = pl.pallas_call(
        kern,
        out_shape=jax.ShapeDtypeStruct((M, C), jnp.float32),
        in_specs=[
            pl.BlockSpec((M, C), lambda: (0, 0)),
            pl.BlockSpec((C, C), lambda: (0, 0)),
            pl.BlockSpec((9, C, C), lambda: (0, 0, 0)),
            pl.BlockSpec((C, C), lambda: (0, 0)),
            pl.BlockSpec((8, C), lambda: (0, 0)),
        ],
        out_specs=pl.BlockSpec((M, C), lambda: (0, 0)),
        scratch_shapes=[
            pltpu.VMEM((N, H + 2, W + 16, C), jnp.float32),   # padded conv2 input
            pltpu.VMEM((M, C), jnp.float32),                  # conv2 accumulator
        ],
    )(xf, params["w1"], params["w2"], params["w3"], params["bn"])

    y = out[:, :Cin].reshape(N, H, W, Cin).transpose(0, 3, 1, 2)   # back to NCHW
    return y


if __name__ == "__main__":
    key = jax.random.PRNGKey(0)
    kx, kp = jax.random.split(key)

    # Bottleneck block with the default ctor args needs in_planes == planes * 4.
    in_planes, planes = 16, 4
    x = jax.random.normal(kx, (2, in_planes, 16, 16), jnp.float32)
    params = init_params(kp, in_planes, planes)

    out = residual_block_forward(x, params)
    out = jax.block_until_ready(out)
    assert out.shape == (2, 16, 16, 16), out.shape
    assert out.dtype == jnp.float32
    assert bool(jnp.all(out >= 0.0))          # final ReLU
    assert bool(jnp.all(jnp.isfinite(out)))
    print("KERNEL_OK")
</pallas_src>

<mosaic_0001>
module attributes {stable_mosaic.version = 11 : i64} {
  func.func @_residual_block_kernel(%arg0: memref<512x128xf32, #tpu.memory_space<vmem>>, %arg1: memref<128x128xf32, #tpu.memory_space<vmem>>, %arg2: memref<9x128x128xf32, #tpu.memory_space<vmem>>, %arg3: memref<128x128xf32, #tpu.memory_space<vmem>>, %arg4: memref<8x128xf32, #tpu.memory_space<vmem>>, %arg5: memref<512x128xf32, #tpu.memory_space<vmem>>, %arg6: memref<2x18x32x128xf32, #tpu.memory_space<vmem>>, %arg7: memref<512x128xf32, #tpu.memory_space<vmem>>) attributes {dimension_semantics = [], scalar_prefetch = 0 : i64, scratch_operands = 2 : i64, tpu.core_type = #tpu.core_type<tc>} {
    %c0 = arith.constant 0 : index
    %c0_0 = arith.constant 0 : index
    %0 = vector.load %arg4[%c0, %c0_0] : memref<8x128xf32, #tpu.memory_space<vmem>>, vector<8x128xf32>
    %c0_1 = arith.constant 0 : index
    %c0_2 = arith.constant 0 : index
    %1 = vector.load %arg0[%c0_1, %c0_2] : memref<512x128xf32, #tpu.memory_space<vmem>>, vector<512x128xf32>
    %c0_3 = arith.constant 0 : index
    %c0_4 = arith.constant 0 : index
    %2 = vector.load %arg1[%c0_3, %c0_4] : memref<128x128xf32, #tpu.memory_space<vmem>>, vector<128x128xf32>
    %cst = arith.constant dense<0.000000e+00> : vector<512x128xf32>
    %3 = tpu.matmul %1, %2, %cst {dimension_numbers = #tpu.dot_dimension_numbers<[1], [0], [0], [1], [0, 0, 1, 1], [], []>} : vector<512x128xf32>, vector<128x128xf32>, vector<512x128xf32> -> vector<512x128xf32>
    %4 = vector.extract_strided_slice %0 {offsets = [0, 0], sizes = [1, 128], strides = [1, 1]} : vector<8x128xf32> to vector<1x128xf32>
    %5 = vector.extract_strided_slice %0 {offsets = [1, 0], sizes = [1, 128], strides = [1, 1]} : vector<8x128xf32> to vector<1x128xf32>
    %cst_5 = arith.constant dense<0.000000e+00> : vector<128xf32>
    %6 = vector.multi_reduction <add>, %3, %cst_5 [0] : vector<512x128xf32> to vector<128xf32>
    %7 = vector.shape_cast %6 : vector<128xf32> to vector<1x128xf32>
    %cst_6 = arith.constant 5.120000e+02 : f32
    %8 = vector.broadcast %cst_6 : f32 to vector<1x128xf32>
    %9 = arith.divf %7, %8 : vector<1x128xf32>
    %10 = vector.broadcast %9 : vector<1x128xf32> to vector<512x128xf32>
    %11 = arith.subf %3, %10 : vector<512x128xf32>
    %12 = arith.mulf %11, %11 : vector<512x128xf32>
    %cst_7 = arith.constant dense<0.000000e+00> : vector<128xf32>
    %13 = vector.multi_reduction <add>, %12, %cst_7 [0] : vector<512x128xf32> to vector<128xf32>
    %14 = vector.shape_cast %13 : vector<128xf32> to vector<1x128xf32>
    %cst_8 = arith.constant 5.120000e+02 : f32
    %15 = vector.broadcast %cst_8 : f32 to vector<1x128xf32>
    %16 = arith.divf %14, %15 : vector<1x128xf32>
    %17 = vector.broadcast %9 : vector<1x128xf32> to vector<512x128xf32>
    %18 = arith.subf %3, %17 : vector<512x128xf32>
    %cst_9 = arith.constant 9.99999974E-6 : f32
    %19 = vector.broadcast %cst_9 : f32 to vector<1x128xf32>
    %20 = arith.addf %16, %19 : vector<1x128xf32>
    %21 = math.rsqrt %20 : vector<1x128xf32>
    %22 = vector.broadcast %21 : vector<1x128xf32> to vector<512x128xf32>
    %23 = arith.mulf %18, %22 : vector<512x128xf32>
    %24 = vector.broadcast %4 : vector<1x128xf32> to vector<512x128xf32>
    %25 = arith.mulf %23, %24 : vector<512x128xf32>
    %26 = vector.broadcast %5 : vector<1x128xf32> to vector<512x128xf32>
    %27 = arith.addf %25, %26 : vector<512x128xf32>
    %cst_10 = arith.constant 0.000000e+00 : f32
    %28 = vector.broadcast %cst_10 : f32 to vector<512x128xf32>
    %29 = arith.maximumf %27, %28 : vector<512x128xf32>
    %cst_11 = arith.constant 0.000000e+00 : f32
    %30 = vector.broadcast %cst_11 : f32 to vector<2x18x32x128xf32>
    %c0_12 = arith.constant 0 : index
    %c0_13 = arith.constant 0 : index
    %c0_14 = arith.constant 0 : index
    %c0_15 = arith.constant 0 : index
    %31 = vector.load %arg6[%c0_12, %c0_13, %c0_14, %c0_15] : memref<2x18x32x128xf32, #tpu.memory_space<vmem>>, vector<2x18x32x128xf32>
    tpu.vector_store %arg6[%c0_12, %c0_13, %c0_14, %c0_15], %30 {strides = array<i32>} : memref<2x18x32x128xf32, #tpu.memory_space<vmem>>, vector<2x18x32x128xf32>,
    %32 = vector.shape_cast %29 : vector<512x128xf32> to vector<2x16x16x128xf32>
    %c0_16 = arith.constant 0 : index
    %c1 = arith.constant 1 : index
    %c8 = arith.constant 8 : index
    %c0_17 = arith.constant 0 : index
    %33 = vector.load %arg6[%c0_16, %c1, %c8, %c0_17] : memref<2x18x32x128xf32, #tpu.memory_space<vmem>>, vector<2x16x16x128xf32>
    tpu.vector_store %arg6[%c0_16, %c1, %c8, %c0_17], %32 {strides = array<i32>} : memref<2x18x32x128xf32, #tpu.memory_space<vmem>>, vector<2x16x16x128xf32>,
    %cst_18 = arith.constant 0.000000e+00 : f32
    %34 = vector.broadcast %cst_18 : f32 to vector<512x128xf32>
    %c0_19 = arith.constant 0 : index
    %c0_20 = arith.constant 0 : index
    %35 = vector.load %arg7[%c0_19, %c0_20] : memref<512x128xf32, #tpu.memory_space<vmem>>, vector<512x128xf32>
    tpu.vector_store %arg7[%c0_19, %c0_20], %34 {strides = array<i32>} : memref<512x128xf32, #tpu.memory_space<vmem>>, vector<512x128xf32>,
    %c0_21 = arith.constant 0 : index
    %c0_22 = arith.constant 0 : index
    %c7 = arith.constant 7 : index
    %c0_23 = arith.constant 0 : index
    %36 = vector.load %arg6[%c0_21, %c0_22, %c7, %c0_23] : memref<2x18x32x128xf32, #tpu.memory_space<vmem>>, vector<2x16x16x128xf32>
    %37 = vector.shape_cast %36 : vector<2x16x16x128xf32> to vector<512x128xf32>
    %c0_24 = arith.constant 0 : index
    %c0_25 = arith.constant 0 : index
    %38 = vector.load %arg7[%c0_24, %c0_25] : memref<512x128xf32, #tpu.memory_space<vmem>>, vector<512x128xf32>
    %c0_26 = arith.constant 0 : index
    %c0_27 = arith.constant 0 : index
    %c0_28 = arith.constant 0 : index
    %39 = vector.load %arg2[%c0_26, %c0_27, %c0_28] : memref<9x128x128xf32, #tpu.memory_space<vmem>>, vector<1x128x128xf32>
    %40 = vector.shape_cast %39 : vector<1x128x128xf32> to vector<128x128xf32>
    %cst_29 = arith.constant dense<0.000000e+00> : vector<512x128xf32>
    %41 = tpu.matmul %37, %40, %cst_29 {dimension_numbers = #tpu.dot_dimension_numbers<[1], [0], [0], [1], [0, 0, 1, 1], [], []>} : vector<512x128xf32>, vector<128x128xf32>, vector<512x128xf32> -> vector<512x128xf32>
    %42 = arith.addf %38, %41 : vector<512x128xf32>
    %c0_30 = arith.constant 0 : index
    %c0_31 = arith.constant 0 : index
    %43 = vector.load %arg7[%c0_30, %c0_31] : memref<512x128xf32, #tpu.memory_space<vmem>>, vector<512x128xf32>
    tpu.vector_store %arg7[%c0_30, %c0_31], %42 {strides = array<i32>} : memref<512x128xf32, #tpu.memory_space<vmem>>, vector<512x128xf32>,
    %c0_32 = arith.constant 0 : index
    %c0_33 = arith.constant 0 : index
    %c8_34 = arith.constant 8 : index
    %c0_35 = arith.constant 0 : index
    %44 = vector.load %arg6[%c0_32, %c0_33, %c8_34, %c0_35] : memref<2x18x32x128xf32, #tpu.memory_space<vmem>>, vector<2x16x16x128xf32>
    %45 = vector.shape_cast %44 : vector<2x16x16x128xf32> to vector<512x128xf32>
    %c0_36 = arith.constant 0 : index
    %c0_37 = arith.constant 0 : index
    %46 = vector.load %arg7[%c0_36, %c0_37] : memref<512x128xf32, #tpu.memory_space<vmem>>, vector<512x128xf32>
    %c1_38 = arith.constant 1 : index
    %c0_39 = arith.constant 0 : index
    %c0_40 = arith.constant 0 : index
    %47 = vector.load %arg2[%c1_38, %c0_39, %c0_40] : memref<9x128x128xf32, #tpu.memory_space<vmem>>, vector<1x128x128xf32>
    %48 = vector.shape_cast %47 : vector<1x128x128xf32> to vector<128x128xf32>
    %cst_41 = arith.constant dense<0.000000e+00> : vector<512x128xf32>
    %49 = tpu.matmul %45, %48, %cst_41 {dimension_numbers = #tpu.dot_dimension_numbers<[1], [0], [0], [1], [0, 0, 1, 1], [], []>} : vector<512x128xf32>, vector<128x128xf32>, vector<512x128xf32> -> vector<512x128xf32>
    %50 = arith.addf %46, %49 : vector<512x128xf32>
    %c0_42 = arith.constant 0 : index
    %c0_43 = arith.constant 0 : index
    %51 = vector.load %arg7[%c0_42, %c0_43] : memref<512x128xf32, #tpu.memory_space<vmem>>, vector<512x128xf32>
    tpu.vector_store %arg7[%c0_42, %c0_43], %50 {strides = array<i32>} : memref<512x128xf32, #tpu.memory_space<vmem>>, vector<512x128xf32>,
    %c0_44 = arith.constant 0 : index
    %c0_45 = arith.constant 0 : index
    %c9 = arith.constant 9 : index
    %c0_46 = arith.constant 0 : index
    %52 = vector.load %arg6[%c0_44, %c0_45, %c9, %c0_46] : memref<2x18x32x128xf32, #tpu.memory_space<vmem>>, vector<2x16x16x128xf32>
    %53 = vector.shape_cast %52 : vector<2x16x16x128xf32> to vector<512x128xf32>
    %c0_47 = arith.constant 0 : index
    %c0_48 = arith.constant 0 : index
    %54 = vector.load %arg7[%c0_47, %c0_48] : memref<512x128xf32, #tpu.memory_space<vmem>>, vector<512x128xf32>
    %c2 = arith.constant 2 : index
    %c0_49 = arith.constant 0 : index
    %c0_50 = arith.constant 0 : index
    %55 = vector.load %arg2[%c2, %c0_49, %c0_50] : memref<9x128x128xf32, #tpu.memory_space<vmem>>, vector<1x128x128xf32>
    %56 = vector.shape_cast %55 : vector<1x128x128xf32> to vector<128x128xf32>
    %cst_51 = arith.constant dense<0.000000e+00> : vector<512x128xf32>
    %57 = tpu.matmul %53, %56, %cst_51 {dimension_numbers = #tpu.dot_dimension_numbers<[1], [0], [0], [1], [0, 0, 1, 1], [], []>} : vector<512x128xf32>, vector<128x128xf32>, vector<512x128xf32> -> vector<512x128xf32>
    %58 = arith.addf %54, %57 : vector<512x128xf32>
    %c0_52 = arith.constant 0 : index
    %c0_53 = arith.constant 0 : index
    %59 = vector.load %arg7[%c0_52, %c0_53] : memref<512x128xf32, #tpu.memory_space<vmem>>, vector<512x128xf32>
    tpu.vector_store %arg7[%c0_52, %c0_53], %58 {strides = array<i32>} : memref<512x128xf32, #tpu.memory_space<vmem>>, vector<512x128xf32>,
    %c0_54 = arith.constant 0 : index
    %c1_55 = arith.constant 1 : index
    %c7_56 = arith.constant 7 : index
    %c0_57 = arith.constant 0 : index
    %60 = vector.load %arg6[%c0_54, %c1_55, %c7_56, %c0_57] : memref<2x18x32x128xf32, #tpu.memory_space<vmem>>, vector<2x16x16x128xf32>
    %61 = vector.shape_cast %60 : vector<2x16x16x128xf32> to vector<512x128xf32>
    %c0_58 = arith.constant 0 : index
    %c0_59 = arith.constant 0 : index
    %62 = vector.load %arg7[%c0_58, %c0_59] : memref<512x128xf32, #tpu.memory_space<vmem>>, vector<512x128xf32>
    %c3 = arith.constant 3 : index
    %c0_60 = arith.constant 0 : index
    %c0_61 = arith.constant 0 : index
    %63 = vector.load %arg2[%c3, %c0_60, %c0_61] : memref<9x128x128xf32, #tpu.memory_space<vmem>>, vector<1x128x128xf32>
    %64 = vector.shape_cast %63 : vector<1x128x128xf32> to vector<128x128xf32>
    %cst_62 = arith.constant dense<0.000000e+00> : vector<512x128xf32>
    %65 = tpu.matmul %61, %64, %cst_62 {dimension_numbers = #tpu.dot_dimension_numbers<[1], [0], [0], [1], [0, 0, 1, 1], [], []>} : vector<512x128xf32>, vector<128x128xf32>, vector<512x128xf32> -> vector<512x128xf32>
    %66 = arith.addf %62, %65 : vector<512x128xf32>
    %c0_63 = arith.constant 0 : index
    %c0_64 = arith.constant 0 : index
    %67 = vector.load %arg7[%c0_63, %c0_64] : memref<512x128xf32, #tpu.memory_space<vmem>>, vector<512x128xf32>
    tpu.vector_store %arg7[%c0_63, %c0_64], %66 {strides = array<i32>} : memref<512x128xf32, #tpu.memory_space<vmem>>, vector<512x128xf32>,
    %c0_65 = arith.constant 0 : index
    %c1_66 = arith.constant 1 : index
    %c8_67 = arith.constant 8 : index
    %c0_68 = arith.constant 0 : index
    %68 = vector.load %arg6[%c0_65, %c1_66, %c8_67, %c0_68] : memref<2x18x32x128xf32, #tpu.memory_space<vmem>>, vector<2x16x16x128xf32>
    %69 = vector.shape_cast %68 : vector<2x16x16x128xf32> to vector<512x128xf32>
    %c0_69 = arith.constant 0 : index
    %c0_70 = arith.constant 0 : index
    %70 = vector.load %arg7[%c0_69, %c0_70] : memref<512x128xf32, #tpu.memory_space<vmem>>, vector<512x128xf32>
    %c4 = arith.constant 4 : index
    %c0_71 = arith.constant 0 : index
    %c0_72 = arith.constant 0 : index
    %71 = vector.load %arg2[%c4, %c0_71, %c0_72] : memref<9x128x128xf32, #tpu.memory_space<vmem>>, vector<1x128x128xf32>
    %72 = vector.shape_cast %71 : vector<1x128x128xf32> to vector<128x128xf32>
    %cst_73 = arith.constant dense<0.000000e+00> : vector<512x128xf32>
    %73 = tpu.matmul %69, %72, %cst_73 {dimension_numbers = #tpu.dot_dimension_numbers<[1], [0], [0], [1], [0, 0, 1, 1], [], []>} : vector<512x128xf32>, vector<128x128xf32>, vector<512x128xf32> -> vector<512x128xf32>
    %74 = arith.addf %70, %73 : vector<512x128xf32>
    %c0_74 = arith.constant 0 : index
    %c0_75 = arith.constant 0 : index
    %75 = vector.load %arg7[%c0_74, %c0_75] : memref<512x128xf32, #tpu.memory_space<vmem>>, vector<512x128xf32>
    tpu.vector_store %arg7[%c0_74, %c0_75], %74 {strides = array<i32>} : memref<512x128xf32, #tpu.memory_space<vmem>>, vector<512x128xf32>,
    %c0_76 = arith.constant 0 : index
    %c1_77 = arith.constant 1 : index
    %c9_78 = arith.constant 9 : index
    %c0_79 = arith.constant 0 : index
    %76 = vector.load %arg6[%c0_76, %c1_77, %c9_78, %c0_79] : memref<2x18x32x128xf32, #tpu.memory_space<vmem>>, vector<2x16x16x128xf32>
    %77 = vector.shape_cast %76 : vector<2x16x16x128xf32> to vector<512x128xf32>
    %c0_80 = arith.constant 0 : index
    %c0_81 = arith.constant 0 : index
    %78 = vector.load %arg7[%c0_80, %c0_81] : memref<512x128xf32, #tpu.memory_space<vmem>>, vector<512x128xf32>
    %c5 = arith.constant 5 : index
    %c0_82 = arith.constant 0 : index
    %c0_83 = arith.constant 0 : index
    %79 = vector.load %arg2[%c5, %c0_82, %c0_83] : memref<9x128x128xf32, #tpu.memory_space<vmem>>, vector<1x128x128xf32>
    %80 = vector.shape_cast %79 : vector<1x128x128xf32> to vector<128x128xf32>
    %cst_84 = arith.constant dense<0.000000e+00> : vector<512x128xf32>
    %81 = tpu.matmul %77, %80, %cst_84 {dimension_numbers = #tpu.dot_dimension_numbers<[1], [0], [0], [1], [0, 0, 1, 1], [], []>} : vector<512x128xf32>, vector<128x128xf32>, vector<512x128xf32> -> vector<512x128xf32>
    %82 = arith.addf %78, %81 : vector<512x128xf32>
    %c0_85 = arith.constant 0 : index
    %c0_86 = arith.constant 0 : index
    %83 = vector.load %arg7[%c0_85, %c0_86] : memref<512x128xf32, #tpu.memory_space<vmem>>, vector<512x128xf32>
    tpu.vector_store %arg7[%c0_85, %c0_86], %82 {strides = array<i32>} : memref<512x128xf32, #tpu.memory_space<vmem>>, vector<512x128xf32>,
    %c0_87 = arith.constant 0 : index
    %c2_88 = arith.constant 2 : index
    %c7_89 = arith.constant 7 : index
    %c0_90 = arith.constant 0 : index
    %84 = vector.load %arg6[%c0_87, %c2_88, %c7_89, %c0_90] : memref<2x18x32x128xf32, #tpu.memory_space<vmem>>, vector<2x16x16x128xf32>
    %85 = vector.shape_cast %84 : vector<2x16x16x128xf32> to vector<512x128xf32>
    %c0_91 = arith.constant 0 : index
    %c0_92 = arith.constant 0 : index
    %86 = vector.load %arg7[%c0_91, %c0_92] : memref<512x128xf32, #tpu.memory_space<vmem>>, vector<512x128xf32>
    %c6 = arith.constant 6 : index
    %c0_93 = arith.constant 0 : index
    %c0_94 = arith.constant 0 : index
    %87 = vector.load %arg2[%c6, %c0_93, %c0_94] : memref<9x128x128xf32, #tpu.memory_space<vmem>>, vector<1x128x128xf32>
    %88 = vector.shape_cast %87 : vector<1x128x128xf32> to vector<128x128xf32>
    %cst_95 = arith.constant dense<0.000000e+00> : vector<512x128xf32>
    %89 = tpu.matmul %85, %88, %cst_95 {dimension_numbers = #tpu.dot_dimension_numbers<[1], [0], [0], [1], [0, 0, 1, 1], [], []>} : vector<512x128xf32>, vector<128x128xf32>, vector<512x128xf32> -> vector<512x128xf32>
    %90 = arith.addf %86, %89 : vector<512x128xf32>
    %c0_96 = arith.constant 0 : index
    %c0_97 = arith.constant 0 : index
    %91 = vector.load %arg7[%c0_96, %c0_97] : memref<512x128xf32, #tpu.memory_space<vmem>>, vector<512x128xf32>
    tpu.vector_store %arg7[%c0_96, %c0_97], %90 {strides = array<i32>} : memref<512x128xf32, #tpu.memory_space<vmem>>, vector<512x128xf32>,
    %c0_98 = arith.constant 0 : index
    %c2_99 = arith.constant 2 : index
    %c8_100 = arith.constant 8 : index
    %c0_101 = arith.constant 0 : index
    %92 = vector.load %arg6[%c0_98, %c2_99, %c8_100, %c0_101] : memref<2x18x32x128xf32, #tpu.memory_space<vmem>>, vector<2x16x16x128xf32>
    %93 = vector.shape_cast %92 : vector<2x16x16x128xf32> to vector<512x128xf32>
    %c0_102 = arith.constant 0 : index
    %c0_103 = arith.constant 0 : index
    %94 = vector.load %arg7[%c0_102, %c0_103] : memref<512x128xf32, #tpu.memory_space<vmem>>, vector<512x128xf32>
    %c7_104 = arith.constant 7 : index
    %c0_105 = arith.constant 0 : index
    %c0_106 = arith.constant 0 : index
    %95 = vector.load %arg2[%c7_104, %c0_105, %c0_106] : memref<9x128x128xf32, #tpu.memory_space<vmem>>, vector<1x128x128xf32>
    %96 = vector.shape_cast %95 : vector<1x128x128xf32> to vector<128x128xf32>
    %cst_107 = arith.constant dense<0.000000e+00> : vector<512x128xf32>
    %97 = tpu.matmul %93, %96, %cst_107 {dimension_numbers = #tpu.dot_dimension_numbers<[1], [0], [0], [1], [0, 0, 1, 1], [], []>} : vector<512x128xf32>, vector<128x128xf32>, vector<512x128xf32> -> vector<512x128xf32>
    %98 = arith.addf %94, %97 : vector<512x128xf32>
    %c0_108 = arith.constant 0 : index
    %c0_109 = arith.constant 0 : index
    %99 = vector.load %arg7[%c0_108, %c0_109] : memref<512x128xf32, #tpu.memory_space<vmem>>, vector<512x128xf32>
    tpu.vector_store %arg7[%c0_108, %c0_109], %98 {strides = array<i32>} : memref<512x128xf32, #tpu.memory_space<vmem>>, vector<512x128xf32>,
    %c0_110 = arith.constant 0 : index
    %c2_111 = arith.constant 2 : index
    %c9_112 = arith.constant 9 : index
    %c0_113 = arith.constant 0 : index
    %100 = vector.load %arg6[%c0_110, %c2_111, %c9_112, %c0_113] : memref<2x18x32x128xf32, #tpu.memory_space<vmem>>, vector<2x16x16x128xf32>
    %101 = vector.shape_cast %100 : vector<2x16x16x128xf32> to vector<512x128xf32>
    %c0_114 = arith.constant 0 : index
    %c0_115 = arith.constant 0 : index
    %102 = vector.load %arg7[%c0_114, %c0_115] : memref<512x128xf32, #tpu.memory_space<vmem>>, vector<512x128xf32>
    %c8_116 = arith.constant 8 : index
    %c0_117 = arith.constant 0 : index
    %c0_118 = arith.constant 0 : index
    %103 = vector.load %arg2[%c8_116, %c0_117, %c0_118] : memref<9x128x128xf32, #tpu.memory_space<vmem>>, vector<1x128x128xf32>
    %104 = vector.shape_cast %103 : vector<1x128x128xf32> to vector<128x128xf32>
    %cst_119 = arith.constant dense<0.000000e+00> : vector<512x128xf32>
    %105 = tpu.matmul %101, %104, %cst_119 {dimension_numbers = #tpu.dot_dimension_numbers<[1], [0], [0], [1], [0, 0, 1, 1], [], []>} : vector<512x128xf32>, vector<128x128xf32>, vector<512x128xf32> -> vector<512x128xf32>
    %106 = arith.addf %102, %105 : vector<512x128xf32>
    %c0_120 = arith.constant 0 : index
    %c0_121 = arith.constant 0 : index
    %107 = vector.load %arg7[%c0_120, %c0_121] : memref<512x128xf32, #tpu.memory_space<vmem>>, vector<512x128xf32>
    tpu.vector_store %arg7[%c0_120, %c0_121], %106 {strides = array<i32>} : memref<512x128xf32, #tpu.memory_space<vmem>>, vector<512x128xf32>,
    %c0_122 = arith.constant 0 : index
    %c0_123 = arith.constant 0 : index
    %108 = vector.load %arg7[%c0_122, %c0_123] : memref<512x128xf32, #tpu.memory_space<vmem>>, vector<512x128xf32>
    %109 = vector.extract_strided_slice %0 {offsets = [2, 0], sizes = [1, 128], strides = [1, 1]} : vector<8x128xf32> to vector<1x128xf32>
    %110 = vector.extract_strided_slice %0 {offsets = [3, 0], sizes = [1, 128], strides = [1, 1]} : vector<8x128xf32> to vector<1x128xf32>
    %cst_124 = arith.constant dense<0.000000e+00> : vector<128xf32>
    %111 = vector.multi_reduction <add>, %108, %cst_124 [0] : vector<512x128xf32> to vector<128xf32>
    %112 = vector.shape_cast %111 : vector<128xf32> to vector<1x128xf32>
    %cst_125 = arith.constant 5.120000e+02 : f32
    %113 = vector.broadcast %cst_125 : f32 to vector<1x128xf32>
    %114 = arith.divf %112, %113 : vector<1x128xf32>
    %115 = vector.broadcast %114 : vector<1x128xf32> to vector<512x128xf32>
    %116 = arith.subf %108, %115 : vector<512x128xf32>
    %117 = arith.mulf %116, %116 : vector<512x128xf32>
    %cst_126 = arith.constant dense<0.000000e+00> : vector<128xf32>
    %118 = vector.multi_reduction <add>, %117, %cst_126 [0] : vector<512x128xf32> to vector<128xf32>
    %119 = vector.shape_cast %118 : vector<128xf32> to vector<1x128xf32>
    %cst_127 = arith.constant 5.120000e+02 : f32
    %120 = vector.broadcast %cst_127 : f32 to vector<1x128xf32>
    %121 = arith.divf %119, %120 : vector<1x128xf32>
    %122 = vector.broadcast %114 : vector<1x128xf32> to vector<512x128xf32>
    %123 = arith.subf %108, %122 : vector<512x128xf32>
    %cst_128 = arith.constant 9.99999974E-6 : f32
    %124 = vector.broadcast %cst_128 : f32 to vector<1x128xf32>
    %125 = arith.addf %121, %124 : vector<1x128xf32>
    %126 = math.rsqrt %125 : vector<1x128xf32>
    %127 = vector.broadcast %126 : vector<1x128xf32> to vector<512x128xf32>
    %128 = arith.mulf %123, %127 : vector<512x128xf32>
    %129 = vector.broadcast %109 : vector<1x128xf32> to vector<512x128xf32>
    %130 = arith.mulf %128, %129 : vector<512x128xf32>
    %131 = vector.broadcast %110 : vector<1x128xf32> to vector<512x128xf32>
    %132 = arith.addf %130, %131 : vector<512x128xf32>
    %cst_129 = arith.constant 0.000000e+00 : f32
    %133 = vector.broadcast %cst_129 : f32 to vector<512x128xf32>
    %134 = arith.maximumf %132, %133 : vector<512x128xf32>
    %c0_130 = arith.constant 0 : index
    %c0_131 = arith.constant 0 : index
    %135 = vector.load %arg3[%c0_130, %c0_131] : memref<128x128xf32, #tpu.memory_space<vmem>>, vector<128x128xf32>
    %cst_132 = arith.constant dense<0.000000e+00> : vector<512x128xf32>
    %136 = tpu.matmul %134, %135, %cst_132 {dimension_numbers = #tpu.dot_dimension_numbers<[1], [0], [0], [1], [0, 0, 1, 1], [], []>} : vector<512x128xf32>, vector<128x128xf32>, vector<512x128xf32> -> vector<512x128xf32>
    %137 = vector.extract_strided_slice %0 {offsets = [4, 0], sizes = [1, 128], strides = [1, 1]} : vector<8x128xf32> to vector<1x128xf32>
    %138 = vector.extract_strided_slice %0 {offsets = [5, 0], sizes = [1, 128], strides = [1, 1]} : vector<8x128xf32> to vector<1x128xf32>
    %cst_133 = arith.constant dense<0.000000e+00> : vector<128xf32>
    %139 = vector.multi_reduction <add>, %136, %cst_133 [0] : vector<512x128xf32> to vector<128xf32>
    %140 = vector.shape_cast %139 : vector<128xf32> to vector<1x128xf32>
    %cst_134 = arith.constant 5.120000e+02 : f32
    %141 = vector.broadcast %cst_134 : f32 to vector<1x128xf32>
    %142 = arith.divf %140, %141 : vector<1x128xf32>
    %143 = vector.broadcast %142 : vector<1x128xf32> to vector<512x128xf32>
    %144 = arith.subf %136, %143 : vector<512x128xf32>
    %145 = arith.mulf %144, %144 : vector<512x128xf32>
    %cst_135 = arith.constant dense<0.000000e+00> : vector<128xf32>
    %146 = vector.multi_reduction <add>, %145, %cst_135 [0] : vector<512x128xf32> to vector<128xf32>
    %147 = vector.shape_cast %146 : vector<128xf32> to vector<1x128xf32>
    %cst_136 = arith.constant 5.120000e+02 : f32
    %148 = vector.broadcast %cst_136 : f32 to vector<1x128xf32>
    %149 = arith.divf %147, %148 : vector<1x128xf32>
    %150 = vector.broadcast %142 : vector<1x128xf32> to vector<512x128xf32>
    %151 = arith.subf %136, %150 : vector<512x128xf32>
    %cst_137 = arith.constant 9.99999974E-6 : f32
    %152 = vector.broadcast %cst_137 : f32 to vector<1x128xf32>
    %153 = arith.addf %149, %152 : vector<1x128xf32>
    %154 = math.rsqrt %153 : vector<1x128xf32>
    %155 = vector.broadcast %154 : vector<1x128xf32> to vector<512x128xf32>
    %156 = arith.mulf %151, %155 : vector<512x128xf32>
    %157 = vector.broadcast %137 : vector<1x128xf32> to vector<512x128xf32>
    %158 = arith.mulf %156, %157 : vector<512x128xf32>
    %159 = vector.broadcast %138 : vector<1x128xf32> to vector<512x128xf32>
    %160 = arith.addf %158, %159 : vector<512x128xf32>
    %c0_138 = arith.constant 0 : index
    %c0_139 = arith.constant 0 : index
    %161 = vector.load %arg0[%c0_138, %c0_139] : memref<512x128xf32, #tpu.memory_space<vmem>>, vector<512x128xf32>
    %162 = arith.addf %160, %161 : vector<512x128xf32>
    %cst_140 = arith.constant 0.000000e+00 : f32
    %163 = vector.broadcast %cst_140 : f32 to vector<512x128xf32>
    %164 = arith.maximumf %162, %163 : vector<512x128xf32>
    %c0_141 = arith.constant 0 : index
    %c0_142 = arith.constant 0 : index
    %165 = vector.load %arg5[%c0_141, %c0_142] : memref<512x128xf32, #tpu.memory_space<vmem>>, vector<512x128xf32>
    tpu.vector_store %arg5[%c0_141, %c0_142], %164 {strides = array<i32>} : memref<512x128xf32, #tpu.memory_space<vmem>>, vector<512x128xf32>,
    return
  }
}

</mosaic_0001>

<llo_original>
// kernel: residual_block_forward.1
$region0: #{residual_block_forward.1}
  #allocation0 [shape = 'u32[]', space=smem, size = 0x4, offset = 0x4, fixed_abs, tag = 'smem constant byte address 0x4 - core index']
  #allocation1 [shape = 'u32[144,128]{1,0:T(1,128)}', space=vmem, size = 0x12000, scoped, tag = 'internal scratch']
  #allocation2 [shape = 'f32[2,18,32,128]{3,2,1,0:T(8,128)}', space=vmem, size = 0x90000, scoped, tag = 'scratch operand']
  #allocation3 [shape = 'f32[512,128]{1,0:T(8,128)}', space=vmem, size = 0x40000, scoped, tag = 'scratch operand']
  %s0 = inlined_call_operand.vmem [shape: f32[512,128], index: 0, kind: input, shape index: {}]
  %s1 = inlined_call_operand.vmem [shape: f32[128,128], index: 1, kind: input, shape index: {}]
  %s2 = inlined_call_operand.vmem [shape: f32[9,128,128], index: 2, kind: input, shape index: {}]
  %s3 = inlined_call_operand.vmem [shape: f32[128,128], index: 3, kind: input, shape index: {}]
  %s4 = inlined_call_operand.vmem [shape: f32[8,128], index: 4, kind: input, shape index: {}]
  %s5 = inlined_call_operand.vmem [shape: f32[512,128], index: 5, kind: output, shape index: {}]
  %s6 = sld [smem:[#allocation0]]
  $region30: #{residual_block_forward.1} parent=0
    _
  %s8 = ssub.s32 1, %s6
  %s9 = scalar_select 0, %s8, %s6
  // Predicated region
  $region2: #{residual_block_forward.1} parent=0 // pred_check
    _
  $region3: #{residual_block_forward.1} parent=0 // pred_check_branch
    %11 = sbr.rel (0) target = $region5
  $region4: #{residual_block_forward.1} parent=0 // pred_region
    _
  $region5: #{residual_block_forward.1} parent=0 // pred_fallthru
    _
  // Predicated region
  $region6: #{residual_block_forward.1} parent=0 // pred_check
    _
  $region7: #{residual_block_forward.1} parent=0 // pred_check_branch
    %13 = sbr.rel (0) target = $region9
  $region8: #{residual_block_forward.1} parent=0 // pred_region
    _
  $region9: #{residual_block_forward.1} parent=0 // pred_fallthru
    _
  // Predicated region
  $region10: #{residual_block_forward.1} parent=0 // pred_check
    _
  $region11: #{residual_block_forward.1} parent=0 // pred_check_branch
    %15 = sbr.rel (0) target = $region13
  $region12: #{residual_block_forward.1} parent=0 // pred_region
    _
  $region13: #{residual_block_forward.1} parent=0 // pred_fallthru
    _
  // Predicated region
  $region14: #{residual_block_forward.1} parent=0 // pred_check
    _
  $region15: #{residual_block_forward.1} parent=0 // pred_check_branch
    %17 = sbr.rel (0) target = $region17
  $region16: #{residual_block_forward.1} parent=0 // pred_region
    _
  $region17: #{residual_block_forward.1} parent=0 // pred_fallthru
    _
  // Predicated region
  $region18: #{residual_block_forward.1} parent=0 // pred_check
    _
  $region19: #{residual_block_forward.1} parent=0 // pred_check_branch
    %19 = sbr.rel (0) target = $region21
  $region20: #{residual_block_forward.1} parent=0 // pred_region
    _
  $region21: #{residual_block_forward.1} parent=0 // pred_fallthru
    _
  %v20 = vld [vmem:[%s4] sm:$0xff]
  %v21 = vld [vmem:[%s0] sm:$0xff]
  %v22 = vld [vmem:[%s0 + $0x8] sm:$0xff]
  %v23 = vld [vmem:[%s0 + $0x10] sm:$0xff]
  %v24 = vld [vmem:[%s0 + $0x18] sm:$0xff]
  %v25 = vld [vmem:[%s0 + $0x20] sm:$0xff]
  %v26 = vld [vmem:[%s0 + $0x28] sm:$0xff]
  %v27 = vld [vmem:[%s0 + $0x30] sm:$0xff]
  %v28 = vld [vmem:[%s0 + $0x38] sm:$0xff]
  %v29 = vld [vmem:[%s0 + $0x40] sm:$0xff]
  %v30 = vld [vmem:[%s0 + $0x48] sm:$0xff]
  %v31 = vld [vmem:[%s0 + $0x50] sm:$0xff]
  %v32 = vld [vmem:[%s0 + $0x58] sm:$0xff]
  %v33 = vld [vmem:[%s0 + $0x60] sm:$0xff]
  %v34 = vld [vmem:[%s0 + $0x68] sm:$0xff]
  %v35 = vld [vmem:[%s0 + $0x70] sm:$0xff]
  %v36 = vld [vmem:[%s0 + $0x78] sm:$0xff]
  %v37 = vld [vmem:[%s0 + $0x80] sm:$0xff]
  %v38 = vld [vmem:[%s0 + $0x88] sm:$0xff]
  %v39 = vld [vmem:[%s0 + $0x90] sm:$0xff]
  %v40 = vld [vmem:[%s0 + $0x98] sm:$0xff]
  %v41 = vld [vmem:[%s0 + $0xa0] sm:$0xff]
  %v42 = vld [vmem:[%s0 + $0xa8] sm:$0xff]
  %v43 = vld [vmem:[%s0 + $0xb0] sm:$0xff]
  %v44 = vld [vmem:[%s0 + $0xb8] sm:$0xff]
  %v45 = vld [vmem:[%s0 + $0xc0] sm:$0xff]
  %v46 = vld [vmem:[%s0 + $0xc8] sm:$0xff]
  %v47 = vld [vmem:[%s0 + $0xd0] sm:$0xff]
  %v48 = vld [vmem:[%s0 + $0xd8] sm:$0xff]
  %v49 = vld [vmem:[%s0 + $0xe0] sm:$0xff]
  %v50 = vld [vmem:[%s0 + $0xe8] sm:$0xff]
  %v51 = vld [vmem:[%s0 + $0xf0] sm:$0xff]
  %v52 = vld [vmem:[%s0 + $0xf8] sm:$0xff]
  %v53 = vld [vmem:[%s0 + $0x100] sm:$0xff]
  %v54 = vld [vmem:[%s0 + $0x108] sm:$0xff]
  %v55 = vld [vmem:[%s0 + $0x110] sm:$0xff]
  %v56 = vld [vmem:[%s0 + $0x118] sm:$0xff]
  %v57 = vld [vmem:[%s0 + $0x120] sm:$0xff]
  %v58 = vld [vmem:[%s0 + $0x128] sm:$0xff]
  %v59 = vld [vmem:[%s0 + $0x130] sm:$0xff]
  %v60 = vld [vmem:[%s0 + $0x138] sm:$0xff]
  %v61 = vld [vmem:[%s0 + $0x140] sm:$0xff]
  %v62 = vld [vmem:[%s0 + $0x148] sm:$0xff]
  %v63 = vld [vmem:[%s0 + $0x150] sm:$0xff]
  %v64 = vld [vmem:[%s0 + $0x158] sm:$0xff]
  %v65 = vld [vmem:[%s0 + $0x160] sm:$0xff]
  %v66 = vld [vmem:[%s0 + $0x168] sm:$0xff]
  %v67 = vld [vmem:[%s0 + $0x170] sm:$0xff]
  %v68 = vld [vmem:[%s0 + $0x178] sm:$0xff]
  %v69 = vld [vmem:[%s0 + $0x180] sm:$0xff]
  %v70 = vld [vmem:[%s0 + $0x188] sm:$0xff]
  %v71 = vld [vmem:[%s0 + $0x190] sm:$0xff]
  %v72 = vld [vmem:[%s0 + $0x198] sm:$0xff]
  %v73 = vld [vmem:[%s0 + $0x1a0] sm:$0xff]
  %v74 = vld [vmem:[%s0 + $0x1a8] sm:$0xff]
  %v75 = vld [vmem:[%s0 + $0x1b0] sm:$0xff]
  %v76 = vld [vmem:[%s0 + $0x1b8] sm:$0xff]
  %v77 = vld [vmem:[%s0 + $0x1c0] sm:$0xff]
  %v78 = vld [vmem:[%s0 + $0x1c8] sm:$0xff]
  %v79 = vld [vmem:[%s0 + $0x1d0] sm:$0xff]
  %v80 = vld [vmem:[%s0 + $0x1d8] sm:$0xff]
  %v81 = vld [vmem:[%s0 + $0x1e0] sm:$0xff]
  %v82 = vld [vmem:[%s0 + $0x1e8] sm:$0xff]
  %v83 = vld [vmem:[%s0 + $0x1f0] sm:$0xff]
  %v84 = vld [vmem:[%s0 + $0x1f8] sm:$0xff]
  %v85 = vld [vmem:[%s1] sm:$0xff]
  %v86 = vld [vmem:[%s1 + $0x8] sm:$0xff]
  %v87 = vld [vmem:[%s1 + $0x10] sm:$0xff]
  %v88 = vld [vmem:[%s1 + $0x18] sm:$0xff]
  %v89 = vld [vmem:[%s1 + $0x20] sm:$0xff]
  %v90 = vld [vmem:[%s1 + $0x28] sm:$0xff]
  %v91 = vld [vmem:[%s1 + $0x30] sm:$0xff]
  %v92 = vld [vmem:[%s1 + $0x38] sm:$0xff]
  %v93 = vld [vmem:[%s1 + $0x40] sm:$0xff]
  %v94 = vld [vmem:[%s1 + $0x48] sm:$0xff]
  %v95 = vld [vmem:[%s1 + $0x50] sm:$0xff]
  %v96 = vld [vmem:[%s1 + $0x58] sm:$0xff]
  %v97 = vld [vmem:[%s1 + $0x60] sm:$0xff]
  %v98 = vld [vmem:[%s1 + $0x68] sm:$0xff]
  %v99 = vld [vmem:[%s1 + $0x70] sm:$0xff]
  %v100 = vld [vmem:[%s1 + $0x78] sm:$0xff]
  %101 = vmatprep.subr.mxu0 0.0
  %102 = vmatpush1.msra.mxu0 %v100
  %103 = vmatprep.subr.mxu0 0.0
  %104 = vmatpush1.msra.mxu0 %v99
  %105 = vmatprep.subr.mxu0 0.0
  %106 = vmatpush1.msra.mxu0 %v98
  %107 = vmatprep.subr.mxu0 0.0
  %108 = vmatpush1.msra.mxu0 %v97
  %109 = vmatprep.subr.mxu0 0.0
  %110 = vmatpush1.msra.mxu0 %v96
  %111 = vmatprep.subr.mxu0 0.0
  %112 = vmatpush1.msra.mxu0 %v95
  %113 = vmatprep.subr.mxu0 0.0
  %114 = vmatpush1.msra.mxu0 %v94
  %115 = vmatprep.subr.mxu0 0.0
  %116 = vmatpush1.msra.mxu0 %v93
  %117 = vmatprep.subr.mxu0 0.0
  %118 = vmatpush1.msra.mxu0 %v92
  %119 = vmatprep.subr.mxu0 0.0
  %120 = vmatpush1.msra.mxu0 %v91
  %121 = vmatprep.subr.mxu0 0.0
  %122 = vmatpush1.msra.mxu0 %v90
  %123 = vmatprep.subr.mxu0 0.0
  %124 = vmatpush1.msra.mxu0 %v89
  %125 = vmatprep.subr.mxu0 0.0
  %126 = vmatpush1.msra.mxu0 %v88
  %127 = vmatprep.subr.mxu0 0.0
  %128 = vmatpush1.msra.mxu0 %v87
  %129 = vmatprep.subr.mxu0 0.0
  %130 = vmatpush1.msra.mxu0 %v86
  %131 = vmatprep.subr.mxu0 0.0
  %132 = vmatpush1.msra.mxu0 %v85
  %133 = vmatprep.subr.mxu0 0.0
  %134 = vmatpush2.msra.mxu0 0.0
  %135 = vmatprep.subr.mxu0 0.0
  %136 = vmatpush2.msra.mxu0 0.0
  %137 = vmatprep.subr.mxu0 0.0
  %138 = vmatpush2.msra.mxu0 0.0
  %139 = vmatprep.subr.mxu0 0.0
  %140 = vmatpush2.msra.mxu0 0.0
  %141 = vmatprep.subr.mxu0 0.0
  %142 = vmatpush2.msra.mxu0 0.0
  %143 = vmatprep.subr.mxu0 0.0
  %144 = vmatpush2.msra.mxu0 0.0
  %145 = vmatprep.subr.mxu0 0.0
  %146 = vmatpush2.msra.mxu0 0.0
  %147 = vmatprep.subr.mxu0 0.0
  %148 = vmatpush2.msra.mxu0 0.0
  %149 = vmatprep.subr.mxu0 0.0
  %150 = vmatpush2.msra.mxu0 0.0
  %151 = vmatprep.subr.mxu0 0.0
  %152 = vmatpush2.msra.mxu0 0.0
  %153 = vmatprep.subr.mxu0 0.0
  %154 = vmatpush2.msra.mxu0 0.0
  %155 = vmatprep.subr.mxu0 0.0
  %156 = vmatpush2.msra.mxu0 0.0
  %157 = vmatprep.subr.mxu0 0.0
  %158 = vmatpush2.msra.mxu0 0.0
  %159 = vmatprep.subr.mxu0 0.0
  %160 = vmatpush2.msra.mxu0 0.0
  %161 = vmatprep.subr.mxu0 0.0
  %162 = vmatpush2.msra.mxu0 0.0
  %163 = vmatprep.subr.mxu0 0.0
  %164 = vmatpush2.msra.mxu0 0.0
  %165 = vmatprep.mubr.f32.mxu0 0.0
  %166 = vmatmul.mubr.f32.gmra.mxu0 %v21
  %v167 = vpop.f32.mrf.mxu0
  %v168 = vadd.f32 0.0, %v167
  %v169 = vpop.f32.mrf.mxu0
  %170 = vmatprep.mubr.f32.mxu0 0.0
  %171 = vmatmul.mubr.f32.gmra.mxu0 %v22
  %v172 = vpop.f32.mrf.mxu0
  %v173 = vadd.f32 0.0, %v172
  %v174 = vpop.f32.mrf.mxu0
  %175 = vmatprep.mubr.f32.mxu0 0.0
  %176 = vmatmul.mubr.f32.gmra.mxu0 %v23
  %v177 = vpop.f32.mrf.mxu0
  %v178 = vadd.f32 0.0, %v177
  %v179 = vpop.f32.mrf.mxu0
  %180 = vmatprep.mubr.f32.mxu0 0.0
  %181 = vmatmul.mubr.f32.gmra.mxu0 %v24
  %v182 = vpop.f32.mrf.mxu0
  %v183 = vadd.f32 0.0, %v182
  %v184 = vpop.f32.mrf.mxu0
  %185 = vmatprep.mubr.f32.mxu0 0.0
  %186 = vmatmul.mubr.f32.gmra.mxu0 %v25
  %v187 = vpop.f32.mrf.mxu0
  %v188 = vadd.f32 0.0, %v187
  %v189 = vpop.f32.mrf.mxu0
  %190 = vmatprep.mubr.f32.mxu0 0.0
  %191 = vmatmul.mubr.f32.gmra.mxu0 %v26
  %v192 = vpop.f32.mrf.mxu0
  %v193 = vadd.f32 0.0, %v192
  %v194 = vpop.f32.mrf.mxu0
  %195 = vmatprep.mubr.f32.mxu0 0.0
  %196 = vmatmul.mubr.f32.gmra.mxu0 %v27
  %v197 = vpop.f32.mrf.mxu0
  %v198 = vadd.f32 0.0, %v197
  %v199 = vpop.f32.mrf.mxu0
  %200 = vmatprep.mubr.f32.mxu0 0.0
  %201 = vmatmul.mubr.f32.gmra.mxu0 %v28
  %v202 = vpop.f32.mrf.mxu0
  %v203 = vadd.f32 0.0, %v202
  %v204 = vpop.f32.mrf.mxu0
  %205 = vmatprep.mubr.f32.mxu0 0.0
  %206 = vmatmul.mubr.f32.gmra.mxu0 %v29
  %v207 = vpop.f32.mrf.mxu0
  %v208 = vadd.f32 0.0, %v207
  %v209 = vpop.f32.mrf.mxu0
  %210 = vmatprep.mubr.f32.mxu0 0.0
  %211 = vmatmul.mubr.f32.gmra.mxu0 %v30
  %v212 = vpop.f32.mrf.mxu0
  %v213 = vadd.f32 0.0, %v212
  %v214 = vpop.f32.mrf.mxu0
  %215 = vmatprep.mubr.f32.mxu0 0.0
  %216 = vmatmul.mubr.f32.gmra.mxu0 %v31
  %v217 = vpop.f32.mrf.mxu0
  %v218 = vadd.f32 0.0, %v217
  %v219 = vpop.f32.mrf.mxu0
  %220 = vmatprep.mubr.f32.mxu0 0.0
  %221 = vmatmul.mubr.f32.gmra.mxu0 %v32
  %v222 = vpop.f32.mrf.mxu0
  %v223 = vadd.f32 0.0, %v222
  %v224 = vpop.f32.mrf.mxu0
  %225 = vmatprep.mubr.f32.mxu0 0.0
  %226 = vmatmul.mubr.f32.gmra.mxu0 %v33
  %v227 = vpop.f32.mrf.mxu0
  %v228 = vadd.f32 0.0, %v227
  %v229 = vpop.f32.mrf.mxu0
  %230 = vmatprep.mubr.f32.mxu0 0.0
  %231 = vmatmul.mubr.f32.gmra.mxu0 %v34
  %v232 = vpop.f32.mrf.mxu0
  %v233 = vadd.f32 0.0, %v232
  %v234 = vpop.f32.mrf.mxu0
  %235 = vmatprep.mubr.f32.mxu0 0.0
  %236 = vmatmul.mubr.f32.gmra.mxu0 %v35
  %v237 = vpop.f32.mrf.mxu0
  %v238 = vadd.f32 0.0, %v237
  %v239 = vpop.f32.mrf.mxu0
  %240 = vmatprep.mubr.f32.mxu0 0.0
  %241 = vmatmul.mubr.f32.gmra.mxu0 %v36
  %v242 = vpop.f32.mrf.mxu0
  %v243 = vadd.f32 0.0, %v242
  %v244 = vpop.f32.mrf.mxu0
  %245 = vmatprep.mubr.f32.mxu0 0.0
  %246 = vmatmul.mubr.f32.gmra.mxu0 %v37
  %v247 = vpop.f32.mrf.mxu0
  %v248 = vadd.f32 0.0, %v247
  %v249 = vpop.f32.mrf.mxu0
  %250 = vmatprep.mubr.f32.mxu0 0.0
  %251 = vmatmul.mubr.f32.gmra.mxu0 %v38
  %v252 = vpop.f32.mrf.mxu0
  %v253 = vadd.f32 0.0, %v252
  %v254 = vpop.f32.mrf.mxu0
  %255 = vmatprep.mubr.f32.mxu0 0.0
  %256 = vmatmul.mubr.f32.gmra.mxu0 %v39
  %v257 = vpop.f32.mrf.mxu0
  %v258 = vadd.f32 0.0, %v257
  %v259 = vpop.f32.mrf.mxu0
  %260 = vmatprep.mubr.f32.mxu0 0.0
  %261 = vmatmul.mubr.f32.gmra.mxu0 %v40
  %v262 = vpop.f32.mrf.mxu0
  %v263 = vadd.f32 0.0, %v262
  %v264 = vpop.f32.mrf.mxu0
  %265 = vmatprep.mubr.f32.mxu0 0.0
  %266 = vmatmul.mubr.f32.gmra.mxu0 %v41
  %v267 = vpop.f32.mrf.mxu0
  %v268 = vadd.f32 0.0, %v267
  %v269 = vpop.f32.mrf.mxu0
  %270 = vmatprep.mubr.f32.mxu0 0.0
  %271 = vmatmul.mubr.f32.gmra.mxu0 %v42
  %v272 = vpop.f32.mrf.mxu0
  %v273 = vadd.f32 0.0, %v272
  %v274 = vpop.f32.mrf.mxu0
  %275 = vmatprep.mubr.f32.mxu0 0.0
  %276 = vmatmul.mubr.f32.gmra.mxu0 %v43
  %v277 = vpop.f32.mrf.mxu0
  %v278 = vadd.f32 0.0, %v277
  %v279 = vpop.f32.mrf.mxu0
  %280 = vmatprep.mubr.f32.mxu0 0.0
  %281 = vmatmul.mubr.f32.gmra.mxu0 %v44
  %v282 = vpop.f32.mrf.mxu0
  %v283 = vadd.f32 0.0, %v282
  %v284 = vpop.f32.mrf.mxu0
  %285 = vmatprep.mubr.f32.mxu0 0.0
  %286 = vmatmul.mubr.f32.gmra.mxu0 %v45
  %v287 = vpop.f32.mrf.mxu0
  %v288 = vadd.f32 0.0, %v287
  %v289 = vpop.f32.mrf.mxu0
  %290 = vmatprep.mubr.f32.mxu0 0.0
  %291 = vmatmul.mubr.f32.gmra.mxu0 %v46
  %v292 = vpop.f32.mrf.mxu0
  %v293 = vadd.f32 0.0, %v292
  %v294 = vpop.f32.mrf.mxu0
  %295 = vmatprep.mubr.f32.mxu0 0.0
  %296 = vmatmul.mubr.f32.gmra.mxu0 %v47
  %v297 = vpop.f32.mrf.mxu0
  %v298 = vadd.f32 0.0, %v297
  %v299 = vpop.f32.mrf.mxu0
  %300 = vmatprep.mubr.f32.mxu0 0.0
  %301 = vmatmul.mubr.f32.gmra.mxu0 %v48
  %v302 = vpop.f32.mrf.mxu0
  %v303 = vadd.f32 0.0, %v302
  %v304 = vpop.f32.mrf.mxu0
  %305 = vmatprep.mubr.f32.mxu0 0.0
  %306 = vmatmul.mubr.f32.gmra.mxu0 %v49
  %v307 = vpop.f32.mrf.mxu0
  %v308 = vadd.f32 0.0, %v307
  %v309 = vpop.f32.mrf.mxu0
  %310 = vmatprep.mubr.f32.mxu0 0.0
  %311 = vmatmul.mubr.f32.gmra.mxu0 %v50
  %v312 = vpop.f32.mrf.mxu0
  %v313 = vadd.f32 0.0, %v312
  %v314 = vpop.f32.mrf.mxu0
  %315 = vmatprep.mubr.f32.mxu0 0.0
  %316 = vmatmul.mubr.f32.gmra.mxu0 %v51
  %v317 = vpop.f32.mrf.mxu0
  %v318 = vadd.f32 0.0, %v317
  %v319 = vpop.f32.mrf.mxu0
  %320 = vmatprep.mubr.f32.mxu0 0.0
  %321 = vmatmul.mubr.f32.gmra.mxu0 %v52
  %v322 = vpop.f32.mrf.mxu0
  %v323 = vadd.f32 0.0, %v322
  %v324 = vpop.f32.mrf.mxu0
  %325 = vmatprep.mubr.f32.mxu0 0.0
  %326 = vmatmul.mubr.f32.gmra.mxu0 %v53
  %v327 = vpop.f32.mrf.mxu0
  %v328 = vadd.f32 0.0, %v327
  %v329 = vpop.f32.mrf.mxu0
  %330 = vmatprep.mubr.f32.mxu0 0.0
  %331 = vmatmul.mubr.f32.gmra.mxu0 %v54
  %v332 = vpop.f32.mrf.mxu0
  %v333 = vadd.f32 0.0, %v332
  %v334 = vpop.f32.mrf.mxu0
  %335 = vmatprep.mubr.f32.mxu0 0.0
  %336 = vmatmul.mubr.f32.gmra.mxu0 %v55
  %v337 = vpop.f32.mrf.mxu0
  %v338 = vadd.f32 0.0, %v337
  %v339 = vpop.f32.mrf.mxu0
  %340 = vmatprep.mubr.f32.mxu0 0.0
  %341 = vmatmul.mubr.f32.gmra.mxu0 %v56
  %v342 = vpop.f32.mrf.mxu0
  %v343 = vadd.f32 0.0, %v342
  %v344 = vpop.f32.mrf.mxu0
  %345 = vmatprep.mubr.f32.mxu0 0.0
  %346 = vmatmul.mubr.f32.gmra.mxu0 %v57
  %v347 = vpop.f32.mrf.mxu0
  %v348 = vadd.f32 0.0, %v347
  %v349 = vpop.f32.mrf.mxu0
  %350 = vmatprep.mubr.f32.mxu0 0.0
  %351 = vmatmul.mubr.f32.gmra.mxu0 %v58
  %v352 = vpop.f32.mrf.mxu0
  %v353 = vadd.f32 0.0, %v352
  %v354 = vpop.f32.mrf.mxu0
  %355 = vmatprep.mubr.f32.mxu0 0.0
  %356 = vmatmul.mubr.f32.gmra.mxu0 %v59
  %v357 = vpop.f32.mrf.mxu0
  %v358 = vadd.f32 0.0, %v357
  %v359 = vpop.f32.mrf.mxu0
  %360 = vmatprep.mubr.f32.mxu0 0.0
  %361 = vmatmul.mubr.f32.gmra.mxu0 %v60
  %v362 = vpop.f32.mrf.mxu0
  %v363 = vadd.f32 0.0, %v362
  %v364 = vpop.f32.mrf.mxu0
  %365 = vmatprep.mubr.f32.mxu0 0.0
  %366 = vmatmul.mubr.f32.gmra.mxu0 %v61
  %v367 = vpop.f32.mrf.mxu0
  %v368 = vadd.f32 0.0, %v367
  %v369 = vpop.f32.mrf.mxu0
  %370 = vmatprep.mubr.f32.mxu0 0.0
  %371 = vmatmul.mubr.f32.gmra.mxu0 %v62
  %v372 = vpop.f32.mrf.mxu0
  %v373 = vadd.f32 0.0, %v372
  %v374 = vpop.f32.mrf.mxu0
  %375 = vmatprep.mubr.f32.mxu0 0.0
  %376 = vmatmul.mubr.f32.gmra.mxu0 %v63
  %v377 = vpop.f32.mrf.mxu0
  %v378 = vadd.f32 0.0, %v377
  %v379 = vpop.f32.mrf.mxu0
  %380 = vmatprep.mubr.f32.mxu0 0.0
  %381 = vmatmul.mubr.f32.gmra.mxu0 %v64
  %v382 = vpop.f32.mrf.mxu0
  %v383 = vadd.f32 0.0, %v382
  %v384 = vpop.f32.mrf.mxu0
  %385 = vmatprep.mubr.f32.mxu0 0.0
  %386 = vmatmul.mubr.f32.gmra.mxu0 %v65
  %v387 = vpop.f32.mrf.mxu0
  %v388 = vadd.f32 0.0, %v387
  %v389 = vpop.f32.mrf.mxu0
  %390 = vmatprep.mubr.f32.mxu0 0.0
  %391 = vmatmul.mubr.f32.gmra.mxu0 %v66
  %v392 = vpop.f32.mrf.mxu0
  %v393 = vadd.f32 0.0, %v392
  %v394 = vpop.f32.mrf.mxu0
  %395 = vmatprep.mubr.f32.mxu0 0.0
  %396 = vmatmul.mubr.f32.gmra.mxu0 %v67
  %v397 = vpop.f32.mrf.mxu0
  %v398 = vadd.f32 0.0, %v397
  %v399 = vpop.f32.mrf.mxu0
  %400 = vmatprep.mubr.f32.mxu0 0.0
  %401 = vmatmul.mubr.f32.gmra.mxu0 %v68
  %v402 = vpop.f32.mrf.mxu0
  %v403 = vadd.f32 0.0, %v402
  %v404 = vpop.f32.mrf.mxu0
  %405 = vmatprep.mubr.f32.mxu0 0.0
  %406 = vmatmul.mubr.f32.gmra.mxu0 %v69
  %v407 = vpop.f32.mrf.mxu0
  %v408 = vadd.f32 0.0, %v407
  %v409 = vpop.f32.mrf.mxu0
  %410 = vmatprep.mubr.f32.mxu0 0.0
  %411 = vmatmul.mubr.f32.gmra.mxu0 %v70
  %v412 = vpop.f32.mrf.mxu0
  %v413 = vadd.f32 0.0, %v412
  %v414 = vpop.f32.mrf.mxu0
  %415 = vmatprep.mubr.f32.mxu0 0.0
  %416 = vmatmul.mubr.f32.gmra.mxu0 %v71
  %v417 = vpop.f32.mrf.mxu0
  %v418 = vadd.f32 0.0, %v417
  %v419 = vpop.f32.mrf.mxu0
  %420 = vmatprep.mubr.f32.mxu0 0.0
  %421 = vmatmul.mubr.f32.gmra.mxu0 %v72
  %v422 = vpop.f32.mrf.mxu0
  %v423 = vadd.f32 0.0, %v422
  %v424 = vpop.f32.mrf.mxu0
  %425 = vmatprep.mubr.f32.mxu0 0.0
  %426 = vmatmul.mubr.f32.gmra.mxu0 %v73
  %v427 = vpop.f32.mrf.mxu0
  %v428 = vadd.f32 0.0, %v427
  %v429 = vpop.f32.mrf.mxu0
  %430 = vmatprep.mubr.f32.mxu0 0.0
  %431 = vmatmul.mubr.f32.gmra.mxu0 %v74
  %v432 = vpop.f32.mrf.mxu0
  %v433 = vadd.f32 0.0, %v432
  %v434 = vpop.f32.mrf.mxu0
  %435 = vmatprep.mubr.f32.mxu0 0.0
  %436 = vmatmul.mubr.f32.gmra.mxu0 %v75
  %v437 = vpop.f32.mrf.mxu0
  %v438 = vadd.f32 0.0, %v437
  %v439 = vpop.f32.mrf.mxu0
  %440 = vmatprep.mubr.f32.mxu0 0.0
  %441 = vmatmul.mubr.f32.gmra.mxu0 %v76
  %v442 = vpop.f32.mrf.mxu0
  %v443 = vadd.f32 0.0, %v442
  %v444 = vpop.f32.mrf.mxu0
  %445 = vmatprep.mubr.f32.mxu0 0.0
  %446 = vmatmul.mubr.f32.gmra.mxu0 %v77
  %v447 = vpop.f32.mrf.mxu0
  %v448 = vadd.f32 0.0, %v447
  %v449 = vpop.f32.mrf.mxu0
  %450 = vmatprep.mubr.f32.mxu0 0.0
  %451 = vmatmul.mubr.f32.gmra.mxu0 %v78
  %v452 = vpop.f32.mrf.mxu0
  %v453 = vadd.f32 0.0, %v452
  %v454 = vpop.f32.mrf.mxu0
  %455 = vmatprep.mubr.f32.mxu0 0.0
  %456 = vmatmul.mubr.f32.gmra.mxu0 %v79
  %v457 = vpop.f32.mrf.mxu0
  %v458 = vadd.f32 0.0, %v457
  %v459 = vpop.f32.mrf.mxu0
  %460 = vmatprep.mubr.f32.mxu0 0.0
  %461 = vmatmul.mubr.f32.gmra.mxu0 %v80
  %v462 = vpop.f32.mrf.mxu0
  %v463 = vadd.f32 0.0, %v462
  %v464 = vpop.f32.mrf.mxu0
  %465 = vmatprep.mubr.f32.mxu0 0.0
  %466 = vmatmul.mubr.f32.gmra.mxu0 %v81
  %v467 = vpop.f32.mrf.mxu0
  %v468 = vadd.f32 0.0, %v467
  %v469 = vpop.f32.mrf.mxu0
  %470 = vmatprep.mubr.f32.mxu0 0.0
  %471 = vmatmul.mubr.f32.gmra.mxu0 %v82
  %v472 = vpop.f32.mrf.mxu0
  %v473 = vadd.f32 0.0, %v472
  %v474 = vpop.f32.mrf.mxu0
  %475 = vmatprep.mubr.f32.mxu0 0.0
  %476 = vmatmul.mubr.f32.gmra.mxu0 %v83
  %v477 = vpop.f32.mrf.mxu0
  %v478 = vadd.f32 0.0, %v477
  %v479 = vpop.f32.mrf.mxu0
  %480 = vmatprep.mubr.f32.mxu0 0.0
  %481 = vmatmul.mubr.f32.gmra.mxu0 %v84
  %v482 = vpop.f32.mrf.mxu0
  %v483 = vadd.f32 0.0, %v482
  %v484 = vpop.f32.mrf.mxu0
  %485 = vdwg.mxu0
  %v486 = vadd.f32 %v168, %v173
  %v487 = vadd.f32 %v486, %v178
  %v488 = vadd.f32 %v487, %v183
  %v489 = vadd.f32 %v488, %v188
  %v490 = vadd.f32 %v489, %v193
  %v491 = vadd.f32 %v490, %v198
  %v492 = vadd.f32 %v491, %v203
  %v493 = vadd.f32 %v492, %v208
  %v494 = vadd.f32 %v493, %v213
  %v495 = vadd.f32 %v494, %v218
  %v496 = vadd.f32 %v495, %v223
  %v497 = vadd.f32 %v496, %v228
  %v498 = vadd.f32 %v497, %v233
  %v499 = vadd.f32 %v498, %v238
  %v500 = vadd.f32 %v499, %v243
  %v501 = vadd.f32 %v500, %v248
  %v502 = vadd.f32 %v501, %v253
  %v503 = vadd.f32 %v502, %v258
  %v504 = vadd.f32 %v503, %v263
  %v505 = vadd.f32 %v504, %v268
  %v506 = vadd.f32 %v505, %v273
  %v507 = vadd.f32 %v506, %v278
  %v508 = vadd.f32 %v507, %v283
  %v509 = vadd.f32 %v508, %v288
  %v510 = vadd.f32 %v509, %v293
  %v511 = vadd.f32 %v510, %v298
  %v512 = vadd.f32 %v511, %v303
  %v513 = vadd.f32 %v512, %v308
  %v514 = vadd.f32 %v513, %v313
  %v515 = vadd.f32 %v514, %v318
  %v516 = vadd.f32 %v515, %v323
  %v517 = vadd.f32 %v516, %v328
  %v518 = vadd.f32 %v517, %v333
  %v519 = vadd.f32 %v518, %v338
  %v520 = vadd.f32 %v519, %v343
  %v521 = vadd.f32 %v520, %v348
  %v522 = vadd.f32 %v521, %v353
  %v523 = vadd.f32 %v522, %v358
  %v524 = vadd.f32 %v523, %v363
  %v525 = vadd.f32 %v524, %v368
  %v526 = vadd.f32 %v525, %v373
  %v527 = vadd.f32 %v526, %v378
  %v528 = vadd.f32 %v527, %v383
  %v529 = vadd.f32 %v528, %v388
  %v530 = vadd.f32 %v529, %v393
  %v531 = vadd.f32 %v530, %v398
  %v532 = vadd.f32 %v531, %v403
  %v533 = vadd.f32 %v532, %v408
  %v534 = vadd.f32 %v533, %v413
  %v535 = vadd.f32 %v534, %v418
  %v536 = vadd.f32 %v535, %v423
  %v537 = vadd.f32 %v536, %v428
  %v538 = vadd.f32 %v537, %v433
  %v539 = vadd.f32 %v538, %v438
  %v540 = vadd.f32 %v539, %v443
  %v541 = vadd.f32 %v540, %v448
  %v542 = vadd.f32 %v541, %v453
  %v543 = vadd.f32 %v542, %v458
  %v544 = vadd.f32 %v543, %v463
  %v545 = vadd.f32 %v544, %v468
  %v546 = vadd.f32 %v545, %v473
  %v547 = vadd.f32 %v546, %v478
  %v548 = vadd.f32 %v547, %v483
  %v549 = vrot.slane %v548, 4
  %v550 = vadd.f32 %v548, %v549
  %v551 = vrot.slane %v550, 2
  %v552 = vadd.f32 %v550, %v551
  %v553 = vrot.slane %v552, 1
  %v554 = vadd.f32 %v552, %v553
  %v555 = vrcp.pop 512.0
  %v556 = vmul.f32 %v554, %v555
  %v557 = vsub.f32 %v168, %v556
  %v558 = vsub.f32 %v173, %v556
  %v559 = vsub.f32 %v178, %v556
  %v560 = vsub.f32 %v183, %v556
  %v561 = vsub.f32 %v188, %v556
  %v562 = vsub.f32 %v193, %v556
  %v563 = vsub.f32 %v198, %v556
  %v564 = vsub.f32 %v203, %v556
  %v565 = vsub.f32 %v208, %v556
  %v566 = vsub.f32 %v213, %v556
  %v567 = vsub.f32 %v218, %v556
  %v568 = vsub.f32 %v223, %v556
  %v569 = vsub.f32 %v228, %v556
  %v570 = vsub.f32 %v233, %v556
  %v571 = vsub.f32 %v238, %v556
  %v572 = vsub.f32 %v243, %v556
  %v573 = vsub.f32 %v248, %v556
  %v574 = vsub.f32 %v253, %v556
  %v575 = vsub.f32 %v258, %v556
  %v576 = vsub.f32 %v263, %v556
  %v577 = vsub.f32 %v268, %v556
  %v578 = vsub.f32 %v273, %v556
  %v579 = vsub.f32 %v278, %v556
  %v580 = vsub.f32 %v283, %v556
  %v581 = vsub.f32 %v288, %v556
  %v582 = vsub.f32 %v293, %v556
  %v583 = vsub.f32 %v298, %v556
  %v584 = vsub.f32 %v303, %v556
  %v585 = vsub.f32 %v308, %v556
  %v586 = vsub.f32 %v313, %v556
  %v587 = vsub.f32 %v318, %v556
  %v588 = vsub.f32 %v323, %v556
  %v589 = vsub.f32 %v328, %v556
  %v590 = vsub.f32 %v333, %v556
  %v591 = vsub.f32 %v338, %v556
  %v592 = vsub.f32 %v343, %v556
  %v593 = vsub.f32 %v348, %v556
  %v594 = vsub.f32 %v353, %v556
  %v595 = vsub.f32 %v358, %v556
  %v596 = vsub.f32 %v363, %v556
  %v597 = vsub.f32 %v368, %v556
  %v598 = vsub.f32 %v373, %v556
  %v599 = vsub.f32 %v378, %v556
  %v600 = vsub.f32 %v383, %v556
  %v601 = vsub.f32 %v388, %v556
  %v602 = vsub.f32 %v393, %v556
  %v603 = vsub.f32 %v398, %v556
  %v604 = vsub.f32 %v403, %v556
  %v605 = vsub.f32 %v408, %v556
  %v606 = vsub.f32 %v413, %v556
  %v607 = vsub.f32 %v418, %v556
  %v608 = vsub.f32 %v423, %v556
  %v609 = vsub.f32 %v428, %v556
  %v610 = vsub.f32 %v433, %v556
  %v611 = vsub.f32 %v438, %v556
  %v612 = vsub.f32 %v443, %v556
  %v613 = vsub.f32 %v448, %v556
  %v614 = vsub.f32 %v453, %v556
  %v615 = vsub.f32 %v458, %v556
  %v616 = vsub.f32 %v463, %v556
  %v617 = vsub.f32 %v468, %v556
  %v618 = vsub.f32 %v473, %v556
  %v619 = vsub.f32 %v478, %v556
  %v620 = vsub.f32 %v483, %v556
  %v621 = vmul.f32 %v557, %v557
  %v622 = vmul.f32 %v558, %v558
  %v623 = vmul.f32 %v559, %v559
  %v624 = vmul.f32 %v560, %v560
  %v625 = vmul.f32 %v561, %v561
  %v626 = vmul.f32 %v562, %v562
  %v627 = vmul.f32 %v563, %v563
  %v628 = vmul.f32 %v564, %v564
  %v629 = vmul.f32 %v565, %v565
  %v630 = vmul.f32 %v566, %v566
  %v631 = vmul.f32 %v567, %v567
  %v632 = vmul.f32 %v568, %v568
  %v633 = vmul.f32 %v569, %v569
  %v634 = vmul.f32 %v570, %v570
  %v635 = vmul.f32 %v571, %v571
  %v636 = vmul.f32 %v572, %v572
  %v637 = vmul.f32 %v573, %v573
  %v638 = vmul.f32 %v574, %v574
  %v639 = vmul.f32 %v575, %v575
  %v640 = vmul.f32 %v576, %v576
  %v641 = vmul.f32 %v577, %v577
  %v642 = vmul.f32 %v578, %v578
  %v643 = vmul.f32 %v579, %v579
  %v644 = vmul.f32 %v580, %v580
  %v645 = vmul.f32 %v581, %v581
  %v646 = vmul.f32 %v582, %v582
  %v647 = vmul.f32 %v583, %v583
  %v648 = vmul.f32 %v584, %v584
  %v649 = vmul.f32 %v585, %v585
  %v650 = vmul.f32 %v586, %v586
  %v651 = vmul.f32 %v587, %v587
  %v652 = vmul.f32 %v588, %v588
  %v653 = vmul.f32 %v589, %v589
  %v654 = vmul.f32 %v590, %v590
  %v655 = vmul.f32 %v591, %v591
  %v656 = vmul.f32 %v592, %v592
  %v657 = vmul.f32 %v593, %v593
  %v658 = vmul.f32 %v594, %v594
  %v659 = vmul.f32 %v595, %v595
  %v660 = vmul.f32 %v596, %v596
  %v661 = vmul.f32 %v597, %v597
  %v662 = vmul.f32 %v598, %v598
  %v663 = vmul.f32 %v599, %v599
  %v664 = vmul.f32 %v600, %v600
  %v665 = vmul.f32 %v601, %v601
  %v666 = vmul.f32 %v602, %v602
  %v667 = vmul.f32 %v603, %v603
  %v668 = vmul.f32 %v604, %v604
  %v669 = vmul.f32 %v605, %v605
  %v670 = vmul.f32 %v606, %v606
  %v671 = vmul.f32 %v607, %v607
  %v672 = vmul.f32 %v608, %v608
  %v673 = vmul.f32 %v609, %v609
  %v674 = vmul.f32 %v610, %v610
  %v675 = vmul.f32 %v611, %v611
  %v676 = vmul.f32 %v612, %v612
  %v677 = vmul.f32 %v613, %v613
  %v678 = vmul.f32 %v614, %v614
  %v679 = vmul.f32 %v615, %v615
  %v680 = vmul.f32 %v616, %v616
  %v681 = vmul.f32 %v617, %v617
  %v682 = vmul.f32 %v618, %v618
  %v683 = vmul.f32 %v619, %v619
  %v684 = vmul.f32 %v620, %v620
  %v685 = vadd.f32 %v621, %v622
  %v686 = vadd.f32 %v685, %v623
  %v687 = vadd.f32 %v686, %v624
  %v688 = vadd.f32 %v687, %v625
  %v689 = vadd.f32 %v688, %v626
  %v690 = vadd.f32 %v689, %v627
  %v691 = vadd.f32 %v690, %v628
  %v692 = vadd.f32 %v691, %v629
  %v693 = vadd.f32 %v692, %v630
  %v694 = vadd.f32 %v693, %v631
  %v695 = vadd.f32 %v694, %v632
  %v696 = vadd.f32 %v695, %v633
  %v697 = vadd.f32 %v696, %v634
  %v698 = vadd.f32 %v697, %v635
  %v699 = vadd.f32 %v698, %v636
  %v700 = vadd.f32 %v699, %v637
  %v701 = vadd.f32 %v700, %v638
  %v702 = vadd.f32 %v701, %v639
  %v703 = vadd.f32 %v702, %v640
  %v704 = vadd.f32 %v703, %v641
  %v705 = vadd.f32 %v704, %v642
  %v706 = vadd.f32 %v705, %v643
  %v707 = vadd.f32 %v706, %v644
  %v708 = vadd.f32 %v707, %v645
  %v709 = vadd.f32 %v708, %v646
  %v710 = vadd.f32 %v709, %v647
  %v711 = vadd.f32 %v710, %v648
  %v712 = vadd.f32 %v711, %v649
  %v713 = vadd.f32 %v712, %v650
  %v714 = vadd.f32 %v713, %v651
  %v715 = vadd.f32 %v714, %v652
  %v716 = vadd.f32 %v715, %v653
  %v717 = vadd.f32 %v716, %v654
  %v718 = vadd.f32 %v717, %v655
  %v719 = vadd.f32 %v718, %v656
  %v720 = vadd.f32 %v719, %v657
  %v721 = vadd.f32 %v720, %v658
  %v722 = vadd.f32 %v721, %v659
  %v723 = vadd.f32 %v722, %v660
  %v724 = vadd.f32 %v723, %v661
  %v725 = vadd.f32 %v724, %v662
  %v726 = vadd.f32 %v725, %v663
  %v727 = vadd.f32 %v726, %v664
  %v728 = vadd.f32 %v727, %v665
  %v729 = vadd.f32 %v728, %v666
  %v730 = vadd.f32 %v729, %v667
  %v731 = vadd.f32 %v730, %v668
  %v732 = vadd.f32 %v731, %v669
  %v733 = vadd.f32 %v732, %v670
  %v734 = vadd.f32 %v733, %v671
  %v735 = vadd.f32 %v734, %v672
  %v736 = vadd.f32 %v735, %v673
  %v737 = vadd.f32 %v736, %v674
  %v738 = vadd.f32 %v737, %v675
  %v739 = vadd.f32 %v738, %v676
  %v740 = vadd.f32 %v739, %v677
  %v741 = vadd.f32 %v740, %v678
  %v742 = vadd.f32 %v741, %v679
  %v743 = vadd.f32 %v742, %v680
  %v744 = vadd.f32 %v743, %v681
  %v745 = vadd.f32 %v744, %v682
  %v746 = vadd.f32 %v745, %v683
  %v747 = vadd.f32 %v746, %v684
  %v748 = vrot.slane %v747, 4
  %v749 = vadd.f32 %v747, %v748
  %v750 = vrot.slane %v749, 2
  %v751 = vadd.f32 %v749, %v750
  %v752 = vrot.slane %v751, 1
  %v753 = vadd.f32 %v751, %v752
  %v754 = vmul.f32 %v753, %v555
  %v755 = vadd.f32 %v754, 1e-05
  %v756 = vrsqrt.pop %v755
  %v757 = vmul.f32 %v557, %v756
  %v758 = vmul.f32 %v558, %v756
  %v759 = vmul.f32 %v559, %v756
  %v760 = vmul.f32 %v560, %v756
  %v761 = vmul.f32 %v561, %v756
  %v762 = vmul.f32 %v562, %v756
  %v763 = vmul.f32 %v563, %v756
  %v764 = vmul.f32 %v564, %v756
  %v765 = vmul.f32 %v565, %v756
  %v766 = vmul.f32 %v566, %v756
  %v767 = vmul.f32 %v567, %v756
  %v768 = vmul.f32 %v568, %v756
  %v769 = vmul.f32 %v569, %v756
  %v770 = vmul.f32 %v570, %v756
  %v771 = vmul.f32 %v571, %v756
  %v772 = vmul.f32 %v572, %v756
  %v773 = vmul.f32 %v573, %v756
  %v774 = vmul.f32 %v574, %v756
  %v775 = vmul.f32 %v575, %v756
  %v776 = vmul.f32 %v576, %v756
  %v777 = vmul.f32 %v577, %v756
  %v778 = vmul.f32 %v578, %v756
  %v779 = vmul.f32 %v579, %v756
  %v780 = vmul.f32 %v580, %v756
  %v781 = vmul.f32 %v581, %v756
  %v782 = vmul.f32 %v582, %v756
  %v783 = vmul.f32 %v583, %v756
  %v784 = vmul.f32 %v584, %v756
  %v785 = vmul.f32 %v585, %v756
  %v786 = vmul.f32 %v586, %v756
  %v787 = vmul.f32 %v587, %v756
  %v788 = vmul.f32 %v588, %v756
  %v789 = vmul.f32 %v589, %v756
  %v790 = vmul.f32 %v590, %v756
  %v791 = vmul.f32 %v591, %v756
  %v792 = vmul.f32 %v592, %v756
  %v793 = vmul.f32 %v593, %v756
  %v794 = vmul.f32 %v594, %v756
  %v795 = vmul.f32 %v595, %v756
  %v796 = vmul.f32 %v596, %v756
  %v797 = vmul.f32 %v597, %v756
  %v798 = vmul.f32 %v598, %v756
  %v799 = vmul.f32 %v599, %v756
  %v800 = vmul.f32 %v600, %v756
  %v801 = vmul.f32 %v601, %v756
  %v802 = vmul.f32 %v602, %v756
  %v803 = vmul.f32 %v603, %v756
  %v804 = vmul.f32 %v604, %v756
  %v805 = vmul.f32 %v605, %v756
  %v806 = vmul.f32 %v606, %v756
  %v807 = vmul.f32 %v607, %v756
  %v808 = vmul.f32 %v608, %v756
  %v809 = vmul.f32 %v609, %v756
  %v810 = vmul.f32 %v610, %v756
  %v811 = vmul.f32 %v611, %v756
  %v812 = vmul.f32 %v612, %v756
  %v813 = vmul.f32 %v613, %v756
  %v814 = vmul.f32 %v614, %v756
  %v815 = vmul.f32 %v615, %v756
  %v816 = vmul.f32 %v616, %v756
  %v817 = vmul.f32 %v617, %v756
  %v818 = vmul.f32 %v618, %v756
  %v819 = vmul.f32 %v619, %v756
  %v820 = vmul.f32 %v620, %v756
  %v821 = vlaneseq
  %v822 = vshrl.u32 %v821, 7
  %v823 = vsub.s32 0, %v822
  %v824 = vrot.slane %v20, %v823
  %v825 = vmul.f32 %v757, %v824
  %v826 = vmul.f32 %v758, %v824
  %v827 = vmul.f32 %v759, %v824
  %v828 = vmul.f32 %v760, %v824
  %v829 = vmul.f32 %v761, %v824
  %v830 = vmul.f32 %v762, %v824
  %v831 = vmul.f32 %v763, %v824
  %v832 = vmul.f32 %v764, %v824
  %v833 = vmul.f32 %v765, %v824
  %v834 = vmul.f32 %v766, %v824
  %v835 = vmul.f32 %v767, %v824
  %v836 = vmul.f32 %v768, %v824
  %v837 = vmul.f32 %v769, %v824
  %v838 = vmul.f32 %v770, %v824
  %v839 = vmul.f32 %v771, %v824
  %v840 = vmul.f32 %v772, %v824
  %v841 = vmul.f32 %v773, %v824
  %v842 = vmul.f32 %v774, %v824
  %v843 = vmul.f32 %v775, %v824
  %v844 = vmul.f32 %v776, %v824
  %v845 = vmul.f32 %v777, %v824
  %v846 = vmul.f32 %v778, %v824
  %v847 = vmul.f32 %v779, %v824
  %v848 = vmul.f32 %v780, %v824
  %v849 = vmul.f32 %v781, %v824
  %v850 = vmul.f32 %v782, %v824
  %v851 = vmul.f32 %v783, %v824
  %v852 = vmul.f32 %v784, %v824
  %v853 = vmul.f32 %v785, %v824
  %v854 = vmul.f32 %v786, %v824
  %v855 = vmul.f32 %v787, %v824
  %v856 = vmul.f32 %v788, %v824
  %v857 = vmul.f32 %v789, %v824
  %v858 = vmul.f32 %v790, %v824
  %v859 = vmul.f32 %v791, %v824
  %v860 = vmul.f32 %v792, %v824
  %v861 = vmul.f32 %v793, %v824
  %v862 = vmul.f32 %v794, %v824
  %v863 = vmul.f32 %v795, %v824
  %v864 = vmul.f32 %v796, %v824
  %v865 = vmul.f32 %v797, %v824
  %v866 = vmul.f32 %v798, %v824
  %v867 = vmul.f32 %v799, %v824
  %v868 = vmul.f32 %v800, %v824
  %v869 = vmul.f32 %v801, %v824
  %v870 = vmul.f32 %v802, %v824
  %v871 = vmul.f32 %v803, %v824
  %v872 = vmul.f32 %v804, %v824
  %v873 = vmul.f32 %v805, %v824
  %v874 = vmul.f32 %v806, %v824
  %v875 = vmul.f32 %v807, %v824
  %v876 = vmul.f32 %v808, %v824
  %v877 = vmul.f32 %v809, %v824
  %v878 = vmul.f32 %v810, %v824
  %v879 = vmul.f32 %v811, %v824
  %v880 = vmul.f32 %v812, %v824
  %v881 = vmul.f32 %v813, %v824
  %v882 = vmul.f32 %v814, %v824
  %v883 = vmul.f32 %v815, %v824
  %v884 = vmul.f32 %v816, %v824
  %v885 = vmul.f32 %v817, %v824
  %v886 = vmul.f32 %v818, %v824
  %v887 = vmul.f32 %v819, %v824
  %v888 = vmul.f32 %v820, %v824
  %v889 = vlaneseq
  %v890 = vshrl.u32 %v889, 7
  %v891 = vsub.s32 1, %v890
  %v892 = vrot.slane %v20, %v891
  %v893 = vadd.f32 %v825, %v892
  %v894 = vadd.f32 %v826, %v892
  %v895 = vadd.f32 %v827, %v892
  %v896 = vadd.f32 %v828, %v892
  %v897 = vadd.f32 %v829, %v892
  %v898 = vadd.f32 %v830, %v892
  %v899 = vadd.f32 %v831, %v892
  %v900 = vadd.f32 %v832, %v892
  %v901 = vadd.f32 %v833, %v892
  %v902 = vadd.f32 %v834, %v892
  %v903 = vadd.f32 %v835, %v892
  %v904 = vadd.f32 %v836, %v892
  %v905 = vadd.f32 %v837, %v892
  %v906 = vadd.f32 %v838, %v892
  %v907 = vadd.f32 %v839, %v892
  %v908 = vadd.f32 %v840, %v892
  %v909 = vadd.f32 %v841, %v892
  %v910 = vadd.f32 %v842, %v892
  %v911 = vadd.f32 %v843, %v892
  %v912 = vadd.f32 %v844, %v892
  %v913 = vadd.f32 %v845, %v892
  %v914 = vadd.f32 %v846, %v892
  %v915 = vadd.f32 %v847, %v892
  %v916 = vadd.f32 %v848, %v892
  %v917 = vadd.f32 %v849, %v892
  %v918 = vadd.f32 %v850, %v892
  %v919 = vadd.f32 %v851, %v892
  %v920 = vadd.f32 %v852, %v892
  %v921 = vadd.f32 %v853, %v892
  %v922 = vadd.f32 %v854, %v892
  %v923 = vadd.f32 %v855, %v892
  %v924 = vadd.f32 %v856, %v892
  %v925 = vadd.f32 %v857, %v892
  %v926 = vadd.f32 %v858, %v892
  %v927 = vadd.f32 %v859, %v892
  %v928 = vadd.f32 %v860, %v892
  %v929 = vadd.f32 %v861, %v892
  %v930 = vadd.f32 %v862, %v892
  %v931 = vadd.f32 %v863, %v892
  %v932 = vadd.f32 %v864, %v892
  %v933 = vadd.f32 %v865, %v892
  %v934 = vadd.f32 %v866, %v892
  %v935 = vadd.f32 %v867, %v892
  %v936 = vadd.f32 %v868, %v892
  %v937 = vadd.f32 %v869, %v892
  %v938 = vadd.f32 %v870, %v892
  %v939 = vadd.f32 %v871, %v892
  %v940 = vadd.f32 %v872, %v892
  %v941 = vadd.f32 %v873, %v892
  %v942 = vadd.f32 %v874, %v892
  %v943 = vadd.f32 %v875, %v892
  %v944 = vadd.f32 %v876, %v892
  %v945 = vadd.f32 %v877, %v892
  %v946 = vadd.f32 %v878, %v892
  %v947 = vadd.f32 %v879, %v892
  %v948 = vadd.f32 %v880, %v892
  %v949 = vadd.f32 %v881, %v892
  %v950 = vadd.f32 %v882, %v892
  %v951 = vadd.f32 %v883, %v892
  %v952 = vadd.f32 %v884, %v892
  %v953 = vadd.f32 %v885, %v892
  %v954 = vadd.f32 %v886, %v892
  %v955 = vadd.f32 %v887, %v892
  %v956 = vadd.f32 %v888, %v892
  %v957 = vmax.f32 %v893, 0.0
  %v958 = vmax.f32 %v894, 0.0
  %v959 = vmax.f32 %v895, 0.0
  %v960 = vmax.f32 %v896, 0.0
  %v961 = vmax.f32 %v897, 0.0
  %v962 = vmax.f32 %v898, 0.0
  %v963 = vmax.f32 %v899, 0.0
  %v964 = vmax.f32 %v900, 0.0
  %v965 = vmax.f32 %v901, 0.0
  %v966 = vmax.f32 %v902, 0.0
  %v967 = vmax.f32 %v903, 0.0
  %v968 = vmax.f32 %v904, 0.0
  %v969 = vmax.f32 %v905, 0.0
  %v970 = vmax.f32 %v906, 0.0
  %v971 = vmax.f32 %v907, 0.0
  %v972 = vmax.f32 %v908, 0.0
  %v973 = vmax.f32 %v909, 0.0
  %v974 = vmax.f32 %v910, 0.0
  %v975 = vmax.f32 %v911, 0.0
  %v976 = vmax.f32 %v912, 0.0
  %v977 = vmax.f32 %v913, 0.0
  %v978 = vmax.f32 %v914, 0.0
  %v979 = vmax.f32 %v915, 0.0
  %v980 = vmax.f32 %v916, 0.0
  %v981 = vmax.f32 %v917, 0.0
  %v982 = vmax.f32 %v918, 0.0
  %v983 = vmax.f32 %v919, 0.0
  %v984 = vmax.f32 %v920, 0.0
  %v985 = vmax.f32 %v921, 0.0
  %v986 = vmax.f32 %v922, 0.0
  %v987 = vmax.f32 %v923, 0.0
  %v988 = vmax.f32 %v924, 0.0
  %v989 = vmax.f32 %v925, 0.0
  %v990 = vmax.f32 %v926, 0.0
  %v991 = vmax.f32 %v927, 0.0
  %v992 = vmax.f32 %v928, 0.0
  %v993 = vmax.f32 %v929, 0.0
  %v994 = vmax.f32 %v930, 0.0
  %v995 = vmax.f32 %v931, 0.0
  %v996 = vmax.f32 %v932, 0.0
  %v997 = vmax.f32 %v933, 0.0
  %v998 = vmax.f32 %v934, 0.0
  %v999 = vmax.f32 %v935, 0.0
  %v1000 = vmax.f32 %v936, 0.0
  %v1001 = vmax.f32 %v937, 0.0
  %v1002 = vmax.f32 %v938, 0.0
  %v1003 = vmax.f32 %v939, 0.0
  %v1004 = vmax.f32 %v940, 0.0
  %v1005 = vmax.f32 %v941, 0.0
  %v1006 = vmax.f32 %v942, 0.0
  %v1007 = vmax.f32 %v943, 0.0
  %v1008 = vmax.f32 %v944, 0.0
  %v1009 = vmax.f32 %v945, 0.0
  %v1010 = vmax.f32 %v946, 0.0
  %v1011 = vmax.f32 %v947, 0.0
  %v1012 = vmax.f32 %v948, 0.0
  %v1013 = vmax.f32 %v949, 0.0
  %v1014 = vmax.f32 %v950, 0.0
  %v1015 = vmax.f32 %v951, 0.0
  %v1016 = vmax.f32 %v952, 0.0
  %v1017 = vmax.f32 %v953, 0.0
  %v1018 = vmax.f32 %v954, 0.0
  %v1019 = vmax.f32 %v955, 0.0
  %v1020 = vmax.f32 %v956, 0.0
  %1021 = vst [vmem:[#allocation2] sm:$0xff] 0.0
  %1022 = vst [vmem:[#allocation2 + $0x8] sm:$0xff] 0.0
  %1023 = vst [vmem:[#allocation2 + $0x10] sm:$0xff] 0.0
  %1024 = vst [vmem:[#allocation2 + $0x18] sm:$0xff] 0.0
  %1025 = vst [vmem:[#allocation2 + $0x20] sm:$0xff] 0.0
  %1026 = vst [vmem:[#allocation2 + $0x28] sm:$0xff] 0.0
  %1027 = vst [vmem:[#allocation2 + $0x30] sm:$0xff] 0.0
  %1028 = vst [vmem:[#allocation2 + $0x38] sm:$0xff] 0.0
  %1029 = vst [vmem:[#allocation2 + $0x40] sm:$0xff] 0.0
  %1030 = vst [vmem:[#allocation2 + $0x48] sm:$0xff] 0.0
  %1031 = vst [vmem:[#allocation2 + $0x50] sm:$0xff] 0.0
  %1032 = vst [vmem:[#allocation2 + $0x58] sm:$0xff] 0.0
  %1033 = vst [vmem:[#allocation2 + $0x60] sm:$0xff] 0.0
  %1034 = vst [vmem:[#allocation2 + $0x68] sm:$0xff] 0.0
  %1035 = vst [vmem:[#allocation2 + $0x70] sm:$0xff] 0.0
  %1036 = vst [vmem:[#allocation2 + $0x78] sm:$0xff] 0.0
  %1037 = vst [vmem:[#allocation2 + $0x80] sm:$0xff] 0.0
  %1038 = vst [vmem:[#allocation2 + $0x88] sm:$0xff] 0.0
  %1039 = vst [vmem:[#allocation2 + $0x90] sm:$0xff] 0.0
  %1040 = vst [vmem:[#allocation2 + $0x98] sm:$0xff] 0.0
  %1041 = vst [vmem:[#allocation2 + $0xa0] sm:$0xff] 0.0
  %1042 = vst [vmem:[#allocation2 + $0xa8] sm:$0xff] 0.0
  %1043 = vst [vmem:[#allocation2 + $0xb0] sm:$0xff] 0.0
  %1044 = vst [vmem:[#allocation2 + $0xb8] sm:$0xff] 0.0
  %1045 = vst [vmem:[#allocation2 + $0xc0] sm:$0xff] 0.0
  %1046 = vst [vmem:[#allocation2 + $0xc8] sm:$0xff] 0.0
  %1047 = vst [vmem:[#allocation2 + $0xd0] sm:$0xff] 0.0
  %1048 = vst [vmem:[#allocation2 + $0xd8] sm:$0xff] 0.0
  %1049 = vst [vmem:[#allocation2 + $0xe0] sm:$0xff] 0.0
  %1050 = vst [vmem:[#allocation2 + $0xe8] sm:$0xff] 0.0
  %1051 = vst [vmem:[#allocation2 + $0xf0] sm:$0xff] 0.0
  %1052 = vst [vmem:[#allocation2 + $0xf8] sm:$0xff] 0.0
  %1053 = vst [vmem:[#allocation2 + $0x100] sm:$0xff] 0.0
  %1054 = vst [vmem:[#allocation2 + $0x108] sm:$0xff] 0.0
  %1055 = vst [vmem:[#allocation2 + $0x110] sm:$0xff] 0.0
  %1056 = vst [vmem:[#allocation2 + $0x118] sm:$0xff] 0.0
  %1057 = vst [vmem:[#allocation2 + $0x120] sm:$0xff] 0.0
  %1058 = vst [vmem:[#allocation2 + $0x128] sm:$0xff] 0.0
  %1059 = vst [vmem:[#allocation2 + $0x130] sm:$0xff] 0.0
  %1060 = vst [vmem:[#allocation2 + $0x138] sm:$0xff] 0.0
  %1061 = vst [vmem:[#allocation2 + $0x140] sm:$0xff] 0.0
  %1062 = vst [vmem:[#allocation2 + $0x148] sm:$0xff] 0.0
  %1063 = vst [vmem:[#allocation2 + $0x150] sm:$0xff] 0.0
  %1064 = vst [vmem:[#allocation2 + $0x158] sm:$0xff] 0.0
  %1065 = vst [vmem:[#allocation2 + $0x160] sm:$0xff] 0.0
  %1066 = vst [vmem:[#allocation2 + $0x168] sm:$0xff] 0.0
  %1067 = vst [vmem:[#allocation2 + $0x170] sm:$0xff] 0.0
  %1068 = vst [vmem:[#allocation2 + $0x178] sm:$0xff] 0.0
  %1069 = vst [vmem:[#allocation2 + $0x180] sm:$0xff] 0.0
  %1070 = vst [vmem:[#allocation2 + $0x188] sm:$0xff] 0.0
  %1071 = vst [vmem:[#allocation2 + $0x190] sm:$0xff] 0.0
  %1072 = vst [vmem:[#allocation2 + $0x198] sm:$0xff] 0.0
  %1073 = vst [vmem:[#allocation2 + $0x1a0] sm:$0xff] 0.0
  %1074 = vst [vmem:[#allocation2 + $0x1a8] sm:$0xff] 0.0
  %1075 = vst [vmem:[#allocation2 + $0x1b0] sm:$0xff] 0.0
  %1076 = vst [vmem:[#allocation2 + $0x1b8] sm:$0xff] 0.0
  %1077 = vst [vmem:[#allocation2 + $0x1c0] sm:$0xff] 0.0
  %1078 = vst [vmem:[#allocation2 + $0x1c8] sm:$0xff] 0.0
  %1079 = vst [vmem:[#allocation2 + $0x1d0] sm:$0xff] 0.0
  %1080 = vst [vmem:[#allocation2 + $0x1d8] sm:$0xff] 0.0
  %1081 = vst [vmem:[#allocation2 + $0x1e0] sm:$0xff] 0.0
  %1082 = vst [vmem:[#allocation2 + $0x1e8] sm:$0xff] 0.0
  %1083 = vst [vmem:[#allocation2 + $0x1f0] sm:$0xff] 0.0
  %1084 = vst [vmem:[#allocation2 + $0x1f8] sm:$0xff] 0.0
  %1085 = vst [vmem:[#allocation2 + $0x200] sm:$0xff] 0.0
  %1086 = vst [vmem:[#allocation2 + $0x208] sm:$0xff] 0.0
  %1087 = vst [vmem:[#allocation2 + $0x210] sm:$0xff] 0.0
  %1088 = vst [vmem:[#allocation2 + $0x218] sm:$0xff] 0.0
  %1089 = vst [vmem:[#allocation2 + $0x220] sm:$0xff] 0.0
  %1090 = vst [vmem:[#allocation2 + $0x228] sm:$0xff] 0.0
  %1091 = vst [vmem:[#allocation2 + $0x230] sm:$0xff] 0.0
  %1092 = vst [vmem:[#allocation2 + $0x238] sm:$0xff] 0.0
  %1093 = vst [vmem:[#allocation2 + $0x240] sm:$0xff] 0.0
  %1094 = vst [vmem:[#allocation2 + $0x248] sm:$0xff] 0.0
  %1095 = vst [vmem:[#allocation2 + $0x250] sm:$0xff] 0.0
  %1096 = vst [vmem:[#allocation2 + $0x258] sm:$0xff] 0.0
  %1097 = vst [vmem:[#allocation2 + $0x260] sm:$0xff] 0.0
  %1098 = vst [vmem:[#allocation2 + $0x268] sm:$0xff] 0.0
  %1099 = vst [vmem:[#allocation2 + $0x270] sm:$0xff] 0.0
  %1100 = vst [vmem:[#allocation2 + $0x278] sm:$0xff] 0.0
  %1101 = vst [vmem:[#allocation2 + $0x280] sm:$0xff] 0.0
  %1102 = vst [vmem:[#allocation2 + $0x288] sm:$0xff] 0.0
  %1103 = vst [vmem:[#allocation2 + $0x290] sm:$0xff] 0.0
  %1104 = vst [vmem:[#allocation2 + $0x298] sm:$0xff] 0.0
  %1105 = vst [vmem:[#allocation2 + $0x2a0] sm:$0xff] 0.0
  %1106 = vst [vmem:[#allocation2 + $0x2a8] sm:$0xff] 0.0
  %1107 = vst [vmem:[#allocation2 + $0x2b0] sm:$0xff] 0.0
  %1108 = vst [vmem:[#allocation2 + $0x2b8] sm:$0xff] 0.0
  %1109 = vst [vmem:[#allocation2 + $0x2c0] sm:$0xff] 0.0
  %1110 = vst [vmem:[#allocation2 + $0x2c8] sm:$0xff] 0.0
  %1111 = vst [vmem:[#allocation2 + $0x2d0] sm:$0xff] 0.0
  %1112 = vst [vmem:[#allocation2 + $0x2d8] sm:$0xff] 0.0
  %1113 = vst [vmem:[#allocation2 + $0x2e0] sm:$0xff] 0.0
  %1114 = vst [vmem:[#allocation2 + $0x2e8] sm:$0xff] 0.0
  %1115 = vst [vmem:[#allocation2 + $0x2f0] sm:$0xff] 0.0
  %1116 = vst [vmem:[#allocation2 + $0x2f8] sm:$0xff] 0.0
  %1117 = vst [vmem:[#allocation2 + $0x300] sm:$0xff] 0.0
  %1118 = vst [vmem:[#allocation2 + $0x308] sm:$0xff] 0.0
  %1119 = vst [vmem:[#allocation2 + $0x310] sm:$0xff] 0.0
  %1120 = vst [vmem:[#allocation2 + $0x318] sm:$0xff] 0.0
  %1121 = vst [vmem:[#allocation2 + $0x320] sm:$0xff] 0.0
  %1122 = vst [vmem:[#allocation2 + $0x328] sm:$0xff] 0.0
  %1123 = vst [vmem:[#allocation2 + $0x330] sm:$0xff] 0.0
  %1124 = vst [vmem:[#allocation2 + $0x338] sm:$0xff] 0.0
  %1125 = vst [vmem:[#allocation2 + $0x340] sm:$0xff] 0.0
  %1126 = vst [vmem:[#allocation2 + $0x348] sm:$0xff] 0.0
  %1127 = vst [vmem:[#allocation2 + $0x350] sm:$0xff] 0.0
  %1128 = vst [vmem:[#allocation2 + $0x358] sm:$0xff] 0.0
  %1129 = vst [vmem:[#allocation2 + $0x360] sm:$0xff] 0.0
  %1130 = vst [vmem:[#allocation2 + $0x368] sm:$0xff] 0.0
  %1131 = vst [vmem:[#allocation2 + $0x370] sm:$0xff] 0.0
  %1132 = vst [vmem:[#allocation2 + $0x378] sm:$0xff] 0.0
  %1133 = vst [vmem:[#allocation2 + $0x380] sm:$0xff] 0.0
  %1134 = vst [vmem:[#allocation2 + $0x388] sm:$0xff] 0.0
  %1135 = vst [vmem:[#allocation2 + $0x390] sm:$0xff] 0.0
  %1136 = vst [vmem:[#allocation2 + $0x398] sm:$0xff] 0.0
  %1137 = vst [vmem:[#allocation2 + $0x3a0] sm:$0xff] 0.0
  %1138 = vst [vmem:[#allocation2 + $0x3a8] sm:$0xff] 0.0
  %1139 = vst [vmem:[#allocation2 + $0x3b0] sm:$0xff] 0.0
  %1140 = vst [vmem:[#allocation2 + $0x3b8] sm:$0xff] 0.0
  %1141 = vst [vmem:[#allocation2 + $0x3c0] sm:$0xff] 0.0
  %1142 = vst [vmem:[#allocation2 + $0x3c8] sm:$0xff] 0.0
  %1143 = vst [vmem:[#allocation2 + $0x3d0] sm:$0xff] 0.0
  %1144 = vst [vmem:[#allocation2 + $0x3d8] sm:$0xff] 0.0
  %1145 = vst [vmem:[#allocation2 + $0x3e0] sm:$0xff] 0.0
  %1146 = vst [vmem:[#allocation2 + $0x3e8] sm:$0xff] 0.0
  %1147 = vst [vmem:[#allocation2 + $0x3f0] sm:$0xff] 0.0
  %1148 = vst [vmem:[#allocation2 + $0x3f8] sm:$0xff] 0.0
  %1149 = vst [vmem:[#allocation2 + $0x400] sm:$0xff] 0.0
  %1150 = vst [vmem:[#allocation2 + $0x408] sm:$0xff] 0.0
  %1151 = vst [vmem:[#allocation2 + $0x410] sm:$0xff] 0.0
  %1152 = vst [vmem:[#allocation2 + $0x418] sm:$0xff] 0.0
  %1153 = vst [vmem:[#allocation2 + $0x420] sm:$0xff] 0.0
  %1154 = vst [vmem:[#allocation2 + $0x428] sm:$0xff] 0.0
  %1155 = vst [vmem:[#allocation2 + $0x430] sm:$0xff] 0.0
  %1156 = vst [vmem:[#allocation2 + $0x438] sm:$0xff] 0.0
  %1157 = vst [vmem:[#allocation2 + $0x440] sm:$0xff] 0.0
  %1158 = vst [vmem:[#allocation2 + $0x448] sm:$0xff] 0.0
  %1159 = vst [vmem:[#allocation2 + $0x450] sm:$0xff] 0.0
  %1160 = vst [vmem:[#allocation2 + $0x458] sm:$0xff] 0.0
  %1161 = vst [vmem:[#allocation2 + $0x460] sm:$0xff] 0.0
  %1162 = vst [vmem:[#allocation2 + $0x468] sm:$0xff] 0.0
  %1163 = vst [vmem:[#allocation2 + $0x470] sm:$0xff] 0.0
  %1164 = vst [vmem:[#allocation2 + $0x478] sm:$0xff] 0.0
  %s1165 = scalar_lea.vmem [#allocation2], 32
  %1166 = vst [vmem:[%s1165 + $0x8] sm:$0xff] %v957
  %1167 = vst [vmem:[%s1165 + $0x10] sm:$0xff] %v958
  %1168 = vst [vmem:[%s1165 + $0x28] sm:$0xff] %v959
  %1169 = vst [vmem:[%s1165 + $0x30] sm:$0xff] %v960
  %1170 = vst [vmem:[%s1165 + $0x48] sm:$0xff] %v961
  %1171 = vst [vmem:[%s1165 + $0x50] sm:$0xff] %v962
  %1172 = vst [vmem:[%s1165 + $0x68] sm:$0xff] %v963
  %1173 = vst [vmem:[%s1165 + $0x70] sm:$0xff] %v964
  %1174 = vst [vmem:[%s1165 + $0x88] sm:$0xff] %v965
  %1175 = vst [vmem:[%s1165 + $0x90] sm:$0xff] %v966
  %1176 = vst [vmem:[%s1165 + $0xa8] sm:$0xff] %v967
  %1177 = vst [vmem:[%s1165 + $0xb0] sm:$0xff] %v968
  %1178 = vst [vmem:[%s1165 + $0xc8] sm:$0xff] %v969
  %1179 = vst [vmem:[%s1165 + $0xd0] sm:$0xff] %v970
  %1180 = vst [vmem:[%s1165 + $0xe8] sm:$0xff] %v971
  %1181 = vst [vmem:[%s1165 + $0xf0] sm:$0xff] %v972
  %1182 = vst [vmem:[%s1165 + $0x108] sm:$0xff] %v973
  %1183 = vst [vmem:[%s1165 + $0x110] sm:$0xff] %v974
  %1184 = vst [vmem:[%s1165 + $0x128] sm:$0xff] %v975
  %1185 = vst [vmem:[%s1165 + $0x130] sm:$0xff] %v976
  %1186 = vst [vmem:[%s1165 + $0x148] sm:$0xff] %v977
  %1187 = vst [vmem:[%s1165 + $0x150] sm:$0xff] %v978
  %1188 = vst [vmem:[%s1165 + $0x168] sm:$0xff] %v979
  %1189 = vst [vmem:[%s1165 + $0x170] sm:$0xff] %v980
  %1190 = vst [vmem:[%s1165 + $0x188] sm:$0xff] %v981
  %1191 = vst [vmem:[%s1165 + $0x190] sm:$0xff] %v982
  %1192 = vst [vmem:[%s1165 + $0x1a8] sm:$0xff] %v983
  %1193 = vst [vmem:[%s1165 + $0x1b0] sm:$0xff] %v984
  %1194 = vst [vmem:[%s1165 + $0x1c8] sm:$0xff] %v985
  %1195 = vst [vmem:[%s1165 + $0x1d0] sm:$0xff] %v986
  %1196 = vst [vmem:[%s1165 + $0x1e8] sm:$0xff] %v987
  %1197 = vst [vmem:[%s1165 + $0x1f0] sm:$0xff] %v988
  %1198 = vst [vmem:[%s1165 + $0x248] sm:$0xff] %v989
  %1199 = vst [vmem:[%s1165 + $0x250] sm:$0xff] %v990
  %1200 = vst [vmem:[%s1165 + $0x268] sm:$0xff] %v991
  %1201 = vst [vmem:[%s1165 + $0x270] sm:$0xff] %v992
  %1202 = vst [vmem:[%s1165 + $0x288] sm:$0xff] %v993
  %1203 = vst [vmem:[%s1165 + $0x290] sm:$0xff] %v994
  %1204 = vst [vmem:[%s1165 + $0x2a8] sm:$0xff] %v995
  %1205 = vst [vmem:[%s1165 + $0x2b0] sm:$0xff] %v996
  %1206 = vst [vmem:[%s1165 + $0x2c8] sm:$0xff] %v997
  %1207 = vst [vmem:[%s1165 + $0x2d0] sm:$0xff] %v998
  %1208 = vst [vmem:[%s1165 + $0x2e8] sm:$0xff] %v999
  %1209 = vst [vmem:[%s1165 + $0x2f0] sm:$0xff] %v1000
  %1210 = vst [vmem:[%s1165 + $0x308] sm:$0xff] %v1001
  %1211 = vst [vmem:[%s1165 + $0x310] sm:$0xff] %v1002
  %1212 = vst [vmem:[%s1165 + $0x328] sm:$0xff] %v1003
  %1213 = vst [vmem:[%s1165 + $0x330] sm:$0xff] %v1004
  %1214 = vst [vmem:[%s1165 + $0x348] sm:$0xff] %v1005
  %1215 = vst [vmem:[%s1165 + $0x350] sm:$0xff] %v1006
  %1216 = vst [vmem:[%s1165 + $0x368] sm:$0xff] %v1007
  %1217 = vst [vmem:[%s1165 + $0x370] sm:$0xff] %v1008
  %1218 = vst [vmem:[%s1165 + $0x388] sm:$0xff] %v1009
  %1219 = vst [vmem:[%s1165 + $0x390] sm:$0xff] %v1010
  %1220 = vst [vmem:[%s1165 + $0x3a8] sm:$0xff] %v1011
  %1221 = vst [vmem:[%s1165 + $0x3b0] sm:$0xff] %v1012
  %1222 = vst [vmem:[%s1165 + $0x3c8] sm:$0xff] %v1013
  %1223 = vst [vmem:[%s1165 + $0x3d0] sm:$0xff] %v1014
  %1224 = vst [vmem:[%s1165 + $0x3e8] sm:$0xff] %v1015
  %1225 = vst [vmem:[%s1165 + $0x3f0] sm:$0xff] %v1016
  %1226 = vst [vmem:[%s1165 + $0x408] sm:$0xff] %v1017
  %1227 = vst [vmem:[%s1165 + $0x410] sm:$0xff] %v1018
  %1228 = vst [vmem:[%s1165 + $0x428] sm:$0xff] %v1019
  %1229 = vst [vmem:[%s1165 + $0x430] sm:$0xff] %v1020
  %1230 = vst [vmem:[#allocation3] sm:$0xff] 0.0
  %1231 = vst [vmem:[#allocation3 + $0x8] sm:$0xff] 0.0
  %1232 = vst [vmem:[#allocation3 + $0x10] sm:$0xff] 0.0
  %1233 = vst [vmem:[#allocation3 + $0x18] sm:$0xff] 0.0
  %1234 = vst [vmem:[#allocation3 + $0x20] sm:$0xff] 0.0
  %1235 = vst [vmem:[#allocation3 + $0x28] sm:$0xff] 0.0
  %1236 = vst [vmem:[#allocation3 + $0x30] sm:$0xff] 0.0
  %1237 = vst [vmem:[#allocation3 + $0x38] sm:$0xff] 0.0
  %1238 = vst [vmem:[#allocation3 + $0x40] sm:$0xff] 0.0
  %1239 = vst [vmem:[#allocation3 + $0x48] sm:$0xff] 0.0
  %1240 = vst [vmem:[#allocation3 + $0x50] sm:$0xff] 0.0
  %1241 = vst [vmem:[#allocation3 + $0x58] sm:$0xff] 0.0
  %1242 = vst [vmem:[#allocation3 + $0x60] sm:$0xff] 0.0
  %1243 = vst [vmem:[#allocation3 + $0x68] sm:$0xff] 0.0
  %1244 = vst [vmem:[#allocation3 + $0x70] sm:$0xff] 0.0
  %1245 = vst [vmem:[#allocation3 + $0x78] sm:$0xff] 0.0
  %1246 = vst [vmem:[#allocation3 + $0x80] sm:$0xff] 0.0
  %1247 = vst [vmem:[#allocation3 + $0x88] sm:$0xff] 0.0
  %1248 = vst [vmem:[#allocation3 + $0x90] sm:$0xff] 0.0
  %1249 = vst [vmem:[#allocation3 + $0x98] sm:$0xff] 0.0
  %1250 = vst [vmem:[#allocation3 + $0xa0] sm:$0xff] 0.0
  %1251 = vst [vmem:[#allocation3 + $0xa8] sm:$0xff] 0.0
  %1252 = vst [vmem:[#allocation3 + $0xb0] sm:$0xff] 0.0
  %1253 = vst [vmem:[#allocation3 + $0xb8] sm:$0xff] 0.0
  %1254 = vst [vmem:[#allocation3 + $0xc0] sm:$0xff] 0.0
  %1255 = vst [vmem:[#allocation3 + $0xc8] sm:$0xff] 0.0
  %1256 = vst [vmem:[#allocation3 + $0xd0] sm:$0xff] 0.0
  %1257 = vst [vmem:[#allocation3 + $0xd8] sm:$0xff] 0.0
  %1258 = vst [vmem:[#allocation3 + $0xe0] sm:$0xff] 0.0
  %1259 = vst [vmem:[#allocation3 + $0xe8] sm:$0xff] 0.0
  %1260 = vst [vmem:[#allocation3 + $0xf0] sm:$0xff] 0.0
  %1261 = vst [vmem:[#allocation3 + $0xf8] sm:$0xff] 0.0
  %1262 = vst [vmem:[#allocation3 + $0x100] sm:$0xff] 0.0
  %1263 = vst [vmem:[#allocation3 + $0x108] sm:$0xff] 0.0
  %1264 = vst [vmem:[#allocation3 + $0x110] sm:$0xff] 0.0
  %1265 = vst [vmem:[#allocation3 + $0x118] sm:$0xff] 0.0
  %1266 = vst [vmem:[#allocation3 + $0x120] sm:$0xff] 0.0
  %1267 = vst [vmem:[#allocation3 + $0x128] sm:$0xff] 0.0
  %1268 = vst [vmem:[#allocation3 + $0x130] sm:$0xff] 0.0
  %1269 = vst [vmem:[#allocation3 + $0x138] sm:$0xff] 0.0
  %1270 = vst [vmem:[#allocation3 + $0x140] sm:$0xff] 0.0
  %1271 = vst [vmem:[#allocation3 + $0x148] sm:$0xff] 0.0
  %1272 = vst [vmem:[#allocation3 + $0x150] sm:$0xff] 0.0
  %1273 = vst [vmem:[#allocation3 + $0x158] sm:$0xff] 0.0
  %1274 = vst [vmem:[#allocation3 + $0x160] sm:$0xff] 0.0
  %1275 = vst [vmem:[#allocation3 + $0x168] sm:$0xff] 0.0
  %1276 = vst [vmem:[#allocation3 + $0x170] sm:$0xff] 0.0
  %1277 = vst [vmem:[#allocation3 + $0x178] sm:$0xff] 0.0
  %1278 = vst [vmem:[#allocation3 + $0x180] sm:$0xff] 0.0
  %1279 = vst [vmem:[#allocation3 + $0x188] sm:$0xff] 0.0
  %1280 = vst [vmem:[#allocation3 + $0x190] sm:$0xff] 0.0
  %1281 = vst [vmem:[#allocation3 + $0x198] sm:$0xff] 0.0
  %1282 = vst [vmem:[#allocation3 + $0x1a0] sm:$0xff] 0.0
  %1283 = vst [vmem:[#allocation3 + $0x1a8] sm:$0xff] 0.0
  %1284 = vst [vmem:[#allocation3 + $0x1b0] sm:$0xff] 0.0
  %1285 = vst [vmem:[#allocation3 + $0x1b8] sm:$0xff] 0.0
  %1286 = vst [vmem:[#allocation3 + $0x1c0] sm:$0xff] 0.0
  %1287 = vst [vmem:[#allocation3 + $0x1c8] sm:$0xff] 0.0
  %1288 = vst [vmem:[#allocation3 + $0x1d0] sm:$0xff] 0.0
  %1289 = vst [vmem:[#allocation3 + $0x1d8] sm:$0xff] 0.0
  %1290 = vst [vmem:[#allocation3 + $0x1e0] sm:$0xff] 0.0
  %1291 = vst [vmem:[#allocation3 + $0x1e8] sm:$0xff] 0.0
  %1292 = vst [vmem:[#allocation3 + $0x1f0] sm:$0xff] 0.0
  %1293 = vst [vmem:[#allocation3 + $0x1f8] sm:$0xff] 0.0
  %v1294 = vld [vmem:[#allocation2 + $0x7] sm:$0xff]
  %v1295 = vld [vmem:[#allocation2 + $0xf] sm:$0xff]
  %v1296 = vld [vmem:[#allocation2 + $0x27] sm:$0xff]
  %v1297 = vld [vmem:[#allocation2 + $0x2f] sm:$0xff]
  %v1298 = vld [vmem:[#allocation2 + $0x47] sm:$0xff]
  %v1299 = vld [vmem:[#allocation2 + $0x4f] sm:$0xff]
  %v1300 = vld [vmem:[#allocation2 + $0x67] sm:$0xff]
  %v1301 = vld [vmem:[#allocation2 + $0x6f] sm:$0xff]
  %v1302 = vld [vmem:[#allocation2 + $0x87] sm:$0xff]
  %v1303 = vld [vmem:[#allocation2 + $0x8f] sm:$0xff]
  %v1304 = vld [vmem:[#allocation2 + $0xa7] sm:$0xff]
  %v1305 = vld [vmem:[#allocation2 + $0xaf] sm:$0xff]
  %v1306 = vld [vmem:[#allocation2 + $0xc7] sm:$0xff]
  %v1307 = vld [vmem:[#allocation2 + $0xcf] sm:$0xff]
  %v1308 = vld [vmem:[#allocation2 + $0xe7] sm:$0xff]
  %v1309 = vld [vmem:[#allocation2 + $0xef] sm:$0xff]
  %v1310 = vld [vmem:[#allocation2 + $0x107] sm:$0xff]
  %v1311 = vld [vmem:[#allocation2 + $0x10f] sm:$0xff]
  %v1312 = vld [vmem:[#allocation2 + $0x127] sm:$0xff]
  %v1313 = vld [vmem:[#allocation2 + $0x12f] sm:$0xff]
  %v1314 = vld [vmem:[#allocation2 + $0x147] sm:$0xff]
  %v1315 = vld [vmem:[#allocation2 + $0x14f] sm:$0xff]
  %v1316 = vld [vmem:[#allocation2 + $0x167] sm:$0xff]
  %v1317 = vld [vmem:[#allocation2 + $0x16f] sm:$0xff]
  %v1318 = vld [vmem:[#allocation2 + $0x187] sm:$0xff]
  %v1319 = vld [vmem:[#allocation2 + $0x18f] sm:$0xff]
  %v1320 = vld [vmem:[#allocation2 + $0x1a7] sm:$0xff]
  %v1321 = vld [vmem:[#allocation2 + $0x1af] sm:$0xff]
  %v1322 = vld [vmem:[#allocation2 + $0x1c7] sm:$0xff]
  %v1323 = vld [vmem:[#allocation2 + $0x1cf] sm:$0xff]
  %v1324 = vld [vmem:[#allocation2 + $0x1e7] sm:$0xff]
  %v1325 = vld [vmem:[#allocation2 + $0x1ef] sm:$0xff]
  %v1326 = vld [vmem:[#allocation2 + $0x247] sm:$0xff]
  %v1327 = vld [vmem:[#allocation2 + $0x24f] sm:$0xff]
  %v1328 = vld [vmem:[#allocation2 + $0x267] sm:$0xff]
  %v1329 = vld [vmem:[#allocation2 + $0x26f] sm:$0xff]
  %v1330 = vld [vmem:[#allocation2 + $0x287] sm:$0xff]
  %v1331 = vld [vmem:[#allocation2 + $0x28f] sm:$0xff]
  %v1332 = vld [vmem:[#allocation2 + $0x2a7] sm:$0xff]
  %v1333 = vld [vmem:[#allocation2 + $0x2af] sm:$0xff]
  %v1334 = vld [vmem:[#allocation2 + $0x2c7] sm:$0xff]
  %v1335 = vld [vmem:[#allocation2 + $0x2cf] sm:$0xff]
  %v1336 = vld [vmem:[#allocation2 + $0x2e7] sm:$0xff]
  %v1337 = vld [vmem:[#allocation2 + $0x2ef] sm:$0xff]
  %v1338 = vld [vmem:[#allocation2 + $0x307] sm:$0xff]
  %v1339 = vld [vmem:[#allocation2 + $0x30f] sm:$0xff]
  %v1340 = vld [vmem:[#allocation2 + $0x327] sm:$0xff]
  %v1341 = vld [vmem:[#allocation2 + $0x32f] sm:$0xff]
  %v1342 = vld [vmem:[#allocation2 + $0x347] sm:$0xff]
  %v1343 = vld [vmem:[#allocation2 + $0x34f] sm:$0xff]
  %v1344 = vld [vmem:[#allocation2 + $0x367] sm:$0xff]
  %v1345 = vld [vmem:[#allocation2 + $0x36f] sm:$0xff]
  %v1346 = vld [vmem:[#allocation2 + $0x387] sm:$0xff]
  %v1347 = vld [vmem:[#allocation2 + $0x38f] sm:$0xff]
  %v1348 = vld [vmem:[#allocation2 + $0x3a7] sm:$0xff]
  %v1349 = vld [vmem:[#allocation2 + $0x3af] sm:$0xff]
  %v1350 = vld [vmem:[#allocation2 + $0x3c7] sm:$0xff]
  %v1351 = vld [vmem:[#allocation2 + $0x3cf] sm:$0xff]
  %v1352 = vld [vmem:[#allocation2 + $0x3e7] sm:$0xff]
  %v1353 = vld [vmem:[#allocation2 + $0x3ef] sm:$0xff]
  %v1354 = vld [vmem:[#allocation2 + $0x407] sm:$0xff]
  %v1355 = vld [vmem:[#allocation2 + $0x40f] sm:$0xff]
  %v1356 = vld [vmem:[#allocation2 + $0x427] sm:$0xff]
  %v1357 = vld [vmem:[#allocation2 + $0x42f] sm:$0xff]
  %v1358 = vld [vmem:[#allocation3] sm:$0xff]
  %v1359 = vld [vmem:[#allocation3 + $0x8] sm:$0xff]
  %v1360 = vld [vmem:[#allocation3 + $0x10] sm:$0xff]
  %v1361 = vld [vmem:[#allocation3 + $0x18] sm:$0xff]
  %v1362 = vld [vmem:[#allocation3 + $0x20] sm:$0xff]
  %v1363 = vld [vmem:[#allocation3 + $0x28] sm:$0xff]
  %v1364 = vld [vmem:[#allocation3 + $0x30] sm:$0xff]
  %v1365 = vld [vmem:[#allocation3 + $0x38] sm:$0xff]
  %v1366 = vld [vmem:[#allocation3 + $0x40] sm:$0xff]
  %v1367 = vld [vmem:[#allocation3 + $0x48] sm:$0xff]
  %v1368 = vld [vmem:[#allocation3 + $0x50] sm:$0xff]
  %v1369 = vld [vmem:[#allocation3 + $0x58] sm:$0xff]
  %v1370 = vld [vmem:[#allocation3 + $0x60] sm:$0xff]
  %v1371 = vld [vmem:[#allocation3 + $0x68] sm:$0xff]
  %v1372 = vld [vmem:[#allocation3 + $0x70] sm:$0xff]
  %v1373 = vld [vmem:[#allocation3 + $0x78] sm:$0xff]
  %v1374 = vld [vmem:[#allocation3 + $0x80] sm:$0xff]
  %v1375 = vld [vmem:[#allocation3 + $0x88] sm:$0xff]
  %v1376 = vld [vmem:[#allocation3 + $0x90] sm:$0xff]
  %v1377 = vld [vmem:[#allocation3 + $0x98] sm:$0xff]
  %v1378 = vld [vmem:[#allocation3 + $0xa0] sm:$0xff]
  %v1379 = vld [vmem:[#allocation3 + $0xa8] sm:$0xff]
  %v1380 = vld [vmem:[#allocation3 + $0xb0] sm:$0xff]
  %v1381 = vld [vmem:[#allocation3 + $0xb8] sm:$0xff]
  %v1382 = vld [vmem:[#allocation3 + $0xc0] sm:$0xff]
  %v1383 = vld [vmem:[#allocation3 + $0xc8] sm:$0xff]
  %v1384 = vld [vmem:[#allocation3 + $0xd0] sm:$0xff]
  %v1385 = vld [vmem:[#allocation3 + $0xd8] sm:$0xff]
  %v1386 = vld [vmem:[#allocation3 + $0xe0] sm:$0xff]
  %v1387 = vld [vmem:[#allocation3 + $0xe8] sm:$0xff]
  %v1388 = vld [vmem:[#allocation3 + $0xf0] sm:$0xff]
  %v1389 = vld [vmem:[#allocation3 + $0xf8] sm:$0xff]
  %v1390 = vld [vmem:[#allocation3 + $0x100] sm:$0xff]
  %v1391 = vld [vmem:[#allocation3 + $0x108] sm:$0xff]
  %v1392 = vld [vmem:[#allocation3 + $0x110] sm:$0xff]
  %v1393 = vld [vmem:[#allocation3 + $0x118] sm:$0xff]
  %v1394 = vld [vmem:[#allocation3 + $0x120] sm:$0xff]
  %v1395 = vld [vmem:[#allocation3 + $0x128] sm:$0xff]
  %v1396 = vld [vmem:[#allocation3 + $0x130] sm:$0xff]
  %v1397 = vld [vmem:[#allocation3 + $0x138] sm:$0xff]
  %v1398 = vld [vmem:[#allocation3 + $0x140] sm:$0xff]
  %v1399 = vld [vmem:[#allocation3 + $0x148] sm:$0xff]
  %v1400 = vld [vmem:[#allocation3 + $0x150] sm:$0xff]
  %v1401 = vld [vmem:[#allocation3 + $0x158] sm:$0xff]
  %v1402 = vld [vmem:[#allocation3 + $0x160] sm:$0xff]
  %v1403 = vld [vmem:[#allocation3 + $0x168] sm:$0xff]
  %v1404 = vld [vmem:[#allocation3 + $0x170] sm:$0xff]
  %v1405 = vld [vmem:[#allocation3 + $0x178] sm:$0xff]
  %v1406 = vld [vmem:[#allocation3 + $0x180] sm:$0xff]
  %v1407 = vld [vmem:[#allocation3 + $0x188] sm:$0xff]
  %v1408 = vld [vmem:[#allocation3 + $0x190] sm:$0xff]
  %v1409 = vld [vmem:[#allocation3 + $0x198] sm:$0xff]
  %v1410 = vld [vmem:[#allocation3 + $0x1a0] sm:$0xff]
  %v1411 = vld [vmem:[#allocation3 + $0x1a8] sm:$0xff]
  %v1412 = vld [vmem:[#allocation3 + $0x1b0] sm:$0xff]
  %v1413 = vld [vmem:[#allocation3 + $0x1b8] sm:$0xff]
  %v1414 = vld [vmem:[#allocation3 + $0x1c0] sm:$0xff]
  %v1415 = vld [vmem:[#allocation3 + $0x1c8] sm:$0xff]
  %v1416 = vld [vmem:[#allocation3 + $0x1d0] sm:$0xff]
  %v1417 = vld [vmem:[#allocation3 + $0x1d8] sm:$0xff]
  %v1418 = vld [vmem:[#allocation3 + $0x1e0] sm:$0xff]
  %v1419 = vld [vmem:[#allocation3 + $0x1e8] sm:$0xff]
  %v1420 = vld [vmem:[#allocation3 + $0x1f0] sm:$0xff]
  %v1421 = vld [vmem:[#allocation3 + $0x1f8] sm:$0xff]
  %v1422 = vld [vmem:[%s2] sm:$0xff]
  %v1423 = vld [vmem:[%s2 + $0x8] sm:$0xff]
  %v1424 = vld [vmem:[%s2 + $0x10] sm:$0xff]
  %v1425 = vld [vmem:[%s2 + $0x18] sm:$0xff]
  %v1426 = vld [vmem:[%s2 + $0x20] sm:$0xff]
  %v1427 = vld [vmem:[%s2 + $0x28] sm:$0xff]
  %v1428 = vld [vmem:[%s2 + $0x30] sm:$0xff]
  %v1429 = vld [vmem:[%s2 + $0x38] sm:$0xff]
  %v1430 = vld [vmem:[%s2 + $0x40] sm:$0xff]
  %v1431 = vld [vmem:[%s2 + $0x48] sm:$0xff]
  %v1432 = vld [vmem:[%s2 + $0x50] sm:$0xff]
  %v1433 = vld [vmem:[%s2 + $0x58] sm:$0xff]
  %v1434 = vld [vmem:[%s2 + $0x60] sm:$0xff]
  %v1435 = vld [vmem:[%s2 + $0x68] sm:$0xff]
  %v1436 = vld [vmem:[%s2 + $0x70] sm:$0xff]
  %v1437 = vld [vmem:[%s2 + $0x78] sm:$0xff]
  %1438 = vmatprep.subr.mxu0 0.0
  %1439 = vmatpush1.msra.mxu0 %v1437
  %1440 = vmatprep.subr.mxu0 0.0
  %1441 = vmatpush1.msra.mxu0 %v1436
  %1442 = vmatprep.subr.mxu0 0.0
  %1443 = vmatpush1.msra.mxu0 %v1435
  %1444 = vmatprep.subr.mxu0 0.0
  %1445 = vmatpush1.msra.mxu0 %v1434
  %1446 = vmatprep.subr.mxu0 0.0
  %1447 = vmatpush1.msra.mxu0 %v1433
  %1448 = vmatprep.subr.mxu0 0.0
  %1449 = vmatpush1.msra.mxu0 %v1432
  %1450 = vmatprep.subr.mxu0 0.0
  %1451 = vmatpush1.msra.mxu0 %v1431
  %1452 = vmatprep.subr.mxu0 0.0
  %1453 = vmatpush1.msra.mxu0 %v1430
  %1454 = vmatprep.subr.mxu0 0.0
  %1455 = vmatpush1.msra.mxu0 %v1429
  %1456 = vmatprep.subr.mxu0 0.0
  %1457 = vmatpush1.msra.mxu0 %v1428
  %1458 = vmatprep.subr.mxu0 0.0
  %1459 = vmatpush1.msra.mxu0 %v1427
  %1460 = vmatprep.subr.mxu0 0.0
  %1461 = vmatpush1.msra.mxu0 %v1426
  %1462 = vmatprep.subr.mxu0 0.0
  %1463 = vmatpush1.msra.mxu0 %v1425
  %1464 = vmatprep.subr.mxu0 0.0
  %1465 = vmatpush1.msra.mxu0 %v1424
  %1466 = vmatprep.subr.mxu0 0.0
  %1467 = vmatpush1.msra.mxu0 %v1423
  %1468 = vmatprep.subr.mxu0 0.0
  %1469 = vmatpush1.msra.mxu0 %v1422
  %1470 = vmatprep.subr.mxu0 0.0
  %1471 = vmatpush2.msra.mxu0 0.0
  %1472 = vmatprep.subr.mxu0 0.0
  %1473 = vmatpush2.msra.mxu0 0.0
  %1474 = vmatprep.subr.mxu0 0.0
  %1475 = vmatpush2.msra.mxu0 0.0
  %1476 = vmatprep.subr.mxu0 0.0
  %1477 = vmatpush2.msra.mxu0 0.0
  %1478 = vmatprep.subr.mxu0 0.0
  %1479 = vmatpush2.msra.mxu0 0.0
  %1480 = vmatprep.subr.mxu0 0.0
  %1481 = vmatpush2.msra.mxu0 0.0
  %1482 = vmatprep.subr.mxu0 0.0
  %1483 = vmatpush2.msra.mxu0 0.0
  %1484 = vmatprep.subr.mxu0 0.0
  %1485 = vmatpush2.msra.mxu0 0.0
  %1486 = vmatprep.subr.mxu0 0.0
  %1487 = vmatpush2.msra.mxu0 0.0
  %1488 = vmatprep.subr.mxu0 0.0
  %1489 = vmatpush2.msra.mxu0 0.0
  %1490 = vmatprep.subr.mxu0 0.0
  %1491 = vmatpush2.msra.mxu0 0.0
  %1492 = vmatprep.subr.mxu0 0.0
  %1493 = vmatpush2.msra.mxu0 0.0
  %1494 = vmatprep.subr.mxu0 0.0
  %1495 = vmatpush2.msra.mxu0 0.0
  %1496 = vmatprep.subr.mxu0 0.0
  %1497 = vmatpush2.msra.mxu0 0.0
  %1498 = vmatprep.subr.mxu0 0.0
  %1499 = vmatpush2.msra.mxu0 0.0
  %1500 = vmatprep.subr.mxu0 0.0
  %1501 = vmatpush2.msra.mxu0 0.0
  %1502 = vmatprep.mubr.f32.mxu0 0.0
  %1503 = vmatmul.mubr.f32.gmra.mxu0 %v1294
  %v1504 = vpop.f32.mrf.mxu0
  %v1505 = vadd.f32 0.0, %v1504
  %v1506 = vpop.f32.mrf.mxu0
  %1507 = vmatprep.mubr.f32.mxu0 0.0
  %1508 = vmatmul.mubr.f32.gmra.mxu0 %v1295
  %v1509 = vpop.f32.mrf.mxu0
  %v1510 = vadd.f32 0.0, %v1509
  %v1511 = vpop.f32.mrf.mxu0
  %1512 = vmatprep.mubr.f32.mxu0 0.0
  %1513 = vmatmul.mubr.f32.gmra.mxu0 %v1296
  %v1514 = vpop.f32.mrf.mxu0
  %v1515 = vadd.f32 0.0, %v1514
  %v1516 = vpop.f32.mrf.mxu0
  %1517 = vmatprep.mubr.f32.mxu0 0.0
  %1518 = vmatmul.mubr.f32.gmra.mxu0 %v1297
  %v1519 = vpop.f32.mrf.mxu0
  %v1520 = vadd.f32 0.0, %v1519
  %v1521 = vpop.f32.mrf.mxu0
  %1522 = vmatprep.mubr.f32.mxu0 0.0
  %1523 = vmatmul.mubr.f32.gmra.mxu0 %v1298
  %v1524 = vpop.f32.mrf.mxu0
  %v1525 = vadd.f32 0.0, %v1524
  %v1526 = vpop.f32.mrf.mxu0
  %1527 = vmatprep.mubr.f32.mxu0 0.0
  %1528 = vmatmul.mubr.f32.gmra.mxu0 %v1299
  %v1529 = vpop.f32.mrf.mxu0
  %v1530 = vadd.f32 0.0, %v1529
  %v1531 = vpop.f32.mrf.mxu0
  %1532 = vmatprep.mubr.f32.mxu0 0.0
  %1533 = vmatmul.mubr.f32.gmra.mxu0 %v1300
  %v1534 = vpop.f32.mrf.mxu0
  %v1535 = vadd.f32 0.0, %v1534
  %v1536 = vpop.f32.mrf.mxu0
  %1537 = vmatprep.mubr.f32.mxu0 0.0
  %1538 = vmatmul.mubr.f32.gmra.mxu0 %v1301
  %v1539 = vpop.f32.mrf.mxu0
  %v1540 = vadd.f32 0.0, %v1539
  %v1541 = vpop.f32.mrf.mxu0
  %1542 = vmatprep.mubr.f32.mxu0 0.0
  %1543 = vmatmul.mubr.f32.gmra.mxu0 %v1302
  %v1544 = vpop.f32.mrf.mxu0
  %v1545 = vadd.f32 0.0, %v1544
  %v1546 = vpop.f32.mrf.mxu0
  %1547 = vmatprep.mubr.f32.mxu0 0.0
  %1548 = vmatmul.mubr.f32.gmra.mxu0 %v1303
  %v1549 = vpop.f32.mrf.mxu0
  %v1550 = vadd.f32 0.0, %v1549
  %v1551 = vpop.f32.mrf.mxu0
  %1552 = vmatprep.mubr.f32.mxu0 0.0
  %1553 = vmatmul.mubr.f32.gmra.mxu0 %v1304
  %v1554 = vpop.f32.mrf.mxu0
  %v1555 = vadd.f32 0.0, %v1554
  %v1556 = vpop.f32.mrf.mxu0
  %1557 = vmatprep.mubr.f32.mxu0 0.0
  %1558 = vmatmul.mubr.f32.gmra.mxu0 %v1305
  %v1559 = vpop.f32.mrf.mxu0
  %v1560 = vadd.f32 0.0, %v1559
  %v1561 = vpop.f32.mrf.mxu0
  %1562 = vmatprep.mubr.f32.mxu0 0.0
  %1563 = vmatmul.mubr.f32.gmra.mxu0 %v1306
  %v1564 = vpop.f32.mrf.mxu0
  %v1565 = vadd.f32 0.0, %v1564
  %v1566 = vpop.f32.mrf.mxu0
  %1567 = vmatprep.mubr.f32.mxu0 0.0
  %1568 = vmatmul.mubr.f32.gmra.mxu0 %v1307
  %v1569 = vpop.f32.mrf.mxu0
  %v1570 = vadd.f32 0.0, %v1569
  %v1571 = vpop.f32.mrf.mxu0
  %1572 = vmatprep.mubr.f32.mxu0 0.0
  %1573 = vmatmul.mubr.f32.gmra.mxu0 %v1308
  %v1574 = vpop.f32.mrf.mxu0
  %v1575 = vadd.f32 0.0, %v1574
  %v1576 = vpop.f32.mrf.mxu0
  %1577 = vmatprep.mubr.f32.mxu0 0.0
  %1578 = vmatmul.mubr.f32.gmra.mxu0 %v1309
  %v1579 = vpop.f32.mrf.mxu0
  %v1580 = vadd.f32 0.0, %v1579
  %v1581 = vpop.f32.mrf.mxu0
  %1582 = vmatprep.mubr.f32.mxu0 0.0
  %1583 = vmatmul.mubr.f32.gmra.mxu0 %v1310
  %v1584 = vpop.f32.mrf.mxu0
  %v1585 = vadd.f32 0.0, %v1584
  %v1586 = vpop.f32.mrf.mxu0
  %1587 = vmatprep.mubr.f32.mxu0 0.0
  %1588 = vmatmul.mubr.f32.gmra.mxu0 %v1311
  %v1589 = vpop.f32.mrf.mxu0
  %v1590 = vadd.f32 0.0, %v1589
  %v1591 = vpop.f32.mrf.mxu0
  %1592 = vmatprep.mubr.f32.mxu0 0.0
  %1593 = vmatmul.mubr.f32.gmra.mxu0 %v1312
  %v1594 = vpop.f32.mrf.mxu0
  %v1595 = vadd.f32 0.0, %v1594
  %v1596 = vpop.f32.mrf.mxu0
  %1597 = vmatprep.mubr.f32.mxu0 0.0
  %1598 = vmatmul.mubr.f32.gmra.mxu0 %v1313
  %v1599 = vpop.f32.mrf.mxu0
  %v1600 = vadd.f32 0.0, %v1599
  %v1601 = vpop.f32.mrf.mxu0
  %1602 = vmatprep.mubr.f32.mxu0 0.0
  %1603 = vmatmul.mubr.f32.gmra.mxu0 %v1314
  %v1604 = vpop.f32.mrf.mxu0
  %v1605 = vadd.f32 0.0, %v1604
  %v1606 = vpop.f32.mrf.mxu0
  %1607 = vmatprep.mubr.f32.mxu0 0.0
  %1608 = vmatmul.mubr.f32.gmra.mxu0 %v1315
  %v1609 = vpop.f32.mrf.mxu0
  %v1610 = vadd.f32 0.0, %v1609
  %v1611 = vpop.f32.mrf.mxu0
  %1612 = vmatprep.mubr.f32.mxu0 0.0
  %1613 = vmatmul.mubr.f32.gmra.mxu0 %v1316
  %v1614 = vpop.f32.mrf.mxu0
  %v1615 = vadd.f32 0.0, %v1614
  %v1616 = vpop.f32.mrf.mxu0
  %1617 = vmatprep.mubr.f32.mxu0 0.0
  %1618 = vmatmul.mubr.f32.gmra.mxu0 %v1317
  %v1619 = vpop.f32.mrf.mxu0
  %v1620 = vadd.f32 0.0, %v1619
  %v1621 = vpop.f32.mrf.mxu0
  %1622 = vmatprep.mubr.f32.mxu0 0.0
  %1623 = vmatmul.mubr.f32.gmra.mxu0 %v1318
  %v1624 = vpop.f32.mrf.mxu0
  %v1625 = vadd.f32 0.0, %v1624
  %v1626 = vpop.f32.mrf.mxu0
  %1627 = vmatprep.mubr.f32.mxu0 0.0
  %1628 = vmatmul.mubr.f32.gmra.mxu0 %v1319
  %v1629 = vpop.f32.mrf.mxu0
  %v1630 = vadd.f32 0.0, %v1629
  %v1631 = vpop.f32.mrf.mxu0
  %1632 = vmatprep.mubr.f32.mxu0 0.0
  %1633 = vmatmul.mubr.f32.gmra.mxu0 %v1320
  %v1634 = vpop.f32.mrf.mxu0
  %v1635 = vadd.f32 0.0, %v1634
  %v1636 = vpop.f32.mrf.mxu0
  %1637 = vmatprep.mubr.f32.mxu0 0.0
  %1638 = vmatmul.mubr.f32.gmra.mxu0 %v1321
  %v1639 = vpop.f32.mrf.mxu0
  %v1640 = vadd.f32 0.0, %v1639
  %v1641 = vpop.f32.mrf.mxu0
  %1642 = vmatprep.mubr.f32.mxu0 0.0
  %1643 = vmatmul.mubr.f32.gmra.mxu0 %v1322
  %v1644 = vpop.f32.mrf.mxu0
  %v1645 = vadd.f32 0.0, %v1644
  %v1646 = vpop.f32.mrf.mxu0
  %1647 = vmatprep.mubr.f32.mxu0 0.0
  %1648 = vmatmul.mubr.f32.gmra.mxu0 %v1323
  %v1649 = vpop.f32.mrf.mxu0
  %v1650 = vadd.f32 0.0, %v1649
  %v1651 = vpop.f32.mrf.mxu0
  %1652 = vmatprep.mubr.f32.mxu0 0.0
  %1653 = vmatmul.mubr.f32.gmra.mxu0 %v1324
  %v1654 = vpop.f32.mrf.mxu0
  %v1655 = vadd.f32 0.0, %v1654
  %v1656 = vpop.f32.mrf.mxu0
  %1657 = vmatprep.mubr.f32.mxu0 0.0
  %1658 = vmatmul.mubr.f32.gmra.mxu0 %v1325
  %v1659 = vpop.f32.mrf.mxu0
  %v1660 = vadd.f32 0.0, %v1659
  %v1661 = vpop.f32.mrf.mxu0
  %1662 = vmatprep.mubr.f32.mxu0 0.0
  %1663 = vmatmul.mubr.f32.gmra.mxu0 %v1326
  %v1664 = vpop.f32.mrf.mxu0
  %v1665 = vadd.f32 0.0, %v1664
  %v1666 = vpop.f32.mrf.mxu0
  %1667 = vmatprep.mubr.f32.mxu0 0.0
  %1668 = vmatmul.mubr.f32.gmra.mxu0 %v1327
  %v1669 = vpop.f32.mrf.mxu0
  %v1670 = vadd.f32 0.0, %v1669
  %v1671 = vpop.f32.mrf.mxu0
  %1672 = vmatprep.mubr.f32.mxu0 0.0
  %1673 = vmatmul.mubr.f32.gmra.mxu0 %v1328
  %v1674 = vpop.f32.mrf.mxu0
  %v1675 = vadd.f32 0.0, %v1674
  %v1676 = vpop.f32.mrf.mxu0
  %1677 = vmatprep.mubr.f32.mxu0 0.0
  %1678 = vmatmul.mubr.f32.gmra.mxu0 %v1329
  %v1679 = vpop.f32.mrf.mxu0
  %v1680 = vadd.f32 0.0, %v1679
  %v1681 = vpop.f32.mrf.mxu0
  %1682 = vmatprep.mubr.f32.mxu0 0.0
  %1683 = vmatmul.mubr.f32.gmra.mxu0 %v1330
  %v1684 = vpop.f32.mrf.mxu0
  %v1685 = vadd.f32 0.0, %v1684
  %v1686 = vpop.f32.mrf.mxu0
  %1687 = vmatprep.mubr.f32.mxu0 0.0
  %1688 = vmatmul.mubr.f32.gmra.mxu0 %v1331
  %v1689 = vpop.f32.mrf.mxu0
  %v1690 = vadd.f32 0.0, %v1689
  %v1691 = vpop.f32.mrf.mxu0
  %1692 = vmatprep.mubr.f32.mxu0 0.0
  %1693 = vmatmul.mubr.f32.gmra.mxu0 %v1332
  %v1694 = vpop.f32.mrf.mxu0
  %v1695 = vadd.f32 0.0, %v1694
  %v1696 = vpop.f32.mrf.mxu0
  %1697 = vmatprep.mubr.f32.mxu0 0.0
  %1698 = vmatmul.mubr.f32.gmra.mxu0 %v1333
  %v1699 = vpop.f32.mrf.mxu0
  %v1700 = vadd.f32 0.0, %v1699
  %v1701 = vpop.f32.mrf.mxu0
  %1702 = vmatprep.mubr.f32.mxu0 0.0
  %1703 = vmatmul.mubr.f32.gmra.mxu0 %v1334
  %v1704 = vpop.f32.mrf.mxu0
  %v1705 = vadd.f32 0.0, %v1704
  %v1706 = vpop.f32.mrf.mxu0
  %1707 = vmatprep.mubr.f32.mxu0 0.0
  %1708 = vmatmul.mubr.f32.gmra.mxu0 %v1335
  %v1709 = vpop.f32.mrf.mxu0
  %v1710 = vadd.f32 0.0, %v1709
  %v1711 = vpop.f32.mrf.mxu0
  %1712 = vmatprep.mubr.f32.mxu0 0.0
  %1713 = vmatmul.mubr.f32.gmra.mxu0 %v1336
  %v1714 = vpop.f32.mrf.mxu0
  %v1715 = vadd.f32 0.0, %v1714
  %v1716 = vpop.f32.mrf.mxu0
  %1717 = vmatprep.mubr.f32.mxu0 0.0
  %1718 = vmatmul.mubr.f32.gmra.mxu0 %v1337
  %v1719 = vpop.f32.mrf.mxu0
  %v1720 = vadd.f32 0.0, %v1719
  %v1721 = vpop.f32.mrf.mxu0
  %1722 = vmatprep.mubr.f32.mxu0 0.0
  %1723 = vmatmul.mubr.f32.gmra.mxu0 %v1338
  %v1724 = vpop.f32.mrf.mxu0
  %v1725 = vadd.f32 0.0, %v1724
  %v1726 = vpop.f32.mrf.mxu0
  %1727 = vmatprep.mubr.f32.mxu0 0.0
  %1728 = vmatmul.mubr.f32.gmra.mxu0 %v1339
  %v1729 = vpop.f32.mrf.mxu0
  %v1730 = vadd.f32 0.0, %v1729
  %v1731 = vpop.f32.mrf.mxu0
  %1732 = vmatprep.mubr.f32.mxu0 0.0
  %1733 = vmatmul.mubr.f32.gmra.mxu0 %v1340
  %v1734 = vpop.f32.mrf.mxu0
  %v1735 = vadd.f32 0.0, %v1734
  %v1736 = vpop.f32.mrf.mxu0
  %1737 = vmatprep.mubr.f32.mxu0 0.0
  %1738 = vmatmul.mubr.f32.gmra.mxu0 %v1341
  %v1739 = vpop.f32.mrf.mxu0
  %v1740 = vadd.f32 0.0, %v1739
  %v1741 = vpop.f32.mrf.mxu0
  %1742 = vmatprep.mubr.f32.mxu0 0.0
  %1743 = vmatmul.mubr.f32.gmra.mxu0 %v1342
  %v1744 = vpop.f32.mrf.mxu0
  %v1745 = vadd.f32 0.0, %v1744
  %v1746 = vpop.f32.mrf.mxu0
  %1747 = vmatprep.mubr.f32.mxu0 0.0
  %1748 = vmatmul.mubr.f32.gmra.mxu0 %v1343
  %v1749 = vpop.f32.mrf.mxu0
  %v1750 = vadd.f32 0.0, %v1749
  %v1751 = vpop.f32.mrf.mxu0
  %1752 = vmatprep.mubr.f32.mxu0 0.0
  %1753 = vmatmul.mubr.f32.gmra.mxu0 %v1344
  %v1754 = vpop.f32.mrf.mxu0
  %v1755 = vadd.f32 0.0, %v1754
  %v1756 = vpop.f32.mrf.mxu0
  %1757 = vmatprep.mubr.f32.mxu0 0.0
  %1758 = vmatmul.mubr.f32.gmra.mxu0 %v1345
  %v1759 = vpop.f32.mrf.mxu0
  %v1760 = vadd.f32 0.0, %v1759
  %v1761 = vpop.f32.mrf.mxu0
  %1762 = vmatprep.mubr.f32.mxu0 0.0
  %1763 = vmatmul.mubr.f32.gmra.mxu0 %v1346
  %v1764 = vpop.f32.mrf.mxu0
  %v1765 = vadd.f32 0.0, %v1764
  %v1766 = vpop.f32.mrf.mxu0
  %1767 = vmatprep.mubr.f32.mxu0 0.0
  %1768 = vmatmul.mubr.f32.gmra.mxu0 %v1347
  %v1769 = vpop.f32.mrf.mxu0
  %v1770 = vadd.f32 0.0, %v1769
  %v1771 = vpop.f32.mrf.mxu0
  %1772 = vmatprep.mubr.f32.mxu0 0.0
  %1773 = vmatmul.mubr.f32.gmra.mxu0 %v1348
  %v1774 = vpop.f32.mrf.mxu0
  %v1775 = vadd.f32 0.0, %v1774
  %v1776 = vpop.f32.mrf.mxu0
  %1777 = vmatprep.mubr.f32.mxu0 0.0
  %1778 = vmatmul.mubr.f32.gmra.mxu0 %v1349
  %v1779 = vpop.f32.mrf.mxu0
  %v1780 = vadd.f32 0.0, %v1779
  %v1781 = vpop.f32.mrf.mxu0
  %1782 = vmatprep.mubr.f32.mxu0 0.0
  %1783 = vmatmul.mubr.f32.gmra.mxu0 %v1350
  %v1784 = vpop.f32.mrf.mxu0
  %v1785 = vadd.f32 0.0, %v1784
  %v1786 = vpop.f32.mrf.mxu0
  %1787 = vmatprep.mubr.f32.mxu0 0.0
  %1788 = vmatmul.mubr.f32.gmra.mxu0 %v1351
  %v1789 = vpop.f32.mrf.mxu0
  %v1790 = vadd.f32 0.0, %v1789
  %v1791 = vpop.f32.mrf.mxu0
  %1792 = vmatprep.mubr.f32.mxu0 0.0
  %1793 = vmatmul.mubr.f32.gmra.mxu0 %v1352
  %v1794 = vpop.f32.mrf.mxu0
  %v1795 = vadd.f32 0.0, %v1794
  %v1796 = vpop.f32.mrf.mxu0
  %1797 = vmatprep.mubr.f32.mxu0 0.0
  %1798 = vmatmul.mubr.f32.gmra.mxu0 %v1353
  %v1799 = vpop.f32.mrf.mxu0
  %v1800 = vadd.f32 0.0, %v1799
  %v1801 = vpop.f32.mrf.mxu0
  %1802 = vmatprep.mubr.f32.mxu0 0.0
  %1803 = vmatmul.mubr.f32.gmra.mxu0 %v1354
  %v1804 = vpop.f32.mrf.mxu0
  %v1805 = vadd.f32 0.0, %v1804
  %v1806 = vpop.f32.mrf.mxu0
  %1807 = vmatprep.mubr.f32.mxu0 0.0
  %1808 = vmatmul.mubr.f32.gmra.mxu0 %v1355
  %v1809 = vpop.f32.mrf.mxu0
  %v1810 = vadd.f32 0.0, %v1809
  %v1811 = vpop.f32.mrf.mxu0
  %1812 = vmatprep.mubr.f32.mxu0 0.0
  %1813 = vmatmul.mubr.f32.gmra.mxu0 %v1356
  %v1814 = vpop.f32.mrf.mxu0
  %v1815 = vadd.f32 0.0, %v1814
  %v1816 = vpop.f32.mrf.mxu0
  %1817 = vmatprep.mubr.f32.mxu0 0.0
  %1818 = vmatmul.mubr.f32.gmra.mxu0 %v1357
  %v1819 = vpop.f32.mrf.mxu0
  %v1820 = vadd.f32 0.0, %v1819
  %v1821 = vpop.f32.mrf.mxu0
  %1822 = vdwg.mxu0
  %v1823 = vadd.f32 %v1358, %v1505
  %v1824 = vadd.f32 %v1359, %v1510
  %v1825 = vadd.f32 %v1360, %v1515
  %v1826 = vadd.f32 %v1361, %v1520
  %v1827 = vadd.f32 %v1362, %v1525
  %v1828 = vadd.f32 %v1363, %v1530
  %v1829 = vadd.f32 %v1364, %v1535
  %v1830 = vadd.f32 %v1365, %v1540
  %v1831 = vadd.f32 %v1366, %v1545
  %v1832 = vadd.f32 %v1367, %v1550
  %v1833 = vadd.f32 %v1368, %v1555
  %v1834 = vadd.f32 %v1369, %v1560
  %v1835 = vadd.f32 %v1370, %v1565
  %v1836 = vadd.f32 %v1371, %v1570
  %v1837 = vadd.f32 %v1372, %v1575
  %v1838 = vadd.f32 %v1373, %v1580
  %v1839 = vadd.f32 %v1374, %v1585
  %v1840 = vadd.f32 %v1375, %v1590
  %v1841 = vadd.f32 %v1376, %v1595
  %v1842 = vadd.f32 %v1377, %v1600
  %v1843 = vadd.f32 %v1378, %v1605
  %v1844 = vadd.f32 %v1379, %v1610
  %v1845 = vadd.f32 %v1380, %v1615
  %v1846 = vadd.f32 %v1381, %v1620
  %v1847 = vadd.f32 %v1382, %v1625
  %v1848 = vadd.f32 %v1383, %v1630
  %v1849 = vadd.f32 %v1384, %v1635
  %v1850 = vadd.f32 %v1385, %v1640
  %v1851 = vadd.f32 %v1386, %v1645
  %v1852 = vadd.f32 %v1387, %v1650
  %v1853 = vadd.f32 %v1388, %v1655
  %v1854 = vadd.f32 %v1389, %v1660
  %v1855 = vadd.f32 %v1390, %v1665
  %v1856 = vadd.f32 %v1391, %v1670
  %v1857 = vadd.f32 %v1392, %v1675
  %v1858 = vadd.f32 %v1393, %v1680
  %v1859 = vadd.f32 %v1394, %v1685
  %v1860 = vadd.f32 %v1395, %v1690
  %v1861 = vadd.f32 %v1396, %v1695
  %v1862 = vadd.f32 %v1397, %v1700
  %v1863 = vadd.f32 %v1398, %v1705
  %v1864 = vadd.f32 %v1399, %v1710
  %v1865 = vadd.f32 %v1400, %v1715
  %v1866 = vadd.f32 %v1401, %v1720
  %v1867 = vadd.f32 %v1402, %v1725
  %v1868 = vadd.f32 %v1403, %v1730
  %v1869 = vadd.f32 %v1404, %v1735
  %v1870 = vadd.f32 %v1405, %v1740
  %v1871 = vadd.f32 %v1406, %v1745
  %v1872 = vadd.f32 %v1407, %v1750
  %v1873 = vadd.f32 %v1408, %v1755
  %v1874 = vadd.f32 %v1409, %v1760
  %v1875 = vadd.f32 %v1410, %v1765
  %v1876 = vadd.f32 %v1411, %v1770
  %v1877 = vadd.f32 %v1412, %v1775
  %v1878 = vadd.f32 %v1413, %v1780
  %v1879 = vadd.f32 %v1414, %v1785
  %v1880 = vadd.f32 %v1415, %v1790
  %v1881 = vadd.f32 %v1416, %v1795
  %v1882 = vadd.f32 %v1417, %v1800
  %v1883 = vadd.f32 %v1418, %v1805
  %v1884 = vadd.f32 %v1419, %v1810
  %v1885 = vadd.f32 %v1420, %v1815
  %v1886 = vadd.f32 %v1421, %v1820
  %1887 = vst [vmem:[#allocation3] sm:$0xff] %v1823
  %1888 = vst [vmem:[#allocation3 + $0x8] sm:$0xff] %v1824
  %1889 = vst [vmem:[#allocation3 + $0x10] sm:$0xff] %v1825
  %1890 = vst [vmem:[#allocation3 + $0x18] sm:$0xff] %v1826
  %1891 = vst [vmem:[#allocation3 + $0x20] sm:$0xff] %v1827
  %1892 = vst [vmem:[#allocation3 + $0x28] sm:$0xff] %v1828
  %1893 = vst [vmem:[#allocation3 + $0x30] sm:$0xff] %v1829
  %1894 = vst [vmem:[#allocation3 + $0x38] sm:$0xff] %v1830
  %1895 = vst [vmem:[#allocation3 + $0x40] sm:$0xff] %v1831
  %1896 = vst [vmem:[#allocation3 + $0x48] sm:$0xff] %v1832
  %1897 = vst [vmem:[#allocation3 + $0x50] sm:$0xff] %v1833
  %1898 = vst [vmem:[#allocation3 + $0x58] sm:$0xff] %v1834
  %1899 = vst [vmem:[#allocation3 + $0x60] sm:$0xff] %v1835
  %1900 = vst [vmem:[#allocation3 + $0x68] sm:$0xff] %v1836
  %1901 = vst [vmem:[#allocation3 + $0x70] sm:$0xff] %v1837
  %1902 = vst [vmem:[#allocation3 + $0x78] sm:$0xff] %v1838
  %1903 = vst [vmem:[#allocation3 + $0x80] sm:$0xff] %v1839
  %1904 = vst [vmem:[#allocation3 + $0x88] sm:$0xff] %v1840
  %1905 = vst [vmem:[#allocation3 + $0x90] sm:$0xff] %v1841
  %1906 = vst [vmem:[#allocation3 + $0x98] sm:$0xff] %v1842
  %1907 = vst [vmem:[#allocation3 + $0xa0] sm:$0xff] %v1843
  %1908 = vst [vmem:[#allocation3 + $0xa8] sm:$0xff] %v1844
  %1909 = vst [vmem:[#allocation3 + $0xb0] sm:$0xff] %v1845
  %1910 = vst [vmem:[#allocation3 + $0xb8] sm:$0xff] %v1846
  %1911 = vst [vmem:[#allocation3 + $0xc0] sm:$0xff] %v1847
  %1912 = vst [vmem:[#allocation3 + $0xc8] sm:$0xff] %v1848
  %1913 = vst [vmem:[#allocation3 + $0xd0] sm:$0xff] %v1849
  %1914 = vst [vmem:[#allocation3 + $0xd8] sm:$0xff] %v1850
  %1915 = vst [vmem:[#allocation3 + $0xe0] sm:$0xff] %v1851
  %1916 = vst [vmem:[#allocation3 + $0xe8] sm:$0xff] %v1852
  %1917 = vst [vmem:[#allocation3 + $0xf0] sm:$0xff] %v1853
  %1918 = vst [vmem:[#allocation3 + $0xf8] sm:$0xff] %v1854
  %1919 = vst [vmem:[#allocation3 + $0x100] sm:$0xff] %v1855
  %1920 = vst [vmem:[#allocation3 + $0x108] sm:$0xff] %v1856
  %1921 = vst [vmem:[#allocation3 + $0x110] sm:$0xff] %v1857
  %1922 = vst [vmem:[#allocation3 + $0x118] sm:$0xff] %v1858
  %1923 = vst [vmem:[#allocation3 + $0x120] sm:$0xff] %v1859
  %1924 = vst [vmem:[#allocation3 + $0x128] sm:$0xff] %v1860
  %1925 = vst [vmem:[#allocation3 + $0x130] sm:$0xff] %v1861
  %1926 = vst [vmem:[#allocation3 + $0x138] sm:$0xff] %v1862
  %1927 = vst [vmem:[#allocation3 + $0x140] sm:$0xff] %v1863
  %1928 = vst [vmem:[#allocation3 + $0x148] sm:$0xff] %v1864
  %1929 = vst [vmem:[#allocation3 + $0x150] sm:$0xff] %v1865
  %1930 = vst [vmem:[#allocation3 + $0x158] sm:$0xff] %v1866
  %1931 = vst [vmem:[#allocation3 + $0x160] sm:$0xff] %v1867
  %1932 = vst [vmem:[#allocation3 + $0x168] sm:$0xff] %v1868
  %1933 = vst [vmem:[#allocation3 + $0x170] sm:$0xff] %v1869
  %1934 = vst [vmem:[#allocation3 + $0x178] sm:$0xff] %v1870
  %1935 = vst [vmem:[#allocation3 + $0x180] sm:$0xff] %v1871
  %1936 = vst [vmem:[#allocation3 + $0x188] sm:$0xff] %v1872
  %1937 = vst [vmem:[#allocation3 + $0x190] sm:$0xff] %v1873
  %1938 = vst [vmem:[#allocation3 + $0x198] sm:$0xff] %v1874
  %1939 = vst [vmem:[#allocation3 + $0x1a0] sm:$0xff] %v1875
  %1940 = vst [vmem:[#allocation3 + $0x1a8] sm:$0xff] %v1876
  %1941 = vst [vmem:[#allocation3 + $0x1b0] sm:$0xff] %v1877
  %1942 = vst [vmem:[#allocation3 + $0x1b8] sm:$0xff] %v1878
  %1943 = vst [vmem:[#allocation3 + $0x1c0] sm:$0xff] %v1879
  %1944 = vst [vmem:[#allocation3 + $0x1c8] sm:$0xff] %v1880
  %1945 = vst [vmem:[#allocation3 + $0x1d0] sm:$0xff] %v1881
  %1946 = vst [vmem:[#allocation3 + $0x1d8] sm:$0xff] %v1882
  %1947 = vst [vmem:[#allocation3 + $0x1e0] sm:$0xff] %v1883
  %1948 = vst [vmem:[#allocation3 + $0x1e8] sm:$0xff] %v1884
  %1949 = vst [vmem:[#allocation3 + $0x1f0] sm:$0xff] %v1885
  %1950 = vst [vmem:[#allocation3 + $0x1f8] sm:$0xff] %v1886
  %v1951 = vld [vmem:[#allocation2 + $0x8] sm:$0xff]
  %v1952 = vld [vmem:[#allocation2 + $0x10] sm:$0xff]
  %v1953 = vld [vmem:[#allocation2 + $0x28] sm:$0xff]
  %v1954 = vld [vmem:[#allocation2 + $0x30] sm:$0xff]
  %v1955 = vld [vmem:[#allocation2 + $0x48] sm:$0xff]
  %v1956 = vld [vmem:[#allocation2 + $0x50] sm:$0xff]
  %v1957 = vld [vmem:[#allocation2 + $0x68] sm:$0xff]
  %v1958 = vld [vmem:[#allocation2 + $0x70] sm:$0xff]
  %v1959 = vld [vmem:[#allocation2 + $0x88] sm:$0xff]
  %v1960 = vld [vmem:[#allocation2 + $0x90] sm:$0xff]
  %v1961 = vld [vmem:[#allocation2 + $0xa8] sm:$0xff]
  %v1962 = vld [vmem:[#allocation2 + $0xb0] sm:$0xff]
  %v1963 = vld [vmem:[#allocation2 + $0xc8] sm:$0xff]
  %v1964 = vld [vmem:[#allocation2 + $0xd0] sm:$0xff]
  %v1965 = vld [vmem:[#allocation2 + $0xe8] sm:$0xff]
  %v1966 = vld [vmem:[#allocation2 + $0xf0] sm:$0xff]
  %v1967 = vld [vmem:[#allocation2 + $0x108] sm:$0xff]
  %v1968 = vld [vmem:[#allocation2 + $0x110] sm:$0xff]
  %v1969 = vld [vmem:[#allocation2 + $0x128] sm:$0xff]
  %v1970 = vld [vmem:[#allocation2 + $0x130] sm:$0xff]
  %v1971 = vld [vmem:[#allocation2 + $0x148] sm:$0xff]
  %v1972 = vld [vmem:[#allocation2 + $0x150] sm:$0xff]
  %v1973 = vld [vmem:[#allocation2 + $0x168] sm:$0xff]
  %v1974 = vld [vmem:[#allocation2 + $0x170] sm:$0xff]
  %v1975 = vld [vmem:[#allocation2 + $0x188] sm:$0xff]
  %v1976 = vld [vmem:[#allocation2 + $0x190] sm:$0xff]
  %v1977 = vld [vmem:[#allocation2 + $0x1a8] sm:$0xff]
  %v1978 = vld [vmem:[#allocation2 + $0x1b0] sm:$0xff]
  %v1979 = vld [vmem:[#allocation2 + $0x1c8] sm:$0xff]
  %v1980 = vld [vmem:[#allocation2 + $0x1d0] sm:$0xff]
  %v1981 = vld [vmem:[#allocation2 + $0x1e8] sm:$0xff]
  %v1982 = vld [vmem:[#allocation2 + $0x1f0] sm:$0xff]
  %v1983 = vld [vmem:[#allocation2 + $0x248] sm:$0xff]
  %v1984 = vld [vmem:[#allocation2 + $0x250] sm:$0xff]
  %v1985 = vld [vmem:[#allocation2 + $0x268] sm:$0xff]
  %v1986 = vld [vmem:[#allocation2 + $0x270] sm:$0xff]
  %v1987 = vld [vmem:[#allocation2 + $0x288] sm:$0xff]
  %v1988 = vld [vmem:[#allocation2 + $0x290] sm:$0xff]
  %v1989 = vld [vmem:[#allocation2 + $0x2a8] sm:$0xff]
  %v1990 = vld [vmem:[#allocation2 + $0x2b0] sm:$0xff]
  %v1991 = vld [vmem:[#allocation2 + $0x2c8] sm:$0xff]
  %v1992 = vld [vmem:[#allocation2 + $0x2d0] sm:$0xff]
  %v1993 = vld [vmem:[#allocation2 + $0x2e8] sm:$0xff]
  %v1994 = vld [vmem:[#allocation2 + $0x2f0] sm:$0xff]
  %v1995 = vld [vmem:[#allocation2 + $0x308] sm:$0xff]
  %v1996 = vld [vmem:[#allocation2 + $0x310] sm:$0xff]
  %v1997 = vld [vmem:[#allocation2 + $0x328] sm:$0xff]
  %v1998 = vld [vmem:[#allocation2 + $0x330] sm:$0xff]
  %v1999 = vld [vmem:[#allocation2 + $0x348] sm:$0xff]
  %v2000 = vld [vmem:[#allocation2 + $0x350] sm:$0xff]
  %v2001 = vld [vmem:[#allocation2 + $0x368] sm:$0xff]
  %v2002 = vld [vmem:[#allocation2 + $0x370] sm:$0xff]
  %v2003 = vld [vmem:[#allocation2 + $0x388] sm:$0xff]
  %v2004 = vld [vmem:[#allocation2 + $0x390] sm:$0xff]
  %v2005 = vld [vmem:[#allocation2 + $0x3a8] sm:$0xff]
  %v2006 = vld [vmem:[#allocation2 + $0x3b0] sm:$0xff]
  %v2007 = vld [vmem:[#allocation2 + $0x3c8] sm:$0xff]
  %v2008 = vld [vmem:[#allocation2 + $0x3d0] sm:$0xff]
  %v2009 = vld [vmem:[#allocation2 + $0x3e8] sm:$0xff]
  %v2010 = vld [vmem:[#allocation2 + $0x3f0] sm:$0xff]
  %v2011 = vld [vmem:[#allocation2 + $0x408] sm:$0xff]
  %v2012 = vld [vmem:[#allocation2 + $0x410] sm:$0xff]
  %v2013 = vld [vmem:[#allocation2 + $0x428] sm:$0xff]
  %v2014 = vld [vmem:[#allocation2 + $0x430] sm:$0xff]
  %v2015 = vld [vmem:[#allocation3] sm:$0xff]
  %v2016 = vld [vmem:[#allocation3 + $0x8] sm:$0xff]
  %v2017 = vld [vmem:[#allocation3 + $0x10] sm:$0xff]
  %v2018 = vld [vmem:[#allocation3 + $0x18] sm:$0xff]
  %v2019 = vld [vmem:[#allocation3 + $0x20] sm:$0xff]
  %v2020 = vld [vmem:[#allocation3 + $0x28] sm:$0xff]
  %v2021 = vld [vmem:[#allocation3 + $0x30] sm:$0xff]
  %v2022 = vld [vmem:[#allocation3 + $0x38] sm:$0xff]
  %v2023 = vld [vmem:[#allocation3 + $0x40] sm:$0xff]
  %v2024 = vld [vmem:[#allocation3 + $0x48] sm:$0xff]
  %v2025 = vld [vmem:[#allocation3 + $0x50] sm:$0xff]
  %v2026 = vld [vmem:[#allocation3 + $0x58] sm:$0xff]
  %v2027 = vld [vmem:[#allocation3 + $0x60] sm:$0xff]
  %v2028 = vld [vmem:[#allocation3 + $0x68] sm:$0xff]
  %v2029 = vld [vmem:[#allocation3 + $0x70] sm:$0xff]
  %v2030 = vld [vmem:[#allocation3 + $0x78] sm:$0xff]
  %v2031 = vld [vmem:[#allocation3 + $0x80] sm:$0xff]
  %v2032 = vld [vmem:[#allocation3 + $0x88] sm:$0xff]
  %v2033 = vld [vmem:[#allocation3 + $0x90] sm:$0xff]
  %v2034 = vld [vmem:[#allocation3 + $0x98] sm:$0xff]
  %v2035 = vld [vmem:[#allocation3 + $0xa0] sm:$0xff]
  %v2036 = vld [vmem:[#allocation3 + $0xa8] sm:$0xff]
  %v2037 = vld [vmem:[#allocation3 + $0xb0] sm:$0xff]
  %v2038 = vld [vmem:[#allocation3 + $0xb8] sm:$0xff]
  %v2039 = vld [vmem:[#allocation3 + $0xc0] sm:$0xff]
  %v2040 = vld [vmem:[#allocation3 + $0xc8] sm:$0xff]
  %v2041 = vld [vmem:[#allocation3 + $0xd0] sm:$0xff]
  %v2042 = vld [vmem:[#allocation3 + $0xd8] sm:$0xff]
  %v2043 = vld [vmem:[#allocation3 + $0xe0] sm:$0xff]
  %v2044 = vld [vmem:[#allocation3 + $0xe8] sm:$0xff]
  %v2045 = vld [vmem:[#allocation3 + $0xf0] sm:$0xff]
  %v2046 = vld [vmem:[#allocation3 + $0xf8] sm:$0xff]
  %v2047 = vld [vmem:[#allocation3 + $0x100] sm:$0xff]
  %v2048 = vld [vmem:[#allocation3 + $0x108] sm:$0xff]
  %v2049 = vld [vmem:[#allocation3 + $0x110] sm:$0xff]
  %v2050 = vld [vmem:[#allocation3 + $0x118] sm:$0xff]
  %v2051 = vld [vmem:[#allocation3 + $0x120] sm:$0xff]
  %v2052 = vld [vmem:[#allocation3 + $0x128] sm:$0xff]
  %v2053 = vld [vmem:[#allocation3 + $0x130] sm:$0xff]
  %v2054 = vld [vmem:[#allocation3 + $0x138] sm:$0xff]
  %v2055 = vld [vmem:[#allocation3 + $0x140] sm:$0xff]
  %v2056 = vld [vmem:[#allocation3 + $0x148] sm:$0xff]
  %v2057 = vld [vmem:[#allocation3 + $0x150] sm:$0xff]
  %v2058 = vld [vmem:[#allocation3 + $0x158] sm:$0xff]
  %v2059 = vld [vmem:[#allocation3 + $0x160] sm:$0xff]
  %v2060 = vld [vmem:[#allocation3 + $0x168] sm:$0xff]
  %v2061 = vld [vmem:[#allocation3 + $0x170] sm:$0xff]
  %v2062 = vld [vmem:[#allocation3 + $0x178] sm:$0xff]
  %v2063 = vld [vmem:[#allocation3 + $0x180] sm:$0xff]
  %v2064 = vld [vmem:[#allocation3 + $0x188] sm:$0xff]
  %v2065 = vld [vmem:[#allocation3 + $0x190] sm:$0xff]
  %v2066 = vld [vmem:[#allocation3 + $0x198] sm:$0xff]
  %v2067 = vld [vmem:[#allocation3 + $0x1a0] sm:$0xff]
  %v2068 = vld [vmem:[#allocation3 + $0x1a8] sm:$0xff]
  %v2069 = vld [vmem:[#allocation3 + $0x1b0] sm:$0xff]
  %v2070 = vld [vmem:[#allocation3 + $0x1b8] sm:$0xff]
  %v2071 = vld [vmem:[#allocation3 + $0x1c0] sm:$0xff]
  %v2072 = vld [vmem:[#allocation3 + $0x1c8] sm:$0xff]
  %v2073 = vld [vmem:[#allocation3 + $0x1d0] sm:$0xff]
  %v2074 = vld [vmem:[#allocation3 + $0x1d8] sm:$0xff]
  %v2075 = vld [vmem:[#allocation3 + $0x1e0] sm:$0xff]
  %v2076 = vld [vmem:[#allocation3 + $0x1e8] sm:$0xff]
  %v2077 = vld [vmem:[#allocation3 + $0x1f0] sm:$0xff]
  %v2078 = vld [vmem:[#allocation3 + $0x1f8] sm:$0xff]
  %s2079 = scalar_lea.vmem %s2, 128
  %v2080 = vld [vmem:[%s2079] sm:$0xff]
  %v2081 = vld [vmem:[%s2079 + $0x8] sm:$0xff]
  %v2082 = vld [vmem:[%s2079 + $0x10] sm:$0xff]
  %v2083 = vld [vmem:[%s2079 + $0x18] sm:$0xff]
  %v2084 = vld [vmem:[%s2079 + $0x20] sm:$0xff]
  %v2085 = vld [vmem:[%s2079 + $0x28] sm:$0xff]
  %v2086 = vld [vmem:[%s2079 + $0x30] sm:$0xff]
  %v2087 = vld [vmem:[%s2079 + $0x38] sm:$0xff]
  %v2088 = vld [vmem:[%s2079 + $0x40] sm:$0xff]
  %v2089 = vld [vmem:[%s2079 + $0x48] sm:$0xff]
  %v2090 = vld [vmem:[%s2079 + $0x50] sm:$0xff]
  %v2091 = vld [vmem:[%s2079 + $0x58] sm:$0xff]
  %v2092 = vld [vmem:[%s2079 + $0x60] sm:$0xff]
  %v2093 = vld [vmem:[%s2079 + $0x68] sm:$0xff]
  %v2094 = vld [vmem:[%s2079 + $0x70] sm:$0xff]
  %v2095 = vld [vmem:[%s2079 + $0x78] sm:$0xff]
  %2096 = vmatprep.subr.mxu0 0.0
  %2097 = vmatpush1.msra.mxu0 %v2095
  %2098 = vmatprep.subr.mxu0 0.0
  %2099 = vmatpush1.msra.mxu0 %v2094
  %2100 = vmatprep.subr.mxu0 0.0
  %2101 = vmatpush1.msra.mxu0 %v2093
  %2102 = vmatprep.subr.mxu0 0.0
  %2103 = vmatpush1.msra.mxu0 %v2092
  %2104 = vmatprep.subr.mxu0 0.0
  %2105 = vmatpush1.msra.mxu0 %v2091
  %2106 = vmatprep.subr.mxu0 0.0
  %2107 = vmatpush1.msra.mxu0 %v2090
  %2108 = vmatprep.subr.mxu0 0.0
  %2109 = vmatpush1.msra.mxu0 %v2089
  %2110 = vmatprep.subr.mxu0 0.0
  %2111 = vmatpush1.msra.mxu0 %v2088
  %2112 = vmatprep.subr.mxu0 0.0
  %2113 = vmatpush1.msra.mxu0 %v2087
  %2114 = vmatprep.subr.mxu0 0.0
  %2115 = vmatpush1.msra.mxu0 %v2086
  %2116 = vmatprep.subr.mxu0 0.0
  %2117 = vmatpush1.msra.mxu0 %v2085
  %2118 = vmatprep.subr.mxu0 0.0
  %2119 = vmatpush1.msra.mxu0 %v2084
  %2120 = vmatprep.subr.mxu0 0.0
  %2121 = vmatpush1.msra.mxu0 %v2083
  %2122 = vmatprep.subr.mxu0 0.0
  %2123 = vmatpush1.msra.mxu0 %v2082
  %2124 = vmatprep.subr.mxu0 0.0
  %2125 = vmatpush1.msra.mxu0 %v2081
  %2126 = vmatprep.subr.mxu0 0.0
  %2127 = vmatpush1.msra.mxu0 %v2080
  %2128 = vmatprep.subr.mxu0 0.0
  %2129 = vmatpush2.msra.mxu0 0.0
  %2130 = vmatprep.subr.mxu0 0.0
  %2131 = vmatpush2.msra.mxu0 0.0
  %2132 = vmatprep.subr.mxu0 0.0
  %2133 = vmatpush2.msra.mxu0 0.0
  %2134 = vmatprep.subr.mxu0 0.0
  %2135 = vmatpush2.msra.mxu0 0.0
  %2136 = vmatprep.subr.mxu0 0.0
  %2137 = vmatpush2.msra.mxu0 0.0
  %2138 = vmatprep.subr.mxu0 0.0
  %2139 = vmatpush2.msra.mxu0 0.0
  %2140 = vmatprep.subr.mxu0 0.0
  %2141 = vmatpush2.msra.mxu0 0.0
  %2142 = vmatprep.subr.mxu0 0.0
  %2143 = vmatpush2.msra.mxu0 0.0
  %2144 = vmatprep.subr.mxu0 0.0
  %2145 = vmatpush2.msra.mxu0 0.0
  %2146 = vmatprep.subr.mxu0 0.0
  %2147 = vmatpush2.msra.mxu0 0.0
  %2148 = vmatprep.subr.mxu0 0.0
  %2149 = vmatpush2.msra.mxu0 0.0
  %2150 = vmatprep.subr.mxu0 0.0
  %2151 = vmatpush2.msra.mxu0 0.0
  %2152 = vmatprep.subr.mxu0 0.0
  %2153 = vmatpush2.msra.mxu0 0.0
  %2154 = vmatprep.subr.mxu0 0.0
  %2155 = vmatpush2.msra.mxu0 0.0
  %2156 = vmatprep.subr.mxu0 0.0
  %2157 = vmatpush2.msra.mxu0 0.0
  %2158 = vmatprep.subr.mxu0 0.0
  %2159 = vmatpush2.msra.mxu0 0.0
  %2160 = vmatprep.mubr.f32.mxu0 0.0
  %2161 = vmatmul.mubr.f32.gmra.mxu0 %v1951
  %v2162 = vpop.f32.mrf.mxu0
  %v2163 = vadd.f32 0.0, %v2162
  %v2164 = vpop.f32.mrf.mxu0
  %2165 = vmatprep.mubr.f32.mxu0 0.0
  %2166 = vmatmul.mubr.f32.gmra.mxu0 %v1952
  %v2167 = vpop.f32.mrf.mxu0
  %v2168 = vadd.f32 0.0, %v2167
  %v2169 = vpop.f32.mrf.mxu0
  %2170 = vmatprep.mubr.f32.mxu0 0.0
  %2171 = vmatmul.mubr.f32.gmra.mxu0 %v1953
  %v2172 = vpop.f32.mrf.mxu0
  %v2173 = vadd.f32 0.0, %v2172
  %v2174 = vpop.f32.mrf.mxu0
  %2175 = vmatprep.mubr.f32.mxu0 0.0
  %2176 = vmatmul.mubr.f32.gmra.mxu0 %v1954
  %v2177 = vpop.f32.mrf.mxu0
  %v2178 = vadd.f32 0.0, %v2177
  %v2179 = vpop.f32.mrf.mxu0
  %2180 = vmatprep.mubr.f32.mxu0 0.0
  %2181 = vmatmul.mubr.f32.gmra.mxu0 %v1955
  %v2182 = vpop.f32.mrf.mxu0
  %v2183 = vadd.f32 0.0, %v2182
  %v2184 = vpop.f32.mrf.mxu0
  %2185 = vmatprep.mubr.f32.mxu0 0.0
  %2186 = vmatmul.mubr.f32.gmra.mxu0 %v1956
  %v2187 = vpop.f32.mrf.mxu0
  %v2188 = vadd.f32 0.0, %v2187
  %v2189 = vpop.f32.mrf.mxu0
  %2190 = vmatprep.mubr.f32.mxu0 0.0
  %2191 = vmatmul.mubr.f32.gmra.mxu0 %v1957
  %v2192 = vpop.f32.mrf.mxu0
  %v2193 = vadd.f32 0.0, %v2192
  %v2194 = vpop.f32.mrf.mxu0
  %2195 = vmatprep.mubr.f32.mxu0 0.0
  %2196 = vmatmul.mubr.f32.gmra.mxu0 %v1958
  %v2197 = vpop.f32.mrf.mxu0
  %v2198 = vadd.f32 0.0, %v2197
  %v2199 = vpop.f32.mrf.mxu0
  %2200 = vmatprep.mubr.f32.mxu0 0.0
  %2201 = vmatmul.mubr.f32.gmra.mxu0 %v1959
  %v2202 = vpop.f32.mrf.mxu0
  %v2203 = vadd.f32 0.0, %v2202
  %v2204 = vpop.f32.mrf.mxu0
  %2205 = vmatprep.mubr.f32.mxu0 0.0
  %2206 = vmatmul.mubr.f32.gmra.mxu0 %v1960
  %v2207 = vpop.f32.mrf.mxu0
  %v2208 = vadd.f32 0.0, %v2207
  %v2209 = vpop.f32.mrf.mxu0
  %2210 = vmatprep.mubr.f32.mxu0 0.0
  %2211 = vmatmul.mubr.f32.gmra.mxu0 %v1961
  %v2212 = vpop.f32.mrf.mxu0
  %v2213 = vadd.f32 0.0, %v2212
  %v2214 = vpop.f32.mrf.mxu0
  %2215 = vmatprep.mubr.f32.mxu0 0.0
  %2216 = vmatmul.mubr.f32.gmra.mxu0 %v1962
  %v2217 = vpop.f32.mrf.mxu0
  %v2218 = vadd.f32 0.0, %v2217
  %v2219 = vpop.f32.mrf.mxu0
  %2220 = vmatprep.mubr.f32.mxu0 0.0
  %2221 = vmatmul.mubr.f32.gmra.mxu0 %v1963
  %v2222 = vpop.f32.mrf.mxu0
  %v2223 = vadd.f32 0.0, %v2222
  %v2224 = vpop.f32.mrf.mxu0
  %2225 = vmatprep.mubr.f32.mxu0 0.0
  %2226 = vmatmul.mubr.f32.gmra.mxu0 %v1964
  %v2227 = vpop.f32.mrf.mxu0
  %v2228 = vadd.f32 0.0, %v2227
  %v2229 = vpop.f32.mrf.mxu0
  %2230 = vmatprep.mubr.f32.mxu0 0.0
  %2231 = vmatmul.mubr.f32.gmra.mxu0 %v1965
  %v2232 = vpop.f32.mrf.mxu0
  %v2233 = vadd.f32 0.0, %v2232
  %v2234 = vpop.f32.mrf.mxu0
  %2235 = vmatprep.mubr.f32.mxu0 0.0
  %2236 = vmatmul.mubr.f32.gmra.mxu0 %v1966
  %v2237 = vpop.f32.mrf.mxu0
  %v2238 = vadd.f32 0.0, %v2237
  %v2239 = vpop.f32.mrf.mxu0
  %2240 = vmatprep.mubr.f32.mxu0 0.0
  %2241 = vmatmul.mubr.f32.gmra.mxu0 %v1967
  %v2242 = vpop.f32.mrf.mxu0
  %v2243 = vadd.f32 0.0, %v2242
  %v2244 = vpop.f32.mrf.mxu0
  %2245 = vmatprep.mubr.f32.mxu0 0.0
  %2246 = vmatmul.mubr.f32.gmra.mxu0 %v1968
  %v2247 = vpop.f32.mrf.mxu0
  %v2248 = vadd.f32 0.0, %v2247
  %v2249 = vpop.f32.mrf.mxu0
  %2250 = vmatprep.mubr.f32.mxu0 0.0
  %2251 = vmatmul.mubr.f32.gmra.mxu0 %v1969
  %v2252 = vpop.f32.mrf.mxu0
  %v2253 = vadd.f32 0.0, %v2252
  %v2254 = vpop.f32.mrf.mxu0
  %2255 = vmatprep.mubr.f32.mxu0 0.0
  %2256 = vmatmul.mubr.f32.gmra.mxu0 %v1970
  %v2257 = vpop.f32.mrf.mxu0
  %v2258 = vadd.f32 0.0, %v2257
  %v2259 = vpop.f32.mrf.mxu0
  %2260 = vmatprep.mubr.f32.mxu0 0.0
  %2261 = vmatmul.mubr.f32.gmra.mxu0 %v1971
  %v2262 = vpop.f32.mrf.mxu0
  %v2263 = vadd.f32 0.0, %v2262
  %v2264 = vpop.f32.mrf.mxu0
  %2265 = vmatprep.mubr.f32.mxu0 0.0
  %2266 = vmatmul.mubr.f32.gmra.mxu0 %v1972
  %v2267 = vpop.f32.mrf.mxu0
  %v2268 = vadd.f32 0.0, %v2267
  %v2269 = vpop.f32.mrf.mxu0
  %2270 = vmatprep.mubr.f32.mxu0 0.0
  %2271 = vmatmul.mubr.f32.gmra.mxu0 %v1973
  %v2272 = vpop.f32.mrf.mxu0
  %v2273 = vadd.f32 0.0, %v2272
  %v2274 = vpop.f32.mrf.mxu0
  %2275 = vmatprep.mubr.f32.mxu0 0.0
  %2276 = vmatmul.mubr.f32.gmra.mxu0 %v1974
  %v2277 = vpop.f32.mrf.mxu0
  %v2278 = vadd.f32 0.0, %v2277
  %v2279 = vpop.f32.mrf.mxu0
  %2280 = vmatprep.mubr.f32.mxu0 0.0
  %2281 = vmatmul.mubr.f32.gmra.mxu0 %v1975
  %v2282 = vpop.f32.mrf.mxu0
  %v2283 = vadd.f32 0.0, %v2282
  %v2284 = vpop.f32.mrf.mxu0
  %2285 = vmatprep.mubr.f32.mxu0 0.0
  %2286 = vmatmul.mubr.f32.gmra.mxu0 %v1976
  %v2287 = vpop.f32.mrf.mxu0
  %v2288 = vadd.f32 0.0, %v2287
  %v2289 = vpop.f32.mrf.mxu0
  %2290 = vmatprep.mubr.f32.mxu0 0.0
  %2291 = vmatmul.mubr.f32.gmra.mxu0 %v1977
  %v2292 = vpop.f32.mrf.mxu0
  %v2293 = vadd.f32 0.0, %v2292
  %v2294 = vpop.f32.mrf.mxu0
  %2295 = vmatprep.mubr.f32.mxu0 0.0
  %2296 = vmatmul.mubr.f32.gmra.mxu0 %v1978
  %v2297 = vpop.f32.mrf.mxu0
  %v2298 = vadd.f32 0.0, %v2297
  %v2299 = vpop.f32.mrf.mxu0
  %2300 = vmatprep.mubr.f32.mxu0 0.0
  %2301 = vmatmul.mubr.f32.gmra.mxu0 %v1979
  %v2302 = vpop.f32.mrf.mxu0
  %v2303 = vadd.f32 0.0, %v2302
  %v2304 = vpop.f32.mrf.mxu0
  %2305 = vmatprep.mubr.f32.mxu0 0.0
  %2306 = vmatmul.mubr.f32.gmra.mxu0 %v1980
  %v2307 = vpop.f32.mrf.mxu0
  %v2308 = vadd.f32 0.0, %v2307
  %v2309 = vpop.f32.mrf.mxu0
  %2310 = vmatprep.mubr.f32.mxu0 0.0
  %2311 = vmatmul.mubr.f32.gmra.mxu0 %v1981
  %v2312 = vpop.f32.mrf.mxu0
  %v2313 = vadd.f32 0.0, %v2312
  %v2314 = vpop.f32.mrf.mxu0
  %2315 = vmatprep.mubr.f32.mxu0 0.0
  %2316 = vmatmul.mubr.f32.gmra.mxu0 %v1982
  %v2317 = vpop.f32.mrf.mxu0
  %v2318 = vadd.f32 0.0, %v2317
  %v2319 = vpop.f32.mrf.mxu0
  %2320 = vmatprep.mubr.f32.mxu0 0.0
  %2321 = vmatmul.mubr.f32.gmra.mxu0 %v1983
  %v2322 = vpop.f32.mrf.mxu0
  %v2323 = vadd.f32 0.0, %v2322
  %v2324 = vpop.f32.mrf.mxu0
  %2325 = vmatprep.mubr.f32.mxu0 0.0
  %2326 = vmatmul.mubr.f32.gmra.mxu0 %v1984
  %v2327 = vpop.f32.mrf.mxu0
  %v2328 = vadd.f32 0.0, %v2327
  %v2329 = vpop.f32.mrf.mxu0
  %2330 = vmatprep.mubr.f32.mxu0 0.0
  %2331 = vmatmul.mubr.f32.gmra.mxu0 %v1985
  %v2332 = vpop.f32.mrf.mxu0
  %v2333 = vadd.f32 0.0, %v2332
  %v2334 = vpop.f32.mrf.mxu0
  %2335 = vmatprep.mubr.f32.mxu0 0.0
  %2336 = vmatmul.mubr.f32.gmra.mxu0 %v1986
  %v2337 = vpop.f32.mrf.mxu0
  %v2338 = vadd.f32 0.0, %v2337
  %v2339 = vpop.f32.mrf.mxu0
  %2340 = vmatprep.mubr.f32.mxu0 0.0
  %2341 = vmatmul.mubr.f32.gmra.mxu0 %v1987
  %v2342 = vpop.f32.mrf.mxu0
  %v2343 = vadd.f32 0.0, %v2342
  %v2344 = vpop.f32.mrf.mxu0
  %2345 = vmatprep.mubr.f32.mxu0 0.0
  %2346 = vmatmul.mubr.f32.gmra.mxu0 %v1988
  %v2347 = vpop.f32.mrf.mxu0
  %v2348 = vadd.f32 0.0, %v2347
  %v2349 = vpop.f32.mrf.mxu0
  %2350 = vmatprep.mubr.f32.mxu0 0.0
  %2351 = vmatmul.mubr.f32.gmra.mxu0 %v1989
  %v2352 = vpop.f32.mrf.mxu0
  %v2353 = vadd.f32 0.0, %v2352
  %v2354 = vpop.f32.mrf.mxu0
  %2355 = vmatprep.mubr.f32.mxu0 0.0
  %2356 = vmatmul.mubr.f32.gmra.mxu0 %v1990
  %v2357 = vpop.f32.mrf.mxu0
  %v2358 = vadd.f32 0.0, %v2357
  %v2359 = vpop.f32.mrf.mxu0
  %2360 = vmatprep.mubr.f32.mxu0 0.0
  %2361 = vmatmul.mubr.f32.gmra.mxu0 %v1991
  %v2362 = vpop.f32.mrf.mxu0
  %v2363 = vadd.f32 0.0, %v2362
  %v2364 = vpop.f32.mrf.mxu0
  %2365 = vmatprep.mubr.f32.mxu0 0.0
  %2366 = vmatmul.mubr.f32.gmra.mxu0 %v1992
  %v2367 = vpop.f32.mrf.mxu0
  %v2368 = vadd.f32 0.0, %v2367
  %v2369 = vpop.f32.mrf.mxu0
  %2370 = vmatprep.mubr.f32.mxu0 0.0
  %2371 = vmatmul.mubr.f32.gmra.mxu0 %v1993
  %v2372 = vpop.f32.mrf.mxu0
  %v2373 = vadd.f32 0.0, %v2372
  %v2374 = vpop.f32.mrf.mxu0
  %2375 = vmatprep.mubr.f32.mxu0 0.0
  %2376 = vmatmul.mubr.f32.gmra.mxu0 %v1994
  %v2377 = vpop.f32.mrf.mxu0
  %v2378 = vadd.f32 0.0, %v2377
  %v2379 = vpop.f32.mrf.mxu0
  %2380 = vmatprep.mubr.f32.mxu0 0.0
  %2381 = vmatmul.mubr.f32.gmra.mxu0 %v1995
  %v2382 = vpop.f32.mrf.mxu0
  %v2383 = vadd.f32 0.0, %v2382
  %v2384 = vpop.f32.mrf.mxu0
  %2385 = vmatprep.mubr.f32.mxu0 0.0
  %2386 = vmatmul.mubr.f32.gmra.mxu0 %v1996
  %v2387 = vpop.f32.mrf.mxu0
  %v2388 = vadd.f32 0.0, %v2387
  %v2389 = vpop.f32.mrf.mxu0
  %2390 = vmatprep.mubr.f32.mxu0 0.0
  %2391 = vmatmul.mubr.f32.gmra.mxu0 %v1997
  %v2392 = vpop.f32.mrf.mxu0
  %v2393 = vadd.f32 0.0, %v2392
  %v2394 = vpop.f32.mrf.mxu0
  %2395 = vmatprep.mubr.f32.mxu0 0.0
  %2396 = vmatmul.mubr.f32.gmra.mxu0 %v1998
  %v2397 = vpop.f32.mrf.mxu0
  %v2398 = vadd.f32 0.0, %v2397
  %v2399 = vpop.f32.mrf.mxu0
  %2400 = vmatprep.mubr.f32.mxu0 0.0
  %2401 = vmatmul.mubr.f32.gmra.mxu0 %v1999
  %v2402 = vpop.f32.mrf.mxu0
  %v2403 = vadd.f32 0.0, %v2402
  %v2404 = vpop.f32.mrf.mxu0
  %2405 = vmatprep.mubr.f32.mxu0 0.0
  %2406 = vmatmul.mubr.f32.gmra.mxu0 %v2000
  %v2407 = vpop.f32.mrf.mxu0
  %v2408 = vadd.f32 0.0, %v2407
  %v2409 = vpop.f32.mrf.mxu0
  %2410 = vmatprep.mubr.f32.mxu0 0.0
  %2411 = vmatmul.mubr.f32.gmra.mxu0 %v2001
  %v2412 = vpop.f32.mrf.mxu0
  %v2413 = vadd.f32 0.0, %v2412
  %v2414 = vpop.f32.mrf.mxu0
  %2415 = vmatprep.mubr.f32.mxu0 0.0
  %2416 = vmatmul.mubr.f32.gmra.mxu0 %v2002
  %v2417 = vpop.f32.mrf.mxu0
  %v2418 = vadd.f32 0.0, %v2417
  %v2419 = vpop.f32.mrf.mxu0
  %2420 = vmatprep.mubr.f32.mxu0 0.0
  %2421 = vmatmul.mubr.f32.gmra.mxu0 %v2003
  %v2422 = vpop.f32.mrf.mxu0
  %v2423 = vadd.f32 0.0, %v2422
  %v2424 = vpop.f32.mrf.mxu0
  %2425 = vmatprep.mubr.f32.mxu0 0.0
  %2426 = vmatmul.mubr.f32.gmra.mxu0 %v2004
  %v2427 = vpop.f32.mrf.mxu0
  %v2428 = vadd.f32 0.0, %v2427
  %v2429 = vpop.f32.mrf.mxu0
  %2430 = vmatprep.mubr.f32.mxu0 0.0
  %2431 = vmatmul.mubr.f32.gmra.mxu0 %v2005
  %v2432 = vpop.f32.mrf.mxu0
  %v2433 = vadd.f32 0.0, %v2432
  %v2434 = vpop.f32.mrf.mxu0
  %2435 = vmatprep.mubr.f32.mxu0 0.0
  %2436 = vmatmul.mubr.f32.gmra.mxu0 %v2006
  %v2437 = vpop.f32.mrf.mxu0
  %v2438 = vadd.f32 0.0, %v2437
  %v2439 = vpop.f32.mrf.mxu0
  %2440 = vmatprep.mubr.f32.mxu0 0.0
  %2441 = vmatmul.mubr.f32.gmra.mxu0 %v2007
  %v2442 = vpop.f32.mrf.mxu0
  %v2443 = vadd.f32 0.0, %v2442
  %v2444 = vpop.f32.mrf.mxu0
  %2445 = vmatprep.mubr.f32.mxu0 0.0
  %2446 = vmatmul.mubr.f32.gmra.mxu0 %v2008
  %v2447 = vpop.f32.mrf.mxu0
  %v2448 = vadd.f32 0.0, %v2447
  %v2449 = vpop.f32.mrf.mxu0
  %2450 = vmatprep.mubr.f32.mxu0 0.0
  %2451 = vmatmul.mubr.f32.gmra.mxu0 %v2009
  %v2452 = vpop.f32.mrf.mxu0
  %v2453 = vadd.f32 0.0, %v2452
  %v2454 = vpop.f32.mrf.mxu0
  %2455 = vmatprep.mubr.f32.mxu0 0.0
  %2456 = vmatmul.mubr.f32.gmra.mxu0 %v2010
  %v2457 = vpop.f32.mrf.mxu0
  %v2458 = vadd.f32 0.0, %v2457
  %v2459 = vpop.f32.mrf.mxu0
  %2460 = vmatprep.mubr.f32.mxu0 0.0
  %2461 = vmatmul.mubr.f32.gmra.mxu0 %v2011
  %v2462 = vpop.f32.mrf.mxu0
  %v2463 = vadd.f32 0.0, %v2462
  %v2464 = vpop.f32.mrf.mxu0
  %2465 = vmatprep.mubr.f32.mxu0 0.0
  %2466 = vmatmul.mubr.f32.gmra.mxu0 %v2012
  %v2467 = vpop.f32.mrf.mxu0
  %v2468 = vadd.f32 0.0, %v2467
  %v2469 = vpop.f32.mrf.mxu0
  %2470 = vmatprep.mubr.f32.mxu0 0.0
  %2471 = vmatmul.mubr.f32.gmra.mxu0 %v2013
  %v2472 = vpop.f32.mrf.mxu0
  %v2473 = vadd.f32 0.0, %v2472
  %v2474 = vpop.f32.mrf.mxu0
  %2475 = vmatprep.mubr.f32.mxu0 0.0
  %2476 = vmatmul.mubr.f32.gmra.mxu0 %v2014
  %v2477 = vpop.f32.mrf.mxu0
  %v2478 = vadd.f32 0.0, %v2477
  %v2479 = vpop.f32.mrf.mxu0
  %2480 = vdwg.mxu0
  %v2481 = vadd.f32 %v2015, %v2163
  %v2482 = vadd.f32 %v2016, %v2168
  %v2483 = vadd.f32 %v2017, %v2173
  %v2484 = vadd.f32 %v2018, %v2178
  %v2485 = vadd.f32 %v2019, %v2183
  %v2486 = vadd.f32 %v2020, %v2188
  %v2487 = vadd.f32 %v2021, %v2193
  %v2488 = vadd.f32 %v2022, %v2198
  %v2489 = vadd.f32 %v2023, %v2203
  %v2490 = vadd.f32 %v2024, %v2208
  %v2491 = vadd.f32 %v2025, %v2213
  %v2492 = vadd.f32 %v2026, %v2218
  %v2493 = vadd.f32 %v2027, %v2223
  %v2494 = vadd.f32 %v2028, %v2228
  %v2495 = vadd.f32 %v2029, %v2233
  %v2496 = vadd.f32 %v2030, %v2238
  %v2497 = vadd.f32 %v2031, %v2243
  %v2498 = vadd.f32 %v2032, %v2248
  %v2499 = vadd.f32 %v2033, %v2253
  %v2500 = vadd.f32 %v2034, %v2258
  %v2501 = vadd.f32 %v2035, %v2263
  %v2502 = vadd.f32 %v2036, %v2268
  %v2503 = vadd.f32 %v2037, %v2273
  %v2504 = vadd.f32 %v2038, %v2278
  %v2505 = vadd.f32 %v2039, %v2283
  %v2506 = vadd.f32 %v2040, %v2288
  %v2507 = vadd.f32 %v2041, %v2293
  %v2508 = vadd.f32 %v2042, %v2298
  %v2509 = vadd.f32 %v2043, %v2303
  %v2510 = vadd.f32 %v2044, %v2308
  %v2511 = vadd.f32 %v2045, %v2313
  %v2512 = vadd.f32 %v2046, %v2318
  %v2513 = vadd.f32 %v2047, %v2323
  %v2514 = vadd.f32 %v2048, %v2328
  %v2515 = vadd.f32 %v2049, %v2333
  %v2516 = vadd.f32 %v2050, %v2338
  %v2517 = vadd.f32 %v2051, %v2343
  %v2518 = vadd.f32 %v2052, %v2348
  %v2519 = vadd.f32 %v2053, %v2353
  %v2520 = vadd.f32 %v2054, %v2358
  %v2521 = vadd.f32 %v2055, %v2363
  %v2522 = vadd.f32 %v2056, %v2368
  %v2523 = vadd.f32 %v2057, %v2373
  %v2524 = vadd.f32 %v2058, %v2378
  %v2525 = vadd.f32 %v2059, %v2383
  %v2526 = vadd.f32 %v2060, %v2388
  %v2527 = vadd.f32 %v2061, %v2393
  %v2528 = vadd.f32 %v2062, %v2398
  %v2529 = vadd.f32 %v2063, %v2403
  %v2530 = vadd.f32 %v2064, %v2408
  %v2531 = vadd.f32 %v2065, %v2413
  %v2532 = vadd.f32 %v2066, %v2418
  %v2533 = vadd.f32 %v2067, %v2423
  %v2534 = vadd.f32 %v2068, %v2428
  %v2535 = vadd.f32 %v2069, %v2433
  %v2536 = vadd.f32 %v2070, %v2438
  %v2537 = vadd.f32 %v2071, %v2443
  %v2538 = vadd.f32 %v2072, %v2448
  %v2539 = vadd.f32 %v2073, %v2453
  %v2540 = vadd.f32 %v2074, %v2458
  %v2541 = vadd.f32 %v2075, %v2463
  %v2542 = vadd.f32 %v2076, %v2468
  %v2543 = vadd.f32 %v2077, %v2473
  %v2544 = vadd.f32 %v2078, %v2478
  %2545 = vst [vmem:[#allocation3] sm:$0xff] %v2481
  %2546 = vst [vmem:[#allocation3 + $0x8] sm:$0xff] %v2482
  %2547 = vst [vmem:[#allocation3 + $0x10] sm:$0xff] %v2483
  %2548 = vst [vmem:[#allocation3 + $0x18] sm:$0xff] %v2484
  %2549 = vst [vmem:[#allocation3 + $0x20] sm:$0xff] %v2485
  %2550 = vst [vmem:[#allocation3 + $0x28] sm:$0xff] %v2486
  %2551 = vst [vmem:[#allocation3 + $0x30] sm:$0xff] %v2487
  %2552 = vst [vmem:[#allocation3 + $0x38] sm:$0xff] %v2488
  %2553 = vst [vmem:[#allocation3 + $0x40] sm:$0xff] %v2489
  %2554 = vst [vmem:[#allocation3 + $0x48] sm:$0xff] %v2490
  %2555 = vst [vmem:[#allocation3 + $0x50] sm:$0xff] %v2491
  %2556 = vst [vmem:[#allocation3 + $0x58] sm:$0xff] %v2492
  %2557 = vst [vmem:[#allocation3 + $0x60] sm:$0xff] %v2493
  %2558 = vst [vmem:[#allocation3 + $0x68] sm:$0xff] %v2494
  %2559 = vst [vmem:[#allocation3 + $0x70] sm:$0xff] %v2495
  %2560 = vst [vmem:[#allocation3 + $0x78] sm:$0xff] %v2496
  %2561 = vst [vmem:[#allocation3 + $0x80] sm:$0xff] %v2497
  %2562 = vst [vmem:[#allocation3 + $0x88] sm:$0xff] %v2498
  %2563 = vst [vmem:[#allocation3 + $0x90] sm:$0xff] %v2499
  %2564 = vst [vmem:[#allocation3 + $0x98] sm:$0xff] %v2500
  %2565 = vst [vmem:[#allocation3 + $0xa0] sm:$0xff] %v2501
  %2566 = vst [vmem:[#allocation3 + $0xa8] sm:$0xff] %v2502
  %2567 = vst [vmem:[#allocation3 + $0xb0] sm:$0xff] %v2503
  %2568 = vst [vmem:[#allocation3 + $0xb8] sm:$0xff] %v2504
  %2569 = vst [vmem:[#allocation3 + $0xc0] sm:$0xff] %v2505
  %2570 = vst [vmem:[#allocation3 + $0xc8] sm:$0xff] %v2506
  %2571 = vst [vmem:[#allocation3 + $0xd0] sm:$0xff] %v2507
  %2572 = vst [vmem:[#allocation3 + $0xd8] sm:$0xff] %v2508
  %2573 = vst [vmem:[#allocation3 + $0xe0] sm:$0xff] %v2509
  %2574 = vst [vmem:[#allocation3 + $0xe8] sm:$0xff] %v2510
  %2575 = vst [vmem:[#allocation3 + $0xf0] sm:$0xff] %v2511
  %2576 = vst [vmem:[#allocation3 + $0xf8] sm:$0xff] %v2512
  %2577 = vst [vmem:[#allocation3 + $0x100] sm:$0xff] %v2513
  %2578 = vst [vmem:[#allocation3 + $0x108] sm:$0xff] %v2514
  %2579 = vst [vmem:[#allocation3 + $0x110] sm:$0xff] %v2515
  %2580 = vst [vmem:[#allocation3 + $0x118] sm:$0xff] %v2516
  %2581 = vst [vmem:[#allocation3 + $0x120] sm:$0xff] %v2517
  %2582 = vst [vmem:[#allocation3 + $0x128] sm:$0xff] %v2518
  %2583 = vst [vmem:[#allocation3 + $0x130] sm:$0xff] %v2519
  %2584 = vst [vmem:[#allocation3 + $0x138] sm:$0xff] %v2520
  %2585 = vst [vmem:[#allocation3 + $0x140] sm:$0xff] %v2521
  %2586 = vst [vmem:[#allocation3 + $0x148] sm:$0xff] %v2522
  %2587 = vst [vmem:[#allocation3 + $0x150] sm:$0xff] %v2523
  %2588 = vst [vmem:[#allocation3 + $0x158] sm:$0xff] %v2524
  %2589 = vst [vmem:[#allocation3 + $0x160] sm:$0xff] %v2525
  %2590 = vst [vmem:[#allocation3 + $0x168] sm:$0xff] %v2526
  %2591 = vst [vmem:[#allocation3 + $0x170] sm:$0xff] %v2527
  %2592 = vst [vmem:[#allocation3 + $0x178] sm:$0xff] %v2528
  %2593 = vst [vmem:[#allocation3 + $0x180] sm:$0xff] %v2529
  %2594 = vst [vmem:[#allocation3 + $0x188] sm:$0xff] %v2530
  %2595 = vst [vmem:[#allocation3 + $0x190] sm:$0xff] %v2531
  %2596 = vst [vmem:[#allocation3 + $0x198] sm:$0xff] %v2532
  %2597 = vst [vmem:[#allocation3 + $0x1a0] sm:$0xff] %v2533
  %2598 = vst [vmem:[#allocation3 + $0x1a8] sm:$0xff] %v2534
  %2599 = vst [vmem:[#allocation3 + $0x1b0] sm:$0xff] %v2535
  %2600 = vst [vmem:[#allocation3 + $0x1b8] sm:$0xff] %v2536
  %2601 = vst [vmem:[#allocation3 + $0x1c0] sm:$0xff] %v2537
  %2602 = vst [vmem:[#allocation3 + $0x1c8] sm:$0xff] %v2538
  %2603 = vst [vmem:[#allocation3 + $0x1d0] sm:$0xff] %v2539
  %2604 = vst [vmem:[#allocation3 + $0x1d8] sm:$0xff] %v2540
  %2605 = vst [vmem:[#allocation3 + $0x1e0] sm:$0xff] %v2541
  %2606 = vst [vmem:[#allocation3 + $0x1e8] sm:$0xff] %v2542
  %2607 = vst [vmem:[#allocation3 + $0x1f0] sm:$0xff] %v2543
  %2608 = vst [vmem:[#allocation3 + $0x1f8] sm:$0xff] %v2544
  %v2609 = vld [vmem:[#allocation2 + $0x9] sm:$0xff]
  %v2610 = vld [vmem:[#allocation2 + $0x11] sm:$0xff]
  %v2611 = vld [vmem:[#allocation2 + $0x29] sm:$0xff]
  %v2612 = vld [vmem:[#allocation2 + $0x31] sm:$0xff]
  %v2613 = vld [vmem:[#allocation2 + $0x49] sm:$0xff]
  %v2614 = vld [vmem:[#allocation2 + $0x51] sm:$0xff]
  %v2615 = vld [vmem:[#allocation2 + $0x69] sm:$0xff]
  %v2616 = vld [vmem:[#allocation2 + $0x71] sm:$0xff]
  %v2617 = vld [vmem:[#allocation2 + $0x89] sm:$0xff]
  %v2618 = vld [vmem:[#allocation2 + $0x91] sm:$0xff]
  %v2619 = vld [vmem:[#allocation2 + $0xa9] sm:$0xff]
  %v2620 = vld [vmem:[#allocation2 + $0xb1] sm:$0xff]
  %v2621 = vld [vmem:[#allocation2 + $0xc9] sm:$0xff]
  %v2622 = vld [vmem:[#allocation2 + $0xd1] sm:$0xff]
  %v2623 = vld [vmem:[#allocation2 + $0xe9] sm:$0xff]
  %v2624 = vld [vmem:[#allocation2 + $0xf1] sm:$0xff]
  %v2625 = vld [vmem:[#allocation2 + $0x109] sm:$0xff]
  %v2626 = vld [vmem:[#allocation2 + $0x111] sm:$0xff]
  %v2627 = vld [vmem:[#allocation2 + $0x129] sm:$0xff]
  %v2628 = vld [vmem:[#allocation2 + $0x131] sm:$0xff]
  %v2629 = vld [vmem:[#allocation2 + $0x149] sm:$0xff]
  %v2630 = vld [vmem:[#allocation2 + $0x151] sm:$0xff]
  %v2631 = vld [vmem:[#allocation2 + $0x169] sm:$0xff]
  %v2632 = vld [vmem:[#allocation2 + $0x171] sm:$0xff]
  %v2633 = vld [vmem:[#allocation2 + $0x189] sm:$0xff]
  %v2634 = vld [vmem:[#allocation2 + $0x191] sm:$0xff]
  %v2635 = vld [vmem:[#allocation2 + $0x1a9] sm:$0xff]
  %v2636 = vld [vmem:[#allocation2 + $0x1b1] sm:$0xff]
  %v2637 = vld [vmem:[#allocation2 + $0x1c9] sm:$0xff]
  %v2638 = vld [vmem:[#allocation2 + $0x1d1] sm:$0xff]
  %v2639 = vld [vmem:[#allocation2 + $0x1e9] sm:$0xff]
  %v2640 = vld [vmem:[#allocation2 + $0x1f1] sm:$0xff]
  %v2641 = vld [vmem:[#allocation2 + $0x249] sm:$0xff]
  %v2642 = vld [vmem:[#allocation2 + $0x251] sm:$0xff]
  %v2643 = vld [vmem:[#allocation2 + $0x269] sm:$0xff]
  %v2644 = vld [vmem:[#allocation2 + $0x271] sm:$0xff]
  %v2645 = vld [vmem:[#allocation2 + $0x289] sm:$0xff]
  %v2646 = vld [vmem:[#allocation2 + $0x291] sm:$0xff]
  %v2647 = vld [vmem:[#allocation2 + $0x2a9] sm:$0xff]
  %v2648 = vld [vmem:[#allocation2 + $0x2b1] sm:$0xff]
  %v2649 = vld [vmem:[#allocation2 + $0x2c9] sm:$0xff]
  %v2650 = vld [vmem:[#allocation2 + $0x2d1] sm:$0xff]
  %v2651 = vld [vmem:[#allocation2 + $0x2e9] sm:$0xff]
  %v2652 = vld [vmem:[#allocation2 + $0x2f1] sm:$0xff]
  %v2653 = vld [vmem:[#allocation2 + $0x309] sm:$0xff]
  %v2654 = vld [vmem:[#allocation2 + $0x311] sm:$0xff]
  %v2655 = vld [vmem:[#allocation2 + $0x329] sm:$0xff]
  %v2656 = vld [vmem:[#allocation2 + $0x331] sm:$0xff]
  %v2657 = vld [vmem:[#allocation2 + $0x349] sm:$0xff]
  %v2658 = vld [vmem:[#allocation2 + $0x351] sm:$0xff]
  %v2659 = vld [vmem:[#allocation2 + $0x369] sm:$0xff]
  %v2660 = vld [vmem:[#allocation2 + $0x371] sm:$0xff]
  %v2661 = vld [vmem:[#allocation2 + $0x389] sm:$0xff]
  %v2662 = vld [vmem:[#allocation2 + $0x391] sm:$0xff]
  %v2663 = vld [vmem:[#allocation2 + $0x3a9] sm:$0xff]
  %v2664 = vld [vmem:[#allocation2 + $0x3b1] sm:$0xff]
  %v2665 = vld [vmem:[#allocation2 + $0x3c9] sm:$0xff]
  %v2666 = vld [vmem:[#allocation2 + $0x3d1] sm:$0xff]
  %v2667 = vld [vmem:[#allocation2 + $0x3e9] sm:$0xff]
  %v2668 = vld [vmem:[#allocation2 + $0x3f1] sm:$0xff]
  %v2669 = vld [vmem:[#allocation2 + $0x409] sm:$0xff]
  %v2670 = vld [vmem:[#allocation2 + $0x411] sm:$0xff]
  %v2671 = vld [vmem:[#allocation2 + $0x429] sm:$0xff]
  %v2672 = vld [vmem:[#allocation2 + $0x431] sm:$0xff]
  %v2673 = vld [vmem:[#allocation3] sm:$0xff]
  %v2674 = vld [vmem:[#allocation3 + $0x8] sm:$0xff]
  %v2675 = vld [vmem:[#allocation3 + $0x10] sm:$0xff]
  %v2676 = vld [vmem:[#allocation3 + $0x18] sm:$0xff]
  %v2677 = vld [vmem:[#allocation3 + $0x20] sm:$0xff]
  %v2678 = vld [vmem:[#allocation3 + $0x28] sm:$0xff]
  %v2679 = vld [vmem:[#allocation3 + $0x30] sm:$0xff]
  %v2680 = vld [vmem:[#allocation3 + $0x38] sm:$0xff]
  %v2681 = vld [vmem:[#allocation3 + $0x40] sm:$0xff]
  %v2682 = vld [vmem:[#allocation3 + $0x48] sm:$0xff]
  %v2683 = vld [vmem:[#allocation3 + $0x50] sm:$0xff]
  %v2684 = vld [vmem:[#allocation3 + $0x58] sm:$0xff]
  %v2685 = vld [vmem:[#allocation3 + $0x60] sm:$0xff]
  %v2686 = vld [vmem:[#allocation3 + $0x68] sm:$0xff]
  %v2687 = vld [vmem:[#allocation3 + $0x70] sm:$0xff]
  %v2688 = vld [vmem:[#allocation3 + $0x78] sm:$0xff]
  %v2689 = vld [vmem:[#allocation3 + $0x80] sm:$0xff]
  %v2690 = vld [vmem:[#allocation3 + $0x88] sm:$0xff]
  %v2691 = vld [vmem:[#allocation3 + $0x90] sm:$0xff]
  %v2692 = vld [vmem:[#allocation3 + $0x98] sm:$0xff]
  %v2693 = vld [vmem:[#allocation3 + $0xa0] sm:$0xff]
  %v2694 = vld [vmem:[#allocation3 + $0xa8] sm:$0xff]
  %v2695 = vld [vmem:[#allocation3 + $0xb0] sm:$0xff]
  %v2696 = vld [vmem:[#allocation3 + $0xb8] sm:$0xff]
  %v2697 = vld [vmem:[#allocation3 + $0xc0] sm:$0xff]
  %v2698 = vld [vmem:[#allocation3 + $0xc8] sm:$0xff]
  %v2699 = vld [vmem:[#allocation3 + $0xd0] sm:$0xff]
  %v2700 = vld [vmem:[#allocation3 + $0xd8] sm:$0xff]
  %v2701 = vld [vmem:[#allocation3 + $0xe0] sm:$0xff]
  %v2702 = vld [vmem:[#allocation3 + $0xe8] sm:$0xff]
  %v2703 = vld [vmem:[#allocation3 + $0xf0] sm:$0xff]
  %v2704 = vld [vmem:[#allocation3 + $0xf8] sm:$0xff]
  %v2705 = vld [vmem:[#allocation3 + $0x100] sm:$0xff]
  %v2706 = vld [vmem:[#allocation3 + $0x108] sm:$0xff]
  %v2707 = vld [vmem:[#allocation3 + $0x110] sm:$0xff]
  %v2708 = vld [vmem:[#allocation3 + $0x118] sm:$0xff]
  %v2709 = vld [vmem:[#allocation3 + $0x120] sm:$0xff]
  %v2710 = vld [vmem:[#allocation3 + $0x128] sm:$0xff]
  %v2711 = vld [vmem:[#allocation3 + $0x130] sm:$0xff]
  %v2712 = vld [vmem:[#allocation3 + $0x138] sm:$0xff]
  %v2713 = vld [vmem:[#allocation3 + $0x140] sm:$0xff]
  %v2714 = vld [vmem:[#allocation3 + $0x148] sm:$0xff]
  %v2715 = vld [vmem:[#allocation3 + $0x150] sm:$0xff]
  %v2716 = vld [vmem:[#allocation3 + $0x158] sm:$0xff]
  %v2717 = vld [vmem:[#allocation3 + $0x160] sm:$0xff]
  %v2718 = vld [vmem:[#allocation3 + $0x168] sm:$0xff]
  %v2719 = vld [vmem:[#allocation3 + $0x170] sm:$0xff]
  %v2720 = vld [vmem:[#allocation3 + $0x178] sm:$0xff]
  %v2721 = vld [vmem:[#allocation3 + $0x180] sm:$0xff]
  %v2722 = vld [vmem:[#allocation3 + $0x188] sm:$0xff]
  %v2723 = vld [vmem:[#allocation3 + $0x190] sm:$0xff]
  %v2724 = vld [vmem:[#allocation3 + $0x198] sm:$0xff]
  %v2725 = vld [vmem:[#allocation3 + $0x1a0] sm:$0xff]
  %v2726 = vld [vmem:[#allocation3 + $0x1a8] sm:$0xff]
  %v2727 = vld [vmem:[#allocation3 + $0x1b0] sm:$0xff]
  %v2728 = vld [vmem:[#allocation3 + $0x1b8] sm:$0xff]
  %v2729 = vld [vmem:[#allocation3 + $0x1c0] sm:$0xff]
  %v2730 = vld [vmem:[#allocation3 + $0x1c8] sm:$0xff]
  %v2731 = vld [vmem:[#allocation3 + $0x1d0] sm:$0xff]
  %v2732 = vld [vmem:[#allocation3 + $0x1d8] sm:$0xff]
  %v2733 = vld [vmem:[#allocation3 + $0x1e0] sm:$0xff]
  %v2734 = vld [vmem:[#allocation3 + $0x1e8] sm:$0xff]
  %v2735 = vld [vmem:[#allocation3 + $0x1f0] sm:$0xff]
  %v2736 = vld [vmem:[#allocation3 + $0x1f8] sm:$0xff]
  %s2737 = scalar_lea.vmem %s2, 256
  %v2738 = vld [vmem:[%s2737] sm:$0xff]
  %v2739 = vld [vmem:[%s2737 + $0x8] sm:$0xff]
  %v2740 = vld [vmem:[%s2737 + $0x10] sm:$0xff]
  %v2741 = vld [vmem:[%s2737 + $0x18] sm:$0xff]
  %v2742 = vld [vmem:[%s2737 + $0x20] sm:$0xff]
  %v2743 = vld [vmem:[%s2737 + $0x28] sm:$0xff]
  %v2744 = vld [vmem:[%s2737 + $0x30] sm:$0xff]
  %v2745 = vld [vmem:[%s2737 + $0x38] sm:$0xff]
  %v2746 = vld [vmem:[%s2737 + $0x40] sm:$0xff]
  %v2747 = vld [vmem:[%s2737 + $0x48] sm:$0xff]
  %v2748 = vld [vmem:[%s2737 + $0x50] sm:$0xff]
  %v2749 = vld [vmem:[%s2737 + $0x58] sm:$0xff]
  %v2750 = vld [vmem:[%s2737 + $0x60] sm:$0xff]
  %v2751 = vld [vmem:[%s2737 + $0x68] sm:$0xff]
  %v2752 = vld [vmem:[%s2737 + $0x70] sm:$0xff]
  %v2753 = vld [vmem:[%s2737 + $0x78] sm:$0xff]
  %2754 = vmatprep.subr.mxu0 0.0
  %2755 = vmatpush1.msra.mxu0 %v2753
  %2756 = vmatprep.subr.mxu0 0.0
  %2757 = vmatpush1.msra.mxu0 %v2752
  %2758 = vmatprep.subr.mxu0 0.0
  %2759 = vmatpush1.msra.mxu0 %v2751
  %2760 = vmatprep.subr.mxu0 0.0
  %2761 = vmatpush1.msra.mxu0 %v2750
  %2762 = vmatprep.subr.mxu0 0.0
  %2763 = vmatpush1.msra.mxu0 %v2749
  %2764 = vmatprep.subr.mxu0 0.0
  %2765 = vmatpush1.msra.mxu0 %v2748
  %2766 = vmatprep.subr.mxu0 0.0
  %2767 = vmatpush1.msra.mxu0 %v2747
  %2768 = vmatprep.subr.mxu0 0.0
  %2769 = vmatpush1.msra.mxu0 %v2746
  %2770 = vmatprep.subr.mxu0 0.0
  %2771 = vmatpush1.msra.mxu0 %v2745
  %2772 = vmatprep.subr.mxu0 0.0
  %2773 = vmatpush1.msra.mxu0 %v2744
  %2774 = vmatprep.subr.mxu0 0.0
  %2775 = vmatpush1.msra.mxu0 %v2743
  %2776 = vmatprep.subr.mxu0 0.0
  %2777 = vmatpush1.msra.mxu0 %v2742
  %2778 = vmatprep.subr.mxu0 0.0
  %2779 = vmatpush1.msra.mxu0 %v2741
  %2780 = vmatprep.subr.mxu0 0.0
  %2781 = vmatpush1.msra.mxu0 %v2740
  %2782 = vmatprep.subr.mxu0 0.0
  %2783 = vmatpush1.msra.mxu0 %v2739
  %2784 = vmatprep.subr.mxu0 0.0
  %2785 = vmatpush1.msra.mxu0 %v2738
  %2786 = vmatprep.subr.mxu0 0.0
  %2787 = vmatpush2.msra.mxu0 0.0
  %2788 = vmatprep.subr.mxu0 0.0
  %2789 = vmatpush2.msra.mxu0 0.0
  %2790 = vmatprep.subr.mxu0 0.0
  %2791 = vmatpush2.msra.mxu0 0.0
  %2792 = vmatprep.subr.mxu0 0.0
  %2793 = vmatpush2.msra.mxu0 0.0
  %2794 = vmatprep.subr.mxu0 0.0
  %2795 = vmatpush2.msra.mxu0 0.0
  %2796 = vmatprep.subr.mxu0 0.0
  %2797 = vmatpush2.msra.mxu0 0.0
  %2798 = vmatprep.subr.mxu0 0.0
  %2799 = vmatpush2.msra.mxu0 0.0
  %2800 = vmatprep.subr.mxu0 0.0
  %2801 = vmatpush2.msra.mxu0 0.0
  %2802 = vmatprep.subr.mxu0 0.0
  %2803 = vmatpush2.msra.mxu0 0.0
  %2804 = vmatprep.subr.mxu0 0.0
  %2805 = vmatpush2.msra.mxu0 0.0
  %2806 = vmatprep.subr.mxu0 0.0
  %2807 = vmatpush2.msra.mxu0 0.0
  %2808 = vmatprep.subr.mxu0 0.0
  %2809 = vmatpush2.msra.mxu0 0.0
  %2810 = vmatprep.subr.mxu0 0.0
  %2811 = vmatpush2.msra.mxu0 0.0
  %2812 = vmatprep.subr.mxu0 0.0
  %2813 = vmatpush2.msra.mxu0 0.0
  %2814 = vmatprep.subr.mxu0 0.0
  %2815 = vmatpush2.msra.mxu0 0.0
  %2816 = vmatprep.subr.mxu0 0.0
  %2817 = vmatpush2.msra.mxu0 0.0
  %2818 = vmatprep.mubr.f32.mxu0 0.0
  %2819 = vmatmul.mubr.f32.gmra.mxu0 %v2609
  %v2820 = vpop.f32.mrf.mxu0
  %v2821 = vadd.f32 0.0, %v2820
  %v2822 = vpop.f32.mrf.mxu0
  %2823 = vmatprep.mubr.f32.mxu0 0.0
  %2824 = vmatmul.mubr.f32.gmra.mxu0 %v2610
  %v2825 = vpop.f32.mrf.mxu0
  %v2826 = vadd.f32 0.0, %v2825
  %v2827 = vpop.f32.mrf.mxu0
  %2828 = vmatprep.mubr.f32.mxu0 0.0
  %2829 = vmatmul.mubr.f32.gmra.mxu0 %v2611
  %v2830 = vpop.f32.mrf.mxu0
  %v2831 = vadd.f32 0.0, %v2830
  %v2832 = vpop.f32.mrf.mxu0
  %2833 = vmatprep.mubr.f32.mxu0 0.0
  %2834 = vmatmul.mubr.f32.gmra.mxu0 %v2612
  %v2835 = vpop.f32.mrf.mxu0
  %v2836 = vadd.f32 0.0, %v2835
  %v2837 = vpop.f32.mrf.mxu0
  %2838 = vmatprep.mubr.f32.mxu0 0.0
  %2839 = vmatmul.mubr.f32.gmra.mxu0 %v2613
  %v2840 = vpop.f32.mrf.mxu0
  %v2841 = vadd.f32 0.0, %v2840
  %v2842 = vpop.f32.mrf.mxu0
  %2843 = vmatprep.mubr.f32.mxu0 0.0
  %2844 = vmatmul.mubr.f32.gmra.mxu0 %v2614
  %v2845 = vpop.f32.mrf.mxu0
  %v2846 = vadd.f32 0.0, %v2845
  %v2847 = vpop.f32.mrf.mxu0
  %2848 = vmatprep.mubr.f32.mxu0 0.0
  %2849 = vmatmul.mubr.f32.gmra.mxu0 %v2615
  %v2850 = vpop.f32.mrf.mxu0
  %v2851 = vadd.f32 0.0, %v2850
  %v2852 = vpop.f32.mrf.mxu0
  %2853 = vmatprep.mubr.f32.mxu0 0.0
  %2854 = vmatmul.mubr.f32.gmra.mxu0 %v2616
  %v2855 = vpop.f32.mrf.mxu0
  %v2856 = vadd.f32 0.0, %v2855
  %v2857 = vpop.f32.mrf.mxu0
  %2858 = vmatprep.mubr.f32.mxu0 0.0
  %2859 = vmatmul.mubr.f32.gmra.mxu0 %v2617
  %v2860 = vpop.f32.mrf.mxu0
  %v2861 = vadd.f32 0.0, %v2860
  %v2862 = vpop.f32.mrf.mxu0
  %2863 = vmatprep.mubr.f32.mxu0 0.0
  %2864 = vmatmul.mubr.f32.gmra.mxu0 %v2618
  %v2865 = vpop.f32.mrf.mxu0
  %v2866 = vadd.f32 0.0, %v2865
  %v2867 = vpop.f32.mrf.mxu0
  %2868 = vmatprep.mubr.f32.mxu0 0.0
  %2869 = vmatmul.mubr.f32.gmra.mxu0 %v2619
  %v2870 = vpop.f32.mrf.mxu0
  %v2871 = vadd.f32 0.0, %v2870
  %v2872 = vpop.f32.mrf.mxu0
  %2873 = vmatprep.mubr.f32.mxu0 0.0
  %2874 = vmatmul.mubr.f32.gmra.mxu0 %v2620
  %v2875 = vpop.f32.mrf.mxu0
  %v2876 = vadd.f32 0.0, %v2875
  %v2877 = vpop.f32.mrf.mxu0
  %2878 = vmatprep.mubr.f32.mxu0 0.0
  %2879 = vmatmul.mubr.f32.gmra.mxu0 %v2621
  %v2880 = vpop.f32.mrf.mxu0
  %v2881 = vadd.f32 0.0, %v2880
  %v2882 = vpop.f32.mrf.mxu0
  %2883 = vmatprep.mubr.f32.mxu0 0.0
  %2884 = vmatmul.mubr.f32.gmra.mxu0 %v2622
  %v2885 = vpop.f32.mrf.mxu0
  %v2886 = vadd.f32 0.0, %v2885
  %v2887 = vpop.f32.mrf.mxu0
  %2888 = vmatprep.mubr.f32.mxu0 0.0
  %2889 = vmatmul.mubr.f32.gmra.mxu0 %v2623
  %v2890 = vpop.f32.mrf.mxu0
  %v2891 = vadd.f32 0.0, %v2890
  %v2892 = vpop.f32.mrf.mxu0
  %2893 = vmatprep.mubr.f32.mxu0 0.0
  %2894 = vmatmul.mubr.f32.gmra.mxu0 %v2624
  %v2895 = vpop.f32.mrf.mxu0
  %v2896 = vadd.f32 0.0, %v2895
  %v2897 = vpop.f32.mrf.mxu0
  %2898 = vmatprep.mubr.f32.mxu0 0.0
  %2899 = vmatmul.mubr.f32.gmra.mxu0 %v2625
  %v2900 = vpop.f32.mrf.mxu0
  %v2901 = vadd.f32 0.0, %v2900
  %v2902 = vpop.f32.mrf.mxu0
  %2903 = vmatprep.mubr.f32.mxu0 0.0
  %2904 = vmatmul.mubr.f32.gmra.mxu0 %v2626
  %v2905 = vpop.f32.mrf.mxu0
  %v2906 = vadd.f32 0.0, %v2905
  %v2907 = vpop.f32.mrf.mxu0
  %2908 = vmatprep.mubr.f32.mxu0 0.0
  %2909 = vmatmul.mubr.f32.gmra.mxu0 %v2627
  %v2910 = vpop.f32.mrf.mxu0
  %v2911 = vadd.f32 0.0, %v2910
  %v2912 = vpop.f32.mrf.mxu0
  %2913 = vmatprep.mubr.f32.mxu0 0.0
  %2914 = vmatmul.mubr.f32.gmra.mxu0 %v2628
  %v2915 = vpop.f32.mrf.mxu0
  %v2916 = vadd.f32 0.0, %v2915
  %v2917 = vpop.f32.mrf.mxu0
  %2918 = vmatprep.mubr.f32.mxu0 0.0
  %2919 = vmatmul.mubr.f32.gmra.mxu0 %v2629
  %v2920 = vpop.f32.mrf.mxu0
  %v2921 = vadd.f32 0.0, %v2920
  %v2922 = vpop.f32.mrf.mxu0
  %2923 = vmatprep.mubr.f32.mxu0 0.0
  %2924 = vmatmul.mubr.f32.gmra.mxu0 %v2630
  %v2925 = vpop.f32.mrf.mxu0
  %v2926 = vadd.f32 0.0, %v2925
  %v2927 = vpop.f32.mrf.mxu0
  %2928 = vmatprep.mubr.f32.mxu0 0.0
  %2929 = vmatmul.mubr.f32.gmra.mxu0 %v2631
  %v2930 = vpop.f32.mrf.mxu0
  %v2931 = vadd.f32 0.0, %v2930
  %v2932 = vpop.f32.mrf.mxu0
  %2933 = vmatprep.mubr.f32.mxu0 0.0
  %2934 = vmatmul.mubr.f32.gmra.mxu0 %v2632
  %v2935 = vpop.f32.mrf.mxu0
  %v2936 = vadd.f32 0.0, %v2935
  %v2937 = vpop.f32.mrf.mxu0
  %2938 = vmatprep.mubr.f32.mxu0 0.0
  %2939 = vmatmul.mubr.f32.gmra.mxu0 %v2633
  %v2940 = vpop.f32.mrf.mxu0
  %v2941 = vadd.f32 0.0, %v2940
  %v2942 = vpop.f32.mrf.mxu0
  %2943 = vmatprep.mubr.f32.mxu0 0.0
  %2944 = vmatmul.mubr.f32.gmra.mxu0 %v2634
  %v2945 = vpop.f32.mrf.mxu0
  %v2946 = vadd.f32 0.0, %v2945
  %v2947 = vpop.f32.mrf.mxu0
  %2948 = vmatprep.mubr.f32.mxu0 0.0
  %2949 = vmatmul.mubr.f32.gmra.mxu0 %v2635
  %v2950 = vpop.f32.mrf.mxu0
  %v2951 = vadd.f32 0.0, %v2950
  %v2952 = vpop.f32.mrf.mxu0
  %2953 = vmatprep.mubr.f32.mxu0 0.0
  %2954 = vmatmul.mubr.f32.gmra.mxu0 %v2636
  %v2955 = vpop.f32.mrf.mxu0
  %v2956 = vadd.f32 0.0, %v2955
  %v2957 = vpop.f32.mrf.mxu0
  %2958 = vmatprep.mubr.f32.mxu0 0.0
  %2959 = vmatmul.mubr.f32.gmra.mxu0 %v2637
  %v2960 = vpop.f32.mrf.mxu0
  %v2961 = vadd.f32 0.0, %v2960
  %v2962 = vpop.f32.mrf.mxu0
  %2963 = vmatprep.mubr.f32.mxu0 0.0
  %2964 = vmatmul.mubr.f32.gmra.mxu0 %v2638
  %v2965 = vpop.f32.mrf.mxu0
  %v2966 = vadd.f32 0.0, %v2965
  %v2967 = vpop.f32.mrf.mxu0
  %2968 = vmatprep.mubr.f32.mxu0 0.0
  %2969 = vmatmul.mubr.f32.gmra.mxu0 %v2639
  %v2970 = vpop.f32.mrf.mxu0
  %v2971 = vadd.f32 0.0, %v2970
  %v2972 = vpop.f32.mrf.mxu0
  %2973 = vmatprep.mubr.f32.mxu0 0.0
  %2974 = vmatmul.mubr.f32.gmra.mxu0 %v2640
  %v2975 = vpop.f32.mrf.mxu0
  %v2976 = vadd.f32 0.0, %v2975
  %v2977 = vpop.f32.mrf.mxu0
  %2978 = vmatprep.mubr.f32.mxu0 0.0
  %2979 = vmatmul.mubr.f32.gmra.mxu0 %v2641
  %v2980 = vpop.f32.mrf.mxu0
  %v2981 = vadd.f32 0.0, %v2980
  %v2982 = vpop.f32.mrf.mxu0
  %2983 = vmatprep.mubr.f32.mxu0 0.0
  %2984 = vmatmul.mubr.f32.gmra.mxu0 %v2642
  %v2985 = vpop.f32.mrf.mxu0
  %v2986 = vadd.f32 0.0, %v2985
  %v2987 = vpop.f32.mrf.mxu0
  %2988 = vmatprep.mubr.f32.mxu0 0.0
  %2989 = vmatmul.mubr.f32.gmra.mxu0 %v2643
  %v2990 = vpop.f32.mrf.mxu0
  %v2991 = vadd.f32 0.0, %v2990
  %v2992 = vpop.f32.mrf.mxu0
  %2993 = vmatprep.mubr.f32.mxu0 0.0
  %2994 = vmatmul.mubr.f32.gmra.mxu0 %v2644
  %v2995 = vpop.f32.mrf.mxu0
  %v2996 = vadd.f32 0.0, %v2995
  %v2997 = vpop.f32.mrf.mxu0
  %2998 = vmatprep.mubr.f32.mxu0 0.0
  %2999 = vmatmul.mubr.f32.gmra.mxu0 %v2645
  %v3000 = vpop.f32.mrf.mxu0
  %v3001 = vadd.f32 0.0, %v3000
  %v3002 = vpop.f32.mrf.mxu0
  %3003 = vmatprep.mubr.f32.mxu0 0.0
  %3004 = vmatmul.mubr.f32.gmra.mxu0 %v2646
  %v3005 = vpop.f32.mrf.mxu0
  %v3006 = vadd.f32 0.0, %v3005
  %v3007 = vpop.f32.mrf.mxu0
  %3008 = vmatprep.mubr.f32.mxu0 0.0
  %3009 = vmatmul.mubr.f32.gmra.mxu0 %v2647
  %v3010 = vpop.f32.mrf.mxu0
  %v3011 = vadd.f32 0.0, %v3010
  %v3012 = vpop.f32.mrf.mxu0
  %3013 = vmatprep.mubr.f32.mxu0 0.0
  %3014 = vmatmul.mubr.f32.gmra.mxu0 %v2648
  %v3015 = vpop.f32.mrf.mxu0
  %v3016 = vadd.f32 0.0, %v3015
  %v3017 = vpop.f32.mrf.mxu0
  %3018 = vmatprep.mubr.f32.mxu0 0.0
  %3019 = vmatmul.mubr.f32.gmra.mxu0 %v2649
  %v3020 = vpop.f32.mrf.mxu0
  %v3021 = vadd.f32 0.0, %v3020
  %v3022 = vpop.f32.mrf.mxu0
  %3023 = vmatprep.mubr.f32.mxu0 0.0
  %3024 = vmatmul.mubr.f32.gmra.mxu0 %v2650
  %v3025 = vpop.f32.mrf.mxu0
  %v3026 = vadd.f32 0.0, %v3025
  %v3027 = vpop.f32.mrf.mxu0
  %3028 = vmatprep.mubr.f32.mxu0 0.0
  %3029 = vmatmul.mubr.f32.gmra.mxu0 %v2651
  %v3030 = vpop.f32.mrf.mxu0
  %v3031 = vadd.f32 0.0, %v3030
  %v3032 = vpop.f32.mrf.mxu0
  %3033 = vmatprep.mubr.f32.mxu0 0.0
  %3034 = vmatmul.mubr.f32.gmra.mxu0 %v2652
  %v3035 = vpop.f32.mrf.mxu0
  %v3036 = vadd.f32 0.0, %v3035
  %v3037 = vpop.f32.mrf.mxu0
  %3038 = vmatprep.mubr.f32.mxu0 0.0
  %3039 = vmatmul.mubr.f32.gmra.mxu0 %v2653
  %v3040 = vpop.f32.mrf.mxu0
  %v3041 = vadd.f32 0.0, %v3040
  %v3042 = vpop.f32.mrf.mxu0
  %3043 = vmatprep.mubr.f32.mxu0 0.0
  %3044 = vmatmul.mubr.f32.gmra.mxu0 %v2654
  %v3045 = vpop.f32.mrf.mxu0
  %v3046 = vadd.f32 0.0, %v3045
  %v3047 = vpop.f32.mrf.mxu0
  %3048 = vmatprep.mubr.f32.mxu0 0.0
  %3049 = vmatmul.mubr.f32.gmra.mxu0 %v2655
  %v3050 = vpop.f32.mrf.mxu0
  %v3051 = vadd.f32 0.0, %v3050
  %v3052 = vpop.f32.mrf.mxu0
  %3053 = vmatprep.mubr.f32.mxu0 0.0
  %3054 = vmatmul.mubr.f32.gmra.mxu0 %v2656
  %v3055 = vpop.f32.mrf.mxu0
  %v3056 = vadd.f32 0.0, %v3055
  %v3057 = vpop.f32.mrf.mxu0
  %3058 = vmatprep.mubr.f32.mxu0 0.0
  %3059 = vmatmul.mubr.f32.gmra.mxu0 %v2657
  %v3060 = vpop.f32.mrf.mxu0
  %v3061 = vadd.f32 0.0, %v3060
  %v3062 = vpop.f32.mrf.mxu0
  %3063 = vmatprep.mubr.f32.mxu0 0.0
  %3064 = vmatmul.mubr.f32.gmra.mxu0 %v2658
  %v3065 = vpop.f32.mrf.mxu0
  %v3066 = vadd.f32 0.0, %v3065
  %v3067 = vpop.f32.mrf.mxu0
  %3068 = vmatprep.mubr.f32.mxu0 0.0
  %3069 = vmatmul.mubr.f32.gmra.mxu0 %v2659
  %v3070 = vpop.f32.mrf.mxu0
  %v3071 = vadd.f32 0.0, %v3070
  %v3072 = vpop.f32.mrf.mxu0
  %3073 = vmatprep.mubr.f32.mxu0 0.0
  %3074 = vmatmul.mubr.f32.gmra.mxu0 %v2660
  %v3075 = vpop.f32.mrf.mxu0
  %v3076 = vadd.f32 0.0, %v3075
  %v3077 = vpop.f32.mrf.mxu0
  %3078 = vmatprep.mubr.f32.mxu0 0.0
  %3079 = vmatmul.mubr.f32.gmra.mxu0 %v2661
  %v3080 = vpop.f32.mrf.mxu0
  %v3081 = vadd.f32 0.0, %v3080
  %v3082 = vpop.f32.mrf.mxu0
  %3083 = vmatprep.mubr.f32.mxu0 0.0
  %3084 = vmatmul.mubr.f32.gmra.mxu0 %v2662
  %v3085 = vpop.f32.mrf.mxu0
  %v3086 = vadd.f32 0.0, %v3085
  %v3087 = vpop.f32.mrf.mxu0
  %3088 = vmatprep.mubr.f32.mxu0 0.0
  %3089 = vmatmul.mubr.f32.gmra.mxu0 %v2663
  %v3090 = vpop.f32.mrf.mxu0
  %v3091 = vadd.f32 0.0, %v3090
  %v3092 = vpop.f32.mrf.mxu0
  %3093 = vmatprep.mubr.f32.mxu0 0.0
  %3094 = vmatmul.mubr.f32.gmra.mxu0 %v2664
  %v3095 = vpop.f32.mrf.mxu0
  %v3096 = vadd.f32 0.0, %v3095
  %v3097 = vpop.f32.mrf.mxu0
  %3098 = vmatprep.mubr.f32.mxu0 0.0
  %3099 = vmatmul.mubr.f32.gmra.mxu0 %v2665
  %v3100 = vpop.f32.mrf.mxu0
  %v3101 = vadd.f32 0.0, %v3100
  %v3102 = vpop.f32.mrf.mxu0
  %3103 = vmatprep.mubr.f32.mxu0 0.0
  %3104 = vmatmul.mubr.f32.gmra.mxu0 %v2666
  %v3105 = vpop.f32.mrf.mxu0
  %v3106 = vadd.f32 0.0, %v3105
  %v3107 = vpop.f32.mrf.mxu0
  %3108 = vmatprep.mubr.f32.mxu0 0.0
  %3109 = vmatmul.mubr.f32.gmra.mxu0 %v2667
  %v3110 = vpop.f32.mrf.mxu0
  %v3111 = vadd.f32 0.0, %v3110
  %v3112 = vpop.f32.mrf.mxu0
  %3113 = vmatprep.mubr.f32.mxu0 0.0
  %3114 = vmatmul.mubr.f32.gmra.mxu0 %v2668
  %v3115 = vpop.f32.mrf.mxu0
  %v3116 = vadd.f32 0.0, %v3115
  %v3117 = vpop.f32.mrf.mxu0
  %3118 = vmatprep.mubr.f32.mxu0 0.0
  %3119 = vmatmul.mubr.f32.gmra.mxu0 %v2669
  %v3120 = vpop.f32.mrf.mxu0
  %v3121 = vadd.f32 0.0, %v3120
  %v3122 = vpop.f32.mrf.mxu0
  %3123 = vmatprep.mubr.f32.mxu0 0.0
  %3124 = vmatmul.mubr.f32.gmra.mxu0 %v2670
  %v3125 = vpop.f32.mrf.mxu0
  %v3126 = vadd.f32 0.0, %v3125
  %v3127 = vpop.f32.mrf.mxu0
  %3128 = vmatprep.mubr.f32.mxu0 0.0
  %3129 = vmatmul.mubr.f32.gmra.mxu0 %v2671
  %v3130 = vpop.f32.mrf.mxu0
  %v3131 = vadd.f32 0.0, %v3130
  %v3132 = vpop.f32.mrf.mxu0
  %3133 = vmatprep.mubr.f32.mxu0 0.0
  %3134 = vmatmul.mubr.f32.gmra.mxu0 %v2672
  %v3135 = vpop.f32.mrf.mxu0
  %v3136 = vadd.f32 0.0, %v3135
  %v3137 = vpop.f32.mrf.mxu0
  %3138 = vdwg.mxu0
  %v3139 = vadd.f32 %v2673, %v2821
  %v3140 = vadd.f32 %v2674, %v2826
  %v3141 = vadd.f32 %v2675, %v2831
  %v3142 = vadd.f32 %v2676, %v2836
  %v3143 = vadd.f32 %v2677, %v2841
  %v3144 = vadd.f32 %v2678, %v2846
  %v3145 = vadd.f32 %v2679, %v2851
  %v3146 = vadd.f32 %v2680, %v2856
  %v3147 = vadd.f32 %v2681, %v2861
  %v3148 = vadd.f32 %v2682, %v2866
  %v3149 = vadd.f32 %v2683, %v2871
  %v3150 = vadd.f32 %v2684, %v2876
  %v3151 = vadd.f32 %v2685, %v2881
  %v3152 = vadd.f32 %v2686, %v2886
  %v3153 = vadd.f32 %v2687, %v2891
  %v3154 = vadd.f32 %v2688, %v2896
  %v3155 = vadd.f32 %v2689, %v2901
  %v3156 = vadd.f32 %v2690, %v2906
  %v3157 = vadd.f32 %v2691, %v2911
  %v3158 = vadd.f32 %v2692, %v2916
  %v3159 = vadd.f32 %v2693, %v2921
  %v3160 = vadd.f32 %v2694, %v2926
  %v3161 = vadd.f32 %v2695, %v2931
  %v3162 = vadd.f32 %v2696, %v2936
  %v3163 = vadd.f32 %v2697, %v2941
  %v3164 = vadd.f32 %v2698, %v2946
  %v3165 = vadd.f32 %v2699, %v2951
  %v3166 = vadd.f32 %v2700, %v2956
  %v3167 = vadd.f32 %v2701, %v2961
  %v3168 = vadd.f32 %v2702, %v2966
  %v3169 = vadd.f32 %v2703, %v2971
  %v3170 = vadd.f32 %v2704, %v2976
  %v3171 = vadd.f32 %v2705, %v2981
  %v3172 = vadd.f32 %v2706, %v2986
  %v3173 = vadd.f32 %v2707, %v2991
  %v3174 = vadd.f32 %v2708, %v2996
  %v3175 = vadd.f32 %v2709, %v3001
  %v3176 = vadd.f32 %v2710, %v3006
  %v3177 = vadd.f32 %v2711, %v3011
  %v3178 = vadd.f32 %v2712, %v3016
  %v3179 = vadd.f32 %v2713, %v3021
  %v3180 = vadd.f32 %v2714, %v3026
  %v3181 = vadd.f32 %v2715, %v3031
  %v3182 = vadd.f32 %v2716, %v3036
  %v3183 = vadd.f32 %v2717, %v3041
  %v3184 = vadd.f32 %v2718, %v3046
  %v3185 = vadd.f32 %v2719, %v3051
  %v3186 = vadd.f32 %v2720, %v3056
  %v3187 = vadd.f32 %v2721, %v3061
  %v3188 = vadd.f32 %v2722, %v3066
  %v3189 = vadd.f32 %v2723, %v3071
  %v3190 = vadd.f32 %v2724, %v3076
  %v3191 = vadd.f32 %v2725, %v3081
  %v3192 = vadd.f32 %v2726, %v3086
  %v3193 = vadd.f32 %v2727, %v3091
  %v3194 = vadd.f32 %v2728, %v3096
  %v3195 = vadd.f32 %v2729, %v3101
  %v3196 = vadd.f32 %v2730, %v3106
  %v3197 = vadd.f32 %v2731, %v3111
  %v3198 = vadd.f32 %v2732, %v3116
  %v3199 = vadd.f32 %v2733, %v3121
  %v3200 = vadd.f32 %v2734, %v3126
  %v3201 = vadd.f32 %v2735, %v3131
  %v3202 = vadd.f32 %v2736, %v3136
  %3203 = vst [vmem:[#allocation3] sm:$0xff] %v3139
  %3204 = vst [vmem:[#allocation3 + $0x8] sm:$0xff] %v3140
  %3205 = vst [vmem:[#allocation3 + $0x10] sm:$0xff] %v3141
  %3206 = vst [vmem:[#allocation3 + $0x18] sm:$0xff] %v3142
  %3207 = vst [vmem:[#allocation3 + $0x20] sm:$0xff] %v3143
  %3208 = vst [vmem:[#allocation3 + $0x28] sm:$0xff] %v3144
  %3209 = vst [vmem:[#allocation3 + $0x30] sm:$0xff] %v3145
  %3210 = vst [vmem:[#allocation3 + $0x38] sm:$0xff] %v3146
  %3211 = vst [vmem:[#allocation3 + $0x40] sm:$0xff] %v3147
  %3212 = vst [vmem:[#allocation3 + $0x48] sm:$0xff] %v3148
  %3213 = vst [vmem:[#allocation3 + $0x50] sm:$0xff] %v3149
  %3214 = vst [vmem:[#allocation3 + $0x58] sm:$0xff] %v3150
  %3215 = vst [vmem:[#allocation3 + $0x60] sm:$0xff] %v3151
  %3216 = vst [vmem:[#allocation3 + $0x68] sm:$0xff] %v3152
  %3217 = vst [vmem:[#allocation3 + $0x70] sm:$0xff] %v3153
  %3218 = vst [vmem:[#allocation3 + $0x78] sm:$0xff] %v3154
  %3219 = vst [vmem:[#allocation3 + $0x80] sm:$0xff] %v3155
  %3220 = vst [vmem:[#allocation3 + $0x88] sm:$0xff] %v3156
  %3221 = vst [vmem:[#allocation3 + $0x90] sm:$0xff] %v3157
  %3222 = vst [vmem:[#allocation3 + $0x98] sm:$0xff] %v3158
  %3223 = vst [vmem:[#allocation3 + $0xa0] sm:$0xff] %v3159
  %3224 = vst [vmem:[#allocation3 + $0xa8] sm:$0xff] %v3160
  %3225 = vst [vmem:[#allocation3 + $0xb0] sm:$0xff] %v3161
  %3226 = vst [vmem:[#allocation3 + $0xb8] sm:$0xff] %v3162
  %3227 = vst [vmem:[#allocation3 + $0xc0] sm:$0xff] %v3163
  %3228 = vst [vmem:[#allocation3 + $0xc8] sm:$0xff] %v3164
  %3229 = vst [vmem:[#allocation3 + $0xd0] sm:$0xff] %v3165
  %3230 = vst [vmem:[#allocation3 + $0xd8] sm:$0xff] %v3166
  %3231 = vst [vmem:[#allocation3 + $0xe0] sm:$0xff] %v3167
  %3232 = vst [vmem:[#allocation3 + $0xe8] sm:$0xff] %v3168
  %3233 = vst [vmem:[#allocation3 + $0xf0] sm:$0xff] %v3169
  %3234 = vst [vmem:[#allocation3 + $0xf8] sm:$0xff] %v3170
  %3235 = vst [vmem:[#allocation3 + $0x100] sm:$0xff] %v3171
  %3236 = vst [vmem:[#allocation3 + $0x108] sm:$0xff] %v3172
  %3237 = vst [vmem:[#allocation3 + $0x110] sm:$0xff] %v3173
  %3238 = vst [vmem:[#allocation3 + $0x118] sm:$0xff] %v3174
  %3239 = vst [vmem:[#allocation3 + $0x120] sm:$0xff] %v3175
  %3240 = vst [vmem:[#allocation3 + $0x128] sm:$0xff] %v3176
  %3241 = vst [vmem:[#allocation3 + $0x130] sm:$0xff] %v3177
  %3242 = vst [vmem:[#allocation3 + $0x138] sm:$0xff] %v3178
  %3243 = vst [vmem:[#allocation3 + $0x140] sm:$0xff] %v3179
  %3244 = vst [vmem:[#allocation3 + $0x148] sm:$0xff] %v3180
  %3245 = vst [vmem:[#allocation3 + $0x150] sm:$0xff] %v3181
  %3246 = vst [vmem:[#allocation3 + $0x158] sm:$0xff] %v3182
  %3247 = vst [vmem:[#allocation3 + $0x160] sm:$0xff] %v3183
  %3248 = vst [vmem:[#allocation3 + $0x168] sm:$0xff] %v3184
  %3249 = vst [vmem:[#allocation3 + $0x170] sm:$0xff] %v3185
  %3250 = vst [vmem:[#allocation3 + $0x178] sm:$0xff] %v3186
  %3251 = vst [vmem:[#allocation3 + $0x180] sm:$0xff] %v3187
  %3252 = vst [vmem:[#allocation3 + $0x188] sm:$0xff] %v3188
  %3253 = vst [vmem:[#allocation3 + $0x190] sm:$0xff] %v3189
  %3254 = vst [vmem:[#allocation3 + $0x198] sm:$0xff] %v3190
  %3255 = vst [vmem:[#allocation3 + $0x1a0] sm:$0xff] %v3191
  %3256 = vst [vmem:[#allocation3 + $0x1a8] sm:$0xff] %v3192
  %3257 = vst [vmem:[#allocation3 + $0x1b0] sm:$0xff] %v3193
  %3258 = vst [vmem:[#allocation3 + $0x1b8] sm:$0xff] %v3194
  %3259 = vst [vmem:[#allocation3 + $0x1c0] sm:$0xff] %v3195
  %3260 = vst [vmem:[#allocation3 + $0x1c8] sm:$0xff] %v3196
  %3261 = vst [vmem:[#allocation3 + $0x1d0] sm:$0xff] %v3197
  %3262 = vst [vmem:[#allocation3 + $0x1d8] sm:$0xff] %v3198
  %3263 = vst [vmem:[#allocation3 + $0x1e0] sm:$0xff] %v3199
  %3264 = vst [vmem:[#allocation3 + $0x1e8] sm:$0xff] %v3200
  %3265 = vst [vmem:[#allocation3 + $0x1f0] sm:$0xff] %v3201
  %3266 = vst [vmem:[#allocation3 + $0x1f8] sm:$0xff] %v3202
  %v3267 = vld [vmem:[%s1165 + $0x7] sm:$0xff]
  %v3268 = vld [vmem:[%s1165 + $0xf] sm:$0xff]
  %v3269 = vld [vmem:[%s1165 + $0x27] sm:$0xff]
  %v3270 = vld [vmem:[%s1165 + $0x2f] sm:$0xff]
  %v3271 = vld [vmem:[%s1165 + $0x47] sm:$0xff]
  %v3272 = vld [vmem:[%s1165 + $0x4f] sm:$0xff]
  %v3273 = vld [vmem:[%s1165 + $0x67] sm:$0xff]
  %v3274 = vld [vmem:[%s1165 + $0x6f] sm:$0xff]
  %v3275 = vld [vmem:[%s1165 + $0x87] sm:$0xff]
  %v3276 = vld [vmem:[%s1165 + $0x8f] sm:$0xff]
  %v3277 = vld [vmem:[%s1165 + $0xa7] sm:$0xff]
  %v3278 = vld [vmem:[%s1165 + $0xaf] sm:$0xff]
  %v3279 = vld [vmem:[%s1165 + $0xc7] sm:$0xff]
  %v3280 = vld [vmem:[%s1165 + $0xcf] sm:$0xff]
  %v3281 = vld [vmem:[%s1165 + $0xe7] sm:$0xff]
  %v3282 = vld [vmem:[%s1165 + $0xef] sm:$0xff]
  %v3283 = vld [vmem:[%s1165 + $0x107] sm:$0xff]
  %v3284 = vld [vmem:[%s1165 + $0x10f] sm:$0xff]
  %v3285 = vld [vmem:[%s1165 + $0x127] sm:$0xff]
  %v3286 = vld [vmem:[%s1165 + $0x12f] sm:$0xff]
  %v3287 = vld [vmem:[%s1165 + $0x147] sm:$0xff]
  %v3288 = vld [vmem:[%s1165 + $0x14f] sm:$0xff]
  %v3289 = vld [vmem:[%s1165 + $0x167] sm:$0xff]
  %v3290 = vld [vmem:[%s1165 + $0x16f] sm:$0xff]
  %v3291 = vld [vmem:[%s1165 + $0x187] sm:$0xff]
  %v3292 = vld [vmem:[%s1165 + $0x18f] sm:$0xff]
  %v3293 = vld [vmem:[%s1165 + $0x1a7] sm:$0xff]
  %v3294 = vld [vmem:[%s1165 + $0x1af] sm:$0xff]
  %v3295 = vld [vmem:[%s1165 + $0x1c7] sm:$0xff]
  %v3296 = vld [vmem:[%s1165 + $0x1cf] sm:$0xff]
  %v3297 = vld [vmem:[%s1165 + $0x1e7] sm:$0xff]
  %v3298 = vld [vmem:[%s1165 + $0x1ef] sm:$0xff]
  %v3299 = vld [vmem:[%s1165 + $0x247] sm:$0xff]
  %v3300 = vld [vmem:[%s1165 + $0x24f] sm:$0xff]
  %v3301 = vld [vmem:[%s1165 + $0x267] sm:$0xff]
  %v3302 = vld [vmem:[%s1165 + $0x26f] sm:$0xff]
  %v3303 = vld [vmem:[%s1165 + $0x287] sm:$0xff]
  %v3304 = vld [vmem:[%s1165 + $0x28f] sm:$0xff]
  %v3305 = vld [vmem:[%s1165 + $0x2a7] sm:$0xff]
  %v3306 = vld [vmem:[%s1165 + $0x2af] sm:$0xff]
  %v3307 = vld [vmem:[%s1165 + $0x2c7] sm:$0xff]
  %v3308 = vld [vmem:[%s1165 + $0x2cf] sm:$0xff]
  %v3309 = vld [vmem:[%s1165 + $0x2e7] sm:$0xff]
  %v3310 = vld [vmem:[%s1165 + $0x2ef] sm:$0xff]
  %v3311 = vld [vmem:[%s1165 + $0x307] sm:$0xff]
  %v3312 = vld [vmem:[%s1165 + $0x30f] sm:$0xff]
  %v3313 = vld [vmem:[%s1165 + $0x327] sm:$0xff]
  %v3314 = vld [vmem:[%s1165 + $0x32f] sm:$0xff]
  %v3315 = vld [vmem:[%s1165 + $0x347] sm:$0xff]
  %v3316 = vld [vmem:[%s1165 + $0x34f] sm:$0xff]
  %v3317 = vld [vmem:[%s1165 + $0x367] sm:$0xff]
  %v3318 = vld [vmem:[%s1165 + $0x36f] sm:$0xff]
  %v3319 = vld [vmem:[%s1165 + $0x387] sm:$0xff]
  %v3320 = vld [vmem:[%s1165 + $0x38f] sm:$0xff]
  %v3321 = vld [vmem:[%s1165 + $0x3a7] sm:$0xff]
  %v3322 = vld [vmem:[%s1165 + $0x3af] sm:$0xff]
  %v3323 = vld [vmem:[%s1165 + $0x3c7] sm:$0xff]
  %v3324 = vld [vmem:[%s1165 + $0x3cf] sm:$0xff]
  %v3325 = vld [vmem:[%s1165 + $0x3e7] sm:$0xff]
  %v3326 = vld [vmem:[%s1165 + $0x3ef] sm:$0xff]
  %v3327 = vld [vmem:[%s1165 + $0x407] sm:$0xff]
  %v3328 = vld [vmem:[%s1165 + $0x40f] sm:$0xff]
  %v3329 = vld [vmem:[%s1165 + $0x427] sm:$0xff]
  %v3330 = vld [vmem:[%s1165 + $0x42f] sm:$0xff]
  %v3331 = vld [vmem:[#allocation3] sm:$0xff]
  %v3332 = vld [vmem:[#allocation3 + $0x8] sm:$0xff]
  %v3333 = vld [vmem:[#allocation3 + $0x10] sm:$0xff]
  %v3334 = vld [vmem:[#allocation3 + $0x18] sm:$0xff]
  %v3335 = vld [vmem:[#allocation3 + $0x20] sm:$0xff]
  %v3336 = vld [vmem:[#allocation3 + $0x28] sm:$0xff]
  %v3337 = vld [vmem:[#allocation3 + $0x30] sm:$0xff]
  %v3338 = vld [vmem:[#allocation3 + $0x38] sm:$0xff]
  %v3339 = vld [vmem:[#allocation3 + $0x40] sm:$0xff]
  %v3340 = vld [vmem:[#allocation3 + $0x48] sm:$0xff]
  %v3341 = vld [vmem:[#allocation3 + $0x50] sm:$0xff]
  %v3342 = vld [vmem:[#allocation3 + $0x58] sm:$0xff]
  %v3343 = vld [vmem:[#allocation3 + $0x60] sm:$0xff]
  %v3344 = vld [vmem:[#allocation3 + $0x68] sm:$0xff]
  %v3345 = vld [vmem:[#allocation3 + $0x70] sm:$0xff]
  %v3346 = vld [vmem:[#allocation3 + $0x78] sm:$0xff]
  %v3347 = vld [vmem:[#allocation3 + $0x80] sm:$0xff]
  %v3348 = vld [vmem:[#allocation3 + $0x88] sm:$0xff]
  %v3349 = vld [vmem:[#allocation3 + $0x90] sm:$0xff]
  %v3350 = vld [vmem:[#allocation3 + $0x98] sm:$0xff]
  %v3351 = vld [vmem:[#allocation3 + $0xa0] sm:$0xff]
  %v3352 = vld [vmem:[#allocation3 + $0xa8] sm:$0xff]
  %v3353 = vld [vmem:[#allocation3 + $0xb0] sm:$0xff]
  %v3354 = vld [vmem:[#allocation3 + $0xb8] sm:$0xff]
  %v3355 = vld [vmem:[#allocation3 + $0xc0] sm:$0xff]
  %v3356 = vld [vmem:[#allocation3 + $0xc8] sm:$0xff]
  %v3357 = vld [vmem:[#allocation3 + $0xd0] sm:$0xff]
  %v3358 = vld [vmem:[#allocation3 + $0xd8] sm:$0xff]
  %v3359 = vld [vmem:[#allocation3 + $0xe0] sm:$0xff]
  %v3360 = vld [vmem:[#allocation3 + $0xe8] sm:$0xff]
  %v3361 = vld [vmem:[#allocation3 + $0xf0] sm:$0xff]
  %v3362 = vld [vmem:[#allocation3 + $0xf8] sm:$0xff]
  %v3363 = vld [vmem:[#allocation3 + $0x100] sm:$0xff]
  %v3364 = vld [vmem:[#allocation3 + $0x108] sm:$0xff]
  %v3365 = vld [vmem:[#allocation3 + $0x110] sm:$0xff]
  %v3366 = vld [vmem:[#allocation3 + $0x118] sm:$0xff]
  %v3367 = vld [vmem:[#allocation3 + $0x120] sm:$0xff]
  %v3368 = vld [vmem:[#allocation3 + $0x128] sm:$0xff]
  %v3369 = vld [vmem:[#allocation3 + $0x130] sm:$0xff]
  %v3370 = vld [vmem:[#allocation3 + $0x138] sm:$0xff]
  %v3371 = vld [vmem:[#allocation3 + $0x140] sm:$0xff]
  %v3372 = vld [vmem:[#allocation3 + $0x148] sm:$0xff]
  %v3373 = vld [vmem:[#allocation3 + $0x150] sm:$0xff]
  %v3374 = vld [vmem:[#allocation3 + $0x158] sm:$0xff]
  %v3375 = vld [vmem:[#allocation3 + $0x160] sm:$0xff]
  %v3376 = vld [vmem:[#allocation3 + $0x168] sm:$0xff]
  %v3377 = vld [vmem:[#allocation3 + $0x170] sm:$0xff]
  %v3378 = vld [vmem:[#allocation3 + $0x178] sm:$0xff]
  %v3379 = vld [vmem:[#allocation3 + $0x180] sm:$0xff]
  %v3380 = vld [vmem:[#allocation3 + $0x188] sm:$0xff]
  %v3381 = vld [vmem:[#allocation3 + $0x190] sm:$0xff]
  %v3382 = vld [vmem:[#allocation3 + $0x198] sm:$0xff]
  %v3383 = vld [vmem:[#allocation3 + $0x1a0] sm:$0xff]
  %v3384 = vld [vmem:[#allocation3 + $0x1a8] sm:$0xff]
  %v3385 = vld [vmem:[#allocation3 + $0x1b0] sm:$0xff]
  %v3386 = vld [vmem:[#allocation3 + $0x1b8] sm:$0xff]
  %v3387 = vld [vmem:[#allocation3 + $0x1c0] sm:$0xff]
  %v3388 = vld [vmem:[#allocation3 + $0x1c8] sm:$0xff]
  %v3389 = vld [vmem:[#allocation3 + $0x1d0] sm:$0xff]
  %v3390 = vld [vmem:[#allocation3 + $0x1d8] sm:$0xff]
  %v3391 = vld [vmem:[#allocation3 + $0x1e0] sm:$0xff]
  %v3392 = vld [vmem:[#allocation3 + $0x1e8] sm:$0xff]
  %v3393 = vld [vmem:[#allocation3 + $0x1f0] sm:$0xff]
  %v3394 = vld [vmem:[#allocation3 + $0x1f8] sm:$0xff]
  %s3395 = scalar_lea.vmem %s2, 384
  %v3396 = vld [vmem:[%s3395] sm:$0xff]
  %v3397 = vld [vmem:[%s3395 + $0x8] sm:$0xff]
  %v3398 = vld [vmem:[%s3395 + $0x10] sm:$0xff]
  %v3399 = vld [vmem:[%s3395 + $0x18] sm:$0xff]
  %v3400 = vld [vmem:[%s3395 + $0x20] sm:$0xff]
  %v3401 = vld [vmem:[%s3395 + $0x28] sm:$0xff]
  %v3402 = vld [vmem:[%s3395 + $0x30] sm:$0xff]
  %v3403 = vld [vmem:[%s3395 + $0x38] sm:$0xff]
  %v3404 = vld [vmem:[%s3395 + $0x40] sm:$0xff]
  %v3405 = vld [vmem:[%s3395 + $0x48] sm:$0xff]
  %v3406 = vld [vmem:[%s3395 + $0x50] sm:$0xff]
  %v3407 = vld [vmem:[%s3395 + $0x58] sm:$0xff]
  %v3408 = vld [vmem:[%s3395 + $0x60] sm:$0xff]
  %v3409 = vld [vmem:[%s3395 + $0x68] sm:$0xff]
  %v3410 = vld [vmem:[%s3395 + $0x70] sm:$0xff]
  %v3411 = vld [vmem:[%s3395 + $0x78] sm:$0xff]
  %3412 = vmatprep.subr.mxu0 0.0
  %3413 = vmatpush1.msra.mxu0 %v3411
  %3414 = vmatprep.subr.mxu0 0.0
  %3415 = vmatpush1.msra.mxu0 %v3410
  %3416 = vmatprep.subr.mxu0 0.0
  %3417 = vmatpush1.msra.mxu0 %v3409
  %3418 = vmatprep.subr.mxu0 0.0
  %3419 = vmatpush1.msra.mxu0 %v3408
  %3420 = vmatprep.subr.mxu0 0.0
  %3421 = vmatpush1.msra.mxu0 %v3407
  %3422 = vmatprep.subr.mxu0 0.0
  %3423 = vmatpush1.msra.mxu0 %v3406
  %3424 = vmatprep.subr.mxu0 0.0
  %3425 = vmatpush1.msra.mxu0 %v3405
  %3426 = vmatprep.subr.mxu0 0.0
  %3427 = vmatpush1.msra.mxu0 %v3404
  %3428 = vmatprep.subr.mxu0 0.0
  %3429 = vmatpush1.msra.mxu0 %v3403
  %3430 = vmatprep.subr.mxu0 0.0
  %3431 = vmatpush1.msra.mxu0 %v3402
  %3432 = vmatprep.subr.mxu0 0.0
  %3433 = vmatpush1.msra.mxu0 %v3401
  %3434 = vmatprep.subr.mxu0 0.0
  %3435 = vmatpush1.msra.mxu0 %v3400
  %3436 = vmatprep.subr.mxu0 0.0
  %3437 = vmatpush1.msra.mxu0 %v3399
  %3438 = vmatprep.subr.mxu0 0.0
  %3439 = vmatpush1.msra.mxu0 %v3398
  %3440 = vmatprep.subr.mxu0 0.0
  %3441 = vmatpush1.msra.mxu0 %v3397
  %3442 = vmatprep.subr.mxu0 0.0
  %3443 = vmatpush1.msra.mxu0 %v3396
  %3444 = vmatprep.subr.mxu0 0.0
  %3445 = vmatpush2.msra.mxu0 0.0
  %3446 = vmatprep.subr.mxu0 0.0
  %3447 = vmatpush2.msra.mxu0 0.0
  %3448 = vmatprep.subr.mxu0 0.0
  %3449 = vmatpush2.msra.mxu0 0.0
  %3450 = vmatprep.subr.mxu0 0.0
  %3451 = vmatpush2.msra.mxu0 0.0
  %3452 = vmatprep.subr.mxu0 0.0
  %3453 = vmatpush2.msra.mxu0 0.0
  %3454 = vmatprep.subr.mxu0 0.0
  %3455 = vmatpush2.msra.mxu0 0.0
  %3456 = vmatprep.subr.mxu0 0.0
  %3457 = vmatpush2.msra.mxu0 0.0
  %3458 = vmatprep.subr.mxu0 0.0
  %3459 = vmatpush2.msra.mxu0 0.0
  %3460 = vmatprep.subr.mxu0 0.0
  %3461 = vmatpush2.msra.mxu0 0.0
  %3462 = vmatprep.subr.mxu0 0.0
  %3463 = vmatpush2.msra.mxu0 0.0
  %3464 = vmatprep.subr.mxu0 0.0
  %3465 = vmatpush2.msra.mxu0 0.0
  %3466 = vmatprep.subr.mxu0 0.0
  %3467 = vmatpush2.msra.mxu0 0.0
  %3468 = vmatprep.subr.mxu0 0.0
  %3469 = vmatpush2.msra.mxu0 0.0
  %3470 = vmatprep.subr.mxu0 0.0
  %3471 = vmatpush2.msra.mxu0 0.0
  %3472 = vmatprep.subr.mxu0 0.0
  %3473 = vmatpush2.msra.mxu0 0.0
  %3474 = vmatprep.subr.mxu0 0.0
  %3475 = vmatpush2.msra.mxu0 0.0
  %3476 = vmatprep.mubr.f32.mxu0 0.0
  %3477 = vmatmul.mubr.f32.gmra.mxu0 %v3267
  %v3478 = vpop.f32.mrf.mxu0
  %v3479 = vadd.f32 0.0, %v3478
  %v3480 = vpop.f32.mrf.mxu0
  %3481 = vmatprep.mubr.f32.mxu0 0.0
  %3482 = vmatmul.mubr.f32.gmra.mxu0 %v3268
  %v3483 = vpop.f32.mrf.mxu0
  %v3484 = vadd.f32 0.0, %v3483
  %v3485 = vpop.f32.mrf.mxu0
  %3486 = vmatprep.mubr.f32.mxu0 0.0
  %3487 = vmatmul.mubr.f32.gmra.mxu0 %v3269
  %v3488 = vpop.f32.mrf.mxu0
  %v3489 = vadd.f32 0.0, %v3488
  %v3490 = vpop.f32.mrf.mxu0
  %3491 = vmatprep.mubr.f32.mxu0 0.0
  %3492 = vmatmul.mubr.f32.gmra.mxu0 %v3270
  %v3493 = vpop.f32.mrf.mxu0
  %v3494 = vadd.f32 0.0, %v3493
  %v3495 = vpop.f32.mrf.mxu0
  %3496 = vmatprep.mubr.f32.mxu0 0.0
  %3497 = vmatmul.mubr.f32.gmra.mxu0 %v3271
  %v3498 = vpop.f32.mrf.mxu0
  %v3499 = vadd.f32 0.0, %v3498
  %v3500 = vpop.f32.mrf.mxu0
  %3501 = vmatprep.mubr.f32.mxu0 0.0
  %3502 = vmatmul.mubr.f32.gmra.mxu0 %v3272
  %v3503 = vpop.f32.mrf.mxu0
  %v3504 = vadd.f32 0.0, %v3503
  %v3505 = vpop.f32.mrf.mxu0
  %3506 = vmatprep.mubr.f32.mxu0 0.0
  %3507 = vmatmul.mubr.f32.gmra.mxu0 %v3273
  %v3508 = vpop.f32.mrf.mxu0
  %v3509 = vadd.f32 0.0, %v3508
  %v3510 = vpop.f32.mrf.mxu0
  %3511 = vmatprep.mubr.f32.mxu0 0.0
  %3512 = vmatmul.mubr.f32.gmra.mxu0 %v3274
  %v3513 = vpop.f32.mrf.mxu0
  %v3514 = vadd.f32 0.0, %v3513
  %v3515 = vpop.f32.mrf.mxu0
  %3516 = vmatprep.mubr.f32.mxu0 0.0
  %3517 = vmatmul.mubr.f32.gmra.mxu0 %v3275
  %v3518 = vpop.f32.mrf.mxu0
  %v3519 = vadd.f32 0.0, %v3518
  %v3520 = vpop.f32.mrf.mxu0
  %3521 = vmatprep.mubr.f32.mxu0 0.0
  %3522 = vmatmul.mubr.f32.gmra.mxu0 %v3276
  %v3523 = vpop.f32.mrf.mxu0
  %v3524 = vadd.f32 0.0, %v3523
  %v3525 = vpop.f32.mrf.mxu0
  %3526 = vmatprep.mubr.f32.mxu0 0.0
  %3527 = vmatmul.mubr.f32.gmra.mxu0 %v3277
  %v3528 = vpop.f32.mrf.mxu0
  %v3529 = vadd.f32 0.0, %v3528
  %v3530 = vpop.f32.mrf.mxu0
  %3531 = vmatprep.mubr.f32.mxu0 0.0
  %3532 = vmatmul.mubr.f32.gmra.mxu0 %v3278
  %v3533 = vpop.f32.mrf.mxu0
  %v3534 = vadd.f32 0.0, %v3533
  %v3535 = vpop.f32.mrf.mxu0
  %3536 = vmatprep.mubr.f32.mxu0 0.0
  %3537 = vmatmul.mubr.f32.gmra.mxu0 %v3279
  %v3538 = vpop.f32.mrf.mxu0
  %v3539 = vadd.f32 0.0, %v3538
  %v3540 = vpop.f32.mrf.mxu0
  %3541 = vmatprep.mubr.f32.mxu0 0.0
  %3542 = vmatmul.mubr.f32.gmra.mxu0 %v3280
  %v3543 = vpop.f32.mrf.mxu0
  %v3544 = vadd.f32 0.0, %v3543
  %v3545 = vpop.f32.mrf.mxu0
  %3546 = vmatprep.mubr.f32.mxu0 0.0
  %3547 = vmatmul.mubr.f32.gmra.mxu0 %v3281
  %v3548 = vpop.f32.mrf.mxu0
  %v3549 = vadd.f32 0.0, %v3548
  %v3550 = vpop.f32.mrf.mxu0
  %3551 = vmatprep.mubr.f32.mxu0 0.0
  %3552 = vmatmul.mubr.f32.gmra.mxu0 %v3282
  %v3553 = vpop.f32.mrf.mxu0
  %v3554 = vadd.f32 0.0, %v3553
  %v3555 = vpop.f32.mrf.mxu0
  %3556 = vmatprep.mubr.f32.mxu0 0.0
  %3557 = vmatmul.mubr.f32.gmra.mxu0 %v3283
  %v3558 = vpop.f32.mrf.mxu0
  %v3559 = vadd.f32 0.0, %v3558
  %v3560 = vpop.f32.mrf.mxu0
  %3561 = vmatprep.mubr.f32.mxu0 0.0
  %3562 = vmatmul.mubr.f32.gmra.mxu0 %v3284
  %v3563 = vpop.f32.mrf.mxu0
  %v3564 = vadd.f32 0.0, %v3563
  %v3565 = vpop.f32.mrf.mxu0
  %3566 = vmatprep.mubr.f32.mxu0 0.0
  %3567 = vmatmul.mubr.f32.gmra.mxu0 %v3285
  %v3568 = vpop.f32.mrf.mxu0
  %v3569 = vadd.f32 0.0, %v3568
  %v3570 = vpop.f32.mrf.mxu0
  %3571 = vmatprep.mubr.f32.mxu0 0.0
  %3572 = vmatmul.mubr.f32.gmra.mxu0 %v3286
  %v3573 = vpop.f32.mrf.mxu0
  %v3574 = vadd.f32 0.0, %v3573
  %v3575 = vpop.f32.mrf.mxu0
  %3576 = vmatprep.mubr.f32.mxu0 0.0
  %3577 = vmatmul.mubr.f32.gmra.mxu0 %v3287
  %v3578 = vpop.f32.mrf.mxu0
  %v3579 = vadd.f32 0.0, %v3578
  %v3580 = vpop.f32.mrf.mxu0
  %3581 = vmatprep.mubr.f32.mxu0 0.0
  %3582 = vmatmul.mubr.f32.gmra.mxu0 %v3288
  %v3583 = vpop.f32.mrf.mxu0
  %v3584 = vadd.f32 0.0, %v3583
  %v3585 = vpop.f32.mrf.mxu0
  %3586 = vmatprep.mubr.f32.mxu0 0.0
  %3587 = vmatmul.mubr.f32.gmra.mxu0 %v3289
  %v3588 = vpop.f32.mrf.mxu0
  %v3589 = vadd.f32 0.0, %v3588
  %v3590 = vpop.f32.mrf.mxu0
  %3591 = vmatprep.mubr.f32.mxu0 0.0
  %3592 = vmatmul.mubr.f32.gmra.mxu0 %v3290
  %v3593 = vpop.f32.mrf.mxu0
  %v3594 = vadd.f32 0.0, %v3593
  %v3595 = vpop.f32.mrf.mxu0
  %3596 = vmatprep.mubr.f32.mxu0 0.0
  %3597 = vmatmul.mubr.f32.gmra.mxu0 %v3291
  %v3598 = vpop.f32.mrf.mxu0
  %v3599 = vadd.f32 0.0, %v3598
  %v3600 = vpop.f32.mrf.mxu0
  %3601 = vmatprep.mubr.f32.mxu0 0.0
  %3602 = vmatmul.mubr.f32.gmra.mxu0 %v3292
  %v3603 = vpop.f32.mrf.mxu0
  %v3604 = vadd.f32 0.0, %v3603
  %v3605 = vpop.f32.mrf.mxu0
  %3606 = vmatprep.mubr.f32.mxu0 0.0
  %3607 = vmatmul.mubr.f32.gmra.mxu0 %v3293
  %v3608 = vpop.f32.mrf.mxu0
  %v3609 = vadd.f32 0.0, %v3608
  %v3610 = vpop.f32.mrf.mxu0
  %3611 = vmatprep.mubr.f32.mxu0 0.0
  %3612 = vmatmul.mubr.f32.gmra.mxu0 %v3294
  %v3613 = vpop.f32.mrf.mxu0
  %v3614 = vadd.f32 0.0, %v3613
  %v3615 = vpop.f32.mrf.mxu0
  %3616 = vmatprep.mubr.f32.mxu0 0.0
  %3617 = vmatmul.mubr.f32.gmra.mxu0 %v3295
  %v3618 = vpop.f32.mrf.mxu0
  %v3619 = vadd.f32 0.0, %v3618
  %v3620 = vpop.f32.mrf.mxu0
  %3621 = vmatprep.mubr.f32.mxu0 0.0
  %3622 = vmatmul.mubr.f32.gmra.mxu0 %v3296
  %v3623 = vpop.f32.mrf.mxu0
  %v3624 = vadd.f32 0.0, %v3623
  %v3625 = vpop.f32.mrf.mxu0
  %3626 = vmatprep.mubr.f32.mxu0 0.0
  %3627 = vmatmul.mubr.f32.gmra.mxu0 %v3297
  %v3628 = vpop.f32.mrf.mxu0
  %v3629 = vadd.f32 0.0, %v3628
  %v3630 = vpop.f32.mrf.mxu0
  %3631 = vmatprep.mubr.f32.mxu0 0.0
  %3632 = vmatmul.mubr.f32.gmra.mxu0 %v3298
  %v3633 = vpop.f32.mrf.mxu0
  %v3634 = vadd.f32 0.0, %v3633
  %v3635 = vpop.f32.mrf.mxu0
  %3636 = vmatprep.mubr.f32.mxu0 0.0
  %3637 = vmatmul.mubr.f32.gmra.mxu0 %v3299
  %v3638 = vpop.f32.mrf.mxu0
  %v3639 = vadd.f32 0.0, %v3638
  %v3640 = vpop.f32.mrf.mxu0
  %3641 = vmatprep.mubr.f32.mxu0 0.0
  %3642 = vmatmul.mubr.f32.gmra.mxu0 %v3300
  %v3643 = vpop.f32.mrf.mxu0
  %v3644 = vadd.f32 0.0, %v3643
  %v3645 = vpop.f32.mrf.mxu0
  %3646 = vmatprep.mubr.f32.mxu0 0.0
  %3647 = vmatmul.mubr.f32.gmra.mxu0 %v3301
  %v3648 = vpop.f32.mrf.mxu0
  %v3649 = vadd.f32 0.0, %v3648
  %v3650 = vpop.f32.mrf.mxu0
  %3651 = vmatprep.mubr.f32.mxu0 0.0
  %3652 = vmatmul.mubr.f32.gmra.mxu0 %v3302
  %v3653 = vpop.f32.mrf.mxu0
  %v3654 = vadd.f32 0.0, %v3653
  %v3655 = vpop.f32.mrf.mxu0
  %3656 = vmatprep.mubr.f32.mxu0 0.0
  %3657 = vmatmul.mubr.f32.gmra.mxu0 %v3303
  %v3658 = vpop.f32.mrf.mxu0
  %v3659 = vadd.f32 0.0, %v3658
  %v3660 = vpop.f32.mrf.mxu0
  %3661 = vmatprep.mubr.f32.mxu0 0.0
  %3662 = vmatmul.mubr.f32.gmra.mxu0 %v3304
  %v3663 = vpop.f32.mrf.mxu0
  %v3664 = vadd.f32 0.0, %v3663
  %v3665 = vpop.f32.mrf.mxu0
  %3666 = vmatprep.mubr.f32.mxu0 0.0
  %3667 = vmatmul.mubr.f32.gmra.mxu0 %v3305
  %v3668 = vpop.f32.mrf.mxu0
  %v3669 = vadd.f32 0.0, %v3668
  %v3670 = vpop.f32.mrf.mxu0
  %3671 = vmatprep.mubr.f32.mxu0 0.0
  %3672 = vmatmul.mubr.f32.gmra.mxu0 %v3306
  %v3673 = vpop.f32.mrf.mxu0
  %v3674 = vadd.f32 0.0, %v3673
  %v3675 = vpop.f32.mrf.mxu0
  %3676 = vmatprep.mubr.f32.mxu0 0.0
  %3677 = vmatmul.mubr.f32.gmra.mxu0 %v3307
  %v3678 = vpop.f32.mrf.mxu0
  %v3679 = vadd.f32 0.0, %v3678
  %v3680 = vpop.f32.mrf.mxu0
  %3681 = vmatprep.mubr.f32.mxu0 0.0
  %3682 = vmatmul.mubr.f32.gmra.mxu0 %v3308
  %v3683 = vpop.f32.mrf.mxu0
  %v3684 = vadd.f32 0.0, %v3683
  %v3685 = vpop.f32.mrf.mxu0
  %3686 = vmatprep.mubr.f32.mxu0 0.0
  %3687 = vmatmul.mubr.f32.gmra.mxu0 %v3309
  %v3688 = vpop.f32.mrf.mxu0
  %v3689 = vadd.f32 0.0, %v3688
  %v3690 = vpop.f32.mrf.mxu0
  %3691 = vmatprep.mubr.f32.mxu0 0.0
  %3692 = vmatmul.mubr.f32.gmra.mxu0 %v3310
  %v3693 = vpop.f32.mrf.mxu0
  %v3694 = vadd.f32 0.0, %v3693
  %v3695 = vpop.f32.mrf.mxu0
  %3696 = vmatprep.mubr.f32.mxu0 0.0
  %3697 = vmatmul.mubr.f32.gmra.mxu0 %v3311
  %v3698 = vpop.f32.mrf.mxu0
  %v3699 = vadd.f32 0.0, %v3698
  %v3700 = vpop.f32.mrf.mxu0
  %3701 = vmatprep.mubr.f32.mxu0 0.0
  %3702 = vmatmul.mubr.f32.gmra.mxu0 %v3312
  %v3703 = vpop.f32.mrf.mxu0
  %v3704 = vadd.f32 0.0, %v3703
  %v3705 = vpop.f32.mrf.mxu0
  %3706 = vmatprep.mubr.f32.mxu0 0.0
  %3707 = vmatmul.mubr.f32.gmra.mxu0 %v3313
  %v3708 = vpop.f32.mrf.mxu0
  %v3709 = vadd.f32 0.0, %v3708
  %v3710 = vpop.f32.mrf.mxu0
  %3711 = vmatprep.mubr.f32.mxu0 0.0
  %3712 = vmatmul.mubr.f32.gmra.mxu0 %v3314
  %v3713 = vpop.f32.mrf.mxu0
  %v3714 = vadd.f32 0.0, %v3713
  %v3715 = vpop.f32.mrf.mxu0
  %3716 = vmatprep.mubr.f32.mxu0 0.0
  %3717 = vmatmul.mubr.f32.gmra.mxu0 %v3315
  %v3718 = vpop.f32.mrf.mxu0
  %v3719 = vadd.f32 0.0, %v3718
  %v3720 = vpop.f32.mrf.mxu0
  %3721 = vmatprep.mubr.f32.mxu0 0.0
  %3722 = vmatmul.mubr.f32.gmra.mxu0 %v3316
  %v3723 = vpop.f32.mrf.mxu0
  %v3724 = vadd.f32 0.0, %v3723
  %v3725 = vpop.f32.mrf.mxu0
  %3726 = vmatprep.mubr.f32.mxu0 0.0
  %3727 = vmatmul.mubr.f32.gmra.mxu0 %v3317
  %v3728 = vpop.f32.mrf.mxu0
  %v3729 = vadd.f32 0.0, %v3728
  %v3730 = vpop.f32.mrf.mxu0
  %3731 = vmatprep.mubr.f32.mxu0 0.0
  %3732 = vmatmul.mubr.f32.gmra.mxu0 %v3318
  %v3733 = vpop.f32.mrf.mxu0
  %v3734 = vadd.f32 0.0, %v3733
  %v3735 = vpop.f32.mrf.mxu0
  %3736 = vmatprep.mubr.f32.mxu0 0.0
  %3737 = vmatmul.mubr.f32.gmra.mxu0 %v3319
  %v3738 = vpop.f32.mrf.mxu0
  %v3739 = vadd.f32 0.0, %v3738
  %v3740 = vpop.f32.mrf.mxu0
  %3741 = vmatprep.mubr.f32.mxu0 0.0
  %3742 = vmatmul.mubr.f32.gmra.mxu0 %v3320
  %v3743 = vpop.f32.mrf.mxu0
  %v3744 = vadd.f32 0.0, %v3743
  %v3745 = vpop.f32.mrf.mxu0
  %3746 = vmatprep.mubr.f32.mxu0 0.0
  %3747 = vmatmul.mubr.f32.gmra.mxu0 %v3321
  %v3748 = vpop.f32.mrf.mxu0
  %v3749 = vadd.f32 0.0, %v3748
  %v3750 = vpop.f32.mrf.mxu0
  %3751 = vmatprep.mubr.f32.mxu0 0.0
  %3752 = vmatmul.mubr.f32.gmra.mxu0 %v3322
  %v3753 = vpop.f32.mrf.mxu0
  %v3754 = vadd.f32 0.0, %v3753
  %v3755 = vpop.f32.mrf.mxu0
  %3756 = vmatprep.mubr.f32.mxu0 0.0
  %3757 = vmatmul.mubr.f32.gmra.mxu0 %v3323
  %v3758 = vpop.f32.mrf.mxu0
  %v3759 = vadd.f32 0.0, %v3758
  %v3760 = vpop.f32.mrf.mxu0
  %3761 = vmatprep.mubr.f32.mxu0 0.0
  %3762 = vmatmul.mubr.f32.gmra.mxu0 %v3324
  %v3763 = vpop.f32.mrf.mxu0
  %v3764 = vadd.f32 0.0, %v3763
  %v3765 = vpop.f32.mrf.mxu0
  %3766 = vmatprep.mubr.f32.mxu0 0.0
  %3767 = vmatmul.mubr.f32.gmra.mxu0 %v3325
  %v3768 = vpop.f32.mrf.mxu0
  %v3769 = vadd.f32 0.0, %v3768
  %v3770 = vpop.f32.mrf.mxu0
  %3771 = vmatprep.mubr.f32.mxu0 0.0
  %3772 = vmatmul.mubr.f32.gmra.mxu0 %v3326
  %v3773 = vpop.f32.mrf.mxu0
  %v3774 = vadd.f32 0.0, %v3773
  %v3775 = vpop.f32.mrf.mxu0
  %3776 = vmatprep.mubr.f32.mxu0 0.0
  %3777 = vmatmul.mubr.f32.gmra.mxu0 %v3327
  %v3778 = vpop.f32.mrf.mxu0
  %v3779 = vadd.f32 0.0, %v3778
  %v3780 = vpop.f32.mrf.mxu0
  %3781 = vmatprep.mubr.f32.mxu0 0.0
  %3782 = vmatmul.mubr.f32.gmra.mxu0 %v3328
  %v3783 = vpop.f32.mrf.mxu0
  %v3784 = vadd.f32 0.0, %v3783
  %v3785 = vpop.f32.mrf.mxu0
  %3786 = vmatprep.mubr.f32.mxu0 0.0
  %3787 = vmatmul.mubr.f32.gmra.mxu0 %v3329
  %v3788 = vpop.f32.mrf.mxu0
  %v3789 = vadd.f32 0.0, %v3788
  %v3790 = vpop.f32.mrf.mxu0
  %3791 = vmatprep.mubr.f32.mxu0 0.0
  %3792 = vmatmul.mubr.f32.gmra.mxu0 %v3330
  %v3793 = vpop.f32.mrf.mxu0
  %v3794 = vadd.f32 0.0, %v3793
  %v3795 = vpop.f32.mrf.mxu0
  %3796 = vdwg.mxu0
  %v3797 = vadd.f32 %v3331, %v3479
  %v3798 = vadd.f32 %v3332, %v3484
  %v3799 = vadd.f32 %v3333, %v3489
  %v3800 = vadd.f32 %v3334, %v3494
  %v3801 = vadd.f32 %v3335, %v3499
  %v3802 = vadd.f32 %v3336, %v3504
  %v3803 = vadd.f32 %v3337, %v3509
  %v3804 = vadd.f32 %v3338, %v3514
  %v3805 = vadd.f32 %v3339, %v3519
  %v3806 = vadd.f32 %v3340, %v3524
  %v3807 = vadd.f32 %v3341, %v3529
  %v3808 = vadd.f32 %v3342, %v3534
  %v3809 = vadd.f32 %v3343, %v3539
  %v3810 = vadd.f32 %v3344, %v3544
  %v3811 = vadd.f32 %v3345, %v3549
  %v3812 = vadd.f32 %v3346, %v3554
  %v3813 = vadd.f32 %v3347, %v3559
  %v3814 = vadd.f32 %v3348, %v3564
  %v3815 = vadd.f32 %v3349, %v3569
  %v3816 = vadd.f32 %v3350, %v3574
  %v3817 = vadd.f32 %v3351, %v3579
  %v3818 = vadd.f32 %v3352, %v3584
  %v3819 = vadd.f32 %v3353, %v3589
  %v3820 = vadd.f32 %v3354, %v3594
  %v3821 = vadd.f32 %v3355, %v3599
  %v3822 = vadd.f32 %v3356, %v3604
  %v3823 = vadd.f32 %v3357, %v3609
  %v3824 = vadd.f32 %v3358, %v3614
  %v3825 = vadd.f32 %v3359, %v3619
  %v3826 = vadd.f32 %v3360, %v3624
  %v3827 = vadd.f32 %v3361, %v3629
  %v3828 = vadd.f32 %v3362, %v3634
  %v3829 = vadd.f32 %v3363, %v3639
  %v3830 = vadd.f32 %v3364, %v3644
  %v3831 = vadd.f32 %v3365, %v3649
  %v3832 = vadd.f32 %v3366, %v3654
  %v3833 = vadd.f32 %v3367, %v3659
  %v3834 = vadd.f32 %v3368, %v3664
  %v3835 = vadd.f32 %v3369, %v3669
  %v3836 = vadd.f32 %v3370, %v3674
  %v3837 = vadd.f32 %v3371, %v3679
  %v3838 = vadd.f32 %v3372, %v3684
  %v3839 = vadd.f32 %v3373, %v3689
  %v3840 = vadd.f32 %v3374, %v3694
  %v3841 = vadd.f32 %v3375, %v3699
  %v3842 = vadd.f32 %v3376, %v3704
  %v3843 = vadd.f32 %v3377, %v3709
  %v3844 = vadd.f32 %v3378, %v3714
  %v3845 = vadd.f32 %v3379, %v3719
  %v3846 = vadd.f32 %v3380, %v3724
  %v3847 = vadd.f32 %v3381, %v3729
  %v3848 = vadd.f32 %v3382, %v3734
  %v3849 = vadd.f32 %v3383, %v3739
  %v3850 = vadd.f32 %v3384, %v3744
  %v3851 = vadd.f32 %v3385, %v3749
  %v3852 = vadd.f32 %v3386, %v3754
  %v3853 = vadd.f32 %v3387, %v3759
  %v3854 = vadd.f32 %v3388, %v3764
  %v3855 = vadd.f32 %v3389, %v3769
  %v3856 = vadd.f32 %v3390, %v3774
  %v3857 = vadd.f32 %v3391, %v3779
  %v3858 = vadd.f32 %v3392, %v3784
  %v3859 = vadd.f32 %v3393, %v3789
  %v3860 = vadd.f32 %v3394, %v3794
  %3861 = vst [vmem:[#allocation3] sm:$0xff] %v3797
  %3862 = vst [vmem:[#allocation3 + $0x8] sm:$0xff] %v3798
  %3863 = vst [vmem:[#allocation3 + $0x10] sm:$0xff] %v3799
  %3864 = vst [vmem:[#allocation3 + $0x18] sm:$0xff] %v3800
  %3865 = vst [vmem:[#allocation3 + $0x20] sm:$0xff] %v3801
  %3866 = vst [vmem:[#allocation3 + $0x28] sm:$0xff] %v3802
  %3867 = vst [vmem:[#allocation3 + $0x30] sm:$0xff] %v3803
  %3868 = vst [vmem:[#allocation3 + $0x38] sm:$0xff] %v3804
  %3869 = vst [vmem:[#allocation3 + $0x40] sm:$0xff] %v3805
  %3870 = vst [vmem:[#allocation3 + $0x48] sm:$0xff] %v3806
  %3871 = vst [vmem:[#allocation3 + $0x50] sm:$0xff] %v3807
  %3872 = vst [vmem:[#allocation3 + $0x58] sm:$0xff] %v3808
  %3873 = vst [vmem:[#allocation3 + $0x60] sm:$0xff] %v3809
  %3874 = vst [vmem:[#allocation3 + $0x68] sm:$0xff] %v3810
  %3875 = vst [vmem:[#allocation3 + $0x70] sm:$0xff] %v3811
  %3876 = vst [vmem:[#allocation3 + $0x78] sm:$0xff] %v3812
  %3877 = vst [vmem:[#allocation3 + $0x80] sm:$0xff] %v3813
  %3878 = vst [vmem:[#allocation3 + $0x88] sm:$0xff] %v3814
  %3879 = vst [vmem:[#allocation3 + $0x90] sm:$0xff] %v3815
  %3880 = vst [vmem:[#allocation3 + $0x98] sm:$0xff] %v3816
  %3881 = vst [vmem:[#allocation3 + $0xa0] sm:$0xff] %v3817
  %3882 = vst [vmem:[#allocation3 + $0xa8] sm:$0xff] %v3818
  %3883 = vst [vmem:[#allocation3 + $0xb0] sm:$0xff] %v3819
  %3884 = vst [vmem:[#allocation3 + $0xb8] sm:$0xff] %v3820
  %3885 = vst [vmem:[#allocation3 + $0xc0] sm:$0xff] %v3821
  %3886 = vst [vmem:[#allocation3 + $0xc8] sm:$0xff] %v3822
  %3887 = vst [vmem:[#allocation3 + $0xd0] sm:$0xff] %v3823
  %3888 = vst [vmem:[#allocation3 + $0xd8] sm:$0xff] %v3824
  %3889 = vst [vmem:[#allocation3 + $0xe0] sm:$0xff] %v3825
  %3890 = vst [vmem:[#allocation3 + $0xe8] sm:$0xff] %v3826
  %3891 = vst [vmem:[#allocation3 + $0xf0] sm:$0xff] %v3827
  %3892 = vst [vmem:[#allocation3 + $0xf8] sm:$0xff] %v3828
  %3893 = vst [vmem:[#allocation3 + $0x100] sm:$0xff] %v3829
  %3894 = vst [vmem:[#allocation3 + $0x108] sm:$0xff] %v3830
  %3895 = vst [vmem:[#allocation3 + $0x110] sm:$0xff] %v3831
  %3896 = vst [vmem:[#allocation3 + $0x118] sm:$0xff] %v3832
  %3897 = vst [vmem:[#allocation3 + $0x120] sm:$0xff] %v3833
  %3898 = vst [vmem:[#allocation3 + $0x128] sm:$0xff] %v3834
  %3899 = vst [vmem:[#allocation3 + $0x130] sm:$0xff] %v3835
  %3900 = vst [vmem:[#allocation3 + $0x138] sm:$0xff] %v3836
  %3901 = vst [vmem:[#allocation3 + $0x140] sm:$0xff] %v3837
  %3902 = vst [vmem:[#allocation3 + $0x148] sm:$0xff] %v3838
  %3903 = vst [vmem:[#allocation3 + $0x150] sm:$0xff] %v3839
  %3904 = vst [vmem:[#allocation3 + $0x158] sm:$0xff] %v3840
  %3905 = vst [vmem:[#allocation3 + $0x160] sm:$0xff] %v3841
  %3906 = vst [vmem:[#allocation3 + $0x168] sm:$0xff] %v3842
  %3907 = vst [vmem:[#allocation3 + $0x170] sm:$0xff] %v3843
  %3908 = vst [vmem:[#allocation3 + $0x178] sm:$0xff] %v3844
  %3909 = vst [vmem:[#allocation3 + $0x180] sm:$0xff] %v3845
  %3910 = vst [vmem:[#allocation3 + $0x188] sm:$0xff] %v3846
  %3911 = vst [vmem:[#allocation3 + $0x190] sm:$0xff] %v3847
  %3912 = vst [vmem:[#allocation3 + $0x198] sm:$0xff] %v3848
  %3913 = vst [vmem:[#allocation3 + $0x1a0] sm:$0xff] %v3849
  %3914 = vst [vmem:[#allocation3 + $0x1a8] sm:$0xff] %v3850
  %3915 = vst [vmem:[#allocation3 + $0x1b0] sm:$0xff] %v3851
  %3916 = vst [vmem:[#allocation3 + $0x1b8] sm:$0xff] %v3852
  %3917 = vst [vmem:[#allocation3 + $0x1c0] sm:$0xff] %v3853
  %3918 = vst [vmem:[#allocation3 + $0x1c8] sm:$0xff] %v3854
  %3919 = vst [vmem:[#allocation3 + $0x1d0] sm:$0xff] %v3855
  %3920 = vst [vmem:[#allocation3 + $0x1d8] sm:$0xff] %v3856
  %3921 = vst [vmem:[#allocation3 + $0x1e0] sm:$0xff] %v3857
  %3922 = vst [vmem:[#allocation3 + $0x1e8] sm:$0xff] %v3858
  %3923 = vst [vmem:[#allocation3 + $0x1f0] sm:$0xff] %v3859
  %3924 = vst [vmem:[#allocation3 + $0x1f8] sm:$0xff] %v3860
  %v3925 = vld [vmem:[%s1165 + $0x8] sm:$0xff]
  %v3926 = vld [vmem:[%s1165 + $0x10] sm:$0xff]
  %v3927 = vld [vmem:[%s1165 + $0x28] sm:$0xff]
  %v3928 = vld [vmem:[%s1165 + $0x30] sm:$0xff]
  %v3929 = vld [vmem:[%s1165 + $0x48] sm:$0xff]
  %v3930 = vld [vmem:[%s1165 + $0x50] sm:$0xff]
  %v3931 = vld [vmem:[%s1165 + $0x68] sm:$0xff]
  %v3932 = vld [vmem:[%s1165 + $0x70] sm:$0xff]
  %v3933 = vld [vmem:[%s1165 + $0x88] sm:$0xff]
  %v3934 = vld [vmem:[%s1165 + $0x90] sm:$0xff]
  %v3935 = vld [vmem:[%s1165 + $0xa8] sm:$0xff]
  %v3936 = vld [vmem:[%s1165 + $0xb0] sm:$0xff]
  %v3937 = vld [vmem:[%s1165 + $0xc8] sm:$0xff]
  %v3938 = vld [vmem:[%s1165 + $0xd0] sm:$0xff]
  %v3939 = vld [vmem:[%s1165 + $0xe8] sm:$0xff]
  %v3940 = vld [vmem:[%s1165 + $0xf0] sm:$0xff]
  %v3941 = vld [vmem:[%s1165 + $0x108] sm:$0xff]
  %v3942 = vld [vmem:[%s1165 + $0x110] sm:$0xff]
  %v3943 = vld [vmem:[%s1165 + $0x128] sm:$0xff]
  %v3944 = vld [vmem:[%s1165 + $0x130] sm:$0xff]
  %v3945 = vld [vmem:[%s1165 + $0x148] sm:$0xff]
  %v3946 = vld [vmem:[%s1165 + $0x150] sm:$0xff]
  %v3947 = vld [vmem:[%s1165 + $0x168] sm:$0xff]
  %v3948 = vld [vmem:[%s1165 + $0x170] sm:$0xff]
  %v3949 = vld [vmem:[%s1165 + $0x188] sm:$0xff]
  %v3950 = vld [vmem:[%s1165 + $0x190] sm:$0xff]
  %v3951 = vld [vmem:[%s1165 + $0x1a8] sm:$0xff]
  %v3952 = vld [vmem:[%s1165 + $0x1b0] sm:$0xff]
  %v3953 = vld [vmem:[%s1165 + $0x1c8] sm:$0xff]
  %v3954 = vld [vmem:[%s1165 + $0x1d0] sm:$0xff]
  %v3955 = vld [vmem:[%s1165 + $0x1e8] sm:$0xff]
  %v3956 = vld [vmem:[%s1165 + $0x1f0] sm:$0xff]
  %v3957 = vld [vmem:[%s1165 + $0x248] sm:$0xff]
  %v3958 = vld [vmem:[%s1165 + $0x250] sm:$0xff]
  %v3959 = vld [vmem:[%s1165 + $0x268] sm:$0xff]
  %v3960 = vld [vmem:[%s1165 + $0x270] sm:$0xff]
  %v3961 = vld [vmem:[%s1165 + $0x288] sm:$0xff]
  %v3962 = vld [vmem:[%s1165 + $0x290] sm:$0xff]
  %v3963 = vld [vmem:[%s1165 + $0x2a8] sm:$0xff]
  %v3964 = vld [vmem:[%s1165 + $0x2b0] sm:$0xff]
  %v3965 = vld [vmem:[%s1165 + $0x2c8] sm:$0xff]
  %v3966 = vld [vmem:[%s1165 + $0x2d0] sm:$0xff]
  %v3967 = vld [vmem:[%s1165 + $0x2e8] sm:$0xff]
  %v3968 = vld [vmem:[%s1165 + $0x2f0] sm:$0xff]
  %v3969 = vld [vmem:[%s1165 + $0x308] sm:$0xff]
  %v3970 = vld [vmem:[%s1165 + $0x310] sm:$0xff]
  %v3971 = vld [vmem:[%s1165 + $0x328] sm:$0xff]
  %v3972 = vld [vmem:[%s1165 + $0x330] sm:$0xff]
  %v3973 = vld [vmem:[%s1165 + $0x348] sm:$0xff]
  %v3974 = vld [vmem:[%s1165 + $0x350] sm:$0xff]
  %v3975 = vld [vmem:[%s1165 + $0x368] sm:$0xff]
  %v3976 = vld [vmem:[%s1165 + $0x370] sm:$0xff]
  %v3977 = vld [vmem:[%s1165 + $0x388] sm:$0xff]
  %v3978 = vld [vmem:[%s1165 + $0x390] sm:$0xff]
  %v3979 = vld [vmem:[%s1165 + $0x3a8] sm:$0xff]
  %v3980 = vld [vmem:[%s1165 + $0x3b0] sm:$0xff]
  %v3981 = vld [vmem:[%s1165 + $0x3c8] sm:$0xff]
  %v3982 = vld [vmem:[%s1165 + $0x3d0] sm:$0xff]
  %v3983 = vld [vmem:[%s1165 + $0x3e8] sm:$0xff]
  %v3984 = vld [vmem:[%s1165 + $0x3f0] sm:$0xff]
  %v3985 = vld [vmem:[%s1165 + $0x408] sm:$0xff]
  %v3986 = vld [vmem:[%s1165 + $0x410] sm:$0xff]
  %v3987 = vld [vmem:[%s1165 + $0x428] sm:$0xff]
  %v3988 = vld [vmem:[%s1165 + $0x430] sm:$0xff]
  %v3989 = vld [vmem:[#allocation3] sm:$0xff]
  %v3990 = vld [vmem:[#allocation3 + $0x8] sm:$0xff]
  %v3991 = vld [vmem:[#allocation3 + $0x10] sm:$0xff]
  %v3992 = vld [vmem:[#allocation3 + $0x18] sm:$0xff]
  %v3993 = vld [vmem:[#allocation3 + $0x20] sm:$0xff]
  %v3994 = vld [vmem:[#allocation3 + $0x28] sm:$0xff]
  %v3995 = vld [vmem:[#allocation3 + $0x30] sm:$0xff]
  %v3996 = vld [vmem:[#allocation3 + $0x38] sm:$0xff]
  %v3997 = vld [vmem:[#allocation3 + $0x40] sm:$0xff]
  %v3998 = vld [vmem:[#allocation3 + $0x48] sm:$0xff]
  %v3999 = vld [vmem:[#allocation3 + $0x50] sm:$0xff]
  %v4000 = vld [vmem:[#allocation3 + $0x58] sm:$0xff]
  %v4001 = vld [vmem:[#allocation3 + $0x60] sm:$0xff]
  %v4002 = vld [vmem:[#allocation3 + $0x68] sm:$0xff]
  %v4003 = vld [vmem:[#allocation3 + $0x70] sm:$0xff]
  %v4004 = vld [vmem:[#allocation3 + $0x78] sm:$0xff]
  %v4005 = vld [vmem:[#allocation3 + $0x80] sm:$0xff]
  %v4006 = vld [vmem:[#allocation3 + $0x88] sm:$0xff]
  %v4007 = vld [vmem:[#allocation3 + $0x90] sm:$0xff]
  %v4008 = vld [vmem:[#allocation3 + $0x98] sm:$0xff]
  %v4009 = vld [vmem:[#allocation3 + $0xa0] sm:$0xff]
  %v4010 = vld [vmem:[#allocation3 + $0xa8] sm:$0xff]
  %v4011 = vld [vmem:[#allocation3 + $0xb0] sm:$0xff]
  %v4012 = vld [vmem:[#allocation3 + $0xb8] sm:$0xff]
  %v4013 = vld [vmem:[#allocation3 + $0xc0] sm:$0xff]
  %v4014 = vld [vmem:[#allocation3 + $0xc8] sm:$0xff]
  %v4015 = vld [vmem:[#allocation3 + $0xd0] sm:$0xff]
  %v4016 = vld [vmem:[#allocation3 + $0xd8] sm:$0xff]
  %v4017 = vld [vmem:[#allocation3 + $0xe0] sm:$0xff]
  %v4018 = vld [vmem:[#allocation3 + $0xe8] sm:$0xff]
  %v4019 = vld [vmem:[#allocation3 + $0xf0] sm:$0xff]
  %v4020 = vld [vmem:[#allocation3 + $0xf8] sm:$0xff]
  %v4021 = vld [vmem:[#allocation3 + $0x100] sm:$0xff]
  %v4022 = vld [vmem:[#allocation3 + $0x108] sm:$0xff]
  %v4023 = vld [vmem:[#allocation3 + $0x110] sm:$0xff]
  %v4024 = vld [vmem:[#allocation3 + $0x118] sm:$0xff]
  %v4025 = vld [vmem:[#allocation3 + $0x120] sm:$0xff]
  %v4026 = vld [vmem:[#allocation3 + $0x128] sm:$0xff]
  %v4027 = vld [vmem:[#allocation3 + $0x130] sm:$0xff]
  %v4028 = vld [vmem:[#allocation3 + $0x138] sm:$0xff]
  %v4029 = vld [vmem:[#allocation3 + $0x140] sm:$0xff]
  %v4030 = vld [vmem:[#allocation3 + $0x148] sm:$0xff]
  %v4031 = vld [vmem:[#allocation3 + $0x150] sm:$0xff]
  %v4032 = vld [vmem:[#allocation3 + $0x158] sm:$0xff]
  %v4033 = vld [vmem:[#allocation3 + $0x160] sm:$0xff]
  %v4034 = vld [vmem:[#allocation3 + $0x168] sm:$0xff]
  %v4035 = vld [vmem:[#allocation3 + $0x170] sm:$0xff]
  %v4036 = vld [vmem:[#allocation3 + $0x178] sm:$0xff]
  %v4037 = vld [vmem:[#allocation3 + $0x180] sm:$0xff]
  %v4038 = vld [vmem:[#allocation3 + $0x188] sm:$0xff]
  %v4039 = vld [vmem:[#allocation3 + $0x190] sm:$0xff]
  %v4040 = vld [vmem:[#allocation3 + $0x198] sm:$0xff]
  %v4041 = vld [vmem:[#allocation3 + $0x1a0] sm:$0xff]
  %v4042 = vld [vmem:[#allocation3 + $0x1a8] sm:$0xff]
  %v4043 = vld [vmem:[#allocation3 + $0x1b0] sm:$0xff]
  %v4044 = vld [vmem:[#allocation3 + $0x1b8] sm:$0xff]
  %v4045 = vld [vmem:[#allocation3 + $0x1c0] sm:$0xff]
  %v4046 = vld [vmem:[#allocation3 + $0x1c8] sm:$0xff]
  %v4047 = vld [vmem:[#allocation3 + $0x1d0] sm:$0xff]
  %v4048 = vld [vmem:[#allocation3 + $0x1d8] sm:$0xff]
  %v4049 = vld [vmem:[#allocation3 + $0x1e0] sm:$0xff]
  %v4050 = vld [vmem:[#allocation3 + $0x1e8] sm:$0xff]
  %v4051 = vld [vmem:[#allocation3 + $0x1f0] sm:$0xff]
  %v4052 = vld [vmem:[#allocation3 + $0x1f8] sm:$0xff]
  %s4053 = scalar_lea.vmem %s2, 512
  %v4054 = vld [vmem:[%s4053] sm:$0xff]
  %v4055 = vld [vmem:[%s4053 + $0x8] sm:$0xff]
  %v4056 = vld [vmem:[%s4053 + $0x10] sm:$0xff]
  %v4057 = vld [vmem:[%s4053 + $0x18] sm:$0xff]
  %v4058 = vld [vmem:[%s4053 + $0x20] sm:$0xff]
  %v4059 = vld [vmem:[%s4053 + $0x28] sm:$0xff]
  %v4060 = vld [vmem:[%s4053 + $0x30] sm:$0xff]
  %v4061 = vld [vmem:[%s4053 + $0x38] sm:$0xff]
  %v4062 = vld [vmem:[%s4053 + $0x40] sm:$0xff]
  %v4063 = vld [vmem:[%s4053 + $0x48] sm:$0xff]
  %v4064 = vld [vmem:[%s4053 + $0x50] sm:$0xff]
  %v4065 = vld [vmem:[%s4053 + $0x58] sm:$0xff]
  %v4066 = vld [vmem:[%s4053 + $0x60] sm:$0xff]
  %v4067 = vld [vmem:[%s4053 + $0x68] sm:$0xff]
  %v4068 = vld [vmem:[%s4053 + $0x70] sm:$0xff]
  %v4069 = vld [vmem:[%s4053 + $0x78] sm:$0xff]
  %4070 = vmatprep.subr.mxu0 0.0
  %4071 = vmatpush1.msra.mxu0 %v4069
  %4072 = vmatprep.subr.mxu0 0.0
  %4073 = vmatpush1.msra.mxu0 %v4068
  %4074 = vmatprep.subr.mxu0 0.0
  %4075 = vmatpush1.msra.mxu0 %v4067
  %4076 = vmatprep.subr.mxu0 0.0
  %4077 = vmatpush1.msra.mxu0 %v4066
  %4078 = vmatprep.subr.mxu0 0.0
  %4079 = vmatpush1.msra.mxu0 %v4065
  %4080 = vmatprep.subr.mxu0 0.0
  %4081 = vmatpush1.msra.mxu0 %v4064
  %4082 = vmatprep.subr.mxu0 0.0
  %4083 = vmatpush1.msra.mxu0 %v4063
  %4084 = vmatprep.subr.mxu0 0.0
  %4085 = vmatpush1.msra.mxu0 %v4062
  %4086 = vmatprep.subr.mxu0 0.0
  %4087 = vmatpush1.msra.mxu0 %v4061
  %4088 = vmatprep.subr.mxu0 0.0
  %4089 = vmatpush1.msra.mxu0 %v4060
  %4090 = vmatprep.subr.mxu0 0.0
  %4091 = vmatpush1.msra.mxu0 %v4059
  %4092 = vmatprep.subr.mxu0 0.0
  %4093 = vmatpush1.msra.mxu0 %v4058
  %4094 = vmatprep.subr.mxu0 0.0
  %4095 = vmatpush1.msra.mxu0 %v4057
  %4096 = vmatprep.subr.mxu0 0.0
  %4097 = vmatpush1.msra.mxu0 %v4056
  %4098 = vmatprep.subr.mxu0 0.0
  %4099 = vmatpush1.msra.mxu0 %v4055
  %4100 = vmatprep.subr.mxu0 0.0
  %4101 = vmatpush1.msra.mxu0 %v4054
  %4102 = vmatprep.subr.mxu0 0.0
  %4103 = vmatpush2.msra.mxu0 0.0
  %4104 = vmatprep.subr.mxu0 0.0
  %4105 = vmatpush2.msra.mxu0 0.0
  %4106 = vmatprep.subr.mxu0 0.0
  %4107 = vmatpush2.msra.mxu0 0.0
  %4108 = vmatprep.subr.mxu0 0.0
  %4109 = vmatpush2.msra.mxu0 0.0
  %4110 = vmatprep.subr.mxu0 0.0
  %4111 = vmatpush2.msra.mxu0 0.0
  %4112 = vmatprep.subr.mxu0 0.0
  %4113 = vmatpush2.msra.mxu0 0.0
  %4114 = vmatprep.subr.mxu0 0.0
  %4115 = vmatpush2.msra.mxu0 0.0
  %4116 = vmatprep.subr.mxu0 0.0
  %4117 = vmatpush2.msra.mxu0 0.0
  %4118 = vmatprep.subr.mxu0 0.0
  %4119 = vmatpush2.msra.mxu0 0.0
  %4120 = vmatprep.subr.mxu0 0.0
  %4121 = vmatpush2.msra.mxu0 0.0
  %4122 = vmatprep.subr.mxu0 0.0
  %4123 = vmatpush2.msra.mxu0 0.0
  %4124 = vmatprep.subr.mxu0 0.0
  %4125 = vmatpush2.msra.mxu0 0.0
  %4126 = vmatprep.subr.mxu0 0.0
  %4127 = vmatpush2.msra.mxu0 0.0
  %4128 = vmatprep.subr.mxu0 0.0
  %4129 = vmatpush2.msra.mxu0 0.0
  %4130 = vmatprep.subr.mxu0 0.0
  %4131 = vmatpush2.msra.mxu0 0.0
  %4132 = vmatprep.subr.mxu0 0.0
  %4133 = vmatpush2.msra.mxu0 0.0
  %4134 = vmatprep.mubr.f32.mxu0 0.0
  %4135 = vmatmul.mubr.f32.gmra.mxu0 %v3925
  %v4136 = vpop.f32.mrf.mxu0
  %v4137 = vadd.f32 0.0, %v4136
  %v4138 = vpop.f32.mrf.mxu0
  %4139 = vmatprep.mubr.f32.mxu0 0.0
  %4140 = vmatmul.mubr.f32.gmra.mxu0 %v3926
  %v4141 = vpop.f32.mrf.mxu0
  %v4142 = vadd.f32 0.0, %v4141
  %v4143 = vpop.f32.mrf.mxu0
  %4144 = vmatprep.mubr.f32.mxu0 0.0
  %4145 = vmatmul.mubr.f32.gmra.mxu0 %v3927
  %v4146 = vpop.f32.mrf.mxu0
  %v4147 = vadd.f32 0.0, %v4146
  %v4148 = vpop.f32.mrf.mxu0
  %4149 = vmatprep.mubr.f32.mxu0 0.0
  %4150 = vmatmul.mubr.f32.gmra.mxu0 %v3928
  %v4151 = vpop.f32.mrf.mxu0
  %v4152 = vadd.f32 0.0, %v4151
  %v4153 = vpop.f32.mrf.mxu0
  %4154 = vmatprep.mubr.f32.mxu0 0.0
  %4155 = vmatmul.mubr.f32.gmra.mxu0 %v3929
  %v4156 = vpop.f32.mrf.mxu0
  %v4157 = vadd.f32 0.0, %v4156
  %v4158 = vpop.f32.mrf.mxu0
  %4159 = vmatprep.mubr.f32.mxu0 0.0
  %4160 = vmatmul.mubr.f32.gmra.mxu0 %v3930
  %v4161 = vpop.f32.mrf.mxu0
  %v4162 = vadd.f32 0.0, %v4161
  %v4163 = vpop.f32.mrf.mxu0
  %4164 = vmatprep.mubr.f32.mxu0 0.0
  %4165 = vmatmul.mubr.f32.gmra.mxu0 %v3931
  %v4166 = vpop.f32.mrf.mxu0
  %v4167 = vadd.f32 0.0, %v4166
  %v4168 = vpop.f32.mrf.mxu0
  %4169 = vmatprep.mubr.f32.mxu0 0.0
  %4170 = vmatmul.mubr.f32.gmra.mxu0 %v3932
  %v4171 = vpop.f32.mrf.mxu0
  %v4172 = vadd.f32 0.0, %v4171
  %v4173 = vpop.f32.mrf.mxu0
  %4174 = vmatprep.mubr.f32.mxu0 0.0
  %4175 = vmatmul.mubr.f32.gmra.mxu0 %v3933
  %v4176 = vpop.f32.mrf.mxu0
  %v4177 = vadd.f32 0.0, %v4176
  %v4178 = vpop.f32.mrf.mxu0
  %4179 = vmatprep.mubr.f32.mxu0 0.0
  %4180 = vmatmul.mubr.f32.gmra.mxu0 %v3934
  %v4181 = vpop.f32.mrf.mxu0
  %v4182 = vadd.f32 0.0, %v4181
  %v4183 = vpop.f32.mrf.mxu0
  %4184 = vmatprep.mubr.f32.mxu0 0.0
  %4185 = vmatmul.mubr.f32.gmra.mxu0 %v3935
  %v4186 = vpop.f32.mrf.mxu0
  %v4187 = vadd.f32 0.0, %v4186
  %v4188 = vpop.f32.mrf.mxu0
  %4189 = vmatprep.mubr.f32.mxu0 0.0
  %4190 = vmatmul.mubr.f32.gmra.mxu0 %v3936
  %v4191 = vpop.f32.mrf.mxu0
  %v4192 = vadd.f32 0.0, %v4191
  %v4193 = vpop.f32.mrf.mxu0
  %4194 = vmatprep.mubr.f32.mxu0 0.0
  %4195 = vmatmul.mubr.f32.gmra.mxu0 %v3937
  %v4196 = vpop.f32.mrf.mxu0
  %v4197 = vadd.f32 0.0, %v4196
  %v4198 = vpop.f32.mrf.mxu0
  %4199 = vmatprep.mubr.f32.mxu0 0.0
  %4200 = vmatmul.mubr.f32.gmra.mxu0 %v3938
  %v4201 = vpop.f32.mrf.mxu0
  %v4202 = vadd.f32 0.0, %v4201
  %v4203 = vpop.f32.mrf.mxu0
  %4204 = vmatprep.mubr.f32.mxu0 0.0
  %4205 = vmatmul.mubr.f32.gmra.mxu0 %v3939
  %v4206 = vpop.f32.mrf.mxu0
  %v4207 = vadd.f32 0.0, %v4206
  %v4208 = vpop.f32.mrf.mxu0
  %4209 = vmatprep.mubr.f32.mxu0 0.0
  %4210 = vmatmul.mubr.f32.gmra.mxu0 %v3940
  %v4211 = vpop.f32.mrf.mxu0
  %v4212 = vadd.f32 0.0, %v4211
  %v4213 = vpop.f32.mrf.mxu0
  %4214 = vmatprep.mubr.f32.mxu0 0.0
  %4215 = vmatmul.mubr.f32.gmra.mxu0 %v3941
  %v4216 = vpop.f32.mrf.mxu0
  %v4217 = vadd.f32 0.0, %v4216
  %v4218 = vpop.f32.mrf.mxu0
  %4219 = vmatprep.mubr.f32.mxu0 0.0
  %4220 = vmatmul.mubr.f32.gmra.mxu0 %v3942
  %v4221 = vpop.f32.mrf.mxu0
  %v4222 = vadd.f32 0.0, %v4221
  %v4223 = vpop.f32.mrf.mxu0
  %4224 = vmatprep.mubr.f32.mxu0 0.0
  %4225 = vmatmul.mubr.f32.gmra.mxu0 %v3943
  %v4226 = vpop.f32.mrf.mxu0
  %v4227 = vadd.f32 0.0, %v4226
  %v4228 = vpop.f32.mrf.mxu0
  %4229 = vmatprep.mubr.f32.mxu0 0.0
  %4230 = vmatmul.mubr.f32.gmra.mxu0 %v3944
  %v4231 = vpop.f32.mrf.mxu0
  %v4232 = vadd.f32 0.0, %v4231
  %v4233 = vpop.f32.mrf.mxu0
  %4234 = vmatprep.mubr.f32.mxu0 0.0
  %4235 = vmatmul.mubr.f32.gmra.mxu0 %v3945
  %v4236 = vpop.f32.mrf.mxu0
  %v4237 = vadd.f32 0.0, %v4236
  %v4238 = vpop.f32.mrf.mxu0
  %4239 = vmatprep.mubr.f32.mxu0 0.0
  %4240 = vmatmul.mubr.f32.gmra.mxu0 %v3946
  %v4241 = vpop.f32.mrf.mxu0
  %v4242 = vadd.f32 0.0, %v4241
  %v4243 = vpop.f32.mrf.mxu0
  %4244 = vmatprep.mubr.f32.mxu0 0.0
  %4245 = vmatmul.mubr.f32.gmra.mxu0 %v3947
  %v4246 = vpop.f32.mrf.mxu0
  %v4247 = vadd.f32 0.0, %v4246
  %v4248 = vpop.f32.mrf.mxu0
  %4249 = vmatprep.mubr.f32.mxu0 0.0
  %4250 = vmatmul.mubr.f32.gmra.mxu0 %v3948
  %v4251 = vpop.f32.mrf.mxu0
  %v4252 = vadd.f32 0.0, %v4251
  %v4253 = vpop.f32.mrf.mxu0
  %4254 = vmatprep.mubr.f32.mxu0 0.0
  %4255 = vmatmul.mubr.f32.gmra.mxu0 %v3949
  %v4256 = vpop.f32.mrf.mxu0
  %v4257 = vadd.f32 0.0, %v4256
  %v4258 = vpop.f32.mrf.mxu0
  %4259 = vmatprep.mubr.f32.mxu0 0.0
  %4260 = vmatmul.mubr.f32.gmra.mxu0 %v3950
  %v4261 = vpop.f32.mrf.mxu0
  %v4262 = vadd.f32 0.0, %v4261
  %v4263 = vpop.f32.mrf.mxu0
  %4264 = vmatprep.mubr.f32.mxu0 0.0
  %4265 = vmatmul.mubr.f32.gmra.mxu0 %v3951
  %v4266 = vpop.f32.mrf.mxu0
  %v4267 = vadd.f32 0.0, %v4266
  %v4268 = vpop.f32.mrf.mxu0
  %4269 = vmatprep.mubr.f32.mxu0 0.0
  %4270 = vmatmul.mubr.f32.gmra.mxu0 %v3952
  %v4271 = vpop.f32.mrf.mxu0
  %v4272 = vadd.f32 0.0, %v4271
  %v4273 = vpop.f32.mrf.mxu0
  %4274 = vmatprep.mubr.f32.mxu0 0.0
  %4275 = vmatmul.mubr.f32.gmra.mxu0 %v3953
  %v4276 = vpop.f32.mrf.mxu0
  %v4277 = vadd.f32 0.0, %v4276
  %v4278 = vpop.f32.mrf.mxu0
  %4279 = vmatprep.mubr.f32.mxu0 0.0
  %4280 = vmatmul.mubr.f32.gmra.mxu0 %v3954
  %v4281 = vpop.f32.mrf.mxu0
  %v4282 = vadd.f32 0.0, %v4281
  %v4283 = vpop.f32.mrf.mxu0
  %4284 = vmatprep.mubr.f32.mxu0 0.0
  %4285 = vmatmul.mubr.f32.gmra.mxu0 %v3955
  %v4286 = vpop.f32.mrf.mxu0
  %v4287 = vadd.f32 0.0, %v4286
  %v4288 = vpop.f32.mrf.mxu0
  %4289 = vmatprep.mubr.f32.mxu0 0.0
  %4290 = vmatmul.mubr.f32.gmra.mxu0 %v3956
  %v4291 = vpop.f32.mrf.mxu0
  %v4292 = vadd.f32 0.0, %v4291
  %v4293 = vpop.f32.mrf.mxu0
  %4294 = vmatprep.mubr.f32.mxu0 0.0
  %4295 = vmatmul.mubr.f32.gmra.mxu0 %v3957
  %v4296 = vpop.f32.mrf.mxu0
  %v4297 = vadd.f32 0.0, %v4296
  %v4298 = vpop.f32.mrf.mxu0
  %4299 = vmatprep.mubr.f32.mxu0 0.0
  %4300 = vmatmul.mubr.f32.gmra.mxu0 %v3958
  %v4301 = vpop.f32.mrf.mxu0
  %v4302 = vadd.f32 0.0, %v4301
  %v4303 = vpop.f32.mrf.mxu0
  %4304 = vmatprep.mubr.f32.mxu0 0.0
  %4305 = vmatmul.mubr.f32.gmra.mxu0 %v3959
  %v4306 = vpop.f32.mrf.mxu0
  %v4307 = vadd.f32 0.0, %v4306
  %v4308 = vpop.f32.mrf.mxu0
  %4309 = vmatprep.mubr.f32.mxu0 0.0
  %4310 = vmatmul.mubr.f32.gmra.mxu0 %v3960
  %v4311 = vpop.f32.mrf.mxu0
  %v4312 = vadd.f32 0.0, %v4311
  %v4313 = vpop.f32.mrf.mxu0
  %4314 = vmatprep.mubr.f32.mxu0 0.0
  %4315 = vmatmul.mubr.f32.gmra.mxu0 %v3961
  %v4316 = vpop.f32.mrf.mxu0
  %v4317 = vadd.f32 0.0, %v4316
  %v4318 = vpop.f32.mrf.mxu0
  %4319 = vmatprep.mubr.f32.mxu0 0.0
  %4320 = vmatmul.mubr.f32.gmra.mxu0 %v3962
  %v4321 = vpop.f32.mrf.mxu0
  %v4322 = vadd.f32 0.0, %v4321
  %v4323 = vpop.f32.mrf.mxu0
  %4324 = vmatprep.mubr.f32.mxu0 0.0
  %4325 = vmatmul.mubr.f32.gmra.mxu0 %v3963
  %v4326 = vpop.f32.mrf.mxu0
  %v4327 = vadd.f32 0.0, %v4326
  %v4328 = vpop.f32.mrf.mxu0
  %4329 = vmatprep.mubr.f32.mxu0 0.0
  %4330 = vmatmul.mubr.f32.gmra.mxu0 %v3964
  %v4331 = vpop.f32.mrf.mxu0
  %v4332 = vadd.f32 0.0, %v4331
  %v4333 = vpop.f32.mrf.mxu0
  %4334 = vmatprep.mubr.f32.mxu0 0.0
  %4335 = vmatmul.mubr.f32.gmra.mxu0 %v3965
  %v4336 = vpop.f32.mrf.mxu0
  %v4337 = vadd.f32 0.0, %v4336
  %v4338 = vpop.f32.mrf.mxu0
  %4339 = vmatprep.mubr.f32.mxu0 0.0
  %4340 = vmatmul.mubr.f32.gmra.mxu0 %v3966
  %v4341 = vpop.f32.mrf.mxu0
  %v4342 = vadd.f32 0.0, %v4341
  %v4343 = vpop.f32.mrf.mxu0
  %4344 = vmatprep.mubr.f32.mxu0 0.0
  %4345 = vmatmul.mubr.f32.gmra.mxu0 %v3967
  %v4346 = vpop.f32.mrf.mxu0
  %v4347 = vadd.f32 0.0, %v4346
  %v4348 = vpop.f32.mrf.mxu0
  %4349 = vmatprep.mubr.f32.mxu0 0.0
  %4350 = vmatmul.mubr.f32.gmra.mxu0 %v3968
  %v4351 = vpop.f32.mrf.mxu0
  %v4352 = vadd.f32 0.0, %v4351
  %v4353 = vpop.f32.mrf.mxu0
  %4354 = vmatprep.mubr.f32.mxu0 0.0
  %4355 = vmatmul.mubr.f32.gmra.mxu0 %v3969
  %v4356 = vpop.f32.mrf.mxu0
  %v4357 = vadd.f32 0.0, %v4356
  %v4358 = vpop.f32.mrf.mxu0
  %4359 = vmatprep.mubr.f32.mxu0 0.0
  %4360 = vmatmul.mubr.f32.gmra.mxu0 %v3970
  %v4361 = vpop.f32.mrf.mxu0
  %v4362 = vadd.f32 0.0, %v4361
  %v4363 = vpop.f32.mrf.mxu0
  %4364 = vmatprep.mubr.f32.mxu0 0.0
  %4365 = vmatmul.mubr.f32.gmra.mxu0 %v3971
  %v4366 = vpop.f32.mrf.mxu0
  %v4367 = vadd.f32 0.0, %v4366
  %v4368 = vpop.f32.mrf.mxu0
  %4369 = vmatprep.mubr.f32.mxu0 0.0
  %4370 = vmatmul.mubr.f32.gmra.mxu0 %v3972
  %v4371 = vpop.f32.mrf.mxu0
  %v4372 = vadd.f32 0.0, %v4371
  %v4373 = vpop.f32.mrf.mxu0
  %4374 = vmatprep.mubr.f32.mxu0 0.0
  %4375 = vmatmul.mubr.f32.gmra.mxu0 %v3973
  %v4376 = vpop.f32.mrf.mxu0
  %v4377 = vadd.f32 0.0, %v4376
  %v4378 = vpop.f32.mrf.mxu0
  %4379 = vmatprep.mubr.f32.mxu0 0.0
  %4380 = vmatmul.mubr.f32.gmra.mxu0 %v3974
  %v4381 = vpop.f32.mrf.mxu0
  %v4382 = vadd.f32 0.0, %v4381
  %v4383 = vpop.f32.mrf.mxu0
  %4384 = vmatprep.mubr.f32.mxu0 0.0
  %4385 = vmatmul.mubr.f32.gmra.mxu0 %v3975
  %v4386 = vpop.f32.mrf.mxu0
  %v4387 = vadd.f32 0.0, %v4386
  %v4388 = vpop.f32.mrf.mxu0
  %4389 = vmatprep.mubr.f32.mxu0 0.0
  %4390 = vmatmul.mubr.f32.gmra.mxu0 %v3976
  %v4391 = vpop.f32.mrf.mxu0
  %v4392 = vadd.f32 0.0, %v4391
  %v4393 = vpop.f32.mrf.mxu0
  %4394 = vmatprep.mubr.f32.mxu0 0.0
  %4395 = vmatmul.mubr.f32.gmra.mxu0 %v3977
  %v4396 = vpop.f32.mrf.mxu0
  %v4397 = vadd.f32 0.0, %v4396
  %v4398 = vpop.f32.mrf.mxu0
  %4399 = vmatprep.mubr.f32.mxu0 0.0
  %4400 = vmatmul.mubr.f32.gmra.mxu0 %v3978
  %v4401 = vpop.f32.mrf.mxu0
  %v4402 = vadd.f32 0.0, %v4401
  %v4403 = vpop.f32.mrf.mxu0
  %4404 = vmatprep.mubr.f32.mxu0 0.0
  %4405 = vmatmul.mubr.f32.gmra.mxu0 %v3979
  %v4406 = vpop.f32.mrf.mxu0
  %v4407 = vadd.f32 0.0, %v4406
  %v4408 = vpop.f32.mrf.mxu0
  %4409 = vmatprep.mubr.f32.mxu0 0.0
  %4410 = vmatmul.mubr.f32.gmra.mxu0 %v3980
  %v4411 = vpop.f32.mrf.mxu0
  %v4412 = vadd.f32 0.0, %v4411
  %v4413 = vpop.f32.mrf.mxu0
  %4414 = vmatprep.mubr.f32.mxu0 0.0
  %4415 = vmatmul.mubr.f32.gmra.mxu0 %v3981
  %v4416 = vpop.f32.mrf.mxu0
  %v4417 = vadd.f32 0.0, %v4416
  %v4418 = vpop.f32.mrf.mxu0
  %4419 = vmatprep.mubr.f32.mxu0 0.0
  %4420 = vmatmul.mubr.f32.gmra.mxu0 %v3982
  %v4421 = vpop.f32.mrf.mxu0
  %v4422 = vadd.f32 0.0, %v4421
  %v4423 = vpop.f32.mrf.mxu0
  %4424 = vmatprep.mubr.f32.mxu0 0.0
  %4425 = vmatmul.mubr.f32.gmra.mxu0 %v3983
  %v4426 = vpop.f32.mrf.mxu0
  %v4427 = vadd.f32 0.0, %v4426
  %v4428 = vpop.f32.mrf.mxu0
  %4429 = vmatprep.mubr.f32.mxu0 0.0
  %4430 = vmatmul.mubr.f32.gmra.mxu0 %v3984
  %v4431 = vpop.f32.mrf.mxu0
  %v4432 = vadd.f32 0.0, %v4431
  %v4433 = vpop.f32.mrf.mxu0
  %4434 = vmatprep.mubr.f32.mxu0 0.0
  %4435 = vmatmul.mubr.f32.gmra.mxu0 %v3985
  %v4436 = vpop.f32.mrf.mxu0
  %v4437 = vadd.f32 0.0, %v4436
  %v4438 = vpop.f32.mrf.mxu0
  %4439 = vmatprep.mubr.f32.mxu0 0.0
  %4440 = vmatmul.mubr.f32.gmra.mxu0 %v3986
  %v4441 = vpop.f32.mrf.mxu0
  %v4442 = vadd.f32 0.0, %v4441
  %v4443 = vpop.f32.mrf.mxu0
  %4444 = vmatprep.mubr.f32.mxu0 0.0
  %4445 = vmatmul.mubr.f32.gmra.mxu0 %v3987
  %v4446 = vpop.f32.mrf.mxu0
  %v4447 = vadd.f32 0.0, %v4446
  %v4448 = vpop.f32.mrf.mxu0
  %4449 = vmatprep.mubr.f32.mxu0 0.0
  %4450 = vmatmul.mubr.f32.gmra.mxu0 %v3988
  %v4451 = vpop.f32.mrf.mxu0
  %v4452 = vadd.f32 0.0, %v4451
  %v4453 = vpop.f32.mrf.mxu0
  %4454 = vdwg.mxu0
  %v4455 = vadd.f32 %v3989, %v4137
  %v4456 = vadd.f32 %v3990, %v4142
  %v4457 = vadd.f32 %v3991, %v4147
  %v4458 = vadd.f32 %v3992, %v4152
  %v4459 = vadd.f32 %v3993, %v4157
  %v4460 = vadd.f32 %v3994, %v4162
  %v4461 = vadd.f32 %v3995, %v4167
  %v4462 = vadd.f32 %v3996, %v4172
  %v4463 = vadd.f32 %v3997, %v4177
  %v4464 = vadd.f32 %v3998, %v4182
  %v4465 = vadd.f32 %v3999, %v4187
  %v4466 = vadd.f32 %v4000, %v4192
  %v4467 = vadd.f32 %v4001, %v4197
  %v4468 = vadd.f32 %v4002, %v4202
  %v4469 = vadd.f32 %v4003, %v4207
  %v4470 = vadd.f32 %v4004, %v4212
  %v4471 = vadd.f32 %v4005, %v4217
  %v4472 = vadd.f32 %v4006, %v4222
  %v4473 = vadd.f32 %v4007, %v4227
  %v4474 = vadd.f32 %v4008, %v4232
  %v4475 = vadd.f32 %v4009, %v4237
  %v4476 = vadd.f32 %v4010, %v4242
  %v4477 = vadd.f32 %v4011, %v4247
  %v4478 = vadd.f32 %v4012, %v4252
  %v4479 = vadd.f32 %v4013, %v4257
  %v4480 = vadd.f32 %v4014, %v4262
  %v4481 = vadd.f32 %v4015, %v4267
  %v4482 = vadd.f32 %v4016, %v4272
  %v4483 = vadd.f32 %v4017, %v4277
  %v4484 = vadd.f32 %v4018, %v4282
  %v4485 = vadd.f32 %v4019, %v4287
  %v4486 = vadd.f32 %v4020, %v4292
  %v4487 = vadd.f32 %v4021, %v4297
  %v4488 = vadd.f32 %v4022, %v4302
  %v4489 = vadd.f32 %v4023, %v4307
  %v4490 = vadd.f32 %v4024, %v4312
  %v4491 = vadd.f32 %v4025, %v4317
  %v4492 = vadd.f32 %v4026, %v4322
  %v4493 = vadd.f32 %v4027, %v4327
  %v4494 = vadd.f32 %v4028, %v4332
  %v4495 = vadd.f32 %v4029, %v4337
  %v4496 = vadd.f32 %v4030, %v4342
  %v4497 = vadd.f32 %v4031, %v4347
  %v4498 = vadd.f32 %v4032, %v4352
  %v4499 = vadd.f32 %v4033, %v4357
  %v4500 = vadd.f32 %v4034, %v4362
  %v4501 = vadd.f32 %v4035, %v4367
  %v4502 = vadd.f32 %v4036, %v4372
  %v4503 = vadd.f32 %v4037, %v4377
  %v4504 = vadd.f32 %v4038, %v4382
  %v4505 = vadd.f32 %v4039, %v4387
  %v4506 = vadd.f32 %v4040, %v4392
  %v4507 = vadd.f32 %v4041, %v4397
  %v4508 = vadd.f32 %v4042, %v4402
  %v4509 = vadd.f32 %v4043, %v4407
  %v4510 = vadd.f32 %v4044, %v4412
  %v4511 = vadd.f32 %v4045, %v4417
  %v4512 = vadd.f32 %v4046, %v4422
  %v4513 = vadd.f32 %v4047, %v4427
  %v4514 = vadd.f32 %v4048, %v4432
  %v4515 = vadd.f32 %v4049, %v4437
  %v4516 = vadd.f32 %v4050, %v4442
  %v4517 = vadd.f32 %v4051, %v4447
  %v4518 = vadd.f32 %v4052, %v4452
  %4519 = vst [vmem:[#allocation3] sm:$0xff] %v4455
  %4520 = vst [vmem:[#allocation3 + $0x8] sm:$0xff] %v4456
  %4521 = vst [vmem:[#allocation3 + $0x10] sm:$0xff] %v4457
  %4522 = vst [vmem:[#allocation3 + $0x18] sm:$0xff] %v4458
  %4523 = vst [vmem:[#allocation3 + $0x20] sm:$0xff] %v4459
  %4524 = vst [vmem:[#allocation3 + $0x28] sm:$0xff] %v4460
  %4525 = vst [vmem:[#allocation3 + $0x30] sm:$0xff] %v4461
  %4526 = vst [vmem:[#allocation3 + $0x38] sm:$0xff] %v4462
  %4527 = vst [vmem:[#allocation3 + $0x40] sm:$0xff] %v4463
  %4528 = vst [vmem:[#allocation3 + $0x48] sm:$0xff] %v4464
  %4529 = vst [vmem:[#allocation3 + $0x50] sm:$0xff] %v4465
  %4530 = vst [vmem:[#allocation3 + $0x58] sm:$0xff] %v4466
  %4531 = vst [vmem:[#allocation3 + $0x60] sm:$0xff] %v4467
  %4532 = vst [vmem:[#allocation3 + $0x68] sm:$0xff] %v4468
  %4533 = vst [vmem:[#allocation3 + $0x70] sm:$0xff] %v4469
  %4534 = vst [vmem:[#allocation3 + $0x78] sm:$0xff] %v4470
  %4535 = vst [vmem:[#allocation3 + $0x80] sm:$0xff] %v4471
  %4536 = vst [vmem:[#allocation3 + $0x88] sm:$0xff] %v4472
  %4537 = vst [vmem:[#allocation3 + $0x90] sm:$0xff] %v4473
  %4538 = vst [vmem:[#allocation3 + $0x98] sm:$0xff] %v4474
  %4539 = vst [vmem:[#allocation3 + $0xa0] sm:$0xff] %v4475
  %4540 = vst [vmem:[#allocation3 + $0xa8] sm:$0xff] %v4476
  %4541 = vst [vmem:[#allocation3 + $0xb0] sm:$0xff] %v4477
  %4542 = vst [vmem:[#allocation3 + $0xb8] sm:$0xff] %v4478
  %4543 = vst [vmem:[#allocation3 + $0xc0] sm:$0xff] %v4479
  %4544 = vst [vmem:[#allocation3 + $0xc8] sm:$0xff] %v4480
  %4545 = vst [vmem:[#allocation3 + $0xd0] sm:$0xff] %v4481
  %4546 = vst [vmem:[#allocation3 + $0xd8] sm:$0xff] %v4482
  %4547 = vst [vmem:[#allocation3 + $0xe0] sm:$0xff] %v4483
  %4548 = vst [vmem:[#allocation3 + $0xe8] sm:$0xff] %v4484
  %4549 = vst [vmem:[#allocation3 + $0xf0] sm:$0xff] %v4485
  %4550 = vst [vmem:[#allocation3 + $0xf8] sm:$0xff] %v4486
  %4551 = vst [vmem:[#allocation3 + $0x100] sm:$0xff] %v4487
  %4552 = vst [vmem:[#allocation3 + $0x108] sm:$0xff] %v4488
  %4553 = vst [vmem:[#allocation3 + $0x110] sm:$0xff] %v4489
  %4554 = vst [vmem:[#allocation3 + $0x118] sm:$0xff] %v4490
  %4555 = vst [vmem:[#allocation3 + $0x120] sm:$0xff] %v4491
  %4556 = vst [vmem:[#allocation3 + $0x128] sm:$0xff] %v4492
  %4557 = vst [vmem:[#allocation3 + $0x130] sm:$0xff] %v4493
  %4558 = vst [vmem:[#allocation3 + $0x138] sm:$0xff] %v4494
  %4559 = vst [vmem:[#allocation3 + $0x140] sm:$0xff] %v4495
  %4560 = vst [vmem:[#allocation3 + $0x148] sm:$0xff] %v4496
  %4561 = vst [vmem:[#allocation3 + $0x150] sm:$0xff] %v4497
  %4562 = vst [vmem:[#allocation3 + $0x158] sm:$0xff] %v4498
  %4563 = vst [vmem:[#allocation3 + $0x160] sm:$0xff] %v4499
  %4564 = vst [vmem:[#allocation3 + $0x168] sm:$0xff] %v4500
  %4565 = vst [vmem:[#allocation3 + $0x170] sm:$0xff] %v4501
  %4566 = vst [vmem:[#allocation3 + $0x178] sm:$0xff] %v4502
  %4567 = vst [vmem:[#allocation3 + $0x180] sm:$0xff] %v4503
  %4568 = vst [vmem:[#allocation3 + $0x188] sm:$0xff] %v4504
  %4569 = vst [vmem:[#allocation3 + $0x190] sm:$0xff] %v4505
  %4570 = vst [vmem:[#allocation3 + $0x198] sm:$0xff] %v4506
  %4571 = vst [vmem:[#allocation3 + $0x1a0] sm:$0xff] %v4507
  %4572 = vst [vmem:[#allocation3 + $0x1a8] sm:$0xff] %v4508
  %4573 = vst [vmem:[#allocation3 + $0x1b0] sm:$0xff] %v4509
  %4574 = vst [vmem:[#allocation3 + $0x1b8] sm:$0xff] %v4510
  %4575 = vst [vmem:[#allocation3 + $0x1c0] sm:$0xff] %v4511
  %4576 = vst [vmem:[#allocation3 + $0x1c8] sm:$0xff] %v4512
  %4577 = vst [vmem:[#allocation3 + $0x1d0] sm:$0xff] %v4513
  %4578 = vst [vmem:[#allocation3 + $0x1d8] sm:$0xff] %v4514
  %4579 = vst [vmem:[#allocation3 + $0x1e0] sm:$0xff] %v4515
  %4580 = vst [vmem:[#allocation3 + $0x1e8] sm:$0xff] %v4516
  %4581 = vst [vmem:[#allocation3 + $0x1f0] sm:$0xff] %v4517
  %4582 = vst [vmem:[#allocation3 + $0x1f8] sm:$0xff] %v4518
  %v4583 = vld [vmem:[%s1165 + $0x9] sm:$0xff]
  %v4584 = vld [vmem:[%s1165 + $0x11] sm:$0xff]
  %v4585 = vld [vmem:[%s1165 + $0x29] sm:$0xff]
  %v4586 = vld [vmem:[%s1165 + $0x31] sm:$0xff]
  %v4587 = vld [vmem:[%s1165 + $0x49] sm:$0xff]
  %v4588 = vld [vmem:[%s1165 + $0x51] sm:$0xff]
  %v4589 = vld [vmem:[%s1165 + $0x69] sm:$0xff]
  %v4590 = vld [vmem:[%s1165 + $0x71] sm:$0xff]
  %v4591 = vld [vmem:[%s1165 + $0x89] sm:$0xff]
  %v4592 = vld [vmem:[%s1165 + $0x91] sm:$0xff]
  %v4593 = vld [vmem:[%s1165 + $0xa9] sm:$0xff]
  %v4594 = vld [vmem:[%s1165 + $0xb1] sm:$0xff]
  %v4595 = vld [vmem:[%s1165 + $0xc9] sm:$0xff]
  %v4596 = vld [vmem:[%s1165 + $0xd1] sm:$0xff]
  %v4597 = vld [vmem:[%s1165 + $0xe9] sm:$0xff]
  %v4598 = vld [vmem:[%s1165 + $0xf1] sm:$0xff]
  %v4599 = vld [vmem:[%s1165 + $0x109] sm:$0xff]
  %v4600 = vld [vmem:[%s1165 + $0x111] sm:$0xff]
  %v4601 = vld [vmem:[%s1165 + $0x129] sm:$0xff]
  %v4602 = vld [vmem:[%s1165 + $0x131] sm:$0xff]
  %v4603 = vld [vmem:[%s1165 + $0x149] sm:$0xff]
  %v4604 = vld [vmem:[%s1165 + $0x151] sm:$0xff]
  %v4605 = vld [vmem:[%s1165 + $0x169] sm:$0xff]
  %v4606 = vld [vmem:[%s1165 + $0x171] sm:$0xff]
  %v4607 = vld [vmem:[%s1165 + $0x189] sm:$0xff]
  %v4608 = vld [vmem:[%s1165 + $0x191] sm:$0xff]
  %v4609 = vld [vmem:[%s1165 + $0x1a9] sm:$0xff]
  %v4610 = vld [vmem:[%s1165 + $0x1b1] sm:$0xff]
  %v4611 = vld [vmem:[%s1165 + $0x1c9] sm:$0xff]
  %v4612 = vld [vmem:[%s1165 + $0x1d1] sm:$0xff]
  %v4613 = vld [vmem:[%s1165 + $0x1e9] sm:$0xff]
  %v4614 = vld [vmem:[%s1165 + $0x1f1] sm:$0xff]
  %v4615 = vld [vmem:[%s1165 + $0x249] sm:$0xff]
  %v4616 = vld [vmem:[%s1165 + $0x251] sm:$0xff]
  %v4617 = vld [vmem:[%s1165 + $0x269] sm:$0xff]
  %v4618 = vld [vmem:[%s1165 + $0x271] sm:$0xff]
  %v4619 = vld [vmem:[%s1165 + $0x289] sm:$0xff]
  %v4620 = vld [vmem:[%s1165 + $0x291] sm:$0xff]
  %v4621 = vld [vmem:[%s1165 + $0x2a9] sm:$0xff]
  %v4622 = vld [vmem:[%s1165 + $0x2b1] sm:$0xff]
  %v4623 = vld [vmem:[%s1165 + $0x2c9] sm:$0xff]
  %v4624 = vld [vmem:[%s1165 + $0x2d1] sm:$0xff]
  %v4625 = vld [vmem:[%s1165 + $0x2e9] sm:$0xff]
  %v4626 = vld [vmem:[%s1165 + $0x2f1] sm:$0xff]
  %v4627 = vld [vmem:[%s1165 + $0x309] sm:$0xff]
  %v4628 = vld [vmem:[%s1165 + $0x311] sm:$0xff]
  %v4629 = vld [vmem:[%s1165 + $0x329] sm:$0xff]
  %v4630 = vld [vmem:[%s1165 + $0x331] sm:$0xff]
  %v4631 = vld [vmem:[%s1165 + $0x349] sm:$0xff]
  %v4632 = vld [vmem:[%s1165 + $0x351] sm:$0xff]
  %v4633 = vld [vmem:[%s1165 + $0x369] sm:$0xff]
  %v4634 = vld [vmem:[%s1165 + $0x371] sm:$0xff]
  %v4635 = vld [vmem:[%s1165 + $0x389] sm:$0xff]
  %v4636 = vld [vmem:[%s1165 + $0x391] sm:$0xff]
  %v4637 = vld [vmem:[%s1165 + $0x3a9] sm:$0xff]
  %v4638 = vld [vmem:[%s1165 + $0x3b1] sm:$0xff]
  %v4639 = vld [vmem:[%s1165 + $0x3c9] sm:$0xff]
  %v4640 = vld [vmem:[%s1165 + $0x3d1] sm:$0xff]
  %v4641 = vld [vmem:[%s1165 + $0x3e9] sm:$0xff]
  %v4642 = vld [vmem:[%s1165 + $0x3f1] sm:$0xff]
  %v4643 = vld [vmem:[%s1165 + $0x409] sm:$0xff]
  %v4644 = vld [vmem:[%s1165 + $0x411] sm:$0xff]
  %v4645 = vld [vmem:[%s1165 + $0x429] sm:$0xff]
  %v4646 = vld [vmem:[%s1165 + $0x431] sm:$0xff]
  %v4647 = vld [vmem:[#allocation3] sm:$0xff]
  %v4648 = vld [vmem:[#allocation3 + $0x8] sm:$0xff]
  %v4649 = vld [vmem:[#allocation3 + $0x10] sm:$0xff]
  %v4650 = vld [vmem:[#allocation3 + $0x18] sm:$0xff]
  %v4651 = vld [vmem:[#allocation3 + $0x20] sm:$0xff]
  %v4652 = vld [vmem:[#allocation3 + $0x28] sm:$0xff]
  %v4653 = vld [vmem:[#allocation3 + $0x30] sm:$0xff]
  %v4654 = vld [vmem:[#allocation3 + $0x38] sm:$0xff]
  %v4655 = vld [vmem:[#allocation3 + $0x40] sm:$0xff]
  %v4656 = vld [vmem:[#allocation3 + $0x48] sm:$0xff]
  %v4657 = vld [vmem:[#allocation3 + $0x50] sm:$0xff]
  %v4658 = vld [vmem:[#allocation3 + $0x58] sm:$0xff]
  %v4659 = vld [vmem:[#allocation3 + $0x60] sm:$0xff]
  %v4660 = vld [vmem:[#allocation3 + $0x68] sm:$0xff]
  %v4661 = vld [vmem:[#allocation3 + $0x70] sm:$0xff]
  %v4662 = vld [vmem:[#allocation3 + $0x78] sm:$0xff]
  %v4663 = vld [vmem:[#allocation3 + $0x80] sm:$0xff]
  %v4664 = vld [vmem:[#allocation3 + $0x88] sm:$0xff]
  %v4665 = vld [vmem:[#allocation3 + $0x90] sm:$0xff]
  %v4666 = vld [vmem:[#allocation3 + $0x98] sm:$0xff]
  %v4667 = vld [vmem:[#allocation3 + $0xa0] sm:$0xff]
  %v4668 = vld [vmem:[#allocation3 + $0xa8] sm:$0xff]
  %v4669 = vld [vmem:[#allocation3 + $0xb0] sm:$0xff]
  %v4670 = vld [vmem:[#allocation3 + $0xb8] sm:$0xff]
  %v4671 = vld [vmem:[#allocation3 + $0xc0] sm:$0xff]
  %v4672 = vld [vmem:[#allocation3 + $0xc8] sm:$0xff]
  %v4673 = vld [vmem:[#allocation3 + $0xd0] sm:$0xff]
  %v4674 = vld [vmem:[#allocation3 + $0xd8] sm:$0xff]
  %v4675 = vld [vmem:[#allocation3 + $0xe0] sm:$0xff]
  %v4676 = vld [vmem:[#allocation3 + $0xe8] sm:$0xff]
  %v4677 = vld [vmem:[#allocation3 + $0xf0] sm:$0xff]
  %v4678 = vld [vmem:[#allocation3 + $0xf8] sm:$0xff]
  %v4679 = vld [vmem:[#allocation3 + $0x100] sm:$0xff]
  %v4680 = vld [vmem:[#allocation3 + $0x108] sm:$0xff]
  %v4681 = vld [vmem:[#allocation3 + $0x110] sm:$0xff]
  %v4682 = vld [vmem:[#allocation3 + $0x118] sm:$0xff]
  %v4683 = vld [vmem:[#allocation3 + $0x120] sm:$0xff]
  %v4684 = vld [vmem:[#allocation3 + $0x128] sm:$0xff]
  %v4685 = vld [vmem:[#allocation3 + $0x130] sm:$0xff]
  %v4686 = vld [vmem:[#allocation3 + $0x138] sm:$0xff]
  %v4687 = vld [vmem:[#allocation3 + $0x140] sm:$0xff]
  %v4688 = vld [vmem:[#allocation3 + $0x148] sm:$0xff]
  %v4689 = vld [vmem:[#allocation3 + $0x150] sm:$0xff]
  %v4690 = vld [vmem:[#allocation3 + $0x158] sm:$0xff]
  %v4691 = vld [vmem:[#allocation3 + $0x160] sm:$0xff]
  %v4692 = vld [vmem:[#allocation3 + $0x168] sm:$0xff]
  %v4693 = vld [vmem:[#allocation3 + $0x170] sm:$0xff]
  %v4694 = vld [vmem:[#allocation3 + $0x178] sm:$0xff]
  %v4695 = vld [vmem:[#allocation3 + $0x180] sm:$0xff]
  %v4696 = vld [vmem:[#allocation3 + $0x188] sm:$0xff]
  %v4697 = vld [vmem:[#allocation3 + $0x190] sm:$0xff]
  %v4698 = vld [vmem:[#allocation3 + $0x198] sm:$0xff]
  %v4699 = vld [vmem:[#allocation3 + $0x1a0] sm:$0xff]
  %v4700 = vld [vmem:[#allocation3 + $0x1a8] sm:$0xff]
  %v4701 = vld [vmem:[#allocation3 + $0x1b0] sm:$0xff]
  %v4702 = vld [vmem:[#allocation3 + $0x1b8] sm:$0xff]
  %v4703 = vld [vmem:[#allocation3 + $0x1c0] sm:$0xff]
  %v4704 = vld [vmem:[#allocation3 + $0x1c8] sm:$0xff]
  %v4705 = vld [vmem:[#allocation3 + $0x1d0] sm:$0xff]
  %v4706 = vld [vmem:[#allocation3 + $0x1d8] sm:$0xff]
  %v4707 = vld [vmem:[#allocation3 + $0x1e0] sm:$0xff]
  %v4708 = vld [vmem:[#allocation3 + $0x1e8] sm:$0xff]
  %v4709 = vld [vmem:[#allocation3 + $0x1f0] sm:$0xff]
  %v4710 = vld [vmem:[#allocation3 + $0x1f8] sm:$0xff]
  %s4711 = scalar_lea.vmem %s2, 640
  %v4712 = vld [vmem:[%s4711] sm:$0xff]
  %v4713 = vld [vmem:[%s4711 + $0x8] sm:$0xff]
  %v4714 = vld [vmem:[%s4711 + $0x10] sm:$0xff]
  %v4715 = vld [vmem:[%s4711 + $0x18] sm:$0xff]
  %v4716 = vld [vmem:[%s4711 + $0x20] sm:$0xff]
  %v4717 = vld [vmem:[%s4711 + $0x28] sm:$0xff]
  %v4718 = vld [vmem:[%s4711 + $0x30] sm:$0xff]
  %v4719 = vld [vmem:[%s4711 + $0x38] sm:$0xff]
  %v4720 = vld [vmem:[%s4711 + $0x40] sm:$0xff]
  %v4721 = vld [vmem:[%s4711 + $0x48] sm:$0xff]
  %v4722 = vld [vmem:[%s4711 + $0x50] sm:$0xff]
  %v4723 = vld [vmem:[%s4711 + $0x58] sm:$0xff]
  %v4724 = vld [vmem:[%s4711 + $0x60] sm:$0xff]
  %v4725 = vld [vmem:[%s4711 + $0x68] sm:$0xff]
  %v4726 = vld [vmem:[%s4711 + $0x70] sm:$0xff]
  %v4727 = vld [vmem:[%s4711 + $0x78] sm:$0xff]
  %4728 = vmatprep.subr.mxu0 0.0
  %4729 = vmatpush1.msra.mxu0 %v4727
  %4730 = vmatprep.subr.mxu0 0.0
  %4731 = vmatpush1.msra.mxu0 %v4726
  %4732 = vmatprep.subr.mxu0 0.0
  %4733 = vmatpush1.msra.mxu0 %v4725
  %4734 = vmatprep.subr.mxu0 0.0
  %4735 = vmatpush1.msra.mxu0 %v4724
  %4736 = vmatprep.subr.mxu0 0.0
  %4737 = vmatpush1.msra.mxu0 %v4723
  %4738 = vmatprep.subr.mxu0 0.0
  %4739 = vmatpush1.msra.mxu0 %v4722
  %4740 = vmatprep.subr.mxu0 0.0
  %4741 = vmatpush1.msra.mxu0 %v4721
  %4742 = vmatprep.subr.mxu0 0.0
  %4743 = vmatpush1.msra.mxu0 %v4720
  %4744 = vmatprep.subr.mxu0 0.0
  %4745 = vmatpush1.msra.mxu0 %v4719
  %4746 = vmatprep.subr.mxu0 0.0
  %4747 = vmatpush1.msra.mxu0 %v4718
  %4748 = vmatprep.subr.mxu0 0.0
  %4749 = vmatpush1.msra.mxu0 %v4717
  %4750 = vmatprep.subr.mxu0 0.0
  %4751 = vmatpush1.msra.mxu0 %v4716
  %4752 = vmatprep.subr.mxu0 0.0
  %4753 = vmatpush1.msra.mxu0 %v4715
  %4754 = vmatprep.subr.mxu0 0.0
  %4755 = vmatpush1.msra.mxu0 %v4714
  %4756 = vmatprep.subr.mxu0 0.0
  %4757 = vmatpush1.msra.mxu0 %v4713
  %4758 = vmatprep.subr.mxu0 0.0
  %4759 = vmatpush1.msra.mxu0 %v4712
  %4760 = vmatprep.subr.mxu0 0.0
  %4761 = vmatpush2.msra.mxu0 0.0
  %4762 = vmatprep.subr.mxu0 0.0
  %4763 = vmatpush2.msra.mxu0 0.0
  %4764 = vmatprep.subr.mxu0 0.0
  %4765 = vmatpush2.msra.mxu0 0.0
  %4766 = vmatprep.subr.mxu0 0.0
  %4767 = vmatpush2.msra.mxu0 0.0
  %4768 = vmatprep.subr.mxu0 0.0
  %4769 = vmatpush2.msra.mxu0 0.0
  %4770 = vmatprep.subr.mxu0 0.0
  %4771 = vmatpush2.msra.mxu0 0.0
  %4772 = vmatprep.subr.mxu0 0.0
  %4773 = vmatpush2.msra.mxu0 0.0
  %4774 = vmatprep.subr.mxu0 0.0
  %4775 = vmatpush2.msra.mxu0 0.0
  %4776 = vmatprep.subr.mxu0 0.0
  %4777 = vmatpush2.msra.mxu0 0.0
  %4778 = vmatprep.subr.mxu0 0.0
  %4779 = vmatpush2.msra.mxu0 0.0
  %4780 = vmatprep.subr.mxu0 0.0
  %4781 = vmatpush2.msra.mxu0 0.0
  %4782 = vmatprep.subr.mxu0 0.0
  %4783 = vmatpush2.msra.mxu0 0.0
  %4784 = vmatprep.subr.mxu0 0.0
  %4785 = vmatpush2.msra.mxu0 0.0
  %4786 = vmatprep.subr.mxu0 0.0
  %4787 = vmatpush2.msra.mxu0 0.0
  %4788 = vmatprep.subr.mxu0 0.0
  %4789 = vmatpush2.msra.mxu0 0.0
  %4790 = vmatprep.subr.mxu0 0.0
  %4791 = vmatpush2.msra.mxu0 0.0
  %4792 = vmatprep.mubr.f32.mxu0 0.0
  %4793 = vmatmul.mubr.f32.gmra.mxu0 %v4583
  %v4794 = vpop.f32.mrf.mxu0
  %v4795 = vadd.f32 0.0, %v4794
  %v4796 = vpop.f32.mrf.mxu0
  %4797 = vmatprep.mubr.f32.mxu0 0.0
  %4798 = vmatmul.mubr.f32.gmra.mxu0 %v4584
  %v4799 = vpop.f32.mrf.mxu0
  %v4800 = vadd.f32 0.0, %v4799
  %v4801 = vpop.f32.mrf.mxu0
  %4802 = vmatprep.mubr.f32.mxu0 0.0
  %4803 = vmatmul.mubr.f32.gmra.mxu0 %v4585
  %v4804 = vpop.f32.mrf.mxu0
  %v4805 = vadd.f32 0.0, %v4804
  %v4806 = vpop.f32.mrf.mxu0
  %4807 = vmatprep.mubr.f32.mxu0 0.0
  %4808 = vmatmul.mubr.f32.gmra.mxu0 %v4586
  %v4809 = vpop.f32.mrf.mxu0
  %v4810 = vadd.f32 0.0, %v4809
  %v4811 = vpop.f32.mrf.mxu0
  %4812 = vmatprep.mubr.f32.mxu0 0.0
  %4813 = vmatmul.mubr.f32.gmra.mxu0 %v4587
  %v4814 = vpop.f32.mrf.mxu0
  %v4815 = vadd.f32 0.0, %v4814
  %v4816 = vpop.f32.mrf.mxu0
  %4817 = vmatprep.mubr.f32.mxu0 0.0
  %4818 = vmatmul.mubr.f32.gmra.mxu0 %v4588
  %v4819 = vpop.f32.mrf.mxu0
  %v4820 = vadd.f32 0.0, %v4819
  %v4821 = vpop.f32.mrf.mxu0
  %4822 = vmatprep.mubr.f32.mxu0 0.0
  %4823 = vmatmul.mubr.f32.gmra.mxu0 %v4589
  %v4824 = vpop.f32.mrf.mxu0
  %v4825 = vadd.f32 0.0, %v4824
  %v4826 = vpop.f32.mrf.mxu0
  %4827 = vmatprep.mubr.f32.mxu0 0.0
  %4828 = vmatmul.mubr.f32.gmra.mxu0 %v4590
  %v4829 = vpop.f32.mrf.mxu0
  %v4830 = vadd.f32 0.0, %v4829
  %v4831 = vpop.f32.mrf.mxu0
  %4832 = vmatprep.mubr.f32.mxu0 0.0
  %4833 = vmatmul.mubr.f32.gmra.mxu0 %v4591
  %v4834 = vpop.f32.mrf.mxu0
  %v4835 = vadd.f32 0.0, %v4834
  %v4836 = vpop.f32.mrf.mxu0
  %4837 = vmatprep.mubr.f32.mxu0 0.0
  %4838 = vmatmul.mubr.f32.gmra.mxu0 %v4592
  %v4839 = vpop.f32.mrf.mxu0
  %v4840 = vadd.f32 0.0, %v4839
  %v4841 = vpop.f32.mrf.mxu0
  %4842 = vmatprep.mubr.f32.mxu0 0.0
  %4843 = vmatmul.mubr.f32.gmra.mxu0 %v4593
  %v4844 = vpop.f32.mrf.mxu0
  %v4845 = vadd.f32 0.0, %v4844
  %v4846 = vpop.f32.mrf.mxu0
  %4847 = vmatprep.mubr.f32.mxu0 0.0
  %4848 = vmatmul.mubr.f32.gmra.mxu0 %v4594
  %v4849 = vpop.f32.mrf.mxu0
  %v4850 = vadd.f32 0.0, %v4849
  %v4851 = vpop.f32.mrf.mxu0
  %4852 = vmatprep.mubr.f32.mxu0 0.0
  %4853 = vmatmul.mubr.f32.gmra.mxu0 %v4595
  %v4854 = vpop.f32.mrf.mxu0
  %v4855 = vadd.f32 0.0, %v4854
  %v4856 = vpop.f32.mrf.mxu0
  %4857 = vmatprep.mubr.f32.mxu0 0.0
  %4858 = vmatmul.mubr.f32.gmra.mxu0 %v4596
  %v4859 = vpop.f32.mrf.mxu0
  %v4860 = vadd.f32 0.0, %v4859
  %v4861 = vpop.f32.mrf.mxu0
  %4862 = vmatprep.mubr.f32.mxu0 0.0
  %4863 = vmatmul.mubr.f32.gmra.mxu0 %v4597
  %v4864 = vpop.f32.mrf.mxu0
  %v4865 = vadd.f32 0.0, %v4864
  %v4866 = vpop.f32.mrf.mxu0
  %4867 = vmatprep.mubr.f32.mxu0 0.0
  %4868 = vmatmul.mubr.f32.gmra.mxu0 %v4598
  %v4869 = vpop.f32.mrf.mxu0
  %v4870 = vadd.f32 0.0, %v4869
  %v4871 = vpop.f32.mrf.mxu0
  %4872 = vmatprep.mubr.f32.mxu0 0.0
  %4873 = vmatmul.mubr.f32.gmra.mxu0 %v4599
  %v4874 = vpop.f32.mrf.mxu0
  %v4875 = vadd.f32 0.0, %v4874
  %v4876 = vpop.f32.mrf.mxu0
  %4877 = vmatprep.mubr.f32.mxu0 0.0
  %4878 = vmatmul.mubr.f32.gmra.mxu0 %v4600
  %v4879 = vpop.f32.mrf.mxu0
  %v4880 = vadd.f32 0.0, %v4879
  %v4881 = vpop.f32.mrf.mxu0
  %4882 = vmatprep.mubr.f32.mxu0 0.0
  %4883 = vmatmul.mubr.f32.gmra.mxu0 %v4601
  %v4884 = vpop.f32.mrf.mxu0
  %v4885 = vadd.f32 0.0, %v4884
  %v4886 = vpop.f32.mrf.mxu0
  %4887 = vmatprep.mubr.f32.mxu0 0.0
  %4888 = vmatmul.mubr.f32.gmra.mxu0 %v4602
  %v4889 = vpop.f32.mrf.mxu0
  %v4890 = vadd.f32 0.0, %v4889
  %v4891 = vpop.f32.mrf.mxu0
  %4892 = vmatprep.mubr.f32.mxu0 0.0
  %4893 = vmatmul.mubr.f32.gmra.mxu0 %v4603
  %v4894 = vpop.f32.mrf.mxu0
  %v4895 = vadd.f32 0.0, %v4894
  %v4896 = vpop.f32.mrf.mxu0
  %4897 = vmatprep.mubr.f32.mxu0 0.0
  %4898 = vmatmul.mubr.f32.gmra.mxu0 %v4604
  %v4899 = vpop.f32.mrf.mxu0
  %v4900 = vadd.f32 0.0, %v4899
  %v4901 = vpop.f32.mrf.mxu0
  %4902 = vmatprep.mubr.f32.mxu0 0.0
  %4903 = vmatmul.mubr.f32.gmra.mxu0 %v4605
  %v4904 = vpop.f32.mrf.mxu0
  %v4905 = vadd.f32 0.0, %v4904
  %v4906 = vpop.f32.mrf.mxu0
  %4907 = vmatprep.mubr.f32.mxu0 0.0
  %4908 = vmatmul.mubr.f32.gmra.mxu0 %v4606
  %v4909 = vpop.f32.mrf.mxu0
  %v4910 = vadd.f32 0.0, %v4909
  %v4911 = vpop.f32.mrf.mxu0
  %4912 = vmatprep.mubr.f32.mxu0 0.0
  %4913 = vmatmul.mubr.f32.gmra.mxu0 %v4607
  %v4914 = vpop.f32.mrf.mxu0
  %v4915 = vadd.f32 0.0, %v4914
  %v4916 = vpop.f32.mrf.mxu0
  %4917 = vmatprep.mubr.f32.mxu0 0.0
  %4918 = vmatmul.mubr.f32.gmra.mxu0 %v4608
  %v4919 = vpop.f32.mrf.mxu0
  %v4920 = vadd.f32 0.0, %v4919
  %v4921 = vpop.f32.mrf.mxu0
  %4922 = vmatprep.mubr.f32.mxu0 0.0
  %4923 = vmatmul.mubr.f32.gmra.mxu0 %v4609
  %v4924 = vpop.f32.mrf.mxu0
  %v4925 = vadd.f32 0.0, %v4924
  %v4926 = vpop.f32.mrf.mxu0
  %4927 = vmatprep.mubr.f32.mxu0 0.0
  %4928 = vmatmul.mubr.f32.gmra.mxu0 %v4610
  %v4929 = vpop.f32.mrf.mxu0
  %v4930 = vadd.f32 0.0, %v4929
  %v4931 = vpop.f32.mrf.mxu0
  %4932 = vmatprep.mubr.f32.mxu0 0.0
  %4933 = vmatmul.mubr.f32.gmra.mxu0 %v4611
  %v4934 = vpop.f32.mrf.mxu0
  %v4935 = vadd.f32 0.0, %v4934
  %v4936 = vpop.f32.mrf.mxu0
  %4937 = vmatprep.mubr.f32.mxu0 0.0
  %4938 = vmatmul.mubr.f32.gmra.mxu0 %v4612
  %v4939 = vpop.f32.mrf.mxu0
  %v4940 = vadd.f32 0.0, %v4939
  %v4941 = vpop.f32.mrf.mxu0
  %4942 = vmatprep.mubr.f32.mxu0 0.0
  %4943 = vmatmul.mubr.f32.gmra.mxu0 %v4613
  %v4944 = vpop.f32.mrf.mxu0
  %v4945 = vadd.f32 0.0, %v4944
  %v4946 = vpop.f32.mrf.mxu0
  %4947 = vmatprep.mubr.f32.mxu0 0.0
  %4948 = vmatmul.mubr.f32.gmra.mxu0 %v4614
  %v4949 = vpop.f32.mrf.mxu0
  %v4950 = vadd.f32 0.0, %v4949
  %v4951 = vpop.f32.mrf.mxu0
  %4952 = vmatprep.mubr.f32.mxu0 0.0
  %4953 = vmatmul.mubr.f32.gmra.mxu0 %v4615
  %v4954 = vpop.f32.mrf.mxu0
  %v4955 = vadd.f32 0.0, %v4954
  %v4956 = vpop.f32.mrf.mxu0
  %4957 = vmatprep.mubr.f32.mxu0 0.0
  %4958 = vmatmul.mubr.f32.gmra.mxu0 %v4616
  %v4959 = vpop.f32.mrf.mxu0
  %v4960 = vadd.f32 0.0, %v4959
  %v4961 = vpop.f32.mrf.mxu0
  %4962 = vmatprep.mubr.f32.mxu0 0.0
  %4963 = vmatmul.mubr.f32.gmra.mxu0 %v4617
  %v4964 = vpop.f32.mrf.mxu0
  %v4965 = vadd.f32 0.0, %v4964
  %v4966 = vpop.f32.mrf.mxu0
  %4967 = vmatprep.mubr.f32.mxu0 0.0
  %4968 = vmatmul.mubr.f32.gmra.mxu0 %v4618
  %v4969 = vpop.f32.mrf.mxu0
  %v4970 = vadd.f32 0.0, %v4969
  %v4971 = vpop.f32.mrf.mxu0
  %4972 = vmatprep.mubr.f32.mxu0 0.0
  %4973 = vmatmul.mubr.f32.gmra.mxu0 %v4619
  %v4974 = vpop.f32.mrf.mxu0
  %v4975 = vadd.f32 0.0, %v4974
  %v4976 = vpop.f32.mrf.mxu0
  %4977 = vmatprep.mubr.f32.mxu0 0.0
  %4978 = vmatmul.mubr.f32.gmra.mxu0 %v4620
  %v4979 = vpop.f32.mrf.mxu0
  %v4980 = vadd.f32 0.0, %v4979
  %v4981 = vpop.f32.mrf.mxu0
  %4982 = vmatprep.mubr.f32.mxu0 0.0
  %4983 = vmatmul.mubr.f32.gmra.mxu0 %v4621
  %v4984 = vpop.f32.mrf.mxu0
  %v4985 = vadd.f32 0.0, %v4984
  %v4986 = vpop.f32.mrf.mxu0
  %4987 = vmatprep.mubr.f32.mxu0 0.0
  %4988 = vmatmul.mubr.f32.gmra.mxu0 %v4622
  %v4989 = vpop.f32.mrf.mxu0
  %v4990 = vadd.f32 0.0, %v4989
  %v4991 = vpop.f32.mrf.mxu0
  %4992 = vmatprep.mubr.f32.mxu0 0.0
  %4993 = vmatmul.mubr.f32.gmra.mxu0 %v4623
  %v4994 = vpop.f32.mrf.mxu0
  %v4995 = vadd.f32 0.0, %v4994
  %v4996 = vpop.f32.mrf.mxu0
  %4997 = vmatprep.mubr.f32.mxu0 0.0
  %4998 = vmatmul.mubr.f32.gmra.mxu0 %v4624
  %v4999 = vpop.f32.mrf.mxu0
  %v5000 = vadd.f32 0.0, %v4999
  %v5001 = vpop.f32.mrf.mxu0
  %5002 = vmatprep.mubr.f32.mxu0 0.0
  %5003 = vmatmul.mubr.f32.gmra.mxu0 %v4625
  %v5004 = vpop.f32.mrf.mxu0
  %v5005 = vadd.f32 0.0, %v5004
  %v5006 = vpop.f32.mrf.mxu0
  %5007 = vmatprep.mubr.f32.mxu0 0.0
  %5008 = vmatmul.mubr.f32.gmra.mxu0 %v4626
  %v5009 = vpop.f32.mrf.mxu0
  %v5010 = vadd.f32 0.0, %v5009
  %v5011 = vpop.f32.mrf.mxu0
  %5012 = vmatprep.mubr.f32.mxu0 0.0
  %5013 = vmatmul.mubr.f32.gmra.mxu0 %v4627
  %v5014 = vpop.f32.mrf.mxu0
  %v5015 = vadd.f32 0.0, %v5014
  %v5016 = vpop.f32.mrf.mxu0
  %5017 = vmatprep.mubr.f32.mxu0 0.0
  %5018 = vmatmul.mubr.f32.gmra.mxu0 %v4628
  %v5019 = vpop.f32.mrf.mxu0
  %v5020 = vadd.f32 0.0, %v5019
  %v5021 = vpop.f32.mrf.mxu0
  %5022 = vmatprep.mubr.f32.mxu0 0.0
  %5023 = vmatmul.mubr.f32.gmra.mxu0 %v4629
  %v5024 = vpop.f32.mrf.mxu0
  %v5025 = vadd.f32 0.0, %v5024
  %v5026 = vpop.f32.mrf.mxu0
  %5027 = vmatprep.mubr.f32.mxu0 0.0
  %5028 = vmatmul.mubr.f32.gmra.mxu0 %v4630
  %v5029 = vpop.f32.mrf.mxu0
  %v5030 = vadd.f32 0.0, %v5029
  %v5031 = vpop.f32.mrf.mxu0
  %5032 = vmatprep.mubr.f32.mxu0 0.0
  %5033 = vmatmul.mubr.f32.gmra.mxu0 %v4631
  %v5034 = vpop.f32.mrf.mxu0
  %v5035 = vadd.f32 0.0, %v5034
  %v5036 = vpop.f32.mrf.mxu0
  %5037 = vmatprep.mubr.f32.mxu0 0.0
  %5038 = vmatmul.mubr.f32.gmra.mxu0 %v4632
  %v5039 = vpop.f32.mrf.mxu0
  %v5040 = vadd.f32 0.0, %v5039
  %v5041 = vpop.f32.mrf.mxu0
  %5042 = vmatprep.mubr.f32.mxu0 0.0
  %5043 = vmatmul.mubr.f32.gmra.mxu0 %v4633
  %v5044 = vpop.f32.mrf.mxu0
  %v5045 = vadd.f32 0.0, %v5044
  %v5046 = vpop.f32.mrf.mxu0
  %5047 = vmatprep.mubr.f32.mxu0 0.0
  %5048 = vmatmul.mubr.f32.gmra.mxu0 %v4634
  %v5049 = vpop.f32.mrf.mxu0
  %v5050 = vadd.f32 0.0, %v5049
  %v5051 = vpop.f32.mrf.mxu0
  %5052 = vmatprep.mubr.f32.mxu0 0.0
  %5053 = vmatmul.mubr.f32.gmra.mxu0 %v4635
  %v5054 = vpop.f32.mrf.mxu0
  %v5055 = vadd.f32 0.0, %v5054
  %v5056 = vpop.f32.mrf.mxu0
  %5057 = vmatprep.mubr.f32.mxu0 0.0
  %5058 = vmatmul.mubr.f32.gmra.mxu0 %v4636
  %v5059 = vpop.f32.mrf.mxu0
  %v5060 = vadd.f32 0.0, %v5059
  %v5061 = vpop.f32.mrf.mxu0
  %5062 = vmatprep.mubr.f32.mxu0 0.0
  %5063 = vmatmul.mubr.f32.gmra.mxu0 %v4637
  %v5064 = vpop.f32.mrf.mxu0
  %v5065 = vadd.f32 0.0, %v5064
  %v5066 = vpop.f32.mrf.mxu0
  %5067 = vmatprep.mubr.f32.mxu0 0.0
  %5068 = vmatmul.mubr.f32.gmra.mxu0 %v4638
  %v5069 = vpop.f32.mrf.mxu0
  %v5070 = vadd.f32 0.0, %v5069
  %v5071 = vpop.f32.mrf.mxu0
  %5072 = vmatprep.mubr.f32.mxu0 0.0
  %5073 = vmatmul.mubr.f32.gmra.mxu0 %v4639
  %v5074 = vpop.f32.mrf.mxu0
  %v5075 = vadd.f32 0.0, %v5074
  %v5076 = vpop.f32.mrf.mxu0
  %5077 = vmatprep.mubr.f32.mxu0 0.0
  %5078 = vmatmul.mubr.f32.gmra.mxu0 %v4640
  %v5079 = vpop.f32.mrf.mxu0
  %v5080 = vadd.f32 0.0, %v5079
  %v5081 = vpop.f32.mrf.mxu0
  %5082 = vmatprep.mubr.f32.mxu0 0.0
  %5083 = vmatmul.mubr.f32.gmra.mxu0 %v4641
  %v5084 = vpop.f32.mrf.mxu0
  %v5085 = vadd.f32 0.0, %v5084
  %v5086 = vpop.f32.mrf.mxu0
  %5087 = vmatprep.mubr.f32.mxu0 0.0
  %5088 = vmatmul.mubr.f32.gmra.mxu0 %v4642
  %v5089 = vpop.f32.mrf.mxu0
  %v5090 = vadd.f32 0.0, %v5089
  %v5091 = vpop.f32.mrf.mxu0
  %5092 = vmatprep.mubr.f32.mxu0 0.0
  %5093 = vmatmul.mubr.f32.gmra.mxu0 %v4643
  %v5094 = vpop.f32.mrf.mxu0
  %v5095 = vadd.f32 0.0, %v5094
  %v5096 = vpop.f32.mrf.mxu0
  %5097 = vmatprep.mubr.f32.mxu0 0.0
  %5098 = vmatmul.mubr.f32.gmra.mxu0 %v4644
  %v5099 = vpop.f32.mrf.mxu0
  %v5100 = vadd.f32 0.0, %v5099
  %v5101 = vpop.f32.mrf.mxu0
  %5102 = vmatprep.mubr.f32.mxu0 0.0
  %5103 = vmatmul.mubr.f32.gmra.mxu0 %v4645
  %v5104 = vpop.f32.mrf.mxu0
  %v5105 = vadd.f32 0.0, %v5104
  %v5106 = vpop.f32.mrf.mxu0
  %5107 = vmatprep.mubr.f32.mxu0 0.0
  %5108 = vmatmul.mubr.f32.gmra.mxu0 %v4646
  %v5109 = vpop.f32.mrf.mxu0
  %v5110 = vadd.f32 0.0, %v5109
  %v5111 = vpop.f32.mrf.mxu0
  %5112 = vdwg.mxu0
  %v5113 = vadd.f32 %v4647, %v4795
  %v5114 = vadd.f32 %v4648, %v4800
  %v5115 = vadd.f32 %v4649, %v4805
  %v5116 = vadd.f32 %v4650, %v4810
  %v5117 = vadd.f32 %v4651, %v4815
  %v5118 = vadd.f32 %v4652, %v4820
  %v5119 = vadd.f32 %v4653, %v4825
  %v5120 = vadd.f32 %v4654, %v4830
  %v5121 = vadd.f32 %v4655, %v4835
  %v5122 = vadd.f32 %v4656, %v4840
  %v5123 = vadd.f32 %v4657, %v4845
  %v5124 = vadd.f32 %v4658, %v4850
  %v5125 = vadd.f32 %v4659, %v4855
  %v5126 = vadd.f32 %v4660, %v4860
  %v5127 = vadd.f32 %v4661, %v4865
  %v5128 = vadd.f32 %v4662, %v4870
  %v5129 = vadd.f32 %v4663, %v4875
  %v5130 = vadd.f32 %v4664, %v4880
  %v5131 = vadd.f32 %v4665, %v4885
  %v5132 = vadd.f32 %v4666, %v4890
  %v5133 = vadd.f32 %v4667, %v4895
  %v5134 = vadd.f32 %v4668, %v4900
  %v5135 = vadd.f32 %v4669, %v4905
  %v5136 = vadd.f32 %v4670, %v4910
  %v5137 = vadd.f32 %v4671, %v4915
  %v5138 = vadd.f32 %v4672, %v4920
  %v5139 = vadd.f32 %v4673, %v4925
  %v5140 = vadd.f32 %v4674, %v4930
  %v5141 = vadd.f32 %v4675, %v4935
  %v5142 = vadd.f32 %v4676, %v4940
  %v5143 = vadd.f32 %v4677, %v4945
  %v5144 = vadd.f32 %v4678, %v4950
  %v5145 = vadd.f32 %v4679, %v4955
  %v5146 = vadd.f32 %v4680, %v4960
  %v5147 = vadd.f32 %v4681, %v4965
  %v5148 = vadd.f32 %v4682, %v4970
  %v5149 = vadd.f32 %v4683, %v4975
  %v5150 = vadd.f32 %v4684, %v4980
  %v5151 = vadd.f32 %v4685, %v4985
  %v5152 = vadd.f32 %v4686, %v4990
  %v5153 = vadd.f32 %v4687, %v4995
  %v5154 = vadd.f32 %v4688, %v5000
  %v5155 = vadd.f32 %v4689, %v5005
  %v5156 = vadd.f32 %v4690, %v5010
  %v5157 = vadd.f32 %v4691, %v5015
  %v5158 = vadd.f32 %v4692, %v5020
  %v5159 = vadd.f32 %v4693, %v5025
  %v5160 = vadd.f32 %v4694, %v5030
  %v5161 = vadd.f32 %v4695, %v5035
  %v5162 = vadd.f32 %v4696, %v5040
  %v5163 = vadd.f32 %v4697, %v5045
  %v5164 = vadd.f32 %v4698, %v5050
  %v5165 = vadd.f32 %v4699, %v5055
  %v5166 = vadd.f32 %v4700, %v5060
  %v5167 = vadd.f32 %v4701, %v5065
  %v5168 = vadd.f32 %v4702, %v5070
  %v5169 = vadd.f32 %v4703, %v5075
  %v5170 = vadd.f32 %v4704, %v5080
  %v5171 = vadd.f32 %v4705, %v5085
  %v5172 = vadd.f32 %v4706, %v5090
  %v5173 = vadd.f32 %v4707, %v5095
  %v5174 = vadd.f32 %v4708, %v5100
  %v5175 = vadd.f32 %v4709, %v5105
  %v5176 = vadd.f32 %v4710, %v5110
  %5177 = vst [vmem:[#allocation3] sm:$0xff] %v5113
  %5178 = vst [vmem:[#allocation3 + $0x8] sm:$0xff] %v5114
  %5179 = vst [vmem:[#allocation3 + $0x10] sm:$0xff] %v5115
  %5180 = vst [vmem:[#allocation3 + $0x18] sm:$0xff] %v5116
  %5181 = vst [vmem:[#allocation3 + $0x20] sm:$0xff] %v5117
  %5182 = vst [vmem:[#allocation3 + $0x28] sm:$0xff] %v5118
  %5183 = vst [vmem:[#allocation3 + $0x30] sm:$0xff] %v5119
  %5184 = vst [vmem:[#allocation3 + $0x38] sm:$0xff] %v5120
  %5185 = vst [vmem:[#allocation3 + $0x40] sm:$0xff] %v5121
  %5186 = vst [vmem:[#allocation3 + $0x48] sm:$0xff] %v5122
  %5187 = vst [vmem:[#allocation3 + $0x50] sm:$0xff] %v5123
  %5188 = vst [vmem:[#allocation3 + $0x58] sm:$0xff] %v5124
  %5189 = vst [vmem:[#allocation3 + $0x60] sm:$0xff] %v5125
  %5190 = vst [vmem:[#allocation3 + $0x68] sm:$0xff] %v5126
  %5191 = vst [vmem:[#allocation3 + $0x70] sm:$0xff] %v5127
  %5192 = vst [vmem:[#allocation3 + $0x78] sm:$0xff] %v5128
  %5193 = vst [vmem:[#allocation3 + $0x80] sm:$0xff] %v5129
  %5194 = vst [vmem:[#allocation3 + $0x88] sm:$0xff] %v5130
  %5195 = vst [vmem:[#allocation3 + $0x90] sm:$0xff] %v5131
  %5196 = vst [vmem:[#allocation3 + $0x98] sm:$0xff] %v5132
  %5197 = vst [vmem:[#allocation3 + $0xa0] sm:$0xff] %v5133
  %5198 = vst [vmem:[#allocation3 + $0xa8] sm:$0xff] %v5134
  %5199 = vst [vmem:[#allocation3 + $0xb0] sm:$0xff] %v5135
  %5200 = vst [vmem:[#allocation3 + $0xb8] sm:$0xff] %v5136
  %5201 = vst [vmem:[#allocation3 + $0xc0] sm:$0xff] %v5137
  %5202 = vst [vmem:[#allocation3 + $0xc8] sm:$0xff] %v5138
  %5203 = vst [vmem:[#allocation3 + $0xd0] sm:$0xff] %v5139
  %5204 = vst [vmem:[#allocation3 + $0xd8] sm:$0xff] %v5140
  %5205 = vst [vmem:[#allocation3 + $0xe0] sm:$0xff] %v5141
  %5206 = vst [vmem:[#allocation3 + $0xe8] sm:$0xff] %v5142
  %5207 = vst [vmem:[#allocation3 + $0xf0] sm:$0xff] %v5143
  %5208 = vst [vmem:[#allocation3 + $0xf8] sm:$0xff] %v5144
  %5209 = vst [vmem:[#allocation3 + $0x100] sm:$0xff] %v5145
  %5210 = vst [vmem:[#allocation3 + $0x108] sm:$0xff] %v5146
  %5211 = vst [vmem:[#allocation3 + $0x110] sm:$0xff] %v5147
  %5212 = vst [vmem:[#allocation3 + $0x118] sm:$0xff] %v5148
  %5213 = vst [vmem:[#allocation3 + $0x120] sm:$0xff] %v5149
  %5214 = vst [vmem:[#allocation3 + $0x128] sm:$0xff] %v5150
  %5215 = vst [vmem:[#allocation3 + $0x130] sm:$0xff] %v5151
  %5216 = vst [vmem:[#allocation3 + $0x138] sm:$0xff] %v5152
  %5217 = vst [vmem:[#allocation3 + $0x140] sm:$0xff] %v5153
  %5218 = vst [vmem:[#allocation3 + $0x148] sm:$0xff] %v5154
  %5219 = vst [vmem:[#allocation3 + $0x150] sm:$0xff] %v5155
  %5220 = vst [vmem:[#allocation3 + $0x158] sm:$0xff] %v5156
  %5221 = vst [vmem:[#allocation3 + $0x160] sm:$0xff] %v5157
  %5222 = vst [vmem:[#allocation3 + $0x168] sm:$0xff] %v5158
  %5223 = vst [vmem:[#allocation3 + $0x170] sm:$0xff] %v5159
  %5224 = vst [vmem:[#allocation3 + $0x178] sm:$0xff] %v5160
  %5225 = vst [vmem:[#allocation3 + $0x180] sm:$0xff] %v5161
  %5226 = vst [vmem:[#allocation3 + $0x188] sm:$0xff] %v5162
  %5227 = vst [vmem:[#allocation3 + $0x190] sm:$0xff] %v5163
  %5228 = vst [vmem:[#allocation3 + $0x198] sm:$0xff] %v5164
  %5229 = vst [vmem:[#allocation3 + $0x1a0] sm:$0xff] %v5165
  %5230 = vst [vmem:[#allocation3 + $0x1a8] sm:$0xff] %v5166
  %5231 = vst [vmem:[#allocation3 + $0x1b0] sm:$0xff] %v5167
  %5232 = vst [vmem:[#allocation3 + $0x1b8] sm:$0xff] %v5168
  %5233 = vst [vmem:[#allocation3 + $0x1c0] sm:$0xff] %v5169
  %5234 = vst [vmem:[#allocation3 + $0x1c8] sm:$0xff] %v5170
  %5235 = vst [vmem:[#allocation3 + $0x1d0] sm:$0xff] %v5171
  %5236 = vst [vmem:[#allocation3 + $0x1d8] sm:$0xff] %v5172
  %5237 = vst [vmem:[#allocation3 + $0x1e0] sm:$0xff] %v5173
  %5238 = vst [vmem:[#allocation3 + $0x1e8] sm:$0xff] %v5174
  %5239 = vst [vmem:[#allocation3 + $0x1f0] sm:$0xff] %v5175
  %5240 = vst [vmem:[#allocation3 + $0x1f8] sm:$0xff] %v5176
  %s5241 = scalar_lea.vmem [#allocation2], 64
  %v5242 = vld [vmem:[%s5241 + $0x7] sm:$0xff]
  %v5243 = vld [vmem:[%s5241 + $0xf] sm:$0xff]
  %v5244 = vld [vmem:[%s5241 + $0x27] sm:$0xff]
  %v5245 = vld [vmem:[%s5241 + $0x2f] sm:$0xff]
  %v5246 = vld [vmem:[%s5241 + $0x47] sm:$0xff]
  %v5247 = vld [vmem:[%s5241 + $0x4f] sm:$0xff]
  %v5248 = vld [vmem:[%s5241 + $0x67] sm:$0xff]
  %v5249 = vld [vmem:[%s5241 + $0x6f] sm:$0xff]
  %v5250 = vld [vmem:[%s5241 + $0x87] sm:$0xff]
  %v5251 = vld [vmem:[%s5241 + $0x8f] sm:$0xff]
  %v5252 = vld [vmem:[%s5241 + $0xa7] sm:$0xff]
  %v5253 = vld [vmem:[%s5241 + $0xaf] sm:$0xff]
  %v5254 = vld [vmem:[%s5241 + $0xc7] sm:$0xff]
  %v5255 = vld [vmem:[%s5241 + $0xcf] sm:$0xff]
  %v5256 = vld [vmem:[%s5241 + $0xe7] sm:$0xff]
  %v5257 = vld [vmem:[%s5241 + $0xef] sm:$0xff]
  %v5258 = vld [vmem:[%s5241 + $0x107] sm:$0xff]
  %v5259 = vld [vmem:[%s5241 + $0x10f] sm:$0xff]
  %v5260 = vld [vmem:[%s5241 + $0x127] sm:$0xff]
  %v5261 = vld [vmem:[%s5241 + $0x12f] sm:$0xff]
  %v5262 = vld [vmem:[%s5241 + $0x147] sm:$0xff]
  %v5263 = vld [vmem:[%s5241 + $0x14f] sm:$0xff]
  %v5264 = vld [vmem:[%s5241 + $0x167] sm:$0xff]
  %v5265 = vld [vmem:[%s5241 + $0x16f] sm:$0xff]
  %v5266 = vld [vmem:[%s5241 + $0x187] sm:$0xff]
  %v5267 = vld [vmem:[%s5241 + $0x18f] sm:$0xff]
  %v5268 = vld [vmem:[%s5241 + $0x1a7] sm:$0xff]
  %v5269 = vld [vmem:[%s5241 + $0x1af] sm:$0xff]
  %v5270 = vld [vmem:[%s5241 + $0x1c7] sm:$0xff]
  %v5271 = vld [vmem:[%s5241 + $0x1cf] sm:$0xff]
  %v5272 = vld [vmem:[%s5241 + $0x1e7] sm:$0xff]
  %v5273 = vld [vmem:[%s5241 + $0x1ef] sm:$0xff]
  %v5274 = vld [vmem:[%s5241 + $0x247] sm:$0xff]
  %v5275 = vld [vmem:[%s5241 + $0x24f] sm:$0xff]
  %v5276 = vld [vmem:[%s5241 + $0x267] sm:$0xff]
  %v5277 = vld [vmem:[%s5241 + $0x26f] sm:$0xff]
  %v5278 = vld [vmem:[%s5241 + $0x287] sm:$0xff]
  %v5279 = vld [vmem:[%s5241 + $0x28f] sm:$0xff]
  %v5280 = vld [vmem:[%s5241 + $0x2a7] sm:$0xff]
  %v5281 = vld [vmem:[%s5241 + $0x2af] sm:$0xff]
  %v5282 = vld [vmem:[%s5241 + $0x2c7] sm:$0xff]
  %v5283 = vld [vmem:[%s5241 + $0x2cf] sm:$0xff]
  %v5284 = vld [vmem:[%s5241 + $0x2e7] sm:$0xff]
  %v5285 = vld [vmem:[%s5241 + $0x2ef] sm:$0xff]
  %v5286 = vld [vmem:[%s5241 + $0x307] sm:$0xff]
  %v5287 = vld [vmem:[%s5241 + $0x30f] sm:$0xff]
  %v5288 = vld [vmem:[%s5241 + $0x327] sm:$0xff]
  %v5289 = vld [vmem:[%s5241 + $0x32f] sm:$0xff]
  %v5290 = vld [vmem:[%s5241 + $0x347] sm:$0xff]
  %v5291 = vld [vmem:[%s5241 + $0x34f] sm:$0xff]
  %v5292 = vld [vmem:[%s5241 + $0x367] sm:$0xff]
  %v5293 = vld [vmem:[%s5241 + $0x36f] sm:$0xff]
  %v5294 = vld [vmem:[%s5241 + $0x387] sm:$0xff]
  %v5295 = vld [vmem:[%s5241 + $0x38f] sm:$0xff]
  %v5296 = vld [vmem:[%s5241 + $0x3a7] sm:$0xff]
  %v5297 = vld [vmem:[%s5241 + $0x3af] sm:$0xff]
  %v5298 = vld [vmem:[%s5241 + $0x3c7] sm:$0xff]
  %v5299 = vld [vmem:[%s5241 + $0x3cf] sm:$0xff]
  %v5300 = vld [vmem:[%s5241 + $0x3e7] sm:$0xff]
  %v5301 = vld [vmem:[%s5241 + $0x3ef] sm:$0xff]
  %v5302 = vld [vmem:[%s5241 + $0x407] sm:$0xff]
  %v5303 = vld [vmem:[%s5241 + $0x40f] sm:$0xff]
  %v5304 = vld [vmem:[%s5241 + $0x427] sm:$0xff]
  %v5305 = vld [vmem:[%s5241 + $0x42f] sm:$0xff]
  %v5306 = vld [vmem:[#allocation3] sm:$0xff]
  %v5307 = vld [vmem:[#allocation3 + $0x8] sm:$0xff]
  %v5308 = vld [vmem:[#allocation3 + $0x10] sm:$0xff]
  %v5309 = vld [vmem:[#allocation3 + $0x18] sm:$0xff]
  %v5310 = vld [vmem:[#allocation3 + $0x20] sm:$0xff]
  %v5311 = vld [vmem:[#allocation3 + $0x28] sm:$0xff]
  %v5312 = vld [vmem:[#allocation3 + $0x30] sm:$0xff]
  %v5313 = vld [vmem:[#allocation3 + $0x38] sm:$0xff]
  %v5314 = vld [vmem:[#allocation3 + $0x40] sm:$0xff]
  %v5315 = vld [vmem:[#allocation3 + $0x48] sm:$0xff]
  %v5316 = vld [vmem:[#allocation3 + $0x50] sm:$0xff]
  %v5317 = vld [vmem:[#allocation3 + $0x58] sm:$0xff]
  %v5318 = vld [vmem:[#allocation3 + $0x60] sm:$0xff]
  %v5319 = vld [vmem:[#allocation3 + $0x68] sm:$0xff]
  %v5320 = vld [vmem:[#allocation3 + $0x70] sm:$0xff]
  %v5321 = vld [vmem:[#allocation3 + $0x78] sm:$0xff]
  %v5322 = vld [vmem:[#allocation3 + $0x80] sm:$0xff]
  %v5323 = vld [vmem:[#allocation3 + $0x88] sm:$0xff]
  %v5324 = vld [vmem:[#allocation3 + $0x90] sm:$0xff]
  %v5325 = vld [vmem:[#allocation3 + $0x98] sm:$0xff]
  %v5326 = vld [vmem:[#allocation3 + $0xa0] sm:$0xff]
  %v5327 = vld [vmem:[#allocation3 + $0xa8] sm:$0xff]
  %v5328 = vld [vmem:[#allocation3 + $0xb0] sm:$0xff]
  %v5329 = vld [vmem:[#allocation3 + $0xb8] sm:$0xff]
  %v5330 = vld [vmem:[#allocation3 + $0xc0] sm:$0xff]
  %v5331 = vld [vmem:[#allocation3 + $0xc8] sm:$0xff]
  %v5332 = vld [vmem:[#allocation3 + $0xd0] sm:$0xff]
  %v5333 = vld [vmem:[#allocation3 + $0xd8] sm:$0xff]
  %v5334 = vld [vmem:[#allocation3 + $0xe0] sm:$0xff]
  %v5335 = vld [vmem:[#allocation3 + $0xe8] sm:$0xff]
  %v5336 = vld [vmem:[#allocation3 + $0xf0] sm:$0xff]
  %v5337 = vld [vmem:[#allocation3 + $0xf8] sm:$0xff]
  %v5338 = vld [vmem:[#allocation3 + $0x100] sm:$0xff]
  %v5339 = vld [vmem:[#allocation3 + $0x108] sm:$0xff]
  %v5340 = vld [vmem:[#allocation3 + $0x110] sm:$0xff]
  %v5341 = vld [vmem:[#allocation3 + $0x118] sm:$0xff]
  %v5342 = vld [vmem:[#allocation3 + $0x120] sm:$0xff]
  %v5343 = vld [vmem:[#allocation3 + $0x128] sm:$0xff]
  %v5344 = vld [vmem:[#allocation3 + $0x130] sm:$0xff]
  %v5345 = vld [vmem:[#allocation3 + $0x138] sm:$0xff]
  %v5346 = vld [vmem:[#allocation3 + $0x140] sm:$0xff]
  %v5347 = vld [vmem:[#allocation3 + $0x148] sm:$0xff]
  %v5348 = vld [vmem:[#allocation3 + $0x150] sm:$0xff]
  %v5349 = vld [vmem:[#allocation3 + $0x158] sm:$0xff]
  %v5350 = vld [vmem:[#allocation3 + $0x160] sm:$0xff]
  %v5351 = vld [vmem:[#allocation3 + $0x168] sm:$0xff]
  %v5352 = vld [vmem:[#allocation3 + $0x170] sm:$0xff]
  %v5353 = vld [vmem:[#allocation3 + $0x178] sm:$0xff]
  %v5354 = vld [vmem:[#allocation3 + $0x180] sm:$0xff]
  %v5355 = vld [vmem:[#allocation3 + $0x188] sm:$0xff]
  %v5356 = vld [vmem:[#allocation3 + $0x190] sm:$0xff]
  %v5357 = vld [vmem:[#allocation3 + $0x198] sm:$0xff]
  %v5358 = vld [vmem:[#allocation3 + $0x1a0] sm:$0xff]
  %v5359 = vld [vmem:[#allocation3 + $0x1a8] sm:$0xff]
  %v5360 = vld [vmem:[#allocation3 + $0x1b0] sm:$0xff]
  %v5361 = vld [vmem:[#allocation3 + $0x1b8] sm:$0xff]
  %v5362 = vld [vmem:[#allocation3 + $0x1c0] sm:$0xff]
  %v5363 = vld [vmem:[#allocation3 + $0x1c8] sm:$0xff]
  %v5364 = vld [vmem:[#allocation3 + $0x1d0] sm:$0xff]
  %v5365 = vld [vmem:[#allocation3 + $0x1d8] sm:$0xff]
  %v5366 = vld [vmem:[#allocation3 + $0x1e0] sm:$0xff]
  %v5367 = vld [vmem:[#allocation3 + $0x1e8] sm:$0xff]
  %v5368 = vld [vmem:[#allocation3 + $0x1f0] sm:$0xff]
  %v5369 = vld [vmem:[#allocation3 + $0x1f8] sm:$0xff]
  %s5370 = scalar_lea.vmem %s2, 768
  %v5371 = vld [vmem:[%s5370] sm:$0xff]
  %v5372 = vld [vmem:[%s5370 + $0x8] sm:$0xff]
  %v5373 = vld [vmem:[%s5370 + $0x10] sm:$0xff]
  %v5374 = vld [vmem:[%s5370 + $0x18] sm:$0xff]
  %v5375 = vld [vmem:[%s5370 + $0x20] sm:$0xff]
  %v5376 = vld [vmem:[%s5370 + $0x28] sm:$0xff]
  %v5377 = vld [vmem:[%s5370 + $0x30] sm:$0xff]
  %v5378 = vld [vmem:[%s5370 + $0x38] sm:$0xff]
  %v5379 = vld [vmem:[%s5370 + $0x40] sm:$0xff]
  %v5380 = vld [vmem:[%s5370 + $0x48] sm:$0xff]
  %v5381 = vld [vmem:[%s5370 + $0x50] sm:$0xff]
  %v5382 = vld [vmem:[%s5370 + $0x58] sm:$0xff]
  %v5383 = vld [vmem:[%s5370 + $0x60] sm:$0xff]
  %v5384 = vld [vmem:[%s5370 + $0x68] sm:$0xff]
  %v5385 = vld [vmem:[%s5370 + $0x70] sm:$0xff]
  %v5386 = vld [vmem:[%s5370 + $0x78] sm:$0xff]
  %5387 = vmatprep.subr.mxu0 0.0
  %5388 = vmatpush1.msra.mxu0 %v5386
  %5389 = vmatprep.subr.mxu0 0.0
  %5390 = vmatpush1.msra.mxu0 %v5385
  %5391 = vmatprep.subr.mxu0 0.0
  %5392 = vmatpush1.msra.mxu0 %v5384
  %5393 = vmatprep.subr.mxu0 0.0
  %5394 = vmatpush1.msra.mxu0 %v5383
  %5395 = vmatprep.subr.mxu0 0.0
  %5396 = vmatpush1.msra.mxu0 %v5382
  %5397 = vmatprep.subr.mxu0 0.0
  %5398 = vmatpush1.msra.mxu0 %v5381
  %5399 = vmatprep.subr.mxu0 0.0
  %5400 = vmatpush1.msra.mxu0 %v5380
  %5401 = vmatprep.subr.mxu0 0.0
  %5402 = vmatpush1.msra.mxu0 %v5379
  %5403 = vmatprep.subr.mxu0 0.0
  %5404 = vmatpush1.msra.mxu0 %v5378
  %5405 = vmatprep.subr.mxu0 0.0
  %5406 = vmatpush1.msra.mxu0 %v5377
  %5407 = vmatprep.subr.mxu0 0.0
  %5408 = vmatpush1.msra.mxu0 %v5376
  %5409 = vmatprep.subr.mxu0 0.0
  %5410 = vmatpush1.msra.mxu0 %v5375
  %5411 = vmatprep.subr.mxu0 0.0
  %5412 = vmatpush1.msra.mxu0 %v5374
  %5413 = vmatprep.subr.mxu0 0.0
  %5414 = vmatpush1.msra.mxu0 %v5373
  %5415 = vmatprep.subr.mxu0 0.0
  %5416 = vmatpush1.msra.mxu0 %v5372
  %5417 = vmatprep.subr.mxu0 0.0
  %5418 = vmatpush1.msra.mxu0 %v5371
  %5419 = vmatprep.subr.mxu0 0.0
  %5420 = vmatpush2.msra.mxu0 0.0
  %5421 = vmatprep.subr.mxu0 0.0
  %5422 = vmatpush2.msra.mxu0 0.0
  %5423 = vmatprep.subr.mxu0 0.0
  %5424 = vmatpush2.msra.mxu0 0.0
  %5425 = vmatprep.subr.mxu0 0.0
  %5426 = vmatpush2.msra.mxu0 0.0
  %5427 = vmatprep.subr.mxu0 0.0
  %5428 = vmatpush2.msra.mxu0 0.0
  %5429 = vmatprep.subr.mxu0 0.0
  %5430 = vmatpush2.msra.mxu0 0.0
  %5431 = vmatprep.subr.mxu0 0.0
  %5432 = vmatpush2.msra.mxu0 0.0
  %5433 = vmatprep.subr.mxu0 0.0
  %5434 = vmatpush2.msra.mxu0 0.0
  %5435 = vmatprep.subr.mxu0 0.0
  %5436 = vmatpush2.msra.mxu0 0.0
  %5437 = vmatprep.subr.mxu0 0.0
  %5438 = vmatpush2.msra.mxu0 0.0
  %5439 = vmatprep.subr.mxu0 0.0
  %5440 = vmatpush2.msra.mxu0 0.0
  %5441 = vmatprep.subr.mxu0 0.0
  %5442 = vmatpush2.msra.mxu0 0.0
  %5443 = vmatprep.subr.mxu0 0.0
  %5444 = vmatpush2.msra.mxu0 0.0
  %5445 = vmatprep.subr.mxu0 0.0
  %5446 = vmatpush2.msra.mxu0 0.0
  %5447 = vmatprep.subr.mxu0 0.0
  %5448 = vmatpush2.msra.mxu0 0.0
  %5449 = vmatprep.subr.mxu0 0.0
  %5450 = vmatpush2.msra.mxu0 0.0
  %5451 = vmatprep.mubr.f32.mxu0 0.0
  %5452 = vmatmul.mubr.f32.gmra.mxu0 %v5242
  %v5453 = vpop.f32.mrf.mxu0
  %v5454 = vadd.f32 0.0, %v5453
  %v5455 = vpop.f32.mrf.mxu0
  %5456 = vmatprep.mubr.f32.mxu0 0.0
  %5457 = vmatmul.mubr.f32.gmra.mxu0 %v5243
  %v5458 = vpop.f32.mrf.mxu0
  %v5459 = vadd.f32 0.0, %v5458
  %v5460 = vpop.f32.mrf.mxu0
  %5461 = vmatprep.mubr.f32.mxu0 0.0
  %5462 = vmatmul.mubr.f32.gmra.mxu0 %v5244
  %v5463 = vpop.f32.mrf.mxu0
  %v5464 = vadd.f32 0.0, %v5463
  %v5465 = vpop.f32.mrf.mxu0
  %5466 = vmatprep.mubr.f32.mxu0 0.0
  %5467 = vmatmul.mubr.f32.gmra.mxu0 %v5245
  %v5468 = vpop.f32.mrf.mxu0
  %v5469 = vadd.f32 0.0, %v5468
  %v5470 = vpop.f32.mrf.mxu0
  %5471 = vmatprep.mubr.f32.mxu0 0.0
  %5472 = vmatmul.mubr.f32.gmra.mxu0 %v5246
  %v5473 = vpop.f32.mrf.mxu0
  %v5474 = vadd.f32 0.0, %v5473
  %v5475 = vpop.f32.mrf.mxu0
  %5476 = vmatprep.mubr.f32.mxu0 0.0
  %5477 = vmatmul.mubr.f32.gmra.mxu0 %v5247
  %v5478 = vpop.f32.mrf.mxu0
  %v5479 = vadd.f32 0.0, %v5478
  %v5480 = vpop.f32.mrf.mxu0
  %5481 = vmatprep.mubr.f32.mxu0 0.0
  %5482 = vmatmul.mubr.f32.gmra.mxu0 %v5248
  %v5483 = vpop.f32.mrf.mxu0
  %v5484 = vadd.f32 0.0, %v5483
  %v5485 = vpop.f32.mrf.mxu0
  %5486 = vmatprep.mubr.f32.mxu0 0.0
  %5487 = vmatmul.mubr.f32.gmra.mxu0 %v5249
  %v5488 = vpop.f32.mrf.mxu0
  %v5489 = vadd.f32 0.0, %v5488
  %v5490 = vpop.f32.mrf.mxu0
  %5491 = vmatprep.mubr.f32.mxu0 0.0
  %5492 = vmatmul.mubr.f32.gmra.mxu0 %v5250
  %v5493 = vpop.f32.mrf.mxu0
  %v5494 = vadd.f32 0.0, %v5493
  %v5495 = vpop.f32.mrf.mxu0
  %5496 = vmatprep.mubr.f32.mxu0 0.0
  %5497 = vmatmul.mubr.f32.gmra.mxu0 %v5251
  %v5498 = vpop.f32.mrf.mxu0
  %v5499 = vadd.f32 0.0, %v5498
  %v5500 = vpop.f32.mrf.mxu0
  %5501 = vmatprep.mubr.f32.mxu0 0.0
  %5502 = vmatmul.mubr.f32.gmra.mxu0 %v5252
  %v5503 = vpop.f32.mrf.mxu0
  %v5504 = vadd.f32 0.0, %v5503
  %v5505 = vpop.f32.mrf.mxu0
  %5506 = vmatprep.mubr.f32.mxu0 0.0
  %5507 = vmatmul.mubr.f32.gmra.mxu0 %v5253
  %v5508 = vpop.f32.mrf.mxu0
  %v5509 = vadd.f32 0.0, %v5508
  %v5510 = vpop.f32.mrf.mxu0
  %5511 = vmatprep.mubr.f32.mxu0 0.0
  %5512 = vmatmul.mubr.f32.gmra.mxu0 %v5254
  %v5513 = vpop.f32.mrf.mxu0
  %v5514 = vadd.f32 0.0, %v5513
  %v5515 = vpop.f32.mrf.mxu0
  %5516 = vmatprep.mubr.f32.mxu0 0.0
  %5517 = vmatmul.mubr.f32.gmra.mxu0 %v5255
  %v5518 = vpop.f32.mrf.mxu0
  %v5519 = vadd.f32 0.0, %v5518
  %v5520 = vpop.f32.mrf.mxu0
  %5521 = vmatprep.mubr.f32.mxu0 0.0
  %5522 = vmatmul.mubr.f32.gmra.mxu0 %v5256
  %v5523 = vpop.f32.mrf.mxu0
  %v5524 = vadd.f32 0.0, %v5523
  %v5525 = vpop.f32.mrf.mxu0
  %5526 = vmatprep.mubr.f32.mxu0 0.0
  %5527 = vmatmul.mubr.f32.gmra.mxu0 %v5257
  %v5528 = vpop.f32.mrf.mxu0
  %v5529 = vadd.f32 0.0, %v5528
  %v5530 = vpop.f32.mrf.mxu0
  %5531 = vmatprep.mubr.f32.mxu0 0.0
  %5532 = vmatmul.mubr.f32.gmra.mxu0 %v5258
  %v5533 = vpop.f32.mrf.mxu0
  %v5534 = vadd.f32 0.0, %v5533
  %v5535 = vpop.f32.mrf.mxu0
  %5536 = vmatprep.mubr.f32.mxu0 0.0
  %5537 = vmatmul.mubr.f32.gmra.mxu0 %v5259
  %v5538 = vpop.f32.mrf.mxu0
  %v5539 = vadd.f32 0.0, %v5538
  %v5540 = vpop.f32.mrf.mxu0
  %5541 = vmatprep.mubr.f32.mxu0 0.0
  %5542 = vmatmul.mubr.f32.gmra.mxu0 %v5260
  %v5543 = vpop.f32.mrf.mxu0
  %v5544 = vadd.f32 0.0, %v5543
  %v5545 = vpop.f32.mrf.mxu0
  %5546 = vmatprep.mubr.f32.mxu0 0.0
  %5547 = vmatmul.mubr.f32.gmra.mxu0 %v5261
  %v5548 = vpop.f32.mrf.mxu0
  %v5549 = vadd.f32 0.0, %v5548
  %v5550 = vpop.f32.mrf.mxu0
  %5551 = vmatprep.mubr.f32.mxu0 0.0
  %5552 = vmatmul.mubr.f32.gmra.mxu0 %v5262
  %v5553 = vpop.f32.mrf.mxu0
  %v5554 = vadd.f32 0.0, %v5553
  %v5555 = vpop.f32.mrf.mxu0
  %5556 = vmatprep.mubr.f32.mxu0 0.0
  %5557 = vmatmul.mubr.f32.gmra.mxu0 %v5263
  %v5558 = vpop.f32.mrf.mxu0
  %v5559 = vadd.f32 0.0, %v5558
  %v5560 = vpop.f32.mrf.mxu0
  %5561 = vmatprep.mubr.f32.mxu0 0.0
  %5562 = vmatmul.mubr.f32.gmra.mxu0 %v5264
  %v5563 = vpop.f32.mrf.mxu0
  %v5564 = vadd.f32 0.0, %v5563
  %v5565 = vpop.f32.mrf.mxu0
  %5566 = vmatprep.mubr.f32.mxu0 0.0
  %5567 = vmatmul.mubr.f32.gmra.mxu0 %v5265
  %v5568 = vpop.f32.mrf.mxu0
  %v5569 = vadd.f32 0.0, %v5568
  %v5570 = vpop.f32.mrf.mxu0
  %5571 = vmatprep.mubr.f32.mxu0 0.0
  %5572 = vmatmul.mubr.f32.gmra.mxu0 %v5266
  %v5573 = vpop.f32.mrf.mxu0
  %v5574 = vadd.f32 0.0, %v5573
  %v5575 = vpop.f32.mrf.mxu0
  %5576 = vmatprep.mubr.f32.mxu0 0.0
  %5577 = vmatmul.mubr.f32.gmra.mxu0 %v5267
  %v5578 = vpop.f32.mrf.mxu0
  %v5579 = vadd.f32 0.0, %v5578
  %v5580 = vpop.f32.mrf.mxu0
  %5581 = vmatprep.mubr.f32.mxu0 0.0
  %5582 = vmatmul.mubr.f32.gmra.mxu0 %v5268
  %v5583 = vpop.f32.mrf.mxu0
  %v5584 = vadd.f32 0.0, %v5583
  %v5585 = vpop.f32.mrf.mxu0
  %5586 = vmatprep.mubr.f32.mxu0 0.0
  %5587 = vmatmul.mubr.f32.gmra.mxu0 %v5269
  %v5588 = vpop.f32.mrf.mxu0
  %v5589 = vadd.f32 0.0, %v5588
  %v5590 = vpop.f32.mrf.mxu0
  %5591 = vmatprep.mubr.f32.mxu0 0.0
  %5592 = vmatmul.mubr.f32.gmra.mxu0 %v5270
  %v5593 = vpop.f32.mrf.mxu0
  %v5594 = vadd.f32 0.0, %v5593
  %v5595 = vpop.f32.mrf.mxu0
  %5596 = vmatprep.mubr.f32.mxu0 0.0
  %5597 = vmatmul.mubr.f32.gmra.mxu0 %v5271
  %v5598 = vpop.f32.mrf.mxu0
  %v5599 = vadd.f32 0.0, %v5598
  %v5600 = vpop.f32.mrf.mxu0
  %5601 = vmatprep.mubr.f32.mxu0 0.0
  %5602 = vmatmul.mubr.f32.gmra.mxu0 %v5272
  %v5603 = vpop.f32.mrf.mxu0
  %v5604 = vadd.f32 0.0, %v5603
  %v5605 = vpop.f32.mrf.mxu0
  %5606 = vmatprep.mubr.f32.mxu0 0.0
  %5607 = vmatmul.mubr.f32.gmra.mxu0 %v5273
  %v5608 = vpop.f32.mrf.mxu0
  %v5609 = vadd.f32 0.0, %v5608
  %v5610 = vpop.f32.mrf.mxu0
  %5611 = vmatprep.mubr.f32.mxu0 0.0
  %5612 = vmatmul.mubr.f32.gmra.mxu0 %v5274
  %v5613 = vpop.f32.mrf.mxu0
  %v5614 = vadd.f32 0.0, %v5613
  %v5615 = vpop.f32.mrf.mxu0
  %5616 = vmatprep.mubr.f32.mxu0 0.0
  %5617 = vmatmul.mubr.f32.gmra.mxu0 %v5275
  %v5618 = vpop.f32.mrf.mxu0
  %v5619 = vadd.f32 0.0, %v5618
  %v5620 = vpop.f32.mrf.mxu0
  %5621 = vmatprep.mubr.f32.mxu0 0.0
  %5622 = vmatmul.mubr.f32.gmra.mxu0 %v5276
  %v5623 = vpop.f32.mrf.mxu0
  %v5624 = vadd.f32 0.0, %v5623
  %v5625 = vpop.f32.mrf.mxu0
  %5626 = vmatprep.mubr.f32.mxu0 0.0
  %5627 = vmatmul.mubr.f32.gmra.mxu0 %v5277
  %v5628 = vpop.f32.mrf.mxu0
  %v5629 = vadd.f32 0.0, %v5628
  %v5630 = vpop.f32.mrf.mxu0
  %5631 = vmatprep.mubr.f32.mxu0 0.0
  %5632 = vmatmul.mubr.f32.gmra.mxu0 %v5278
  %v5633 = vpop.f32.mrf.mxu0
  %v5634 = vadd.f32 0.0, %v5633
  %v5635 = vpop.f32.mrf.mxu0
  %5636 = vmatprep.mubr.f32.mxu0 0.0
  %5637 = vmatmul.mubr.f32.gmra.mxu0 %v5279
  %v5638 = vpop.f32.mrf.mxu0
  %v5639 = vadd.f32 0.0, %v5638
  %v5640 = vpop.f32.mrf.mxu0
  %5641 = vmatprep.mubr.f32.mxu0 0.0
  %5642 = vmatmul.mubr.f32.gmra.mxu0 %v5280
  %v5643 = vpop.f32.mrf.mxu0
  %v5644 = vadd.f32 0.0, %v5643
  %v5645 = vpop.f32.mrf.mxu0
  %5646 = vmatprep.mubr.f32.mxu0 0.0
  %5647 = vmatmul.mubr.f32.gmra.mxu0 %v5281
  %v5648 = vpop.f32.mrf.mxu0
  %v5649 = vadd.f32 0.0, %v5648
  %v5650 = vpop.f32.mrf.mxu0
  %5651 = vmatprep.mubr.f32.mxu0 0.0
  %5652 = vmatmul.mubr.f32.gmra.mxu0 %v5282
  %v5653 = vpop.f32.mrf.mxu0
  %v5654 = vadd.f32 0.0, %v5653
  %v5655 = vpop.f32.mrf.mxu0
  %5656 = vmatprep.mubr.f32.mxu0 0.0
  %5657 = vmatmul.mubr.f32.gmra.mxu0 %v5283
  %v5658 = vpop.f32.mrf.mxu0
  %v5659 = vadd.f32 0.0, %v5658
  %v5660 = vpop.f32.mrf.mxu0
  %5661 = vmatprep.mubr.f32.mxu0 0.0
  %5662 = vmatmul.mubr.f32.gmra.mxu0 %v5284
  %v5663 = vpop.f32.mrf.mxu0
  %v5664 = vadd.f32 0.0, %v5663
  %v5665 = vpop.f32.mrf.mxu0
  %5666 = vmatprep.mubr.f32.mxu0 0.0
  %5667 = vmatmul.mubr.f32.gmra.mxu0 %v5285
  %v5668 = vpop.f32.mrf.mxu0
  %v5669 = vadd.f32 0.0, %v5668
  %v5670 = vpop.f32.mrf.mxu0
  %5671 = vmatprep.mubr.f32.mxu0 0.0
  %5672 = vmatmul.mubr.f32.gmra.mxu0 %v5286
  %v5673 = vpop.f32.mrf.mxu0
  %v5674 = vadd.f32 0.0, %v5673
  %v5675 = vpop.f32.mrf.mxu0
  %5676 = vmatprep.mubr.f32.mxu0 0.0
  %5677 = vmatmul.mubr.f32.gmra.mxu0 %v5287
  %v5678 = vpop.f32.mrf.mxu0
  %v5679 = vadd.f32 0.0, %v5678
  %v5680 = vpop.f32.mrf.mxu0
  %5681 = vmatprep.mubr.f32.mxu0 0.0
  %5682 = vmatmul.mubr.f32.gmra.mxu0 %v5288
  %v5683 = vpop.f32.mrf.mxu0
  %v5684 = vadd.f32 0.0, %v5683
  %v5685 = vpop.f32.mrf.mxu0
  %5686 = vmatprep.mubr.f32.mxu0 0.0
  %5687 = vmatmul.mubr.f32.gmra.mxu0 %v5289
  %v5688 = vpop.f32.mrf.mxu0
  %v5689 = vadd.f32 0.0, %v5688
  %v5690 = vpop.f32.mrf.mxu0
  %5691 = vmatprep.mubr.f32.mxu0 0.0
  %5692 = vmatmul.mubr.f32.gmra.mxu0 %v5290
  %v5693 = vpop.f32.mrf.mxu0
  %v5694 = vadd.f32 0.0, %v5693
  %v5695 = vpop.f32.mrf.mxu0
  %5696 = vmatprep.mubr.f32.mxu0 0.0
  %5697 = vmatmul.mubr.f32.gmra.mxu0 %v5291
  %v5698 = vpop.f32.mrf.mxu0
  %v5699 = vadd.f32 0.0, %v5698
  %v5700 = vpop.f32.mrf.mxu0
  %5701 = vmatprep.mubr.f32.mxu0 0.0
  %5702 = vmatmul.mubr.f32.gmra.mxu0 %v5292
  %v5703 = vpop.f32.mrf.mxu0
  %v5704 = vadd.f32 0.0, %v5703
  %v5705 = vpop.f32.mrf.mxu0
  %5706 = vmatprep.mubr.f32.mxu0 0.0
  %5707 = vmatmul.mubr.f32.gmra.mxu0 %v5293
  %v5708 = vpop.f32.mrf.mxu0
  %v5709 = vadd.f32 0.0, %v5708
  %v5710 = vpop.f32.mrf.mxu0
  %5711 = vmatprep.mubr.f32.mxu0 0.0
  %5712 = vmatmul.mubr.f32.gmra.mxu0 %v5294
  %v5713 = vpop.f32.mrf.mxu0
  %v5714 = vadd.f32 0.0, %v5713
  %v5715 = vpop.f32.mrf.mxu0
  %5716 = vmatprep.mubr.f32.mxu0 0.0
  %5717 = vmatmul.mubr.f32.gmra.mxu0 %v5295
  %v5718 = vpop.f32.mrf.mxu0
  %v5719 = vadd.f32 0.0, %v5718
  %v5720 = vpop.f32.mrf.mxu0
  %5721 = vmatprep.mubr.f32.mxu0 0.0
  %5722 = vmatmul.mubr.f32.gmra.mxu0 %v5296
  %v5723 = vpop.f32.mrf.mxu0
  %v5724 = vadd.f32 0.0, %v5723
  %v5725 = vpop.f32.mrf.mxu0
  %5726 = vmatprep.mubr.f32.mxu0 0.0
  %5727 = vmatmul.mubr.f32.gmra.mxu0 %v5297
  %v5728 = vpop.f32.mrf.mxu0
  %v5729 = vadd.f32 0.0, %v5728
  %v5730 = vpop.f32.mrf.mxu0
  %5731 = vmatprep.mubr.f32.mxu0 0.0
  %5732 = vmatmul.mubr.f32.gmra.mxu0 %v5298
  %v5733 = vpop.f32.mrf.mxu0
  %v5734 = vadd.f32 0.0, %v5733
  %v5735 = vpop.f32.mrf.mxu0
  %5736 = vmatprep.mubr.f32.mxu0 0.0
  %5737 = vmatmul.mubr.f32.gmra.mxu0 %v5299
  %v5738 = vpop.f32.mrf.mxu0
  %v5739 = vadd.f32 0.0, %v5738
  %v5740 = vpop.f32.mrf.mxu0
  %5741 = vmatprep.mubr.f32.mxu0 0.0
  %5742 = vmatmul.mubr.f32.gmra.mxu0 %v5300
  %v5743 = vpop.f32.mrf.mxu0
  %v5744 = vadd.f32 0.0, %v5743
  %v5745 = vpop.f32.mrf.mxu0
  %5746 = vmatprep.mubr.f32.mxu0 0.0
  %5747 = vmatmul.mubr.f32.gmra.mxu0 %v5301
  %v5748 = vpop.f32.mrf.mxu0
  %v5749 = vadd.f32 0.0, %v5748
  %v5750 = vpop.f32.mrf.mxu0
  %5751 = vmatprep.mubr.f32.mxu0 0.0
  %5752 = vmatmul.mubr.f32.gmra.mxu0 %v5302
  %v5753 = vpop.f32.mrf.mxu0
  %v5754 = vadd.f32 0.0, %v5753
  %v5755 = vpop.f32.mrf.mxu0
  %5756 = vmatprep.mubr.f32.mxu0 0.0
  %5757 = vmatmul.mubr.f32.gmra.mxu0 %v5303
  %v5758 = vpop.f32.mrf.mxu0
  %v5759 = vadd.f32 0.0, %v5758
  %v5760 = vpop.f32.mrf.mxu0
  %5761 = vmatprep.mubr.f32.mxu0 0.0
  %5762 = vmatmul.mubr.f32.gmra.mxu0 %v5304
  %v5763 = vpop.f32.mrf.mxu0
  %v5764 = vadd.f32 0.0, %v5763
  %v5765 = vpop.f32.mrf.mxu0
  %5766 = vmatprep.mubr.f32.mxu0 0.0
  %5767 = vmatmul.mubr.f32.gmra.mxu0 %v5305
  %v5768 = vpop.f32.mrf.mxu0
  %v5769 = vadd.f32 0.0, %v5768
  %v5770 = vpop.f32.mrf.mxu0
  %5771 = vdwg.mxu0
  %v5772 = vadd.f32 %v5306, %v5454
  %v5773 = vadd.f32 %v5307, %v5459
  %v5774 = vadd.f32 %v5308, %v5464
  %v5775 = vadd.f32 %v5309, %v5469
  %v5776 = vadd.f32 %v5310, %v5474
  %v5777 = vadd.f32 %v5311, %v5479
  %v5778 = vadd.f32 %v5312, %v5484
  %v5779 = vadd.f32 %v5313, %v5489
  %v5780 = vadd.f32 %v5314, %v5494
  %v5781 = vadd.f32 %v5315, %v5499
  %v5782 = vadd.f32 %v5316, %v5504
  %v5783 = vadd.f32 %v5317, %v5509
  %v5784 = vadd.f32 %v5318, %v5514
  %v5785 = vadd.f32 %v5319, %v5519
  %v5786 = vadd.f32 %v5320, %v5524
  %v5787 = vadd.f32 %v5321, %v5529
  %v5788 = vadd.f32 %v5322, %v5534
  %v5789 = vadd.f32 %v5323, %v5539
  %v5790 = vadd.f32 %v5324, %v5544
  %v5791 = vadd.f32 %v5325, %v5549
  %v5792 = vadd.f32 %v5326, %v5554
  %v5793 = vadd.f32 %v5327, %v5559
  %v5794 = vadd.f32 %v5328, %v5564
  %v5795 = vadd.f32 %v5329, %v5569
  %v5796 = vadd.f32 %v5330, %v5574
  %v5797 = vadd.f32 %v5331, %v5579
  %v5798 = vadd.f32 %v5332, %v5584
  %v5799 = vadd.f32 %v5333, %v5589
  %v5800 = vadd.f32 %v5334, %v5594
  %v5801 = vadd.f32 %v5335, %v5599
  %v5802 = vadd.f32 %v5336, %v5604
  %v5803 = vadd.f32 %v5337, %v5609
  %v5804 = vadd.f32 %v5338, %v5614
  %v5805 = vadd.f32 %v5339, %v5619
  %v5806 = vadd.f32 %v5340, %v5624
  %v5807 = vadd.f32 %v5341, %v5629
  %v5808 = vadd.f32 %v5342, %v5634
  %v5809 = vadd.f32 %v5343, %v5639
  %v5810 = vadd.f32 %v5344, %v5644
  %v5811 = vadd.f32 %v5345, %v5649
  %v5812 = vadd.f32 %v5346, %v5654
  %v5813 = vadd.f32 %v5347, %v5659
  %v5814 = vadd.f32 %v5348, %v5664
  %v5815 = vadd.f32 %v5349, %v5669
  %v5816 = vadd.f32 %v5350, %v5674
  %v5817 = vadd.f32 %v5351, %v5679
  %v5818 = vadd.f32 %v5352, %v5684
  %v5819 = vadd.f32 %v5353, %v5689
  %v5820 = vadd.f32 %v5354, %v5694
  %v5821 = vadd.f32 %v5355, %v5699
  %v5822 = vadd.f32 %v5356, %v5704
  %v5823 = vadd.f32 %v5357, %v5709
  %v5824 = vadd.f32 %v5358, %v5714
  %v5825 = vadd.f32 %v5359, %v5719
  %v5826 = vadd.f32 %v5360, %v5724
  %v5827 = vadd.f32 %v5361, %v5729
  %v5828 = vadd.f32 %v5362, %v5734
  %v5829 = vadd.f32 %v5363, %v5739
  %v5830 = vadd.f32 %v5364, %v5744
  %v5831 = vadd.f32 %v5365, %v5749
  %v5832 = vadd.f32 %v5366, %v5754
  %v5833 = vadd.f32 %v5367, %v5759
  %v5834 = vadd.f32 %v5368, %v5764
  %v5835 = vadd.f32 %v5369, %v5769
  %5836 = vst [vmem:[#allocation3] sm:$0xff] %v5772
  %5837 = vst [vmem:[#allocation3 + $0x8] sm:$0xff] %v5773
  %5838 = vst [vmem:[#allocation3 + $0x10] sm:$0xff] %v5774
  %5839 = vst [vmem:[#allocation3 + $0x18] sm:$0xff] %v5775
  %5840 = vst [vmem:[#allocation3 + $0x20] sm:$0xff] %v5776
  %5841 = vst [vmem:[#allocation3 + $0x28] sm:$0xff] %v5777
  %5842 = vst [vmem:[#allocation3 + $0x30] sm:$0xff] %v5778
  %5843 = vst [vmem:[#allocation3 + $0x38] sm:$0xff] %v5779
  %5844 = vst [vmem:[#allocation3 + $0x40] sm:$0xff] %v5780
  %5845 = vst [vmem:[#allocation3 + $0x48] sm:$0xff] %v5781
  %5846 = vst [vmem:[#allocation3 + $0x50] sm:$0xff] %v5782
  %5847 = vst [vmem:[#allocation3 + $0x58] sm:$0xff] %v5783
  %5848 = vst [vmem:[#allocation3 + $0x60] sm:$0xff] %v5784
  %5849 = vst [vmem:[#allocation3 + $0x68] sm:$0xff] %v5785
  %5850 = vst [vmem:[#allocation3 + $0x70] sm:$0xff] %v5786
  %5851 = vst [vmem:[#allocation3 + $0x78] sm:$0xff] %v5787
  %5852 = vst [vmem:[#allocation3 + $0x80] sm:$0xff] %v5788
  %5853 = vst [vmem:[#allocation3 + $0x88] sm:$0xff] %v5789
  %5854 = vst [vmem:[#allocation3 + $0x90] sm:$0xff] %v5790
  %5855 = vst [vmem:[#allocation3 + $0x98] sm:$0xff] %v5791
  %5856 = vst [vmem:[#allocation3 + $0xa0] sm:$0xff] %v5792
  %5857 = vst [vmem:[#allocation3 + $0xa8] sm:$0xff] %v5793
  %5858 = vst [vmem:[#allocation3 + $0xb0] sm:$0xff] %v5794
  %5859 = vst [vmem:[#allocation3 + $0xb8] sm:$0xff] %v5795
  %5860 = vst [vmem:[#allocation3 + $0xc0] sm:$0xff] %v5796
  %5861 = vst [vmem:[#allocation3 + $0xc8] sm:$0xff] %v5797
  %5862 = vst [vmem:[#allocation3 + $0xd0] sm:$0xff] %v5798
  %5863 = vst [vmem:[#allocation3 + $0xd8] sm:$0xff] %v5799
  %5864 = vst [vmem:[#allocation3 + $0xe0] sm:$0xff] %v5800
  %5865 = vst [vmem:[#allocation3 + $0xe8] sm:$0xff] %v5801
  %5866 = vst [vmem:[#allocation3 + $0xf0] sm:$0xff] %v5802
  %5867 = vst [vmem:[#allocation3 + $0xf8] sm:$0xff] %v5803
  %5868 = vst [vmem:[#allocation3 + $0x100] sm:$0xff] %v5804
  %5869 = vst [vmem:[#allocation3 + $0x108] sm:$0xff] %v5805
  %5870 = vst [vmem:[#allocation3 + $0x110] sm:$0xff] %v5806
  %5871 = vst [vmem:[#allocation3 + $0x118] sm:$0xff] %v5807
  %5872 = vst [vmem:[#allocation3 + $0x120] sm:$0xff] %v5808
  %5873 = vst [vmem:[#allocation3 + $0x128] sm:$0xff] %v5809
  %5874 = vst [vmem:[#allocation3 + $0x130] sm:$0xff] %v5810
  %5875 = vst [vmem:[#allocation3 + $0x138] sm:$0xff] %v5811
  %5876 = vst [vmem:[#allocation3 + $0x140] sm:$0xff] %v5812
  %5877 = vst [vmem:[#allocation3 + $0x148] sm:$0xff] %v5813
  %5878 = vst [vmem:[#allocation3 + $0x150] sm:$0xff] %v5814
  %5879 = vst [vmem:[#allocation3 + $0x158] sm:$0xff] %v5815
  %5880 = vst [vmem:[#allocation3 + $0x160] sm:$0xff] %v5816
  %5881 = vst [vmem:[#allocation3 + $0x168] sm:$0xff] %v5817
  %5882 = vst [vmem:[#allocation3 + $0x170] sm:$0xff] %v5818
  %5883 = vst [vmem:[#allocation3 + $0x178] sm:$0xff] %v5819
  %5884 = vst [vmem:[#allocation3 + $0x180] sm:$0xff] %v5820
  %5885 = vst [vmem:[#allocation3 + $0x188] sm:$0xff] %v5821
  %5886 = vst [vmem:[#allocation3 + $0x190] sm:$0xff] %v5822
  %5887 = vst [vmem:[#allocation3 + $0x198] sm:$0xff] %v5823
  %5888 = vst [vmem:[#allocation3 + $0x1a0] sm:$0xff] %v5824
  %5889 = vst [vmem:[#allocation3 + $0x1a8] sm:$0xff] %v5825
  %5890 = vst [vmem:[#allocation3 + $0x1b0] sm:$0xff] %v5826
  %5891 = vst [vmem:[#allocation3 + $0x1b8] sm:$0xff] %v5827
  %5892 = vst [vmem:[#allocation3 + $0x1c0] sm:$0xff] %v5828
  %5893 = vst [vmem:[#allocation3 + $0x1c8] sm:$0xff] %v5829
  %5894 = vst [vmem:[#allocation3 + $0x1d0] sm:$0xff] %v5830
  %5895 = vst [vmem:[#allocation3 + $0x1d8] sm:$0xff] %v5831
  %5896 = vst [vmem:[#allocation3 + $0x1e0] sm:$0xff] %v5832
  %5897 = vst [vmem:[#allocation3 + $0x1e8] sm:$0xff] %v5833
  %5898 = vst [vmem:[#allocation3 + $0x1f0] sm:$0xff] %v5834
  %5899 = vst [vmem:[#allocation3 + $0x1f8] sm:$0xff] %v5835
  %v5900 = vld [vmem:[%s5241 + $0x8] sm:$0xff]
  %v5901 = vld [vmem:[%s5241 + $0x10] sm:$0xff]
  %v5902 = vld [vmem:[%s5241 + $0x28] sm:$0xff]
  %v5903 = vld [vmem:[%s5241 + $0x30] sm:$0xff]
  %v5904 = vld [vmem:[%s5241 + $0x48] sm:$0xff]
  %v5905 = vld [vmem:[%s5241 + $0x50] sm:$0xff]
  %v5906 = vld [vmem:[%s5241 + $0x68] sm:$0xff]
  %v5907 = vld [vmem:[%s5241 + $0x70] sm:$0xff]
  %v5908 = vld [vmem:[%s5241 + $0x88] sm:$0xff]
  %v5909 = vld [vmem:[%s5241 + $0x90] sm:$0xff]
  %v5910 = vld [vmem:[%s5241 + $0xa8] sm:$0xff]
  %v5911 = vld [vmem:[%s5241 + $0xb0] sm:$0xff]
  %v5912 = vld [vmem:[%s5241 + $0xc8] sm:$0xff]
  %v5913 = vld [vmem:[%s5241 + $0xd0] sm:$0xff]
  %v5914 = vld [vmem:[%s5241 + $0xe8] sm:$0xff]
  %v5915 = vld [vmem:[%s5241 + $0xf0] sm:$0xff]
  %v5916 = vld [vmem:[%s5241 + $0x108] sm:$0xff]
  %v5917 = vld [vmem:[%s5241 + $0x110] sm:$0xff]
  %v5918 = vld [vmem:[%s5241 + $0x128] sm:$0xff]
  %v5919 = vld [vmem:[%s5241 + $0x130] sm:$0xff]
  %v5920 = vld [vmem:[%s5241 + $0x148] sm:$0xff]
  %v5921 = vld [vmem:[%s5241 + $0x150] sm:$0xff]
  %v5922 = vld [vmem:[%s5241 + $0x168] sm:$0xff]
  %v5923 = vld [vmem:[%s5241 + $0x170] sm:$0xff]
  %v5924 = vld [vmem:[%s5241 + $0x188] sm:$0xff]
  %v5925 = vld [vmem:[%s5241 + $0x190] sm:$0xff]
  %v5926 = vld [vmem:[%s5241 + $0x1a8] sm:$0xff]
  %v5927 = vld [vmem:[%s5241 + $0x1b0] sm:$0xff]
  %v5928 = vld [vmem:[%s5241 + $0x1c8] sm:$0xff]
  %v5929 = vld [vmem:[%s5241 + $0x1d0] sm:$0xff]
  %v5930 = vld [vmem:[%s5241 + $0x1e8] sm:$0xff]
  %v5931 = vld [vmem:[%s5241 + $0x1f0] sm:$0xff]
  %v5932 = vld [vmem:[%s5241 + $0x248] sm:$0xff]
  %v5933 = vld [vmem:[%s5241 + $0x250] sm:$0xff]
  %v5934 = vld [vmem:[%s5241 + $0x268] sm:$0xff]
  %v5935 = vld [vmem:[%s5241 + $0x270] sm:$0xff]
  %v5936 = vld [vmem:[%s5241 + $0x288] sm:$0xff]
  %v5937 = vld [vmem:[%s5241 + $0x290] sm:$0xff]
  %v5938 = vld [vmem:[%s5241 + $0x2a8] sm:$0xff]
  %v5939 = vld [vmem:[%s5241 + $0x2b0] sm:$0xff]
  %v5940 = vld [vmem:[%s5241 + $0x2c8] sm:$0xff]
  %v5941 = vld [vmem:[%s5241 + $0x2d0] sm:$0xff]
  %v5942 = vld [vmem:[%s5241 + $0x2e8] sm:$0xff]
  %v5943 = vld [vmem:[%s5241 + $0x2f0] sm:$0xff]
  %v5944 = vld [vmem:[%s5241 + $0x308] sm:$0xff]
  %v5945 = vld [vmem:[%s5241 + $0x310] sm:$0xff]
  %v5946 = vld [vmem:[%s5241 + $0x328] sm:$0xff]
  %v5947 = vld [vmem:[%s5241 + $0x330] sm:$0xff]
  %v5948 = vld [vmem:[%s5241 + $0x348] sm:$0xff]
  %v5949 = vld [vmem:[%s5241 + $0x350] sm:$0xff]
  %v5950 = vld [vmem:[%s5241 + $0x368] sm:$0xff]
  %v5951 = vld [vmem:[%s5241 + $0x370] sm:$0xff]
  %v5952 = vld [vmem:[%s5241 + $0x388] sm:$0xff]
  %v5953 = vld [vmem:[%s5241 + $0x390] sm:$0xff]
  %v5954 = vld [vmem:[%s5241 + $0x3a8] sm:$0xff]
  %v5955 = vld [vmem:[%s5241 + $0x3b0] sm:$0xff]
  %v5956 = vld [vmem:[%s5241 + $0x3c8] sm:$0xff]
  %v5957 = vld [vmem:[%s5241 + $0x3d0] sm:$0xff]
  %v5958 = vld [vmem:[%s5241 + $0x3e8] sm:$0xff]
  %v5959 = vld [vmem:[%s5241 + $0x3f0] sm:$0xff]
  %v5960 = vld [vmem:[%s5241 + $0x408] sm:$0xff]
  %v5961 = vld [vmem:[%s5241 + $0x410] sm:$0xff]
  %v5962 = vld [vmem:[%s5241 + $0x428] sm:$0xff]
  %v5963 = vld [vmem:[%s5241 + $0x430] sm:$0xff]
  %v5964 = vld [vmem:[#allocation3] sm:$0xff]
  %v5965 = vld [vmem:[#allocation3 + $0x8] sm:$0xff]
  %v5966 = vld [vmem:[#allocation3 + $0x10] sm:$0xff]
  %v5967 = vld [vmem:[#allocation3 + $0x18] sm:$0xff]
  %v5968 = vld [vmem:[#allocation3 + $0x20] sm:$0xff]
  %v5969 = vld [vmem:[#allocation3 + $0x28] sm:$0xff]
  %v5970 = vld [vmem:[#allocation3 + $0x30] sm:$0xff]
  %v5971 = vld [vmem:[#allocation3 + $0x38] sm:$0xff]
  %v5972 = vld [vmem:[#allocation3 + $0x40] sm:$0xff]
  %v5973 = vld [vmem:[#allocation3 + $0x48] sm:$0xff]
  %v5974 = vld [vmem:[#allocation3 + $0x50] sm:$0xff]
  %v5975 = vld [vmem:[#allocation3 + $0x58] sm:$0xff]
  %v5976 = vld [vmem:[#allocation3 + $0x60] sm:$0xff]
  %v5977 = vld [vmem:[#allocation3 + $0x68] sm:$0xff]
  %v5978 = vld [vmem:[#allocation3 + $0x70] sm:$0xff]
  %v5979 = vld [vmem:[#allocation3 + $0x78] sm:$0xff]
  %v5980 = vld [vmem:[#allocation3 + $0x80] sm:$0xff]
  %v5981 = vld [vmem:[#allocation3 + $0x88] sm:$0xff]
  %v5982 = vld [vmem:[#allocation3 + $0x90] sm:$0xff]
  %v5983 = vld [vmem:[#allocation3 + $0x98] sm:$0xff]
  %v5984 = vld [vmem:[#allocation3 + $0xa0] sm:$0xff]
  %v5985 = vld [vmem:[#allocation3 + $0xa8] sm:$0xff]
  %v5986 = vld [vmem:[#allocation3 + $0xb0] sm:$0xff]
  %v5987 = vld [vmem:[#allocation3 + $0xb8] sm:$0xff]
  %v5988 = vld [vmem:[#allocation3 + $0xc0] sm:$0xff]
  %v5989 = vld [vmem:[#allocation3 + $0xc8] sm:$0xff]
  %v5990 = vld [vmem:[#allocation3 + $0xd0] sm:$0xff]
  %v5991 = vld [vmem:[#allocation3 + $0xd8] sm:$0xff]
  %v5992 = vld [vmem:[#allocation3 + $0xe0] sm:$0xff]
  %v5993 = vld [vmem:[#allocation3 + $0xe8] sm:$0xff]
  %v5994 = vld [vmem:[#allocation3 + $0xf0] sm:$0xff]
  %v5995 = vld [vmem:[#allocation3 + $0xf8] sm:$0xff]
  %v5996 = vld [vmem:[#allocation3 + $0x100] sm:$0xff]
  %v5997 = vld [vmem:[#allocation3 + $0x108] sm:$0xff]
  %v5998 = vld [vmem:[#allocation3 + $0x110] sm:$0xff]
  %v5999 = vld [vmem:[#allocation3 + $0x118] sm:$0xff]
  %v6000 = vld [vmem:[#allocation3 + $0x120] sm:$0xff]
  %v6001 = vld [vmem:[#allocation3 + $0x128] sm:$0xff]
  %v6002 = vld [vmem:[#allocation3 + $0x130] sm:$0xff]
  %v6003 = vld [vmem:[#allocation3 + $0x138] sm:$0xff]
  %v6004 = vld [vmem:[#allocation3 + $0x140] sm:$0xff]
  %v6005 = vld [vmem:[#allocation3 + $0x148] sm:$0xff]
  %v6006 = vld [vmem:[#allocation3 + $0x150] sm:$0xff]
  %v6007 = vld [vmem:[#allocation3 + $0x158] sm:$0xff]
  %v6008 = vld [vmem:[#allocation3 + $0x160] sm:$0xff]
  %v6009 = vld [vmem:[#allocation3 + $0x168] sm:$0xff]
  %v6010 = vld [vmem:[#allocation3 + $0x170] sm:$0xff]
  %v6011 = vld [vmem:[#allocation3 + $0x178] sm:$0xff]
  %v6012 = vld [vmem:[#allocation3 + $0x180] sm:$0xff]
  %v6013 = vld [vmem:[#allocation3 + $0x188] sm:$0xff]
  %v6014 = vld [vmem:[#allocation3 + $0x190] sm:$0xff]
  %v6015 = vld [vmem:[#allocation3 + $0x198] sm:$0xff]
  %v6016 = vld [vmem:[#allocation3 + $0x1a0] sm:$0xff]
  %v6017 = vld [vmem:[#allocation3 + $0x1a8] sm:$0xff]
  %v6018 = vld [vmem:[#allocation3 + $0x1b0] sm:$0xff]
  %v6019 = vld [vmem:[#allocation3 + $0x1b8] sm:$0xff]
  %v6020 = vld [vmem:[#allocation3 + $0x1c0] sm:$0xff]
  %v6021 = vld [vmem:[#allocation3 + $0x1c8] sm:$0xff]
  %v6022 = vld [vmem:[#allocation3 + $0x1d0] sm:$0xff]
  %v6023 = vld [vmem:[#allocation3 + $0x1d8] sm:$0xff]
  %v6024 = vld [vmem:[#allocation3 + $0x1e0] sm:$0xff]
  %v6025 = vld [vmem:[#allocation3 + $0x1e8] sm:$0xff]
  %v6026 = vld [vmem:[#allocation3 + $0x1f0] sm:$0xff]
  %v6027 = vld [vmem:[#allocation3 + $0x1f8] sm:$0xff]
  %s6028 = scalar_lea.vmem %s2, 896
  %v6029 = vld [vmem:[%s6028] sm:$0xff]
  %v6030 = vld [vmem:[%s6028 + $0x8] sm:$0xff]
  %v6031 = vld [vmem:[%s6028 + $0x10] sm:$0xff]
  %v6032 = vld [vmem:[%s6028 + $0x18] sm:$0xff]
  %v6033 = vld [vmem:[%s6028 + $0x20] sm:$0xff]
  %v6034 = vld [vmem:[%s6028 + $0x28] sm:$0xff]
  %v6035 = vld [vmem:[%s6028 + $0x30] sm:$0xff]
  %v6036 = vld [vmem:[%s6028 + $0x38] sm:$0xff]
  %v6037 = vld [vmem:[%s6028 + $0x40] sm:$0xff]
  %v6038 = vld [vmem:[%s6028 + $0x48] sm:$0xff]
  %v6039 = vld [vmem:[%s6028 + $0x50] sm:$0xff]
  %v6040 = vld [vmem:[%s6028 + $0x58] sm:$0xff]
  %v6041 = vld [vmem:[%s6028 + $0x60] sm:$0xff]
  %v6042 = vld [vmem:[%s6028 + $0x68] sm:$0xff]
  %v6043 = vld [vmem:[%s6028 + $0x70] sm:$0xff]
  %v6044 = vld [vmem:[%s6028 + $0x78] sm:$0xff]
  %6045 = vmatprep.subr.mxu0 0.0
  %6046 = vmatpush1.msra.mxu0 %v6044
  %6047 = vmatprep.subr.mxu0 0.0
  %6048 = vmatpush1.msra.mxu0 %v6043
  %6049 = vmatprep.subr.mxu0 0.0
  %6050 = vmatpush1.msra.mxu0 %v6042
  %6051 = vmatprep.subr.mxu0 0.0
  %6052 = vmatpush1.msra.mxu0 %v6041
  %6053 = vmatprep.subr.mxu0 0.0
  %6054 = vmatpush1.msra.mxu0 %v6040
  %6055 = vmatprep.subr.mxu0 0.0
  %6056 = vmatpush1.msra.mxu0 %v6039
  %6057 = vmatprep.subr.mxu0 0.0
  %6058 = vmatpush1.msra.mxu0 %v6038
  %6059 = vmatprep.subr.mxu0 0.0
  %6060 = vmatpush1.msra.mxu0 %v6037
  %6061 = vmatprep.subr.mxu0 0.0
  %6062 = vmatpush1.msra.mxu0 %v6036
  %6063 = vmatprep.subr.mxu0 0.0
  %6064 = vmatpush1.msra.mxu0 %v6035
  %6065 = vmatprep.subr.mxu0 0.0
  %6066 = vmatpush1.msra.mxu0 %v6034
  %6067 = vmatprep.subr.mxu0 0.0
  %6068 = vmatpush1.msra.mxu0 %v6033
  %6069 = vmatprep.subr.mxu0 0.0
  %6070 = vmatpush1.msra.mxu0 %v6032
  %6071 = vmatprep.subr.mxu0 0.0
  %6072 = vmatpush1.msra.mxu0 %v6031
  %6073 = vmatprep.subr.mxu0 0.0
  %6074 = vmatpush1.msra.mxu0 %v6030
  %6075 = vmatprep.subr.mxu0 0.0
  %6076 = vmatpush1.msra.mxu0 %v6029
  %6077 = vmatprep.subr.mxu0 0.0
  %6078 = vmatpush2.msra.mxu0 0.0
  %6079 = vmatprep.subr.mxu0 0.0
  %6080 = vmatpush2.msra.mxu0 0.0
  %6081 = vmatprep.subr.mxu0 0.0
  %6082 = vmatpush2.msra.mxu0 0.0
  %6083 = vmatprep.subr.mxu0 0.0
  %6084 = vmatpush2.msra.mxu0 0.0
  %6085 = vmatprep.subr.mxu0 0.0
  %6086 = vmatpush2.msra.mxu0 0.0
  %6087 = vmatprep.subr.mxu0 0.0
  %6088 = vmatpush2.msra.mxu0 0.0
  %6089 = vmatprep.subr.mxu0 0.0
  %6090 = vmatpush2.msra.mxu0 0.0
  %6091 = vmatprep.subr.mxu0 0.0
  %6092 = vmatpush2.msra.mxu0 0.0
  %6093 = vmatprep.subr.mxu0 0.0
  %6094 = vmatpush2.msra.mxu0 0.0
  %6095 = vmatprep.subr.mxu0 0.0
  %6096 = vmatpush2.msra.mxu0 0.0
  %6097 = vmatprep.subr.mxu0 0.0
  %6098 = vmatpush2.msra.mxu0 0.0
  %6099 = vmatprep.subr.mxu0 0.0
  %6100 = vmatpush2.msra.mxu0 0.0
  %6101 = vmatprep.subr.mxu0 0.0
  %6102 = vmatpush2.msra.mxu0 0.0
  %6103 = vmatprep.subr.mxu0 0.0
  %6104 = vmatpush2.msra.mxu0 0.0
  %6105 = vmatprep.subr.mxu0 0.0
  %6106 = vmatpush2.msra.mxu0 0.0
  %6107 = vmatprep.subr.mxu0 0.0
  %6108 = vmatpush2.msra.mxu0 0.0
  %6109 = vmatprep.mubr.f32.mxu0 0.0
  %6110 = vmatmul.mubr.f32.gmra.mxu0 %v5900
  %v6111 = vpop.f32.mrf.mxu0
  %v6112 = vadd.f32 0.0, %v6111
  %v6113 = vpop.f32.mrf.mxu0
  %6114 = vmatprep.mubr.f32.mxu0 0.0
  %6115 = vmatmul.mubr.f32.gmra.mxu0 %v5901
  %v6116 = vpop.f32.mrf.mxu0
  %v6117 = vadd.f32 0.0, %v6116
  %v6118 = vpop.f32.mrf.mxu0
  %6119 = vmatprep.mubr.f32.mxu0 0.0
  %6120 = vmatmul.mubr.f32.gmra.mxu0 %v5902
  %v6121 = vpop.f32.mrf.mxu0
  %v6122 = vadd.f32 0.0, %v6121
  %v6123 = vpop.f32.mrf.mxu0
  %6124 = vmatprep.mubr.f32.mxu0 0.0
  %6125 = vmatmul.mubr.f32.gmra.mxu0 %v5903
  %v6126 = vpop.f32.mrf.mxu0
  %v6127 = vadd.f32 0.0, %v6126
  %v6128 = vpop.f32.mrf.mxu0
  %6129 = vmatprep.mubr.f32.mxu0 0.0
  %6130 = vmatmul.mubr.f32.gmra.mxu0 %v5904
  %v6131 = vpop.f32.mrf.mxu0
  %v6132 = vadd.f32 0.0, %v6131
  %v6133 = vpop.f32.mrf.mxu0
  %6134 = vmatprep.mubr.f32.mxu0 0.0
  %6135 = vmatmul.mubr.f32.gmra.mxu0 %v5905
  %v6136 = vpop.f32.mrf.mxu0
  %v6137 = vadd.f32 0.0, %v6136
  %v6138 = vpop.f32.mrf.mxu0
  %6139 = vmatprep.mubr.f32.mxu0 0.0
  %6140 = vmatmul.mubr.f32.gmra.mxu0 %v5906
  %v6141 = vpop.f32.mrf.mxu0
  %v6142 = vadd.f32 0.0, %v6141
  %v6143 = vpop.f32.mrf.mxu0
  %6144 = vmatprep.mubr.f32.mxu0 0.0
  %6145 = vmatmul.mubr.f32.gmra.mxu0 %v5907
  %v6146 = vpop.f32.mrf.mxu0
  %v6147 = vadd.f32 0.0, %v6146
  %v6148 = vpop.f32.mrf.mxu0
  %6149 = vmatprep.mubr.f32.mxu0 0.0
  %6150 = vmatmul.mubr.f32.gmra.mxu0 %v5908
  %v6151 = vpop.f32.mrf.mxu0
  %v6152 = vadd.f32 0.0, %v6151
  %v6153 = vpop.f32.mrf.mxu0
  %6154 = vmatprep.mubr.f32.mxu0 0.0
  %6155 = vmatmul.mubr.f32.gmra.mxu0 %v5909
  %v6156 = vpop.f32.mrf.mxu0
  %v6157 = vadd.f32 0.0, %v6156
  %v6158 = vpop.f32.mrf.mxu0
  %6159 = vmatprep.mubr.f32.mxu0 0.0
  %6160 = vmatmul.mubr.f32.gmra.mxu0 %v5910
  %v6161 = vpop.f32.mrf.mxu0
  %v6162 = vadd.f32 0.0, %v6161
  %v6163 = vpop.f32.mrf.mxu0
  %6164 = vmatprep.mubr.f32.mxu0 0.0
  %6165 = vmatmul.mubr.f32.gmra.mxu0 %v5911
  %v6166 = vpop.f32.mrf.mxu0
  %v6167 = vadd.f32 0.0, %v6166
  %v6168 = vpop.f32.mrf.mxu0
  %6169 = vmatprep.mubr.f32.mxu0 0.0
  %6170 = vmatmul.mubr.f32.gmra.mxu0 %v5912
  %v6171 = vpop.f32.mrf.mxu0
  %v6172 = vadd.f32 0.0, %v6171
  %v6173 = vpop.f32.mrf.mxu0
  %6174 = vmatprep.mubr.f32.mxu0 0.0
  %6175 = vmatmul.mubr.f32.gmra.mxu0 %v5913
  %v6176 = vpop.f32.mrf.mxu0
  %v6177 = vadd.f32 0.0, %v6176
  %v6178 = vpop.f32.mrf.mxu0
  %6179 = vmatprep.mubr.f32.mxu0 0.0
  %6180 = vmatmul.mubr.f32.gmra.mxu0 %v5914
  %v6181 = vpop.f32.mrf.mxu0
  %v6182 = vadd.f32 0.0, %v6181
  %v6183 = vpop.f32.mrf.mxu0
  %6184 = vmatprep.mubr.f32.mxu0 0.0
  %6185 = vmatmul.mubr.f32.gmra.mxu0 %v5915
  %v6186 = vpop.f32.mrf.mxu0
  %v6187 = vadd.f32 0.0, %v6186
  %v6188 = vpop.f32.mrf.mxu0
  %6189 = vmatprep.mubr.f32.mxu0 0.0
  %6190 = vmatmul.mubr.f32.gmra.mxu0 %v5916
  %v6191 = vpop.f32.mrf.mxu0
  %v6192 = vadd.f32 0.0, %v6191
  %v6193 = vpop.f32.mrf.mxu0
  %6194 = vmatprep.mubr.f32.mxu0 0.0
  %6195 = vmatmul.mubr.f32.gmra.mxu0 %v5917
  %v6196 = vpop.f32.mrf.mxu0
  %v6197 = vadd.f32 0.0, %v6196
  %v6198 = vpop.f32.mrf.mxu0
  %6199 = vmatprep.mubr.f32.mxu0 0.0
  %6200 = vmatmul.mubr.f32.gmra.mxu0 %v5918
  %v6201 = vpop.f32.mrf.mxu0
  %v6202 = vadd.f32 0.0, %v6201
  %v6203 = vpop.f32.mrf.mxu0
  %6204 = vmatprep.mubr.f32.mxu0 0.0
  %6205 = vmatmul.mubr.f32.gmra.mxu0 %v5919
  %v6206 = vpop.f32.mrf.mxu0
  %v6207 = vadd.f32 0.0, %v6206
  %v6208 = vpop.f32.mrf.mxu0
  %6209 = vmatprep.mubr.f32.mxu0 0.0
  %6210 = vmatmul.mubr.f32.gmra.mxu0 %v5920
  %v6211 = vpop.f32.mrf.mxu0
  %v6212 = vadd.f32 0.0, %v6211
  %v6213 = vpop.f32.mrf.mxu0
  %6214 = vmatprep.mubr.f32.mxu0 0.0
  %6215 = vmatmul.mubr.f32.gmra.mxu0 %v5921
  %v6216 = vpop.f32.mrf.mxu0
  %v6217 = vadd.f32 0.0, %v6216
  %v6218 = vpop.f32.mrf.mxu0
  %6219 = vmatprep.mubr.f32.mxu0 0.0
  %6220 = vmatmul.mubr.f32.gmra.mxu0 %v5922
  %v6221 = vpop.f32.mrf.mxu0
  %v6222 = vadd.f32 0.0, %v6221
  %v6223 = vpop.f32.mrf.mxu0
  %6224 = vmatprep.mubr.f32.mxu0 0.0
  %6225 = vmatmul.mubr.f32.gmra.mxu0 %v5923
  %v6226 = vpop.f32.mrf.mxu0
  %v6227 = vadd.f32 0.0, %v6226
  %v6228 = vpop.f32.mrf.mxu0
  %6229 = vmatprep.mubr.f32.mxu0 0.0
  %6230 = vmatmul.mubr.f32.gmra.mxu0 %v5924
  %v6231 = vpop.f32.mrf.mxu0
  %v6232 = vadd.f32 0.0, %v6231
  %v6233 = vpop.f32.mrf.mxu0
  %6234 = vmatprep.mubr.f32.mxu0 0.0
  %6235 = vmatmul.mubr.f32.gmra.mxu0 %v5925
  %v6236 = vpop.f32.mrf.mxu0
  %v6237 = vadd.f32 0.0, %v6236
  %v6238 = vpop.f32.mrf.mxu0
  %6239 = vmatprep.mubr.f32.mxu0 0.0
  %6240 = vmatmul.mubr.f32.gmra.mxu0 %v5926
  %v6241 = vpop.f32.mrf.mxu0
  %v6242 = vadd.f32 0.0, %v6241
  %v6243 = vpop.f32.mrf.mxu0
  %6244 = vmatprep.mubr.f32.mxu0 0.0
  %6245 = vmatmul.mubr.f32.gmra.mxu0 %v5927
  %v6246 = vpop.f32.mrf.mxu0
  %v6247 = vadd.f32 0.0, %v6246
  %v6248 = vpop.f32.mrf.mxu0
  %6249 = vmatprep.mubr.f32.mxu0 0.0
  %6250 = vmatmul.mubr.f32.gmra.mxu0 %v5928
  %v6251 = vpop.f32.mrf.mxu0
  %v6252 = vadd.f32 0.0, %v6251
  %v6253 = vpop.f32.mrf.mxu0
  %6254 = vmatprep.mubr.f32.mxu0 0.0
  %6255 = vmatmul.mubr.f32.gmra.mxu0 %v5929
  %v6256 = vpop.f32.mrf.mxu0
  %v6257 = vadd.f32 0.0, %v6256
  %v6258 = vpop.f32.mrf.mxu0
  %6259 = vmatprep.mubr.f32.mxu0 0.0
  %6260 = vmatmul.mubr.f32.gmra.mxu0 %v5930
  %v6261 = vpop.f32.mrf.mxu0
  %v6262 = vadd.f32 0.0, %v6261
  %v6263 = vpop.f32.mrf.mxu0
  %6264 = vmatprep.mubr.f32.mxu0 0.0
  %6265 = vmatmul.mubr.f32.gmra.mxu0 %v5931
  %v6266 = vpop.f32.mrf.mxu0
  %v6267 = vadd.f32 0.0, %v6266
  %v6268 = vpop.f32.mrf.mxu0
  %6269 = vmatprep.mubr.f32.mxu0 0.0
  %6270 = vmatmul.mubr.f32.gmra.mxu0 %v5932
  %v6271 = vpop.f32.mrf.mxu0
  %v6272 = vadd.f32 0.0, %v6271
  %v6273 = vpop.f32.mrf.mxu0
  %6274 = vmatprep.mubr.f32.mxu0 0.0
  %6275 = vmatmul.mubr.f32.gmra.mxu0 %v5933
  %v6276 = vpop.f32.mrf.mxu0
  %v6277 = vadd.f32 0.0, %v6276
  %v6278 = vpop.f32.mrf.mxu0
  %6279 = vmatprep.mubr.f32.mxu0 0.0
  %6280 = vmatmul.mubr.f32.gmra.mxu0 %v5934
  %v6281 = vpop.f32.mrf.mxu0
  %v6282 = vadd.f32 0.0, %v6281
  %v6283 = vpop.f32.mrf.mxu0
  %6284 = vmatprep.mubr.f32.mxu0 0.0
  %6285 = vmatmul.mubr.f32.gmra.mxu0 %v5935
  %v6286 = vpop.f32.mrf.mxu0
  %v6287 = vadd.f32 0.0, %v6286
  %v6288 = vpop.f32.mrf.mxu0
  %6289 = vmatprep.mubr.f32.mxu0 0.0
  %6290 = vmatmul.mubr.f32.gmra.mxu0 %v5936
  %v6291 = vpop.f32.mrf.mxu0
  %v6292 = vadd.f32 0.0, %v6291
  %v6293 = vpop.f32.mrf.mxu0
  %6294 = vmatprep.mubr.f32.mxu0 0.0
  %6295 = vmatmul.mubr.f32.gmra.mxu0 %v5937
  %v6296 = vpop.f32.mrf.mxu0
  %v6297 = vadd.f32 0.0, %v6296
  %v6298 = vpop.f32.mrf.mxu0
  %6299 = vmatprep.mubr.f32.mxu0 0.0
  %6300 = vmatmul.mubr.f32.gmra.mxu0 %v5938
  %v6301 = vpop.f32.mrf.mxu0
  %v6302 = vadd.f32 0.0, %v6301
  %v6303 = vpop.f32.mrf.mxu0
  %6304 = vmatprep.mubr.f32.mxu0 0.0
  %6305 = vmatmul.mubr.f32.gmra.mxu0 %v5939
  %v6306 = vpop.f32.mrf.mxu0
  %v6307 = vadd.f32 0.0, %v6306
  %v6308 = vpop.f32.mrf.mxu0
  %6309 = vmatprep.mubr.f32.mxu0 0.0
  %6310 = vmatmul.mubr.f32.gmra.mxu0 %v5940
  %v6311 = vpop.f32.mrf.mxu0
  %v6312 = vadd.f32 0.0, %v6311
  %v6313 = vpop.f32.mrf.mxu0
  %6314 = vmatprep.mubr.f32.mxu0 0.0
  %6315 = vmatmul.mubr.f32.gmra.mxu0 %v5941
  %v6316 = vpop.f32.mrf.mxu0
  %v6317 = vadd.f32 0.0, %v6316
  %v6318 = vpop.f32.mrf.mxu0
  %6319 = vmatprep.mubr.f32.mxu0 0.0
  %6320 = vmatmul.mubr.f32.gmra.mxu0 %v5942
  %v6321 = vpop.f32.mrf.mxu0
  %v6322 = vadd.f32 0.0, %v6321
  %v6323 = vpop.f32.mrf.mxu0
  %6324 = vmatprep.mubr.f32.mxu0 0.0
  %6325 = vmatmul.mubr.f32.gmra.mxu0 %v5943
  %v6326 = vpop.f32.mrf.mxu0
  %v6327 = vadd.f32 0.0, %v6326
  %v6328 = vpop.f32.mrf.mxu0
  %6329 = vmatprep.mubr.f32.mxu0 0.0
  %6330 = vmatmul.mubr.f32.gmra.mxu0 %v5944
  %v6331 = vpop.f32.mrf.mxu0
  %v6332 = vadd.f32 0.0, %v6331
  %v6333 = vpop.f32.mrf.mxu0
  %6334 = vmatprep.mubr.f32.mxu0 0.0
  %6335 = vmatmul.mubr.f32.gmra.mxu0 %v5945
  %v6336 = vpop.f32.mrf.mxu0
  %v6337 = vadd.f32 0.0, %v6336
  %v6338 = vpop.f32.mrf.mxu0
  %6339 = vmatprep.mubr.f32.mxu0 0.0
  %6340 = vmatmul.mubr.f32.gmra.mxu0 %v5946
  %v6341 = vpop.f32.mrf.mxu0
  %v6342 = vadd.f32 0.0, %v6341
  %v6343 = vpop.f32.mrf.mxu0
  %6344 = vmatprep.mubr.f32.mxu0 0.0
  %6345 = vmatmul.mubr.f32.gmra.mxu0 %v5947
  %v6346 = vpop.f32.mrf.mxu0
  %v6347 = vadd.f32 0.0, %v6346
  %v6348 = vpop.f32.mrf.mxu0
  %6349 = vmatprep.mubr.f32.mxu0 0.0
  %6350 = vmatmul.mubr.f32.gmra.mxu0 %v5948
  %v6351 = vpop.f32.mrf.mxu0
  %v6352 = vadd.f32 0.0, %v6351
  %v6353 = vpop.f32.mrf.mxu0
  %6354 = vmatprep.mubr.f32.mxu0 0.0
  %6355 = vmatmul.mubr.f32.gmra.mxu0 %v5949
  %v6356 = vpop.f32.mrf.mxu0
  %v6357 = vadd.f32 0.0, %v6356
  %v6358 = vpop.f32.mrf.mxu0
  %6359 = vmatprep.mubr.f32.mxu0 0.0
  %6360 = vmatmul.mubr.f32.gmra.mxu0 %v5950
  %v6361 = vpop.f32.mrf.mxu0
  %v6362 = vadd.f32 0.0, %v6361
  %v6363 = vpop.f32.mrf.mxu0
  %6364 = vmatprep.mubr.f32.mxu0 0.0
  %6365 = vmatmul.mubr.f32.gmra.mxu0 %v5951
  %v6366 = vpop.f32.mrf.mxu0
  %v6367 = vadd.f32 0.0, %v6366
  %v6368 = vpop.f32.mrf.mxu0
  %6369 = vmatprep.mubr.f32.mxu0 0.0
  %6370 = vmatmul.mubr.f32.gmra.mxu0 %v5952
  %v6371 = vpop.f32.mrf.mxu0
  %v6372 = vadd.f32 0.0, %v6371
  %v6373 = vpop.f32.mrf.mxu0
  %6374 = vmatprep.mubr.f32.mxu0 0.0
  %6375 = vmatmul.mubr.f32.gmra.mxu0 %v5953
  %v6376 = vpop.f32.mrf.mxu0
  %v6377 = vadd.f32 0.0, %v6376
  %v6378 = vpop.f32.mrf.mxu0
  %6379 = vmatprep.mubr.f32.mxu0 0.0
  %6380 = vmatmul.mubr.f32.gmra.mxu0 %v5954
  %v6381 = vpop.f32.mrf.mxu0
  %v6382 = vadd.f32 0.0, %v6381
  %v6383 = vpop.f32.mrf.mxu0
  %6384 = vmatprep.mubr.f32.mxu0 0.0
  %6385 = vmatmul.mubr.f32.gmra.mxu0 %v5955
  %v6386 = vpop.f32.mrf.mxu0
  %v6387 = vadd.f32 0.0, %v6386
  %v6388 = vpop.f32.mrf.mxu0
  %6389 = vmatprep.mubr.f32.mxu0 0.0
  %6390 = vmatmul.mubr.f32.gmra.mxu0 %v5956
  %v6391 = vpop.f32.mrf.mxu0
  %v6392 = vadd.f32 0.0, %v6391
  %v6393 = vpop.f32.mrf.mxu0
  %6394 = vmatprep.mubr.f32.mxu0 0.0
  %6395 = vmatmul.mubr.f32.gmra.mxu0 %v5957
  %v6396 = vpop.f32.mrf.mxu0
  %v6397 = vadd.f32 0.0, %v6396
  %v6398 = vpop.f32.mrf.mxu0
  %6399 = vmatprep.mubr.f32.mxu0 0.0
  %6400 = vmatmul.mubr.f32.gmra.mxu0 %v5958
  %v6401 = vpop.f32.mrf.mxu0
  %v6402 = vadd.f32 0.0, %v6401
  %v6403 = vpop.f32.mrf.mxu0
  %6404 = vmatprep.mubr.f32.mxu0 0.0
  %6405 = vmatmul.mubr.f32.gmra.mxu0 %v5959
  %v6406 = vpop.f32.mrf.mxu0
  %v6407 = vadd.f32 0.0, %v6406
  %v6408 = vpop.f32.mrf.mxu0
  %6409 = vmatprep.mubr.f32.mxu0 0.0
  %6410 = vmatmul.mubr.f32.gmra.mxu0 %v5960
  %v6411 = vpop.f32.mrf.mxu0
  %v6412 = vadd.f32 0.0, %v6411
  %v6413 = vpop.f32.mrf.mxu0
  %6414 = vmatprep.mubr.f32.mxu0 0.0
  %6415 = vmatmul.mubr.f32.gmra.mxu0 %v5961
  %v6416 = vpop.f32.mrf.mxu0
  %v6417 = vadd.f32 0.0, %v6416
  %v6418 = vpop.f32.mrf.mxu0
  %6419 = vmatprep.mubr.f32.mxu0 0.0
  %6420 = vmatmul.mubr.f32.gmra.mxu0 %v5962
  %v6421 = vpop.f32.mrf.mxu0
  %v6422 = vadd.f32 0.0, %v6421
  %v6423 = vpop.f32.mrf.mxu0
  %6424 = vmatprep.mubr.f32.mxu0 0.0
  %6425 = vmatmul.mubr.f32.gmra.mxu0 %v5963
  %v6426 = vpop.f32.mrf.mxu0
  %v6427 = vadd.f32 0.0, %v6426
  %v6428 = vpop.f32.mrf.mxu0
  %6429 = vdwg.mxu0
  %v6430 = vadd.f32 %v5964, %v6112
  %v6431 = vadd.f32 %v5965, %v6117
  %v6432 = vadd.f32 %v5966, %v6122
  %v6433 = vadd.f32 %v5967, %v6127
  %v6434 = vadd.f32 %v5968, %v6132
  %v6435 = vadd.f32 %v5969, %v6137
  %v6436 = vadd.f32 %v5970, %v6142
  %v6437 = vadd.f32 %v5971, %v6147
  %v6438 = vadd.f32 %v5972, %v6152
  %v6439 = vadd.f32 %v5973, %v6157
  %v6440 = vadd.f32 %v5974, %v6162
  %v6441 = vadd.f32 %v5975, %v6167
  %v6442 = vadd.f32 %v5976, %v6172
  %v6443 = vadd.f32 %v5977, %v6177
  %v6444 = vadd.f32 %v5978, %v6182
  %v6445 = vadd.f32 %v5979, %v6187
  %v6446 = vadd.f32 %v5980, %v6192
  %v6447 = vadd.f32 %v5981, %v6197
  %v6448 = vadd.f32 %v5982, %v6202
  %v6449 = vadd.f32 %v5983, %v6207
  %v6450 = vadd.f32 %v5984, %v6212
  %v6451 = vadd.f32 %v5985, %v6217
  %v6452 = vadd.f32 %v5986, %v6222
  %v6453 = vadd.f32 %v5987, %v6227
  %v6454 = vadd.f32 %v5988, %v6232
  %v6455 = vadd.f32 %v5989, %v6237
  %v6456 = vadd.f32 %v5990, %v6242
  %v6457 = vadd.f32 %v5991, %v6247
  %v6458 = vadd.f32 %v5992, %v6252
  %v6459 = vadd.f32 %v5993, %v6257
  %v6460 = vadd.f32 %v5994, %v6262
  %v6461 = vadd.f32 %v5995, %v6267
  %v6462 = vadd.f32 %v5996, %v6272
  %v6463 = vadd.f32 %v5997, %v6277
  %v6464 = vadd.f32 %v5998, %v6282
  %v6465 = vadd.f32 %v5999, %v6287
  %v6466 = vadd.f32 %v6000, %v6292
  %v6467 = vadd.f32 %v6001, %v6297
  %v6468 = vadd.f32 %v6002, %v6302
  %v6469 = vadd.f32 %v6003, %v6307
  %v6470 = vadd.f32 %v6004, %v6312
  %v6471 = vadd.f32 %v6005, %v6317
  %v6472 = vadd.f32 %v6006, %v6322
  %v6473 = vadd.f32 %v6007, %v6327
  %v6474 = vadd.f32 %v6008, %v6332
  %v6475 = vadd.f32 %v6009, %v6337
  %v6476 = vadd.f32 %v6010, %v6342
  %v6477 = vadd.f32 %v6011, %v6347
  %v6478 = vadd.f32 %v6012, %v6352
  %v6479 = vadd.f32 %v6013, %v6357
  %v6480 = vadd.f32 %v6014, %v6362
  %v6481 = vadd.f32 %v6015, %v6367
  %v6482 = vadd.f32 %v6016, %v6372
  %v6483 = vadd.f32 %v6017, %v6377
  %v6484 = vadd.f32 %v6018, %v6382
  %v6485 = vadd.f32 %v6019, %v6387
  %v6486 = vadd.f32 %v6020, %v6392
  %v6487 = vadd.f32 %v6021, %v6397
  %v6488 = vadd.f32 %v6022, %v6402
  %v6489 = vadd.f32 %v6023, %v6407
  %v6490 = vadd.f32 %v6024, %v6412
  %v6491 = vadd.f32 %v6025, %v6417
  %v6492 = vadd.f32 %v6026, %v6422
  %v6493 = vadd.f32 %v6027, %v6427
  %6494 = vst [vmem:[#allocation3] sm:$0xff] %v6430
  %6495 = vst [vmem:[#allocation3 + $0x8] sm:$0xff] %v6431
  %6496 = vst [vmem:[#allocation3 + $0x10] sm:$0xff] %v6432
  %6497 = vst [vmem:[#allocation3 + $0x18] sm:$0xff] %v6433
  %6498 = vst [vmem:[#allocation3 + $0x20] sm:$0xff] %v6434
  %6499 = vst [vmem:[#allocation3 + $0x28] sm:$0xff] %v6435
  %6500 = vst [vmem:[#allocation3 + $0x30] sm:$0xff] %v6436
  %6501 = vst [vmem:[#allocation3 + $0x38] sm:$0xff] %v6437
  %6502 = vst [vmem:[#allocation3 + $0x40] sm:$0xff] %v6438
  %6503 = vst [vmem:[#allocation3 + $0x48] sm:$0xff] %v6439
  %6504 = vst [vmem:[#allocation3 + $0x50] sm:$0xff] %v6440
  %6505 = vst [vmem:[#allocation3 + $0x58] sm:$0xff] %v6441
  %6506 = vst [vmem:[#allocation3 + $0x60] sm:$0xff] %v6442
  %6507 = vst [vmem:[#allocation3 + $0x68] sm:$0xff] %v6443
  %6508 = vst [vmem:[#allocation3 + $0x70] sm:$0xff] %v6444
  %6509 = vst [vmem:[#allocation3 + $0x78] sm:$0xff] %v6445
  %6510 = vst [vmem:[#allocation3 + $0x80] sm:$0xff] %v6446
  %6511 = vst [vmem:[#allocation3 + $0x88] sm:$0xff] %v6447
  %6512 = vst [vmem:[#allocation3 + $0x90] sm:$0xff] %v6448
  %6513 = vst [vmem:[#allocation3 + $0x98] sm:$0xff] %v6449
  %6514 = vst [vmem:[#allocation3 + $0xa0] sm:$0xff] %v6450
  %6515 = vst [vmem:[#allocation3 + $0xa8] sm:$0xff] %v6451
  %6516 = vst [vmem:[#allocation3 + $0xb0] sm:$0xff] %v6452
  %6517 = vst [vmem:[#allocation3 + $0xb8] sm:$0xff] %v6453
  %6518 = vst [vmem:[#allocation3 + $0xc0] sm:$0xff] %v6454
  %6519 = vst [vmem:[#allocation3 + $0xc8] sm:$0xff] %v6455
  %6520 = vst [vmem:[#allocation3 + $0xd0] sm:$0xff] %v6456
  %6521 = vst [vmem:[#allocation3 + $0xd8] sm:$0xff] %v6457
  %6522 = vst [vmem:[#allocation3 + $0xe0] sm:$0xff] %v6458
  %6523 = vst [vmem:[#allocation3 + $0xe8] sm:$0xff] %v6459
  %6524 = vst [vmem:[#allocation3 + $0xf0] sm:$0xff] %v6460
  %6525 = vst [vmem:[#allocation3 + $0xf8] sm:$0xff] %v6461
  %6526 = vst [vmem:[#allocation3 + $0x100] sm:$0xff] %v6462
  %6527 = vst [vmem:[#allocation3 + $0x108] sm:$0xff] %v6463
  %6528 = vst [vmem:[#allocation3 + $0x110] sm:$0xff] %v6464
  %6529 = vst [vmem:[#allocation3 + $0x118] sm:$0xff] %v6465
  %6530 = vst [vmem:[#allocation3 + $0x120] sm:$0xff] %v6466
  %6531 = vst [vmem:[#allocation3 + $0x128] sm:$0xff] %v6467
  %6532 = vst [vmem:[#allocation3 + $0x130] sm:$0xff] %v6468
  %6533 = vst [vmem:[#allocation3 + $0x138] sm:$0xff] %v6469
  %6534 = vst [vmem:[#allocation3 + $0x140] sm:$0xff] %v6470
  %6535 = vst [vmem:[#allocation3 + $0x148] sm:$0xff] %v6471
  %6536 = vst [vmem:[#allocation3 + $0x150] sm:$0xff] %v6472
  %6537 = vst [vmem:[#allocation3 + $0x158] sm:$0xff] %v6473
  %6538 = vst [vmem:[#allocation3 + $0x160] sm:$0xff] %v6474
  %6539 = vst [vmem:[#allocation3 + $0x168] sm:$0xff] %v6475
  %6540 = vst [vmem:[#allocation3 + $0x170] sm:$0xff] %v6476
  %6541 = vst [vmem:[#allocation3 + $0x178] sm:$0xff] %v6477
  %6542 = vst [vmem:[#allocation3 + $0x180] sm:$0xff] %v6478
  %6543 = vst [vmem:[#allocation3 + $0x188] sm:$0xff] %v6479
  %6544 = vst [vmem:[#allocation3 + $0x190] sm:$0xff] %v6480
  %6545 = vst [vmem:[#allocation3 + $0x198] sm:$0xff] %v6481
  %6546 = vst [vmem:[#allocation3 + $0x1a0] sm:$0xff] %v6482
  %6547 = vst [vmem:[#allocation3 + $0x1a8] sm:$0xff] %v6483
  %6548 = vst [vmem:[#allocation3 + $0x1b0] sm:$0xff] %v6484
  %6549 = vst [vmem:[#allocation3 + $0x1b8] sm:$0xff] %v6485
  %6550 = vst [vmem:[#allocation3 + $0x1c0] sm:$0xff] %v6486
  %6551 = vst [vmem:[#allocation3 + $0x1c8] sm:$0xff] %v6487
  %6552 = vst [vmem:[#allocation3 + $0x1d0] sm:$0xff] %v6488
  %6553 = vst [vmem:[#allocation3 + $0x1d8] sm:$0xff] %v6489
  %6554 = vst [vmem:[#allocation3 + $0x1e0] sm:$0xff] %v6490
  %6555 = vst [vmem:[#allocation3 + $0x1e8] sm:$0xff] %v6491
  %6556 = vst [vmem:[#allocation3 + $0x1f0] sm:$0xff] %v6492
  %6557 = vst [vmem:[#allocation3 + $0x1f8] sm:$0xff] %v6493
  %v6558 = vld [vmem:[%s5241 + $0x9] sm:$0xff]
  %v6559 = vld [vmem:[%s5241 + $0x11] sm:$0xff]
  %v6560 = vld [vmem:[%s5241 + $0x29] sm:$0xff]
  %v6561 = vld [vmem:[%s5241 + $0x31] sm:$0xff]
  %v6562 = vld [vmem:[%s5241 + $0x49] sm:$0xff]
  %v6563 = vld [vmem:[%s5241 + $0x51] sm:$0xff]
  %v6564 = vld [vmem:[%s5241 + $0x69] sm:$0xff]
  %v6565 = vld [vmem:[%s5241 + $0x71] sm:$0xff]
  %v6566 = vld [vmem:[%s5241 + $0x89] sm:$0xff]
  %v6567 = vld [vmem:[%s5241 + $0x91] sm:$0xff]
  %v6568 = vld [vmem:[%s5241 + $0xa9] sm:$0xff]
  %v6569 = vld [vmem:[%s5241 + $0xb1] sm:$0xff]
  %v6570 = vld [vmem:[%s5241 + $0xc9] sm:$0xff]
  %v6571 = vld [vmem:[%s5241 + $0xd1] sm:$0xff]
  %v6572 = vld [vmem:[%s5241 + $0xe9] sm:$0xff]
  %v6573 = vld [vmem:[%s5241 + $0xf1] sm:$0xff]
  %v6574 = vld [vmem:[%s5241 + $0x109] sm:$0xff]
  %v6575 = vld [vmem:[%s5241 + $0x111] sm:$0xff]
  %v6576 = vld [vmem:[%s5241 + $0x129] sm:$0xff]
  %v6577 = vld [vmem:[%s5241 + $0x131] sm:$0xff]
  %v6578 = vld [vmem:[%s5241 + $0x149] sm:$0xff]
  %v6579 = vld [vmem:[%s5241 + $0x151] sm:$0xff]
  %v6580 = vld [vmem:[%s5241 + $0x169] sm:$0xff]
  %v6581 = vld [vmem:[%s5241 + $0x171] sm:$0xff]
  %v6582 = vld [vmem:[%s5241 + $0x189] sm:$0xff]
  %v6583 = vld [vmem:[%s5241 + $0x191] sm:$0xff]
  %v6584 = vld [vmem:[%s5241 + $0x1a9] sm:$0xff]
  %v6585 = vld [vmem:[%s5241 + $0x1b1] sm:$0xff]
  %v6586 = vld [vmem:[%s5241 + $0x1c9] sm:$0xff]
  %v6587 = vld [vmem:[%s5241 + $0x1d1] sm:$0xff]
  %v6588 = vld [vmem:[%s5241 + $0x1e9] sm:$0xff]
  %v6589 = vld [vmem:[%s5241 + $0x1f1] sm:$0xff]
  %v6590 = vld [vmem:[%s5241 + $0x249] sm:$0xff]
  %v6591 = vld [vmem:[%s5241 + $0x251] sm:$0xff]
  %v6592 = vld [vmem:[%s5241 + $0x269] sm:$0xff]
  %v6593 = vld [vmem:[%s5241 + $0x271] sm:$0xff]
  %v6594 = vld [vmem:[%s5241 + $0x289] sm:$0xff]
  %v6595 = vld [vmem:[%s5241 + $0x291] sm:$0xff]
  %v6596 = vld [vmem:[%s5241 + $0x2a9] sm:$0xff]
  %v6597 = vld [vmem:[%s5241 + $0x2b1] sm:$0xff]
  %v6598 = vld [vmem:[%s5241 + $0x2c9] sm:$0xff]
  %v6599 = vld [vmem:[%s5241 + $0x2d1] sm:$0xff]
  %v6600 = vld [vmem:[%s5241 + $0x2e9] sm:$0xff]
  %v6601 = vld [vmem:[%s5241 + $0x2f1] sm:$0xff]
  %v6602 = vld [vmem:[%s5241 + $0x309] sm:$0xff]
  %v6603 = vld [vmem:[%s5241 + $0x311] sm:$0xff]
  %v6604 = vld [vmem:[%s5241 + $0x329] sm:$0xff]
  %v6605 = vld [vmem:[%s5241 + $0x331] sm:$0xff]
  %v6606 = vld [vmem:[%s5241 + $0x349] sm:$0xff]
  %v6607 = vld [vmem:[%s5241 + $0x351] sm:$0xff]
  %v6608 = vld [vmem:[%s5241 + $0x369] sm:$0xff]
  %v6609 = vld [vmem:[%s5241 + $0x371] sm:$0xff]
  %v6610 = vld [vmem:[%s5241 + $0x389] sm:$0xff]
  %v6611 = vld [vmem:[%s5241 + $0x391] sm:$0xff]
  %v6612 = vld [vmem:[%s5241 + $0x3a9] sm:$0xff]
  %v6613 = vld [vmem:[%s5241 + $0x3b1] sm:$0xff]
  %v6614 = vld [vmem:[%s5241 + $0x3c9] sm:$0xff]
  %v6615 = vld [vmem:[%s5241 + $0x3d1] sm:$0xff]
  %v6616 = vld [vmem:[%s5241 + $0x3e9] sm:$0xff]
  %v6617 = vld [vmem:[%s5241 + $0x3f1] sm:$0xff]
  %v6618 = vld [vmem:[%s5241 + $0x409] sm:$0xff]
  %v6619 = vld [vmem:[%s5241 + $0x411] sm:$0xff]
  %v6620 = vld [vmem:[%s5241 + $0x429] sm:$0xff]
  %v6621 = vld [vmem:[%s5241 + $0x431] sm:$0xff]
  %v6622 = vld [vmem:[#allocation3] sm:$0xff]
  %v6623 = vld [vmem:[#allocation3 + $0x8] sm:$0xff]
  %v6624 = vld [vmem:[#allocation3 + $0x10] sm:$0xff]
  %v6625 = vld [vmem:[#allocation3 + $0x18] sm:$0xff]
  %v6626 = vld [vmem:[#allocation3 + $0x20] sm:$0xff]
  %v6627 = vld [vmem:[#allocation3 + $0x28] sm:$0xff]
  %v6628 = vld [vmem:[#allocation3 + $0x30] sm:$0xff]
  %v6629 = vld [vmem:[#allocation3 + $0x38] sm:$0xff]
  %v6630 = vld [vmem:[#allocation3 + $0x40] sm:$0xff]
  %v6631 = vld [vmem:[#allocation3 + $0x48] sm:$0xff]
  %v6632 = vld [vmem:[#allocation3 + $0x50] sm:$0xff]
  %v6633 = vld [vmem:[#allocation3 + $0x58] sm:$0xff]
  %v6634 = vld [vmem:[#allocation3 + $0x60] sm:$0xff]
  %v6635 = vld [vmem:[#allocation3 + $0x68] sm:$0xff]
  %v6636 = vld [vmem:[#allocation3 + $0x70] sm:$0xff]
  %v6637 = vld [vmem:[#allocation3 + $0x78] sm:$0xff]
  %v6638 = vld [vmem:[#allocation3 + $0x80] sm:$0xff]
  %v6639 = vld [vmem:[#allocation3 + $0x88] sm:$0xff]
  %v6640 = vld [vmem:[#allocation3 + $0x90] sm:$0xff]
  %v6641 = vld [vmem:[#allocation3 + $0x98] sm:$0xff]
  %v6642 = vld [vmem:[#allocation3 + $0xa0] sm:$0xff]
  %v6643 = vld [vmem:[#allocation3 + $0xa8] sm:$0xff]
  %v6644 = vld [vmem:[#allocation3 + $0xb0] sm:$0xff]
  %v6645 = vld [vmem:[#allocation3 + $0xb8] sm:$0xff]
  %v6646 = vld [vmem:[#allocation3 + $0xc0] sm:$0xff]
  %v6647 = vld [vmem:[#allocation3 + $0xc8] sm:$0xff]
  %v6648 = vld [vmem:[#allocation3 + $0xd0] sm:$0xff]
  %v6649 = vld [vmem:[#allocation3 + $0xd8] sm:$0xff]
  %v6650 = vld [vmem:[#allocation3 + $0xe0] sm:$0xff]
  %v6651 = vld [vmem:[#allocation3 + $0xe8] sm:$0xff]
  %v6652 = vld [vmem:[#allocation3 + $0xf0] sm:$0xff]
  %v6653 = vld [vmem:[#allocation3 + $0xf8] sm:$0xff]
  %v6654 = vld [vmem:[#allocation3 + $0x100] sm:$0xff]
  %v6655 = vld [vmem:[#allocation3 + $0x108] sm:$0xff]
  %v6656 = vld [vmem:[#allocation3 + $0x110] sm:$0xff]
  %v6657 = vld [vmem:[#allocation3 + $0x118] sm:$0xff]
  %v6658 = vld [vmem:[#allocation3 + $0x120] sm:$0xff]
  %v6659 = vld [vmem:[#allocation3 + $0x128] sm:$0xff]
  %v6660 = vld [vmem:[#allocation3 + $0x130] sm:$0xff]
  %v6661 = vld [vmem:[#allocation3 + $0x138] sm:$0xff]
  %v6662 = vld [vmem:[#allocation3 + $0x140] sm:$0xff]
  %v6663 = vld [vmem:[#allocation3 + $0x148] sm:$0xff]
  %v6664 = vld [vmem:[#allocation3 + $0x150] sm:$0xff]
  %v6665 = vld [vmem:[#allocation3 + $0x158] sm:$0xff]
  %v6666 = vld [vmem:[#allocation3 + $0x160] sm:$0xff]
  %v6667 = vld [vmem:[#allocation3 + $0x168] sm:$0xff]
  %v6668 = vld [vmem:[#allocation3 + $0x170] sm:$0xff]
  %v6669 = vld [vmem:[#allocation3 + $0x178] sm:$0xff]
  %v6670 = vld [vmem:[#allocation3 + $0x180] sm:$0xff]
  %v6671 = vld [vmem:[#allocation3 + $0x188] sm:$0xff]
  %v6672 = vld [vmem:[#allocation3 + $0x190] sm:$0xff]
  %v6673 = vld [vmem:[#allocation3 + $0x198] sm:$0xff]
  %v6674 = vld [vmem:[#allocation3 + $0x1a0] sm:$0xff]
  %v6675 = vld [vmem:[#allocation3 + $0x1a8] sm:$0xff]
  %v6676 = vld [vmem:[#allocation3 + $0x1b0] sm:$0xff]
  %v6677 = vld [vmem:[#allocation3 + $0x1b8] sm:$0xff]
  %v6678 = vld [vmem:[#allocation3 + $0x1c0] sm:$0xff]
  %v6679 = vld [vmem:[#allocation3 + $0x1c8] sm:$0xff]
  %v6680 = vld [vmem:[#allocation3 + $0x1d0] sm:$0xff]
  %v6681 = vld [vmem:[#allocation3 + $0x1d8] sm:$0xff]
  %v6682 = vld [vmem:[#allocation3 + $0x1e0] sm:$0xff]
  %v6683 = vld [vmem:[#allocation3 + $0x1e8] sm:$0xff]
  %v6684 = vld [vmem:[#allocation3 + $0x1f0] sm:$0xff]
  %v6685 = vld [vmem:[#allocation3 + $0x1f8] sm:$0xff]
  %s6686 = scalar_lea.vmem %s2, 1024
  %v6687 = vld [vmem:[%s6686] sm:$0xff]
  %v6688 = vld [vmem:[%s6686 + $0x8] sm:$0xff]
  %v6689 = vld [vmem:[%s6686 + $0x10] sm:$0xff]
  %v6690 = vld [vmem:[%s6686 + $0x18] sm:$0xff]
  %v6691 = vld [vmem:[%s6686 + $0x20] sm:$0xff]
  %v6692 = vld [vmem:[%s6686 + $0x28] sm:$0xff]
  %v6693 = vld [vmem:[%s6686 + $0x30] sm:$0xff]
  %v6694 = vld [vmem:[%s6686 + $0x38] sm:$0xff]
  %v6695 = vld [vmem:[%s6686 + $0x40] sm:$0xff]
  %v6696 = vld [vmem:[%s6686 + $0x48] sm:$0xff]
  %v6697 = vld [vmem:[%s6686 + $0x50] sm:$0xff]
  %v6698 = vld [vmem:[%s6686 + $0x58] sm:$0xff]
  %v6699 = vld [vmem:[%s6686 + $0x60] sm:$0xff]
  %v6700 = vld [vmem:[%s6686 + $0x68] sm:$0xff]
  %v6701 = vld [vmem:[%s6686 + $0x70] sm:$0xff]
  %v6702 = vld [vmem:[%s6686 + $0x78] sm:$0xff]
  %6703 = vmatprep.subr.mxu0 0.0
  %6704 = vmatpush1.msra.mxu0 %v6702
  %6705 = vmatprep.subr.mxu0 0.0
  %6706 = vmatpush1.msra.mxu0 %v6701
  %6707 = vmatprep.subr.mxu0 0.0
  %6708 = vmatpush1.msra.mxu0 %v6700
  %6709 = vmatprep.subr.mxu0 0.0
  %6710 = vmatpush1.msra.mxu0 %v6699
  %6711 = vmatprep.subr.mxu0 0.0
  %6712 = vmatpush1.msra.mxu0 %v6698
  %6713 = vmatprep.subr.mxu0 0.0
  %6714 = vmatpush1.msra.mxu0 %v6697
  %6715 = vmatprep.subr.mxu0 0.0
  %6716 = vmatpush1.msra.mxu0 %v6696
  %6717 = vmatprep.subr.mxu0 0.0
  %6718 = vmatpush1.msra.mxu0 %v6695
  %6719 = vmatprep.subr.mxu0 0.0
  %6720 = vmatpush1.msra.mxu0 %v6694
  %6721 = vmatprep.subr.mxu0 0.0
  %6722 = vmatpush1.msra.mxu0 %v6693
  %6723 = vmatprep.subr.mxu0 0.0
  %6724 = vmatpush1.msra.mxu0 %v6692
  %6725 = vmatprep.subr.mxu0 0.0
  %6726 = vmatpush1.msra.mxu0 %v6691
  %6727 = vmatprep.subr.mxu0 0.0
  %6728 = vmatpush1.msra.mxu0 %v6690
  %6729 = vmatprep.subr.mxu0 0.0
  %6730 = vmatpush1.msra.mxu0 %v6689
  %6731 = vmatprep.subr.mxu0 0.0
  %6732 = vmatpush1.msra.mxu0 %v6688
  %6733 = vmatprep.subr.mxu0 0.0
  %6734 = vmatpush1.msra.mxu0 %v6687
  %6735 = vmatprep.subr.mxu0 0.0
  %6736 = vmatpush2.msra.mxu0 0.0
  %6737 = vmatprep.subr.mxu0 0.0
  %6738 = vmatpush2.msra.mxu0 0.0
  %6739 = vmatprep.subr.mxu0 0.0
  %6740 = vmatpush2.msra.mxu0 0.0
  %6741 = vmatprep.subr.mxu0 0.0
  %6742 = vmatpush2.msra.mxu0 0.0
  %6743 = vmatprep.subr.mxu0 0.0
  %6744 = vmatpush2.msra.mxu0 0.0
  %6745 = vmatprep.subr.mxu0 0.0
  %6746 = vmatpush2.msra.mxu0 0.0
  %6747 = vmatprep.subr.mxu0 0.0
  %6748 = vmatpush2.msra.mxu0 0.0
  %6749 = vmatprep.subr.mxu0 0.0
  %6750 = vmatpush2.msra.mxu0 0.0
  %6751 = vmatprep.subr.mxu0 0.0
  %6752 = vmatpush2.msra.mxu0 0.0
  %6753 = vmatprep.subr.mxu0 0.0
  %6754 = vmatpush2.msra.mxu0 0.0
  %6755 = vmatprep.subr.mxu0 0.0
  %6756 = vmatpush2.msra.mxu0 0.0
  %6757 = vmatprep.subr.mxu0 0.0
  %6758 = vmatpush2.msra.mxu0 0.0
  %6759 = vmatprep.subr.mxu0 0.0
  %6760 = vmatpush2.msra.mxu0 0.0
  %6761 = vmatprep.subr.mxu0 0.0
  %6762 = vmatpush2.msra.mxu0 0.0
  %6763 = vmatprep.subr.mxu0 0.0
  %6764 = vmatpush2.msra.mxu0 0.0
  %6765 = vmatprep.subr.mxu0 0.0
  %6766 = vmatpush2.msra.mxu0 0.0
  %6767 = vmatprep.mubr.f32.mxu0 0.0
  %6768 = vmatmul.mubr.f32.gmra.mxu0 %v6558
  %v6769 = vpop.f32.mrf.mxu0
  %v6770 = vadd.f32 0.0, %v6769
  %v6771 = vpop.f32.mrf.mxu0
  %6772 = vmatprep.mubr.f32.mxu0 0.0
  %6773 = vmatmul.mubr.f32.gmra.mxu0 %v6559
  %v6774 = vpop.f32.mrf.mxu0
  %v6775 = vadd.f32 0.0, %v6774
  %v6776 = vpop.f32.mrf.mxu0
  %6777 = vmatprep.mubr.f32.mxu0 0.0
  %6778 = vmatmul.mubr.f32.gmra.mxu0 %v6560
  %v6779 = vpop.f32.mrf.mxu0
  %v6780 = vadd.f32 0.0, %v6779
  %v6781 = vpop.f32.mrf.mxu0
  %6782 = vmatprep.mubr.f32.mxu0 0.0
  %6783 = vmatmul.mubr.f32.gmra.mxu0 %v6561
  %v6784 = vpop.f32.mrf.mxu0
  %v6785 = vadd.f32 0.0, %v6784
  %v6786 = vpop.f32.mrf.mxu0
  %6787 = vmatprep.mubr.f32.mxu0 0.0
  %6788 = vmatmul.mubr.f32.gmra.mxu0 %v6562
  %v6789 = vpop.f32.mrf.mxu0
  %v6790 = vadd.f32 0.0, %v6789
  %v6791 = vpop.f32.mrf.mxu0
  %6792 = vmatprep.mubr.f32.mxu0 0.0
  %6793 = vmatmul.mubr.f32.gmra.mxu0 %v6563
  %v6794 = vpop.f32.mrf.mxu0
  %v6795 = vadd.f32 0.0, %v6794
  %v6796 = vpop.f32.mrf.mxu0
  %6797 = vmatprep.mubr.f32.mxu0 0.0
  %6798 = vmatmul.mubr.f32.gmra.mxu0 %v6564
  %v6799 = vpop.f32.mrf.mxu0
  %v6800 = vadd.f32 0.0, %v6799
  %v6801 = vpop.f32.mrf.mxu0
  %6802 = vmatprep.mubr.f32.mxu0 0.0
  %6803 = vmatmul.mubr.f32.gmra.mxu0 %v6565
  %v6804 = vpop.f32.mrf.mxu0
  %v6805 = vadd.f32 0.0, %v6804
  %v6806 = vpop.f32.mrf.mxu0
  %6807 = vmatprep.mubr.f32.mxu0 0.0
  %6808 = vmatmul.mubr.f32.gmra.mxu0 %v6566
  %v6809 = vpop.f32.mrf.mxu0
  %v6810 = vadd.f32 0.0, %v6809
  %v6811 = vpop.f32.mrf.mxu0
  %6812 = vmatprep.mubr.f32.mxu0 0.0
  %6813 = vmatmul.mubr.f32.gmra.mxu0 %v6567
  %v6814 = vpop.f32.mrf.mxu0
  %v6815 = vadd.f32 0.0, %v6814
  %v6816 = vpop.f32.mrf.mxu0
  %6817 = vmatprep.mubr.f32.mxu0 0.0
  %6818 = vmatmul.mubr.f32.gmra.mxu0 %v6568
  %v6819 = vpop.f32.mrf.mxu0
  %v6820 = vadd.f32 0.0, %v6819
  %v6821 = vpop.f32.mrf.mxu0
  %6822 = vmatprep.mubr.f32.mxu0 0.0
  %6823 = vmatmul.mubr.f32.gmra.mxu0 %v6569
  %v6824 = vpop.f32.mrf.mxu0
  %v6825 = vadd.f32 0.0, %v6824
  %v6826 = vpop.f32.mrf.mxu0
  %6827 = vmatprep.mubr.f32.mxu0 0.0
  %6828 = vmatmul.mubr.f32.gmra.mxu0 %v6570
  %v6829 = vpop.f32.mrf.mxu0
  %v6830 = vadd.f32 0.0, %v6829
  %v6831 = vpop.f32.mrf.mxu0
  %6832 = vmatprep.mubr.f32.mxu0 0.0
  %6833 = vmatmul.mubr.f32.gmra.mxu0 %v6571
  %v6834 = vpop.f32.mrf.mxu0
  %v6835 = vadd.f32 0.0, %v6834
  %v6836 = vpop.f32.mrf.mxu0
  %6837 = vmatprep.mubr.f32.mxu0 0.0
  %6838 = vmatmul.mubr.f32.gmra.mxu0 %v6572
  %v6839 = vpop.f32.mrf.mxu0
  %v6840 = vadd.f32 0.0, %v6839
  %v6841 = vpop.f32.mrf.mxu0
  %6842 = vmatprep.mubr.f32.mxu0 0.0
  %6843 = vmatmul.mubr.f32.gmra.mxu0 %v6573
  %v6844 = vpop.f32.mrf.mxu0
  %v6845 = vadd.f32 0.0, %v6844
  %v6846 = vpop.f32.mrf.mxu0
  %6847 = vmatprep.mubr.f32.mxu0 0.0
  %6848 = vmatmul.mubr.f32.gmra.mxu0 %v6574
  %v6849 = vpop.f32.mrf.mxu0
  %v6850 = vadd.f32 0.0, %v6849
  %v6851 = vpop.f32.mrf.mxu0
  %6852 = vmatprep.mubr.f32.mxu0 0.0
  %6853 = vmatmul.mubr.f32.gmra.mxu0 %v6575
  %v6854 = vpop.f32.mrf.mxu0
  %v6855 = vadd.f32 0.0, %v6854
  %v6856 = vpop.f32.mrf.mxu0
  %6857 = vmatprep.mubr.f32.mxu0 0.0
  %6858 = vmatmul.mubr.f32.gmra.mxu0 %v6576
  %v6859 = vpop.f32.mrf.mxu0
  %v6860 = vadd.f32 0.0, %v6859
  %v6861 = vpop.f32.mrf.mxu0
  %6862 = vmatprep.mubr.f32.mxu0 0.0
  %6863 = vmatmul.mubr.f32.gmra.mxu0 %v6577
  %v6864 = vpop.f32.mrf.mxu0
  %v6865 = vadd.f32 0.0, %v6864
  %v6866 = vpop.f32.mrf.mxu0
  %6867 = vmatprep.mubr.f32.mxu0 0.0
  %6868 = vmatmul.mubr.f32.gmra.mxu0 %v6578
  %v6869 = vpop.f32.mrf.mxu0
  %v6870 = vadd.f32 0.0, %v6869
  %v6871 = vpop.f32.mrf.mxu0
  %6872 = vmatprep.mubr.f32.mxu0 0.0
  %6873 = vmatmul.mubr.f32.gmra.mxu0 %v6579
  %v6874 = vpop.f32.mrf.mxu0
  %v6875 = vadd.f32 0.0, %v6874
  %v6876 = vpop.f32.mrf.mxu0
  %6877 = vmatprep.mubr.f32.mxu0 0.0
  %6878 = vmatmul.mubr.f32.gmra.mxu0 %v6580
  %v6879 = vpop.f32.mrf.mxu0
  %v6880 = vadd.f32 0.0, %v6879
  %v6881 = vpop.f32.mrf.mxu0
  %6882 = vmatprep.mubr.f32.mxu0 0.0
  %6883 = vmatmul.mubr.f32.gmra.mxu0 %v6581
  %v6884 = vpop.f32.mrf.mxu0
  %v6885 = vadd.f32 0.0, %v6884
  %v6886 = vpop.f32.mrf.mxu0
  %6887 = vmatprep.mubr.f32.mxu0 0.0
  %6888 = vmatmul.mubr.f32.gmra.mxu0 %v6582
  %v6889 = vpop.f32.mrf.mxu0
  %v6890 = vadd.f32 0.0, %v6889
  %v6891 = vpop.f32.mrf.mxu0
  %6892 = vmatprep.mubr.f32.mxu0 0.0
  %6893 = vmatmul.mubr.f32.gmra.mxu0 %v6583
  %v6894 = vpop.f32.mrf.mxu0
  %v6895 = vadd.f32 0.0, %v6894
  %v6896 = vpop.f32.mrf.mxu0
  %6897 = vmatprep.mubr.f32.mxu0 0.0
  %6898 = vmatmul.mubr.f32.gmra.mxu0 %v6584
  %v6899 = vpop.f32.mrf.mxu0
  %v6900 = vadd.f32 0.0, %v6899
  %v6901 = vpop.f32.mrf.mxu0
  %6902 = vmatprep.mubr.f32.mxu0 0.0
  %6903 = vmatmul.mubr.f32.gmra.mxu0 %v6585
  %v6904 = vpop.f32.mrf.mxu0
  %v6905 = vadd.f32 0.0, %v6904
  %v6906 = vpop.f32.mrf.mxu0
  %6907 = vmatprep.mubr.f32.mxu0 0.0
  %6908 = vmatmul.mubr.f32.gmra.mxu0 %v6586
  %v6909 = vpop.f32.mrf.mxu0
  %v6910 = vadd.f32 0.0, %v6909
  %v6911 = vpop.f32.mrf.mxu0
  %6912 = vmatprep.mubr.f32.mxu0 0.0
  %6913 = vmatmul.mubr.f32.gmra.mxu0 %v6587
  %v6914 = vpop.f32.mrf.mxu0
  %v6915 = vadd.f32 0.0, %v6914
  %v6916 = vpop.f32.mrf.mxu0
  %6917 = vmatprep.mubr.f32.mxu0 0.0
  %6918 = vmatmul.mubr.f32.gmra.mxu0 %v6588
  %v6919 = vpop.f32.mrf.mxu0
  %v6920 = vadd.f32 0.0, %v6919
  %v6921 = vpop.f32.mrf.mxu0
  %6922 = vmatprep.mubr.f32.mxu0 0.0
  %6923 = vmatmul.mubr.f32.gmra.mxu0 %v6589
  %v6924 = vpop.f32.mrf.mxu0
  %v6925 = vadd.f32 0.0, %v6924
  %v6926 = vpop.f32.mrf.mxu0
  %6927 = vmatprep.mubr.f32.mxu0 0.0
  %6928 = vmatmul.mubr.f32.gmra.mxu0 %v6590
  %v6929 = vpop.f32.mrf.mxu0
  %v6930 = vadd.f32 0.0, %v6929
  %v6931 = vpop.f32.mrf.mxu0
  %6932 = vmatprep.mubr.f32.mxu0 0.0
  %6933 = vmatmul.mubr.f32.gmra.mxu0 %v6591
  %v6934 = vpop.f32.mrf.mxu0
  %v6935 = vadd.f32 0.0, %v6934
  %v6936 = vpop.f32.mrf.mxu0
  %6937 = vmatprep.mubr.f32.mxu0 0.0
  %6938 = vmatmul.mubr.f32.gmra.mxu0 %v6592
  %v6939 = vpop.f32.mrf.mxu0
  %v6940 = vadd.f32 0.0, %v6939
  %v6941 = vpop.f32.mrf.mxu0
  %6942 = vmatprep.mubr.f32.mxu0 0.0
  %6943 = vmatmul.mubr.f32.gmra.mxu0 %v6593
  %v6944 = vpop.f32.mrf.mxu0
  %v6945 = vadd.f32 0.0, %v6944
  %v6946 = vpop.f32.mrf.mxu0
  %6947 = vmatprep.mubr.f32.mxu0 0.0
  %6948 = vmatmul.mubr.f32.gmra.mxu0 %v6594
  %v6949 = vpop.f32.mrf.mxu0
  %v6950 = vadd.f32 0.0, %v6949
  %v6951 = vpop.f32.mrf.mxu0
  %6952 = vmatprep.mubr.f32.mxu0 0.0
  %6953 = vmatmul.mubr.f32.gmra.mxu0 %v6595
  %v6954 = vpop.f32.mrf.mxu0
  %v6955 = vadd.f32 0.0, %v6954
  %v6956 = vpop.f32.mrf.mxu0
  %6957 = vmatprep.mubr.f32.mxu0 0.0
  %6958 = vmatmul.mubr.f32.gmra.mxu0 %v6596
  %v6959 = vpop.f32.mrf.mxu0
  %v6960 = vadd.f32 0.0, %v6959
  %v6961 = vpop.f32.mrf.mxu0
  %6962 = vmatprep.mubr.f32.mxu0 0.0
  %6963 = vmatmul.mubr.f32.gmra.mxu0 %v6597
  %v6964 = vpop.f32.mrf.mxu0
  %v6965 = vadd.f32 0.0, %v6964
  %v6966 = vpop.f32.mrf.mxu0
  %6967 = vmatprep.mubr.f32.mxu0 0.0
  %6968 = vmatmul.mubr.f32.gmra.mxu0 %v6598
  %v6969 = vpop.f32.mrf.mxu0
  %v6970 = vadd.f32 0.0, %v6969
  %v6971 = vpop.f32.mrf.mxu0
  %6972 = vmatprep.mubr.f32.mxu0 0.0
  %6973 = vmatmul.mubr.f32.gmra.mxu0 %v6599
  %v6974 = vpop.f32.mrf.mxu0
  %v6975 = vadd.f32 0.0, %v6974
  %v6976 = vpop.f32.mrf.mxu0
  %6977 = vmatprep.mubr.f32.mxu0 0.0
  %6978 = vmatmul.mubr.f32.gmra.mxu0 %v6600
  %v6979 = vpop.f32.mrf.mxu0
  %v6980 = vadd.f32 0.0, %v6979
  %v6981 = vpop.f32.mrf.mxu0
  %6982 = vmatprep.mubr.f32.mxu0 0.0
  %6983 = vmatmul.mubr.f32.gmra.mxu0 %v6601
  %v6984 = vpop.f32.mrf.mxu0
  %v6985 = vadd.f32 0.0, %v6984
  %v6986 = vpop.f32.mrf.mxu0
  %6987 = vmatprep.mubr.f32.mxu0 0.0
  %6988 = vmatmul.mubr.f32.gmra.mxu0 %v6602
  %v6989 = vpop.f32.mrf.mxu0
  %v6990 = vadd.f32 0.0, %v6989
  %v6991 = vpop.f32.mrf.mxu0
  %6992 = vmatprep.mubr.f32.mxu0 0.0
  %6993 = vmatmul.mubr.f32.gmra.mxu0 %v6603
  %v6994 = vpop.f32.mrf.mxu0
  %v6995 = vadd.f32 0.0, %v6994
  %v6996 = vpop.f32.mrf.mxu0
  %6997 = vmatprep.mubr.f32.mxu0 0.0
  %6998 = vmatmul.mubr.f32.gmra.mxu0 %v6604
  %v6999 = vpop.f32.mrf.mxu0
  %v7000 = vadd.f32 0.0, %v6999
  %v7001 = vpop.f32.mrf.mxu0
  %7002 = vmatprep.mubr.f32.mxu0 0.0
  %7003 = vmatmul.mubr.f32.gmra.mxu0 %v6605
  %v7004 = vpop.f32.mrf.mxu0
  %v7005 = vadd.f32 0.0, %v7004
  %v7006 = vpop.f32.mrf.mxu0
  %7007 = vmatprep.mubr.f32.mxu0 0.0
  %7008 = vmatmul.mubr.f32.gmra.mxu0 %v6606
  %v7009 = vpop.f32.mrf.mxu0
  %v7010 = vadd.f32 0.0, %v7009
  %v7011 = vpop.f32.mrf.mxu0
  %7012 = vmatprep.mubr.f32.mxu0 0.0
  %7013 = vmatmul.mubr.f32.gmra.mxu0 %v6607
  %v7014 = vpop.f32.mrf.mxu0
  %v7015 = vadd.f32 0.0, %v7014
  %v7016 = vpop.f32.mrf.mxu0
  %7017 = vmatprep.mubr.f32.mxu0 0.0
  %7018 = vmatmul.mubr.f32.gmra.mxu0 %v6608
  %v7019 = vpop.f32.mrf.mxu0
  %v7020 = vadd.f32 0.0, %v7019
  %v7021 = vpop.f32.mrf.mxu0
  %7022 = vmatprep.mubr.f32.mxu0 0.0
  %7023 = vmatmul.mubr.f32.gmra.mxu0 %v6609
  %v7024 = vpop.f32.mrf.mxu0
  %v7025 = vadd.f32 0.0, %v7024
  %v7026 = vpop.f32.mrf.mxu0
  %7027 = vmatprep.mubr.f32.mxu0 0.0
  %7028 = vmatmul.mubr.f32.gmra.mxu0 %v6610
  %v7029 = vpop.f32.mrf.mxu0
  %v7030 = vadd.f32 0.0, %v7029
  %v7031 = vpop.f32.mrf.mxu0
  %7032 = vmatprep.mubr.f32.mxu0 0.0
  %7033 = vmatmul.mubr.f32.gmra.mxu0 %v6611
  %v7034 = vpop.f32.mrf.mxu0
  %v7035 = vadd.f32 0.0, %v7034
  %v7036 = vpop.f32.mrf.mxu0
  %7037 = vmatprep.mubr.f32.mxu0 0.0
  %7038 = vmatmul.mubr.f32.gmra.mxu0 %v6612
  %v7039 = vpop.f32.mrf.mxu0
  %v7040 = vadd.f32 0.0, %v7039
  %v7041 = vpop.f32.mrf.mxu0
  %7042 = vmatprep.mubr.f32.mxu0 0.0
  %7043 = vmatmul.mubr.f32.gmra.mxu0 %v6613
  %v7044 = vpop.f32.mrf.mxu0
  %v7045 = vadd.f32 0.0, %v7044
  %v7046 = vpop.f32.mrf.mxu0
  %7047 = vmatprep.mubr.f32.mxu0 0.0
  %7048 = vmatmul.mubr.f32.gmra.mxu0 %v6614
  %v7049 = vpop.f32.mrf.mxu0
  %v7050 = vadd.f32 0.0, %v7049
  %v7051 = vpop.f32.mrf.mxu0
  %7052 = vmatprep.mubr.f32.mxu0 0.0
  %7053 = vmatmul.mubr.f32.gmra.mxu0 %v6615
  %v7054 = vpop.f32.mrf.mxu0
  %v7055 = vadd.f32 0.0, %v7054
  %v7056 = vpop.f32.mrf.mxu0
  %7057 = vmatprep.mubr.f32.mxu0 0.0
  %7058 = vmatmul.mubr.f32.gmra.mxu0 %v6616
  %v7059 = vpop.f32.mrf.mxu0
  %v7060 = vadd.f32 0.0, %v7059
  %v7061 = vpop.f32.mrf.mxu0
  %7062 = vmatprep.mubr.f32.mxu0 0.0
  %7063 = vmatmul.mubr.f32.gmra.mxu0 %v6617
  %v7064 = vpop.f32.mrf.mxu0
  %v7065 = vadd.f32 0.0, %v7064
  %v7066 = vpop.f32.mrf.mxu0
  %7067 = vmatprep.mubr.f32.mxu0 0.0
  %7068 = vmatmul.mubr.f32.gmra.mxu0 %v6618
  %v7069 = vpop.f32.mrf.mxu0
  %v7070 = vadd.f32 0.0, %v7069
  %v7071 = vpop.f32.mrf.mxu0
  %7072 = vmatprep.mubr.f32.mxu0 0.0
  %7073 = vmatmul.mubr.f32.gmra.mxu0 %v6619
  %v7074 = vpop.f32.mrf.mxu0
  %v7075 = vadd.f32 0.0, %v7074
  %v7076 = vpop.f32.mrf.mxu0
  %7077 = vmatprep.mubr.f32.mxu0 0.0
  %7078 = vmatmul.mubr.f32.gmra.mxu0 %v6620
  %v7079 = vpop.f32.mrf.mxu0
  %v7080 = vadd.f32 0.0, %v7079
  %v7081 = vpop.f32.mrf.mxu0
  %7082 = vmatprep.mubr.f32.mxu0 0.0
  %7083 = vmatmul.mubr.f32.gmra.mxu0 %v6621
  %v7084 = vpop.f32.mrf.mxu0
  %v7085 = vadd.f32 0.0, %v7084
  %v7086 = vpop.f32.mrf.mxu0
  %7087 = vdwg.mxu0
  %v7088 = vadd.f32 %v6622, %v6770
  %v7089 = vadd.f32 %v6623, %v6775
  %v7090 = vadd.f32 %v6624, %v6780
  %v7091 = vadd.f32 %v6625, %v6785
  %v7092 = vadd.f32 %v6626, %v6790
  %v7093 = vadd.f32 %v6627, %v6795
  %v7094 = vadd.f32 %v6628, %v6800
  %v7095 = vadd.f32 %v6629, %v6805
  %v7096 = vadd.f32 %v6630, %v6810
  %v7097 = vadd.f32 %v6631, %v6815
  %v7098 = vadd.f32 %v6632, %v6820
  %v7099 = vadd.f32 %v6633, %v6825
  %v7100 = vadd.f32 %v6634, %v6830
  %v7101 = vadd.f32 %v6635, %v6835
  %v7102 = vadd.f32 %v6636, %v6840
  %v7103 = vadd.f32 %v6637, %v6845
  %v7104 = vadd.f32 %v6638, %v6850
  %v7105 = vadd.f32 %v6639, %v6855
  %v7106 = vadd.f32 %v6640, %v6860
  %v7107 = vadd.f32 %v6641, %v6865
  %v7108 = vadd.f32 %v6642, %v6870
  %v7109 = vadd.f32 %v6643, %v6875
  %v7110 = vadd.f32 %v6644, %v6880
  %v7111 = vadd.f32 %v6645, %v6885
  %v7112 = vadd.f32 %v6646, %v6890
  %v7113 = vadd.f32 %v6647, %v6895
  %v7114 = vadd.f32 %v6648, %v6900
  %v7115 = vadd.f32 %v6649, %v6905
  %v7116 = vadd.f32 %v6650, %v6910
  %v7117 = vadd.f32 %v6651, %v6915
  %v7118 = vadd.f32 %v6652, %v6920
  %v7119 = vadd.f32 %v6653, %v6925
  %v7120 = vadd.f32 %v6654, %v6930
  %v7121 = vadd.f32 %v6655, %v6935
  %v7122 = vadd.f32 %v6656, %v6940
  %v7123 = vadd.f32 %v6657, %v6945
  %v7124 = vadd.f32 %v6658, %v6950
  %v7125 = vadd.f32 %v6659, %v6955
  %v7126 = vadd.f32 %v6660, %v6960
  %v7127 = vadd.f32 %v6661, %v6965
  %v7128 = vadd.f32 %v6662, %v6970
  %v7129 = vadd.f32 %v6663, %v6975
  %v7130 = vadd.f32 %v6664, %v6980
  %v7131 = vadd.f32 %v6665, %v6985
  %v7132 = vadd.f32 %v6666, %v6990
  %v7133 = vadd.f32 %v6667, %v6995
  %v7134 = vadd.f32 %v6668, %v7000
  %v7135 = vadd.f32 %v6669, %v7005
  %v7136 = vadd.f32 %v6670, %v7010
  %v7137 = vadd.f32 %v6671, %v7015
  %v7138 = vadd.f32 %v6672, %v7020
  %v7139 = vadd.f32 %v6673, %v7025
  %v7140 = vadd.f32 %v6674, %v7030
  %v7141 = vadd.f32 %v6675, %v7035
  %v7142 = vadd.f32 %v6676, %v7040
  %v7143 = vadd.f32 %v6677, %v7045
  %v7144 = vadd.f32 %v6678, %v7050
  %v7145 = vadd.f32 %v6679, %v7055
  %v7146 = vadd.f32 %v6680, %v7060
  %v7147 = vadd.f32 %v6681, %v7065
  %v7148 = vadd.f32 %v6682, %v7070
  %v7149 = vadd.f32 %v6683, %v7075
  %v7150 = vadd.f32 %v6684, %v7080
  %v7151 = vadd.f32 %v6685, %v7085
  %7152 = vst [vmem:[#allocation3] sm:$0xff] %v7088
  %7153 = vst [vmem:[#allocation3 + $0x8] sm:$0xff] %v7089
  %7154 = vst [vmem:[#allocation3 + $0x10] sm:$0xff] %v7090
  %7155 = vst [vmem:[#allocation3 + $0x18] sm:$0xff] %v7091
  %7156 = vst [vmem:[#allocation3 + $0x20] sm:$0xff] %v7092
  %7157 = vst [vmem:[#allocation3 + $0x28] sm:$0xff] %v7093
  %7158 = vst [vmem:[#allocation3 + $0x30] sm:$0xff] %v7094
  %7159 = vst [vmem:[#allocation3 + $0x38] sm:$0xff] %v7095
  %7160 = vst [vmem:[#allocation3 + $0x40] sm:$0xff] %v7096
  %7161 = vst [vmem:[#allocation3 + $0x48] sm:$0xff] %v7097
  %7162 = vst [vmem:[#allocation3 + $0x50] sm:$0xff] %v7098
  %7163 = vst [vmem:[#allocation3 + $0x58] sm:$0xff] %v7099
  %7164 = vst [vmem:[#allocation3 + $0x60] sm:$0xff] %v7100
  %7165 = vst [vmem:[#allocation3 + $0x68] sm:$0xff] %v7101
  %7166 = vst [vmem:[#allocation3 + $0x70] sm:$0xff] %v7102
  %7167 = vst [vmem:[#allocation3 + $0x78] sm:$0xff] %v7103
  %7168 = vst [vmem:[#allocation3 + $0x80] sm:$0xff] %v7104
  %7169 = vst [vmem:[#allocation3 + $0x88] sm:$0xff] %v7105
  %7170 = vst [vmem:[#allocation3 + $0x90] sm:$0xff] %v7106
  %7171 = vst [vmem:[#allocation3 + $0x98] sm:$0xff] %v7107
  %7172 = vst [vmem:[#allocation3 + $0xa0] sm:$0xff] %v7108
  %7173 = vst [vmem:[#allocation3 + $0xa8] sm:$0xff] %v7109
  %7174 = vst [vmem:[#allocation3 + $0xb0] sm:$0xff] %v7110
  %7175 = vst [vmem:[#allocation3 + $0xb8] sm:$0xff] %v7111
  %7176 = vst [vmem:[#allocation3 + $0xc0] sm:$0xff] %v7112
  %7177 = vst [vmem:[#allocation3 + $0xc8] sm:$0xff] %v7113
  %7178 = vst [vmem:[#allocation3 + $0xd0] sm:$0xff] %v7114
  %7179 = vst [vmem:[#allocation3 + $0xd8] sm:$0xff] %v7115
  %7180 = vst [vmem:[#allocation3 + $0xe0] sm:$0xff] %v7116
  %7181 = vst [vmem:[#allocation3 + $0xe8] sm:$0xff] %v7117
  %7182 = vst [vmem:[#allocation3 + $0xf0] sm:$0xff] %v7118
  %7183 = vst [vmem:[#allocation3 + $0xf8] sm:$0xff] %v7119
  %7184 = vst [vmem:[#allocation3 + $0x100] sm:$0xff] %v7120
  %7185 = vst [vmem:[#allocation3 + $0x108] sm:$0xff] %v7121
  %7186 = vst [vmem:[#allocation3 + $0x110] sm:$0xff] %v7122
  %7187 = vst [vmem:[#allocation3 + $0x118] sm:$0xff] %v7123
  %7188 = vst [vmem:[#allocation3 + $0x120] sm:$0xff] %v7124
  %7189 = vst [vmem:[#allocation3 + $0x128] sm:$0xff] %v7125
  %7190 = vst [vmem:[#allocation3 + $0x130] sm:$0xff] %v7126
  %7191 = vst [vmem:[#allocation3 + $0x138] sm:$0xff] %v7127
  %7192 = vst [vmem:[#allocation3 + $0x140] sm:$0xff] %v7128
  %7193 = vst [vmem:[#allocation3 + $0x148] sm:$0xff] %v7129
  %7194 = vst [vmem:[#allocation3 + $0x150] sm:$0xff] %v7130
  %7195 = vst [vmem:[#allocation3 + $0x158] sm:$0xff] %v7131
  %7196 = vst [vmem:[#allocation3 + $0x160] sm:$0xff] %v7132
  %7197 = vst [vmem:[#allocation3 + $0x168] sm:$0xff] %v7133
  %7198 = vst [vmem:[#allocation3 + $0x170] sm:$0xff] %v7134
  %7199 = vst [vmem:[#allocation3 + $0x178] sm:$0xff] %v7135
  %7200 = vst [vmem:[#allocation3 + $0x180] sm:$0xff] %v7136
  %7201 = vst [vmem:[#allocation3 + $0x188] sm:$0xff] %v7137
  %7202 = vst [vmem:[#allocation3 + $0x190] sm:$0xff] %v7138
  %7203 = vst [vmem:[#allocation3 + $0x198] sm:$0xff] %v7139
  %7204 = vst [vmem:[#allocation3 + $0x1a0] sm:$0xff] %v7140
  %7205 = vst [vmem:[#allocation3 + $0x1a8] sm:$0xff] %v7141
  %7206 = vst [vmem:[#allocation3 + $0x1b0] sm:$0xff] %v7142
  %7207 = vst [vmem:[#allocation3 + $0x1b8] sm:$0xff] %v7143
  %7208 = vst [vmem:[#allocation3 + $0x1c0] sm:$0xff] %v7144
  %7209 = vst [vmem:[#allocation3 + $0x1c8] sm:$0xff] %v7145
  %7210 = vst [vmem:[#allocation3 + $0x1d0] sm:$0xff] %v7146
  %7211 = vst [vmem:[#allocation3 + $0x1d8] sm:$0xff] %v7147
  %7212 = vst [vmem:[#allocation3 + $0x1e0] sm:$0xff] %v7148
  %7213 = vst [vmem:[#allocation3 + $0x1e8] sm:$0xff] %v7149
  %7214 = vst [vmem:[#allocation3 + $0x1f0] sm:$0xff] %v7150
  %7215 = vst [vmem:[#allocation3 + $0x1f8] sm:$0xff] %v7151
  %v7216 = vld [vmem:[#allocation3] sm:$0xff]
  %v7217 = vld [vmem:[#allocation3 + $0x8] sm:$0xff]
  %v7218 = vld [vmem:[#allocation3 + $0x10] sm:$0xff]
  %v7219 = vld [vmem:[#allocation3 + $0x18] sm:$0xff]
  %v7220 = vld [vmem:[#allocation3 + $0x20] sm:$0xff]
  %v7221 = vld [vmem:[#allocation3 + $0x28] sm:$0xff]
  %v7222 = vld [vmem:[#allocation3 + $0x30] sm:$0xff]
  %v7223 = vld [vmem:[#allocation3 + $0x38] sm:$0xff]
  %v7224 = vld [vmem:[#allocation3 + $0x40] sm:$0xff]
  %v7225 = vld [vmem:[#allocation3 + $0x48] sm:$0xff]
  %v7226 = vld [vmem:[#allocation3 + $0x50] sm:$0xff]
  %v7227 = vld [vmem:[#allocation3 + $0x58] sm:$0xff]
  %v7228 = vld [vmem:[#allocation3 + $0x60] sm:$0xff]
  %v7229 = vld [vmem:[#allocation3 + $0x68] sm:$0xff]
  %v7230 = vld [vmem:[#allocation3 + $0x70] sm:$0xff]
  %v7231 = vld [vmem:[#allocation3 + $0x78] sm:$0xff]
  %v7232 = vld [vmem:[#allocation3 + $0x80] sm:$0xff]
  %v7233 = vld [vmem:[#allocation3 + $0x88] sm:$0xff]
  %v7234 = vld [vmem:[#allocation3 + $0x90] sm:$0xff]
  %v7235 = vld [vmem:[#allocation3 + $0x98] sm:$0xff]
  %v7236 = vld [vmem:[#allocation3 + $0xa0] sm:$0xff]
  %v7237 = vld [vmem:[#allocation3 + $0xa8] sm:$0xff]
  %v7238 = vld [vmem:[#allocation3 + $0xb0] sm:$0xff]
  %v7239 = vld [vmem:[#allocation3 + $0xb8] sm:$0xff]
  %v7240 = vld [vmem:[#allocation3 + $0xc0] sm:$0xff]
  %v7241 = vld [vmem:[#allocation3 + $0xc8] sm:$0xff]
  %v7242 = vld [vmem:[#allocation3 + $0xd0] sm:$0xff]
  %v7243 = vld [vmem:[#allocation3 + $0xd8] sm:$0xff]
  %v7244 = vld [vmem:[#allocation3 + $0xe0] sm:$0xff]
  %v7245 = vld [vmem:[#allocation3 + $0xe8] sm:$0xff]
  %v7246 = vld [vmem:[#allocation3 + $0xf0] sm:$0xff]
  %v7247 = vld [vmem:[#allocation3 + $0xf8] sm:$0xff]
  %v7248 = vld [vmem:[#allocation3 + $0x100] sm:$0xff]
  %v7249 = vld [vmem:[#allocation3 + $0x108] sm:$0xff]
  %v7250 = vld [vmem:[#allocation3 + $0x110] sm:$0xff]
  %v7251 = vld [vmem:[#allocation3 + $0x118] sm:$0xff]
  %v7252 = vld [vmem:[#allocation3 + $0x120] sm:$0xff]
  %v7253 = vld [vmem:[#allocation3 + $0x128] sm:$0xff]
  %v7254 = vld [vmem:[#allocation3 + $0x130] sm:$0xff]
  %v7255 = vld [vmem:[#allocation3 + $0x138] sm:$0xff]
  %v7256 = vld [vmem:[#allocation3 + $0x140] sm:$0xff]
  %v7257 = vld [vmem:[#allocation3 + $0x148] sm:$0xff]
  %v7258 = vld [vmem:[#allocation3 + $0x150] sm:$0xff]
  %v7259 = vld [vmem:[#allocation3 + $0x158] sm:$0xff]
  %v7260 = vld [vmem:[#allocation3 + $0x160] sm:$0xff]
  %v7261 = vld [vmem:[#allocation3 + $0x168] sm:$0xff]
  %v7262 = vld [vmem:[#allocation3 + $0x170] sm:$0xff]
  %v7263 = vld [vmem:[#allocation3 + $0x178] sm:$0xff]
  %v7264 = vld [vmem:[#allocation3 + $0x180] sm:$0xff]
  %v7265 = vld [vmem:[#allocation3 + $0x188] sm:$0xff]
  %v7266 = vld [vmem:[#allocation3 + $0x190] sm:$0xff]
  %v7267 = vld [vmem:[#allocation3 + $0x198] sm:$0xff]
  %v7268 = vld [vmem:[#allocation3 + $0x1a0] sm:$0xff]
  %v7269 = vld [vmem:[#allocation3 + $0x1a8] sm:$0xff]
  %v7270 = vld [vmem:[#allocation3 + $0x1b0] sm:$0xff]
  %v7271 = vld [vmem:[#allocation3 + $0x1b8] sm:$0xff]
  %v7272 = vld [vmem:[#allocation3 + $0x1c0] sm:$0xff]
  %v7273 = vld [vmem:[#allocation3 + $0x1c8] sm:$0xff]
  %v7274 = vld [vmem:[#allocation3 + $0x1d0] sm:$0xff]
  %v7275 = vld [vmem:[#allocation3 + $0x1d8] sm:$0xff]
  %v7276 = vld [vmem:[#allocation3 + $0x1e0] sm:$0xff]
  %v7277 = vld [vmem:[#allocation3 + $0x1e8] sm:$0xff]
  %v7278 = vld [vmem:[#allocation3 + $0x1f0] sm:$0xff]
  %v7279 = vld [vmem:[#allocation3 + $0x1f8] sm:$0xff]
  %v7280 = vadd.f32 %v7216, %v7217
  %v7281 = vadd.f32 %v7280, %v7218
  %v7282 = vadd.f32 %v7281, %v7219
  %v7283 = vadd.f32 %v7282, %v7220
  %v7284 = vadd.f32 %v7283, %v7221
  %v7285 = vadd.f32 %v7284, %v7222
  %v7286 = vadd.f32 %v7285, %v7223
  %v7287 = vadd.f32 %v7286, %v7224
  %v7288 = vadd.f32 %v7287, %v7225
  %v7289 = vadd.f32 %v7288, %v7226
  %v7290 = vadd.f32 %v7289, %v7227
  %v7291 = vadd.f32 %v7290, %v7228
  %v7292 = vadd.f32 %v7291, %v7229
  %v7293 = vadd.f32 %v7292, %v7230
  %v7294 = vadd.f32 %v7293, %v7231
  %v7295 = vadd.f32 %v7294, %v7232
  %v7296 = vadd.f32 %v7295, %v7233
  %v7297 = vadd.f32 %v7296, %v7234
  %v7298 = vadd.f32 %v7297, %v7235
  %v7299 = vadd.f32 %v7298, %v7236
  %v7300 = vadd.f32 %v7299, %v7237
  %v7301 = vadd.f32 %v7300, %v7238
  %v7302 = vadd.f32 %v7301, %v7239
  %v7303 = vadd.f32 %v7302, %v7240
  %v7304 = vadd.f32 %v7303, %v7241
  %v7305 = vadd.f32 %v7304, %v7242
  %v7306 = vadd.f32 %v7305, %v7243
  %v7307 = vadd.f32 %v7306, %v7244
  %v7308 = vadd.f32 %v7307, %v7245
  %v7309 = vadd.f32 %v7308, %v7246
  %v7310 = vadd.f32 %v7309, %v7247
  %v7311 = vadd.f32 %v7310, %v7248
  %v7312 = vadd.f32 %v7311, %v7249
  %v7313 = vadd.f32 %v7312, %v7250
  %v7314 = vadd.f32 %v7313, %v7251
  %v7315 = vadd.f32 %v7314, %v7252
  %v7316 = vadd.f32 %v7315, %v7253
  %v7317 = vadd.f32 %v7316, %v7254
  %v7318 = vadd.f32 %v7317, %v7255
  %v7319 = vadd.f32 %v7318, %v7256
  %v7320 = vadd.f32 %v7319, %v7257
  %v7321 = vadd.f32 %v7320, %v7258
  %v7322 = vadd.f32 %v7321, %v7259
  %v7323 = vadd.f32 %v7322, %v7260
  %v7324 = vadd.f32 %v7323, %v7261
  %v7325 = vadd.f32 %v7324, %v7262
  %v7326 = vadd.f32 %v7325, %v7263
  %v7327 = vadd.f32 %v7326, %v7264
  %v7328 = vadd.f32 %v7327, %v7265
  %v7329 = vadd.f32 %v7328, %v7266
  %v7330 = vadd.f32 %v7329, %v7267
  %v7331 = vadd.f32 %v7330, %v7268
  %v7332 = vadd.f32 %v7331, %v7269
  %v7333 = vadd.f32 %v7332, %v7270
  %v7334 = vadd.f32 %v7333, %v7271
  %v7335 = vadd.f32 %v7334, %v7272
  %v7336 = vadd.f32 %v7335, %v7273
  %v7337 = vadd.f32 %v7336, %v7274
  %v7338 = vadd.f32 %v7337, %v7275
  %v7339 = vadd.f32 %v7338, %v7276
  %v7340 = vadd.f32 %v7339, %v7277
  %v7341 = vadd.f32 %v7340, %v7278
  %v7342 = vadd.f32 %v7341, %v7279
  %v7343 = vrot.slane %v7342, 4
  %v7344 = vadd.f32 %v7342, %v7343
  %v7345 = vrot.slane %v7344, 2
  %v7346 = vadd.f32 %v7344, %v7345
  %v7347 = vrot.slane %v7346, 1
  %v7348 = vadd.f32 %v7346, %v7347
  %v7349 = vmul.f32 %v7348, %v555
  %v7350 = vsub.f32 %v7216, %v7349
  %v7351 = vsub.f32 %v7217, %v7349
  %v7352 = vsub.f32 %v7218, %v7349
  %v7353 = vsub.f32 %v7219, %v7349
  %v7354 = vsub.f32 %v7220, %v7349
  %v7355 = vsub.f32 %v7221, %v7349
  %v7356 = vsub.f32 %v7222, %v7349
  %v7357 = vsub.f32 %v7223, %v7349
  %v7358 = vsub.f32 %v7224, %v7349
  %v7359 = vsub.f32 %v7225, %v7349
  %v7360 = vsub.f32 %v7226, %v7349
  %v7361 = vsub.f32 %v7227, %v7349
  %v7362 = vsub.f32 %v7228, %v7349
  %v7363 = vsub.f32 %v7229, %v7349
  %v7364 = vsub.f32 %v7230, %v7349
  %v7365 = vsub.f32 %v7231, %v7349
  %v7366 = vsub.f32 %v7232, %v7349
  %v7367 = vsub.f32 %v7233, %v7349
  %v7368 = vsub.f32 %v7234, %v7349
  %v7369 = vsub.f32 %v7235, %v7349
  %v7370 = vsub.f32 %v7236, %v7349
  %v7371 = vsub.f32 %v7237, %v7349
  %v7372 = vsub.f32 %v7238, %v7349
  %v7373 = vsub.f32 %v7239, %v7349
  %v7374 = vsub.f32 %v7240, %v7349
  %v7375 = vsub.f32 %v7241, %v7349
  %v7376 = vsub.f32 %v7242, %v7349
  %v7377 = vsub.f32 %v7243, %v7349
  %v7378 = vsub.f32 %v7244, %v7349
  %v7379 = vsub.f32 %v7245, %v7349
  %v7380 = vsub.f32 %v7246, %v7349
  %v7381 = vsub.f32 %v7247, %v7349
  %v7382 = vsub.f32 %v7248, %v7349
  %v7383 = vsub.f32 %v7249, %v7349
  %v7384 = vsub.f32 %v7250, %v7349
  %v7385 = vsub.f32 %v7251, %v7349
  %v7386 = vsub.f32 %v7252, %v7349
  %v7387 = vsub.f32 %v7253, %v7349
  %v7388 = vsub.f32 %v7254, %v7349
  %v7389 = vsub.f32 %v7255, %v7349
  %v7390 = vsub.f32 %v7256, %v7349
  %v7391 = vsub.f32 %v7257, %v7349
  %v7392 = vsub.f32 %v7258, %v7349
  %v7393 = vsub.f32 %v7259, %v7349
  %v7394 = vsub.f32 %v7260, %v7349
  %v7395 = vsub.f32 %v7261, %v7349
  %v7396 = vsub.f32 %v7262, %v7349
  %v7397 = vsub.f32 %v7263, %v7349
  %v7398 = vsub.f32 %v7264, %v7349
  %v7399 = vsub.f32 %v7265, %v7349
  %v7400 = vsub.f32 %v7266, %v7349
  %v7401 = vsub.f32 %v7267, %v7349
  %v7402 = vsub.f32 %v7268, %v7349
  %v7403 = vsub.f32 %v7269, %v7349
  %v7404 = vsub.f32 %v7270, %v7349
  %v7405 = vsub.f32 %v7271, %v7349
  %v7406 = vsub.f32 %v7272, %v7349
  %v7407 = vsub.f32 %v7273, %v7349
  %v7408 = vsub.f32 %v7274, %v7349
  %v7409 = vsub.f32 %v7275, %v7349
  %v7410 = vsub.f32 %v7276, %v7349
  %v7411 = vsub.f32 %v7277, %v7349
  %v7412 = vsub.f32 %v7278, %v7349
  %v7413 = vsub.f32 %v7279, %v7349
  %v7414 = vmul.f32 %v7350, %v7350
  %v7415 = vmul.f32 %v7351, %v7351
  %v7416 = vmul.f32 %v7352, %v7352
  %v7417 = vmul.f32 %v7353, %v7353
  %v7418 = vmul.f32 %v7354, %v7354
  %v7419 = vmul.f32 %v7355, %v7355
  %v7420 = vmul.f32 %v7356, %v7356
  %v7421 = vmul.f32 %v7357, %v7357
  %v7422 = vmul.f32 %v7358, %v7358
  %v7423 = vmul.f32 %v7359, %v7359
  %v7424 = vmul.f32 %v7360, %v7360
  %v7425 = vmul.f32 %v7361, %v7361
  %v7426 = vmul.f32 %v7362, %v7362
  %v7427 = vmul.f32 %v7363, %v7363
  %v7428 = vmul.f32 %v7364, %v7364
  %v7429 = vmul.f32 %v7365, %v7365
  %v7430 = vmul.f32 %v7366, %v7366
  %v7431 = vmul.f32 %v7367, %v7367
  %v7432 = vmul.f32 %v7368, %v7368
  %v7433 = vmul.f32 %v7369, %v7369
  %v7434 = vmul.f32 %v7370, %v7370
  %v7435 = vmul.f32 %v7371, %v7371
  %v7436 = vmul.f32 %v7372, %v7372
  %v7437 = vmul.f32 %v7373, %v7373
  %v7438 = vmul.f32 %v7374, %v7374
  %v7439 = vmul.f32 %v7375, %v7375
  %v7440 = vmul.f32 %v7376, %v7376
  %v7441 = vmul.f32 %v7377, %v7377
  %v7442 = vmul.f32 %v7378, %v7378
  %v7443 = vmul.f32 %v7379, %v7379
  %v7444 = vmul.f32 %v7380, %v7380
  %v7445 = vmul.f32 %v7381, %v7381
  %v7446 = vmul.f32 %v7382, %v7382
  %v7447 = vmul.f32 %v7383, %v7383
  %v7448 = vmul.f32 %v7384, %v7384
  %v7449 = vmul.f32 %v7385, %v7385
  %v7450 = vmul.f32 %v7386, %v7386
  %v7451 = vmul.f32 %v7387, %v7387
  %v7452 = vmul.f32 %v7388, %v7388
  %v7453 = vmul.f32 %v7389, %v7389
  %v7454 = vmul.f32 %v7390, %v7390
  %v7455 = vmul.f32 %v7391, %v7391
  %v7456 = vmul.f32 %v7392, %v7392
  %v7457 = vmul.f32 %v7393, %v7393
  %v7458 = vmul.f32 %v7394, %v7394
  %v7459 = vmul.f32 %v7395, %v7395
  %v7460 = vmul.f32 %v7396, %v7396
  %v7461 = vmul.f32 %v7397, %v7397
  %v7462 = vmul.f32 %v7398, %v7398
  %v7463 = vmul.f32 %v7399, %v7399
  %v7464 = vmul.f32 %v7400, %v7400
  %v7465 = vmul.f32 %v7401, %v7401
  %v7466 = vmul.f32 %v7402, %v7402
  %v7467 = vmul.f32 %v7403, %v7403
  %v7468 = vmul.f32 %v7404, %v7404
  %v7469 = vmul.f32 %v7405, %v7405
  %v7470 = vmul.f32 %v7406, %v7406
  %v7471 = vmul.f32 %v7407, %v7407
  %v7472 = vmul.f32 %v7408, %v7408
  %v7473 = vmul.f32 %v7409, %v7409
  %v7474 = vmul.f32 %v7410, %v7410
  %v7475 = vmul.f32 %v7411, %v7411
  %v7476 = vmul.f32 %v7412, %v7412
  %v7477 = vmul.f32 %v7413, %v7413
  %v7478 = vadd.f32 %v7414, %v7415
  %v7479 = vadd.f32 %v7478, %v7416
  %v7480 = vadd.f32 %v7479, %v7417
  %v7481 = vadd.f32 %v7480, %v7418
  %v7482 = vadd.f32 %v7481, %v7419
  %v7483 = vadd.f32 %v7482, %v7420
  %v7484 = vadd.f32 %v7483, %v7421
  %v7485 = vadd.f32 %v7484, %v7422
  %v7486 = vadd.f32 %v7485, %v7423
  %v7487 = vadd.f32 %v7486, %v7424
  %v7488 = vadd.f32 %v7487, %v7425
  %v7489 = vadd.f32 %v7488, %v7426
  %v7490 = vadd.f32 %v7489, %v7427
  %v7491 = vadd.f32 %v7490, %v7428
  %v7492 = vadd.f32 %v7491, %v7429
  %v7493 = vadd.f32 %v7492, %v7430
  %v7494 = vadd.f32 %v7493, %v7431
  %v7495 = vadd.f32 %v7494, %v7432
  %v7496 = vadd.f32 %v7495, %v7433
  %v7497 = vadd.f32 %v7496, %v7434
  %v7498 = vadd.f32 %v7497, %v7435
  %v7499 = vadd.f32 %v7498, %v7436
  %v7500 = vadd.f32 %v7499, %v7437
  %v7501 = vadd.f32 %v7500, %v7438
  %v7502 = vadd.f32 %v7501, %v7439
  %v7503 = vadd.f32 %v7502, %v7440
  %v7504 = vadd.f32 %v7503, %v7441
  %v7505 = vadd.f32 %v7504, %v7442
  %v7506 = vadd.f32 %v7505, %v7443
  %v7507 = vadd.f32 %v7506, %v7444
  %v7508 = vadd.f32 %v7507, %v7445
  %v7509 = vadd.f32 %v7508, %v7446
  %v7510 = vadd.f32 %v7509, %v7447
  %v7511 = vadd.f32 %v7510, %v7448
  %v7512 = vadd.f32 %v7511, %v7449
  %v7513 = vadd.f32 %v7512, %v7450
  %v7514 = vadd.f32 %v7513, %v7451
  %v7515 = vadd.f32 %v7514, %v7452
  %v7516 = vadd.f32 %v7515, %v7453
  %v7517 = vadd.f32 %v7516, %v7454
  %v7518 = vadd.f32 %v7517, %v7455
  %v7519 = vadd.f32 %v7518, %v7456
  %v7520 = vadd.f32 %v7519, %v7457
  %v7521 = vadd.f32 %v7520, %v7458
  %v7522 = vadd.f32 %v7521, %v7459
  %v7523 = vadd.f32 %v7522, %v7460
  %v7524 = vadd.f32 %v7523, %v7461
  %v7525 = vadd.f32 %v7524, %v7462
  %v7526 = vadd.f32 %v7525, %v7463
  %v7527 = vadd.f32 %v7526, %v7464
  %v7528 = vadd.f32 %v7527, %v7465
  %v7529 = vadd.f32 %v7528, %v7466
  %v7530 = vadd.f32 %v7529, %v7467
  %v7531 = vadd.f32 %v7530, %v7468
  %v7532 = vadd.f32 %v7531, %v7469
  %v7533 = vadd.f32 %v7532, %v7470
  %v7534 = vadd.f32 %v7533, %v7471
  %v7535 = vadd.f32 %v7534, %v7472
  %v7536 = vadd.f32 %v7535, %v7473
  %v7537 = vadd.f32 %v7536, %v7474
  %v7538 = vadd.f32 %v7537, %v7475
  %v7539 = vadd.f32 %v7538, %v7476
  %v7540 = vadd.f32 %v7539, %v7477
  %v7541 = vrot.slane %v7540, 4
  %v7542 = vadd.f32 %v7540, %v7541
  %v7543 = vrot.slane %v7542, 2
  %v7544 = vadd.f32 %v7542, %v7543
  %v7545 = vrot.slane %v7544, 1
  %v7546 = vadd.f32 %v7544, %v7545
  %v7547 = vmul.f32 %v7546, %v555
  %v7548 = vadd.f32 %v7547, 1e-05
  %v7549 = vrsqrt.pop %v7548
  %v7550 = vmul.f32 %v7350, %v7549
  %v7551 = vmul.f32 %v7351, %v7549
  %v7552 = vmul.f32 %v7352, %v7549
  %v7553 = vmul.f32 %v7353, %v7549
  %v7554 = vmul.f32 %v7354, %v7549
  %v7555 = vmul.f32 %v7355, %v7549
  %v7556 = vmul.f32 %v7356, %v7549
  %v7557 = vmul.f32 %v7357, %v7549
  %v7558 = vmul.f32 %v7358, %v7549
  %v7559 = vmul.f32 %v7359, %v7549
  %v7560 = vmul.f32 %v7360, %v7549
  %v7561 = vmul.f32 %v7361, %v7549
  %v7562 = vmul.f32 %v7362, %v7549
  %v7563 = vmul.f32 %v7363, %v7549
  %v7564 = vmul.f32 %v7364, %v7549
  %v7565 = vmul.f32 %v7365, %v7549
  %v7566 = vmul.f32 %v7366, %v7549
  %v7567 = vmul.f32 %v7367, %v7549
  %v7568 = vmul.f32 %v7368, %v7549
  %v7569 = vmul.f32 %v7369, %v7549
  %v7570 = vmul.f32 %v7370, %v7549
  %v7571 = vmul.f32 %v7371, %v7549
  %v7572 = vmul.f32 %v7372, %v7549
  %v7573 = vmul.f32 %v7373, %v7549
  %v7574 = vmul.f32 %v7374, %v7549
  %v7575 = vmul.f32 %v7375, %v7549
  %v7576 = vmul.f32 %v7376, %v7549
  %v7577 = vmul.f32 %v7377, %v7549
  %v7578 = vmul.f32 %v7378, %v7549
  %v7579 = vmul.f32 %v7379, %v7549
  %v7580 = vmul.f32 %v7380, %v7549
  %v7581 = vmul.f32 %v7381, %v7549
  %v7582 = vmul.f32 %v7382, %v7549
  %v7583 = vmul.f32 %v7383, %v7549
  %v7584 = vmul.f32 %v7384, %v7549
  %v7585 = vmul.f32 %v7385, %v7549
  %v7586 = vmul.f32 %v7386, %v7549
  %v7587 = vmul.f32 %v7387, %v7549
  %v7588 = vmul.f32 %v7388, %v7549
  %v7589 = vmul.f32 %v7389, %v7549
  %v7590 = vmul.f32 %v7390, %v7549
  %v7591 = vmul.f32 %v7391, %v7549
  %v7592 = vmul.f32 %v7392, %v7549
  %v7593 = vmul.f32 %v7393, %v7549
  %v7594 = vmul.f32 %v7394, %v7549
  %v7595 = vmul.f32 %v7395, %v7549
  %v7596 = vmul.f32 %v7396, %v7549
  %v7597 = vmul.f32 %v7397, %v7549
  %v7598 = vmul.f32 %v7398, %v7549
  %v7599 = vmul.f32 %v7399, %v7549
  %v7600 = vmul.f32 %v7400, %v7549
  %v7601 = vmul.f32 %v7401, %v7549
  %v7602 = vmul.f32 %v7402, %v7549
  %v7603 = vmul.f32 %v7403, %v7549
  %v7604 = vmul.f32 %v7404, %v7549
  %v7605 = vmul.f32 %v7405, %v7549
  %v7606 = vmul.f32 %v7406, %v7549
  %v7607 = vmul.f32 %v7407, %v7549
  %v7608 = vmul.f32 %v7408, %v7549
  %v7609 = vmul.f32 %v7409, %v7549
  %v7610 = vmul.f32 %v7410, %v7549
  %v7611 = vmul.f32 %v7411, %v7549
  %v7612 = vmul.f32 %v7412, %v7549
  %v7613 = vmul.f32 %v7413, %v7549
  %v7614 = vlaneseq
  %v7615 = vshrl.u32 %v7614, 7
  %v7616 = vsub.s32 2, %v7615
  %v7617 = vrot.slane %v20, %v7616
  %v7618 = vmul.f32 %v7550, %v7617
  %v7619 = vmul.f32 %v7551, %v7617
  %v7620 = vmul.f32 %v7552, %v7617
  %v7621 = vmul.f32 %v7553, %v7617
  %v7622 = vmul.f32 %v7554, %v7617
  %v7623 = vmul.f32 %v7555, %v7617
  %v7624 = vmul.f32 %v7556, %v7617
  %v7625 = vmul.f32 %v7557, %v7617
  %v7626 = vmul.f32 %v7558, %v7617
  %v7627 = vmul.f32 %v7559, %v7617
  %v7628 = vmul.f32 %v7560, %v7617
  %v7629 = vmul.f32 %v7561, %v7617
  %v7630 = vmul.f32 %v7562, %v7617
  %v7631 = vmul.f32 %v7563, %v7617
  %v7632 = vmul.f32 %v7564, %v7617
  %v7633 = vmul.f32 %v7565, %v7617
  %v7634 = vmul.f32 %v7566, %v7617
  %v7635 = vmul.f32 %v7567, %v7617
  %v7636 = vmul.f32 %v7568, %v7617
  %v7637 = vmul.f32 %v7569, %v7617
  %v7638 = vmul.f32 %v7570, %v7617
  %v7639 = vmul.f32 %v7571, %v7617
  %v7640 = vmul.f32 %v7572, %v7617
  %v7641 = vmul.f32 %v7573, %v7617
  %v7642 = vmul.f32 %v7574, %v7617
  %v7643 = vmul.f32 %v7575, %v7617
  %v7644 = vmul.f32 %v7576, %v7617
  %v7645 = vmul.f32 %v7577, %v7617
  %v7646 = vmul.f32 %v7578, %v7617
  %v7647 = vmul.f32 %v7579, %v7617
  %v7648 = vmul.f32 %v7580, %v7617
  %v7649 = vmul.f32 %v7581, %v7617
  %v7650 = vmul.f32 %v7582, %v7617
  %v7651 = vmul.f32 %v7583, %v7617
  %v7652 = vmul.f32 %v7584, %v7617
  %v7653 = vmul.f32 %v7585, %v7617
  %v7654 = vmul.f32 %v7586, %v7617
  %v7655 = vmul.f32 %v7587, %v7617
  %v7656 = vmul.f32 %v7588, %v7617
  %v7657 = vmul.f32 %v7589, %v7617
  %v7658 = vmul.f32 %v7590, %v7617
  %v7659 = vmul.f32 %v7591, %v7617
  %v7660 = vmul.f32 %v7592, %v7617
  %v7661 = vmul.f32 %v7593, %v7617
  %v7662 = vmul.f32 %v7594, %v7617
  %v7663 = vmul.f32 %v7595, %v7617
  %v7664 = vmul.f32 %v7596, %v7617
  %v7665 = vmul.f32 %v7597, %v7617
  %v7666 = vmul.f32 %v7598, %v7617
  %v7667 = vmul.f32 %v7599, %v7617
  %v7668 = vmul.f32 %v7600, %v7617
  %v7669 = vmul.f32 %v7601, %v7617
  %v7670 = vmul.f32 %v7602, %v7617
  %v7671 = vmul.f32 %v7603, %v7617
  %v7672 = vmul.f32 %v7604, %v7617
  %v7673 = vmul.f32 %v7605, %v7617
  %v7674 = vmul.f32 %v7606, %v7617
  %v7675 = vmul.f32 %v7607, %v7617
  %v7676 = vmul.f32 %v7608, %v7617
  %v7677 = vmul.f32 %v7609, %v7617
  %v7678 = vmul.f32 %v7610, %v7617
  %v7679 = vmul.f32 %v7611, %v7617
  %v7680 = vmul.f32 %v7612, %v7617
  %v7681 = vmul.f32 %v7613, %v7617
  %v7682 = vlaneseq
  %v7683 = vshrl.u32 %v7682, 7
  %v7684 = vsub.s32 3, %v7683
  %v7685 = vrot.slane %v20, %v7684
  %v7686 = vadd.f32 %v7618, %v7685
  %v7687 = vadd.f32 %v7619, %v7685
  %v7688 = vadd.f32 %v7620, %v7685
  %v7689 = vadd.f32 %v7621, %v7685
  %v7690 = vadd.f32 %v7622, %v7685
  %v7691 = vadd.f32 %v7623, %v7685
  %v7692 = vadd.f32 %v7624, %v7685
  %v7693 = vadd.f32 %v7625, %v7685
  %v7694 = vadd.f32 %v7626, %v7685
  %v7695 = vadd.f32 %v7627, %v7685
  %v7696 = vadd.f32 %v7628, %v7685
  %v7697 = vadd.f32 %v7629, %v7685
  %v7698 = vadd.f32 %v7630, %v7685
  %v7699 = vadd.f32 %v7631, %v7685
  %v7700 = vadd.f32 %v7632, %v7685
  %v7701 = vadd.f32 %v7633, %v7685
  %v7702 = vadd.f32 %v7634, %v7685
  %v7703 = vadd.f32 %v7635, %v7685
  %v7704 = vadd.f32 %v7636, %v7685
  %v7705 = vadd.f32 %v7637, %v7685
  %v7706 = vadd.f32 %v7638, %v7685
  %v7707 = vadd.f32 %v7639, %v7685
  %v7708 = vadd.f32 %v7640, %v7685
  %v7709 = vadd.f32 %v7641, %v7685
  %v7710 = vadd.f32 %v7642, %v7685
  %v7711 = vadd.f32 %v7643, %v7685
  %v7712 = vadd.f32 %v7644, %v7685
  %v7713 = vadd.f32 %v7645, %v7685
  %v7714 = vadd.f32 %v7646, %v7685
  %v7715 = vadd.f32 %v7647, %v7685
  %v7716 = vadd.f32 %v7648, %v7685
  %v7717 = vadd.f32 %v7649, %v7685
  %v7718 = vadd.f32 %v7650, %v7685
  %v7719 = vadd.f32 %v7651, %v7685
  %v7720 = vadd.f32 %v7652, %v7685
  %v7721 = vadd.f32 %v7653, %v7685
  %v7722 = vadd.f32 %v7654, %v7685
  %v7723 = vadd.f32 %v7655, %v7685
  %v7724 = vadd.f32 %v7656, %v7685
  %v7725 = vadd.f32 %v7657, %v7685
  %v7726 = vadd.f32 %v7658, %v7685
  %v7727 = vadd.f32 %v7659, %v7685
  %v7728 = vadd.f32 %v7660, %v7685
  %v7729 = vadd.f32 %v7661, %v7685
  %v7730 = vadd.f32 %v7662, %v7685
  %v7731 = vadd.f32 %v7663, %v7685
  %v7732 = vadd.f32 %v7664, %v7685
  %v7733 = vadd.f32 %v7665, %v7685
  %v7734 = vadd.f32 %v7666, %v7685
  %v7735 = vadd.f32 %v7667, %v7685
  %v7736 = vadd.f32 %v7668, %v7685
  %v7737 = vadd.f32 %v7669, %v7685
  %v7738 = vadd.f32 %v7670, %v7685
  %v7739 = vadd.f32 %v7671, %v7685
  %v7740 = vadd.f32 %v7672, %v7685
  %v7741 = vadd.f32 %v7673, %v7685
  %v7742 = vadd.f32 %v7674, %v7685
  %v7743 = vadd.f32 %v7675, %v7685
  %v7744 = vadd.f32 %v7676, %v7685
  %v7745 = vadd.f32 %v7677, %v7685
  %v7746 = vadd.f32 %v7678, %v7685
  %v7747 = vadd.f32 %v7679, %v7685
  %v7748 = vadd.f32 %v7680, %v7685
  %v7749 = vadd.f32 %v7681, %v7685
  %v7750 = vmax.f32 %v7686, 0.0
  %v7751 = vmax.f32 %v7687, 0.0
  %v7752 = vmax.f32 %v7688, 0.0
  %v7753 = vmax.f32 %v7689, 0.0
  %v7754 = vmax.f32 %v7690, 0.0
  %v7755 = vmax.f32 %v7691, 0.0
  %v7756 = vmax.f32 %v7692, 0.0
  %v7757 = vmax.f32 %v7693, 0.0
  %v7758 = vmax.f32 %v7694, 0.0
  %v7759 = vmax.f32 %v7695, 0.0
  %v7760 = vmax.f32 %v7696, 0.0
  %v7761 = vmax.f32 %v7697, 0.0
  %v7762 = vmax.f32 %v7698, 0.0
  %v7763 = vmax.f32 %v7699, 0.0
  %v7764 = vmax.f32 %v7700, 0.0
  %v7765 = vmax.f32 %v7701, 0.0
  %v7766 = vmax.f32 %v7702, 0.0
  %v7767 = vmax.f32 %v7703, 0.0
  %v7768 = vmax.f32 %v7704, 0.0
  %v7769 = vmax.f32 %v7705, 0.0
  %v7770 = vmax.f32 %v7706, 0.0
  %v7771 = vmax.f32 %v7707, 0.0
  %v7772 = vmax.f32 %v7708, 0.0
  %v7773 = vmax.f32 %v7709, 0.0
  %v7774 = vmax.f32 %v7710, 0.0
  %v7775 = vmax.f32 %v7711, 0.0
  %v7776 = vmax.f32 %v7712, 0.0
  %v7777 = vmax.f32 %v7713, 0.0
  %v7778 = vmax.f32 %v7714, 0.0
  %v7779 = vmax.f32 %v7715, 0.0
  %v7780 = vmax.f32 %v7716, 0.0
  %v7781 = vmax.f32 %v7717, 0.0
  %v7782 = vmax.f32 %v7718, 0.0
  %v7783 = vmax.f32 %v7719, 0.0
  %v7784 = vmax.f32 %v7720, 0.0
  %v7785 = vmax.f32 %v7721, 0.0
  %v7786 = vmax.f32 %v7722, 0.0
  %v7787 = vmax.f32 %v7723, 0.0
  %v7788 = vmax.f32 %v7724, 0.0
  %v7789 = vmax.f32 %v7725, 0.0
  %v7790 = vmax.f32 %v7726, 0.0
  %v7791 = vmax.f32 %v7727, 0.0
  %v7792 = vmax.f32 %v7728, 0.0
  %v7793 = vmax.f32 %v7729, 0.0
  %v7794 = vmax.f32 %v7730, 0.0
  %v7795 = vmax.f32 %v7731, 0.0
  %v7796 = vmax.f32 %v7732, 0.0
  %v7797 = vmax.f32 %v7733, 0.0
  %v7798 = vmax.f32 %v7734, 0.0
  %v7799 = vmax.f32 %v7735, 0.0
  %v7800 = vmax.f32 %v7736, 0.0
  %v7801 = vmax.f32 %v7737, 0.0
  %v7802 = vmax.f32 %v7738, 0.0
  %v7803 = vmax.f32 %v7739, 0.0
  %v7804 = vmax.f32 %v7740, 0.0
  %v7805 = vmax.f32 %v7741, 0.0
  %v7806 = vmax.f32 %v7742, 0.0
  %v7807 = vmax.f32 %v7743, 0.0
  %v7808 = vmax.f32 %v7744, 0.0
  %v7809 = vmax.f32 %v7745, 0.0
  %v7810 = vmax.f32 %v7746, 0.0
  %v7811 = vmax.f32 %v7747, 0.0
  %v7812 = vmax.f32 %v7748, 0.0
  %v7813 = vmax.f32 %v7749, 0.0
  %v7814 = vld [vmem:[%s3] sm:$0xff]
  %v7815 = vld [vmem:[%s3 + $0x8] sm:$0xff]
  %v7816 = vld [vmem:[%s3 + $0x10] sm:$0xff]
  %v7817 = vld [vmem:[%s3 + $0x18] sm:$0xff]
  %v7818 = vld [vmem:[%s3 + $0x20] sm:$0xff]
  %v7819 = vld [vmem:[%s3 + $0x28] sm:$0xff]
  %v7820 = vld [vmem:[%s3 + $0x30] sm:$0xff]
  %v7821 = vld [vmem:[%s3 + $0x38] sm:$0xff]
  %v7822 = vld [vmem:[%s3 + $0x40] sm:$0xff]
  %v7823 = vld [vmem:[%s3 + $0x48] sm:$0xff]
  %v7824 = vld [vmem:[%s3 + $0x50] sm:$0xff]
  %v7825 = vld [vmem:[%s3 + $0x58] sm:$0xff]
  %v7826 = vld [vmem:[%s3 + $0x60] sm:$0xff]
  %v7827 = vld [vmem:[%s3 + $0x68] sm:$0xff]
  %v7828 = vld [vmem:[%s3 + $0x70] sm:$0xff]
  %v7829 = vld [vmem:[%s3 + $0x78] sm:$0xff]
  %7830 = vmatprep.subr.mxu0 0.0
  %7831 = vmatpush1.msra.mxu0 %v7829
  %7832 = vmatprep.subr.mxu0 0.0
  %7833 = vmatpush1.msra.mxu0 %v7828
  %7834 = vmatprep.subr.mxu0 0.0
  %7835 = vmatpush1.msra.mxu0 %v7827
  %7836 = vmatprep.subr.mxu0 0.0
  %7837 = vmatpush1.msra.mxu0 %v7826
  %7838 = vmatprep.subr.mxu0 0.0
  %7839 = vmatpush1.msra.mxu0 %v7825
  %7840 = vmatprep.subr.mxu0 0.0
  %7841 = vmatpush1.msra.mxu0 %v7824
  %7842 = vmatprep.subr.mxu0 0.0
  %7843 = vmatpush1.msra.mxu0 %v7823
  %7844 = vmatprep.subr.mxu0 0.0
  %7845 = vmatpush1.msra.mxu0 %v7822
  %7846 = vmatprep.subr.mxu0 0.0
  %7847 = vmatpush1.msra.mxu0 %v7821
  %7848 = vmatprep.subr.mxu0 0.0
  %7849 = vmatpush1.msra.mxu0 %v7820
  %7850 = vmatprep.subr.mxu0 0.0
  %7851 = vmatpush1.msra.mxu0 %v7819
  %7852 = vmatprep.subr.mxu0 0.0
  %7853 = vmatpush1.msra.mxu0 %v7818
  %7854 = vmatprep.subr.mxu0 0.0
  %7855 = vmatpush1.msra.mxu0 %v7817
  %7856 = vmatprep.subr.mxu0 0.0
  %7857 = vmatpush1.msra.mxu0 %v7816
  %7858 = vmatprep.subr.mxu0 0.0
  %7859 = vmatpush1.msra.mxu0 %v7815
  %7860 = vmatprep.subr.mxu0 0.0
  %7861 = vmatpush1.msra.mxu0 %v7814
  %7862 = vmatprep.subr.mxu0 0.0
  %7863 = vmatpush2.msra.mxu0 0.0
  %7864 = vmatprep.subr.mxu0 0.0
  %7865 = vmatpush2.msra.mxu0 0.0
  %7866 = vmatprep.subr.mxu0 0.0
  %7867 = vmatpush2.msra.mxu0 0.0
  %7868 = vmatprep.subr.mxu0 0.0
  %7869 = vmatpush2.msra.mxu0 0.0
  %7870 = vmatprep.subr.mxu0 0.0
  %7871 = vmatpush2.msra.mxu0 0.0
  %7872 = vmatprep.subr.mxu0 0.0
  %7873 = vmatpush2.msra.mxu0 0.0
  %7874 = vmatprep.subr.mxu0 0.0
  %7875 = vmatpush2.msra.mxu0 0.0
  %7876 = vmatprep.subr.mxu0 0.0
  %7877 = vmatpush2.msra.mxu0 0.0
  %7878 = vmatprep.subr.mxu0 0.0
  %7879 = vmatpush2.msra.mxu0 0.0
  %7880 = vmatprep.subr.mxu0 0.0
  %7881 = vmatpush2.msra.mxu0 0.0
  %7882 = vmatprep.subr.mxu0 0.0
  %7883 = vmatpush2.msra.mxu0 0.0
  %7884 = vmatprep.subr.mxu0 0.0
  %7885 = vmatpush2.msra.mxu0 0.0
  %7886 = vmatprep.subr.mxu0 0.0
  %7887 = vmatpush2.msra.mxu0 0.0
  %7888 = vmatprep.subr.mxu0 0.0
  %7889 = vmatpush2.msra.mxu0 0.0
  %7890 = vmatprep.subr.mxu0 0.0
  %7891 = vmatpush2.msra.mxu0 0.0
  %7892 = vmatprep.subr.mxu0 0.0
  %7893 = vmatpush2.msra.mxu0 0.0
  %7894 = vmatprep.mubr.f32.mxu0 0.0
  %7895 = vmatmul.mubr.f32.gmra.mxu0 %v7750
  %v7896 = vpop.f32.mrf.mxu0
  %v7897 = vadd.f32 0.0, %v7896
  %v7898 = vpop.f32.mrf.mxu0
  %7899 = vmatprep.mubr.f32.mxu0 0.0
  %7900 = vmatmul.mubr.f32.gmra.mxu0 %v7751
  %v7901 = vpop.f32.mrf.mxu0
  %v7902 = vadd.f32 0.0, %v7901
  %v7903 = vpop.f32.mrf.mxu0
  %7904 = vmatprep.mubr.f32.mxu0 0.0
  %7905 = vmatmul.mubr.f32.gmra.mxu0 %v7752
  %v7906 = vpop.f32.mrf.mxu0
  %v7907 = vadd.f32 0.0, %v7906
  %v7908 = vpop.f32.mrf.mxu0
  %7909 = vmatprep.mubr.f32.mxu0 0.0
  %7910 = vmatmul.mubr.f32.gmra.mxu0 %v7753
  %v7911 = vpop.f32.mrf.mxu0
  %v7912 = vadd.f32 0.0, %v7911
  %v7913 = vpop.f32.mrf.mxu0
  %7914 = vmatprep.mubr.f32.mxu0 0.0
  %7915 = vmatmul.mubr.f32.gmra.mxu0 %v7754
  %v7916 = vpop.f32.mrf.mxu0
  %v7917 = vadd.f32 0.0, %v7916
  %v7918 = vpop.f32.mrf.mxu0
  %7919 = vmatprep.mubr.f32.mxu0 0.0
  %7920 = vmatmul.mubr.f32.gmra.mxu0 %v7755
  %v7921 = vpop.f32.mrf.mxu0
  %v7922 = vadd.f32 0.0, %v7921
  %v7923 = vpop.f32.mrf.mxu0
  %7924 = vmatprep.mubr.f32.mxu0 0.0
  %7925 = vmatmul.mubr.f32.gmra.mxu0 %v7756
  %v7926 = vpop.f32.mrf.mxu0
  %v7927 = vadd.f32 0.0, %v7926
  %v7928 = vpop.f32.mrf.mxu0
  %7929 = vmatprep.mubr.f32.mxu0 0.0
  %7930 = vmatmul.mubr.f32.gmra.mxu0 %v7757
  %v7931 = vpop.f32.mrf.mxu0
  %v7932 = vadd.f32 0.0, %v7931
  %v7933 = vpop.f32.mrf.mxu0
  %7934 = vmatprep.mubr.f32.mxu0 0.0
  %7935 = vmatmul.mubr.f32.gmra.mxu0 %v7758
  %v7936 = vpop.f32.mrf.mxu0
  %v7937 = vadd.f32 0.0, %v7936
  %v7938 = vpop.f32.mrf.mxu0
  %7939 = vmatprep.mubr.f32.mxu0 0.0
  %7940 = vmatmul.mubr.f32.gmra.mxu0 %v7759
  %v7941 = vpop.f32.mrf.mxu0
  %v7942 = vadd.f32 0.0, %v7941
  %v7943 = vpop.f32.mrf.mxu0
  %7944 = vmatprep.mubr.f32.mxu0 0.0
  %7945 = vmatmul.mubr.f32.gmra.mxu0 %v7760
  %v7946 = vpop.f32.mrf.mxu0
  %v7947 = vadd.f32 0.0, %v7946
  %v7948 = vpop.f32.mrf.mxu0
  %7949 = vmatprep.mubr.f32.mxu0 0.0
  %7950 = vmatmul.mubr.f32.gmra.mxu0 %v7761
  %v7951 = vpop.f32.mrf.mxu0
  %v7952 = vadd.f32 0.0, %v7951
  %v7953 = vpop.f32.mrf.mxu0
  %7954 = vmatprep.mubr.f32.mxu0 0.0
  %7955 = vmatmul.mubr.f32.gmra.mxu0 %v7762
  %v7956 = vpop.f32.mrf.mxu0
  %v7957 = vadd.f32 0.0, %v7956
  %v7958 = vpop.f32.mrf.mxu0
  %7959 = vmatprep.mubr.f32.mxu0 0.0
  %7960 = vmatmul.mubr.f32.gmra.mxu0 %v7763
  %v7961 = vpop.f32.mrf.mxu0
  %v7962 = vadd.f32 0.0, %v7961
  %v7963 = vpop.f32.mrf.mxu0
  %7964 = vmatprep.mubr.f32.mxu0 0.0
  %7965 = vmatmul.mubr.f32.gmra.mxu0 %v7764
  %v7966 = vpop.f32.mrf.mxu0
  %v7967 = vadd.f32 0.0, %v7966
  %v7968 = vpop.f32.mrf.mxu0
  %7969 = vmatprep.mubr.f32.mxu0 0.0
  %7970 = vmatmul.mubr.f32.gmra.mxu0 %v7765
  %v7971 = vpop.f32.mrf.mxu0
  %v7972 = vadd.f32 0.0, %v7971
  %v7973 = vpop.f32.mrf.mxu0
  %7974 = vmatprep.mubr.f32.mxu0 0.0
  %7975 = vmatmul.mubr.f32.gmra.mxu0 %v7766
  %v7976 = vpop.f32.mrf.mxu0
  %v7977 = vadd.f32 0.0, %v7976
  %v7978 = vpop.f32.mrf.mxu0
  %7979 = vmatprep.mubr.f32.mxu0 0.0
  %7980 = vmatmul.mubr.f32.gmra.mxu0 %v7767
  %v7981 = vpop.f32.mrf.mxu0
  %v7982 = vadd.f32 0.0, %v7981
  %v7983 = vpop.f32.mrf.mxu0
  %7984 = vmatprep.mubr.f32.mxu0 0.0
  %7985 = vmatmul.mubr.f32.gmra.mxu0 %v7768
  %v7986 = vpop.f32.mrf.mxu0
  %v7987 = vadd.f32 0.0, %v7986
  %v7988 = vpop.f32.mrf.mxu0
  %7989 = vmatprep.mubr.f32.mxu0 0.0
  %7990 = vmatmul.mubr.f32.gmra.mxu0 %v7769
  %v7991 = vpop.f32.mrf.mxu0
  %v7992 = vadd.f32 0.0, %v7991
  %v7993 = vpop.f32.mrf.mxu0
  %7994 = vmatprep.mubr.f32.mxu0 0.0
  %7995 = vmatmul.mubr.f32.gmra.mxu0 %v7770
  %v7996 = vpop.f32.mrf.mxu0
  %v7997 = vadd.f32 0.0, %v7996
  %v7998 = vpop.f32.mrf.mxu0
  %7999 = vmatprep.mubr.f32.mxu0 0.0
  %8000 = vmatmul.mubr.f32.gmra.mxu0 %v7771
  %v8001 = vpop.f32.mrf.mxu0
  %v8002 = vadd.f32 0.0, %v8001
  %v8003 = vpop.f32.mrf.mxu0
  %8004 = vmatprep.mubr.f32.mxu0 0.0
  %8005 = vmatmul.mubr.f32.gmra.mxu0 %v7772
  %v8006 = vpop.f32.mrf.mxu0
  %v8007 = vadd.f32 0.0, %v8006
  %v8008 = vpop.f32.mrf.mxu0
  %8009 = vmatprep.mubr.f32.mxu0 0.0
  %8010 = vmatmul.mubr.f32.gmra.mxu0 %v7773
  %v8011 = vpop.f32.mrf.mxu0
  %v8012 = vadd.f32 0.0, %v8011
  %v8013 = vpop.f32.mrf.mxu0
  %8014 = vmatprep.mubr.f32.mxu0 0.0
  %8015 = vmatmul.mubr.f32.gmra.mxu0 %v7774
  %v8016 = vpop.f32.mrf.mxu0
  %v8017 = vadd.f32 0.0, %v8016
  %v8018 = vpop.f32.mrf.mxu0
  %8019 = vmatprep.mubr.f32.mxu0 0.0
  %8020 = vmatmul.mubr.f32.gmra.mxu0 %v7775
  %v8021 = vpop.f32.mrf.mxu0
  %v8022 = vadd.f32 0.0, %v8021
  %v8023 = vpop.f32.mrf.mxu0
  %8024 = vmatprep.mubr.f32.mxu0 0.0
  %8025 = vmatmul.mubr.f32.gmra.mxu0 %v7776
  %v8026 = vpop.f32.mrf.mxu0
  %v8027 = vadd.f32 0.0, %v8026
  %v8028 = vpop.f32.mrf.mxu0
  %8029 = vmatprep.mubr.f32.mxu0 0.0
  %8030 = vmatmul.mubr.f32.gmra.mxu0 %v7777
  %v8031 = vpop.f32.mrf.mxu0
  %v8032 = vadd.f32 0.0, %v8031
  %v8033 = vpop.f32.mrf.mxu0
  %8034 = vmatprep.mubr.f32.mxu0 0.0
  %8035 = vmatmul.mubr.f32.gmra.mxu0 %v7778
  %v8036 = vpop.f32.mrf.mxu0
  %v8037 = vadd.f32 0.0, %v8036
  %v8038 = vpop.f32.mrf.mxu0
  %8039 = vmatprep.mubr.f32.mxu0 0.0
  %8040 = vmatmul.mubr.f32.gmra.mxu0 %v7779
  %v8041 = vpop.f32.mrf.mxu0
  %v8042 = vadd.f32 0.0, %v8041
  %v8043 = vpop.f32.mrf.mxu0
  %8044 = vmatprep.mubr.f32.mxu0 0.0
  %8045 = vmatmul.mubr.f32.gmra.mxu0 %v7780
  %v8046 = vpop.f32.mrf.mxu0
  %v8047 = vadd.f32 0.0, %v8046
  %v8048 = vpop.f32.mrf.mxu0
  %8049 = vmatprep.mubr.f32.mxu0 0.0
  %8050 = vmatmul.mubr.f32.gmra.mxu0 %v7781
  %v8051 = vpop.f32.mrf.mxu0
  %v8052 = vadd.f32 0.0, %v8051
  %v8053 = vpop.f32.mrf.mxu0
  %8054 = vmatprep.mubr.f32.mxu0 0.0
  %8055 = vmatmul.mubr.f32.gmra.mxu0 %v7782
  %v8056 = vpop.f32.mrf.mxu0
  %v8057 = vadd.f32 0.0, %v8056
  %v8058 = vpop.f32.mrf.mxu0
  %8059 = vmatprep.mubr.f32.mxu0 0.0
  %8060 = vmatmul.mubr.f32.gmra.mxu0 %v7783
  %v8061 = vpop.f32.mrf.mxu0
  %v8062 = vadd.f32 0.0, %v8061
  %v8063 = vpop.f32.mrf.mxu0
  %8064 = vmatprep.mubr.f32.mxu0 0.0
  %8065 = vmatmul.mubr.f32.gmra.mxu0 %v7784
  %v8066 = vpop.f32.mrf.mxu0
  %v8067 = vadd.f32 0.0, %v8066
  %v8068 = vpop.f32.mrf.mxu0
  %8069 = vmatprep.mubr.f32.mxu0 0.0
  %8070 = vmatmul.mubr.f32.gmra.mxu0 %v7785
  %v8071 = vpop.f32.mrf.mxu0
  %v8072 = vadd.f32 0.0, %v8071
  %v8073 = vpop.f32.mrf.mxu0
  %8074 = vmatprep.mubr.f32.mxu0 0.0
  %8075 = vmatmul.mubr.f32.gmra.mxu0 %v7786
  %v8076 = vpop.f32.mrf.mxu0
  %v8077 = vadd.f32 0.0, %v8076
  %v8078 = vpop.f32.mrf.mxu0
  %8079 = vmatprep.mubr.f32.mxu0 0.0
  %8080 = vmatmul.mubr.f32.gmra.mxu0 %v7787
  %v8081 = vpop.f32.mrf.mxu0
  %v8082 = vadd.f32 0.0, %v8081
  %v8083 = vpop.f32.mrf.mxu0
  %8084 = vmatprep.mubr.f32.mxu0 0.0
  %8085 = vmatmul.mubr.f32.gmra.mxu0 %v7788
  %v8086 = vpop.f32.mrf.mxu0
  %v8087 = vadd.f32 0.0, %v8086
  %v8088 = vpop.f32.mrf.mxu0
  %8089 = vmatprep.mubr.f32.mxu0 0.0
  %8090 = vmatmul.mubr.f32.gmra.mxu0 %v7789
  %v8091 = vpop.f32.mrf.mxu0
  %v8092 = vadd.f32 0.0, %v8091
  %v8093 = vpop.f32.mrf.mxu0
  %8094 = vmatprep.mubr.f32.mxu0 0.0
  %8095 = vmatmul.mubr.f32.gmra.mxu0 %v7790
  %v8096 = vpop.f32.mrf.mxu0
  %v8097 = vadd.f32 0.0, %v8096
  %v8098 = vpop.f32.mrf.mxu0
  %8099 = vmatprep.mubr.f32.mxu0 0.0
  %8100 = vmatmul.mubr.f32.gmra.mxu0 %v7791
  %v8101 = vpop.f32.mrf.mxu0
  %v8102 = vadd.f32 0.0, %v8101
  %v8103 = vpop.f32.mrf.mxu0
  %8104 = vmatprep.mubr.f32.mxu0 0.0
  %8105 = vmatmul.mubr.f32.gmra.mxu0 %v7792
  %v8106 = vpop.f32.mrf.mxu0
  %v8107 = vadd.f32 0.0, %v8106
  %v8108 = vpop.f32.mrf.mxu0
  %8109 = vmatprep.mubr.f32.mxu0 0.0
  %8110 = vmatmul.mubr.f32.gmra.mxu0 %v7793
  %v8111 = vpop.f32.mrf.mxu0
  %v8112 = vadd.f32 0.0, %v8111
  %v8113 = vpop.f32.mrf.mxu0
  %8114 = vmatprep.mubr.f32.mxu0 0.0
  %8115 = vmatmul.mubr.f32.gmra.mxu0 %v7794
  %v8116 = vpop.f32.mrf.mxu0
  %v8117 = vadd.f32 0.0, %v8116
  %v8118 = vpop.f32.mrf.mxu0
  %8119 = vmatprep.mubr.f32.mxu0 0.0
  %8120 = vmatmul.mubr.f32.gmra.mxu0 %v7795
  %v8121 = vpop.f32.mrf.mxu0
  %v8122 = vadd.f32 0.0, %v8121
  %v8123 = vpop.f32.mrf.mxu0
  %8124 = vmatprep.mubr.f32.mxu0 0.0
  %8125 = vmatmul.mubr.f32.gmra.mxu0 %v7796
  %v8126 = vpop.f32.mrf.mxu0
  %v8127 = vadd.f32 0.0, %v8126
  %v8128 = vpop.f32.mrf.mxu0
  %8129 = vmatprep.mubr.f32.mxu0 0.0
  %8130 = vmatmul.mubr.f32.gmra.mxu0 %v7797
  %v8131 = vpop.f32.mrf.mxu0
  %v8132 = vadd.f32 0.0, %v8131
  %v8133 = vpop.f32.mrf.mxu0
  %8134 = vmatprep.mubr.f32.mxu0 0.0
  %8135 = vmatmul.mubr.f32.gmra.mxu0 %v7798
  %v8136 = vpop.f32.mrf.mxu0
  %v8137 = vadd.f32 0.0, %v8136
  %v8138 = vpop.f32.mrf.mxu0
  %8139 = vmatprep.mubr.f32.mxu0 0.0
  %8140 = vmatmul.mubr.f32.gmra.mxu0 %v7799
  %v8141 = vpop.f32.mrf.mxu0
  %v8142 = vadd.f32 0.0, %v8141
  %v8143 = vpop.f32.mrf.mxu0
  %8144 = vmatprep.mubr.f32.mxu0 0.0
  %8145 = vmatmul.mubr.f32.gmra.mxu0 %v7800
  %v8146 = vpop.f32.mrf.mxu0
  %v8147 = vadd.f32 0.0, %v8146
  %v8148 = vpop.f32.mrf.mxu0
  %8149 = vmatprep.mubr.f32.mxu0 0.0
  %8150 = vmatmul.mubr.f32.gmra.mxu0 %v7801
  %v8151 = vpop.f32.mrf.mxu0
  %v8152 = vadd.f32 0.0, %v8151
  %v8153 = vpop.f32.mrf.mxu0
  %8154 = vmatprep.mubr.f32.mxu0 0.0
  %8155 = vmatmul.mubr.f32.gmra.mxu0 %v7802
  %v8156 = vpop.f32.mrf.mxu0
  %v8157 = vadd.f32 0.0, %v8156
  %v8158 = vpop.f32.mrf.mxu0
  %8159 = vmatprep.mubr.f32.mxu0 0.0
  %8160 = vmatmul.mubr.f32.gmra.mxu0 %v7803
  %v8161 = vpop.f32.mrf.mxu0
  %v8162 = vadd.f32 0.0, %v8161
  %v8163 = vpop.f32.mrf.mxu0
  %8164 = vmatprep.mubr.f32.mxu0 0.0
  %8165 = vmatmul.mubr.f32.gmra.mxu0 %v7804
  %v8166 = vpop.f32.mrf.mxu0
  %v8167 = vadd.f32 0.0, %v8166
  %v8168 = vpop.f32.mrf.mxu0
  %8169 = vmatprep.mubr.f32.mxu0 0.0
  %8170 = vmatmul.mubr.f32.gmra.mxu0 %v7805
  %v8171 = vpop.f32.mrf.mxu0
  %v8172 = vadd.f32 0.0, %v8171
  %v8173 = vpop.f32.mrf.mxu0
  %8174 = vmatprep.mubr.f32.mxu0 0.0
  %8175 = vmatmul.mubr.f32.gmra.mxu0 %v7806
  %v8176 = vpop.f32.mrf.mxu0
  %v8177 = vadd.f32 0.0, %v8176
  %v8178 = vpop.f32.mrf.mxu0
  %8179 = vmatprep.mubr.f32.mxu0 0.0
  %8180 = vmatmul.mubr.f32.gmra.mxu0 %v7807
  %v8181 = vpop.f32.mrf.mxu0
  %v8182 = vadd.f32 0.0, %v8181
  %v8183 = vpop.f32.mrf.mxu0
  %8184 = vmatprep.mubr.f32.mxu0 0.0
  %8185 = vmatmul.mubr.f32.gmra.mxu0 %v7808
  %v8186 = vpop.f32.mrf.mxu0
  %v8187 = vadd.f32 0.0, %v8186
  %v8188 = vpop.f32.mrf.mxu0
  %8189 = vmatprep.mubr.f32.mxu0 0.0
  %8190 = vmatmul.mubr.f32.gmra.mxu0 %v7809
  %v8191 = vpop.f32.mrf.mxu0
  %v8192 = vadd.f32 0.0, %v8191
  %v8193 = vpop.f32.mrf.mxu0
  %8194 = vmatprep.mubr.f32.mxu0 0.0
  %8195 = vmatmul.mubr.f32.gmra.mxu0 %v7810
  %v8196 = vpop.f32.mrf.mxu0
  %v8197 = vadd.f32 0.0, %v8196
  %v8198 = vpop.f32.mrf.mxu0
  %8199 = vmatprep.mubr.f32.mxu0 0.0
  %8200 = vmatmul.mubr.f32.gmra.mxu0 %v7811
  %v8201 = vpop.f32.mrf.mxu0
  %v8202 = vadd.f32 0.0, %v8201
  %v8203 = vpop.f32.mrf.mxu0
  %8204 = vmatprep.mubr.f32.mxu0 0.0
  %8205 = vmatmul.mubr.f32.gmra.mxu0 %v7812
  %v8206 = vpop.f32.mrf.mxu0
  %v8207 = vadd.f32 0.0, %v8206
  %v8208 = vpop.f32.mrf.mxu0
  %8209 = vmatprep.mubr.f32.mxu0 0.0
  %8210 = vmatmul.mubr.f32.gmra.mxu0 %v7813
  %v8211 = vpop.f32.mrf.mxu0
  %v8212 = vadd.f32 0.0, %v8211
  %v8213 = vpop.f32.mrf.mxu0
  %8214 = vdwg.mxu0
  %v8215 = vadd.f32 %v7897, %v7902
  %v8216 = vadd.f32 %v8215, %v7907
  %v8217 = vadd.f32 %v8216, %v7912
  %v8218 = vadd.f32 %v8217, %v7917
  %v8219 = vadd.f32 %v8218, %v7922
  %v8220 = vadd.f32 %v8219, %v7927
  %v8221 = vadd.f32 %v8220, %v7932
  %v8222 = vadd.f32 %v8221, %v7937
  %v8223 = vadd.f32 %v8222, %v7942
  %v8224 = vadd.f32 %v8223, %v7947
  %v8225 = vadd.f32 %v8224, %v7952
  %v8226 = vadd.f32 %v8225, %v7957
  %v8227 = vadd.f32 %v8226, %v7962
  %v8228 = vadd.f32 %v8227, %v7967
  %v8229 = vadd.f32 %v8228, %v7972
  %v8230 = vadd.f32 %v8229, %v7977
  %v8231 = vadd.f32 %v8230, %v7982
  %v8232 = vadd.f32 %v8231, %v7987
  %v8233 = vadd.f32 %v8232, %v7992
  %v8234 = vadd.f32 %v8233, %v7997
  %v8235 = vadd.f32 %v8234, %v8002
  %v8236 = vadd.f32 %v8235, %v8007
  %v8237 = vadd.f32 %v8236, %v8012
  %v8238 = vadd.f32 %v8237, %v8017
  %v8239 = vadd.f32 %v8238, %v8022
  %v8240 = vadd.f32 %v8239, %v8027
  %v8241 = vadd.f32 %v8240, %v8032
  %v8242 = vadd.f32 %v8241, %v8037
  %v8243 = vadd.f32 %v8242, %v8042
  %v8244 = vadd.f32 %v8243, %v8047
  %v8245 = vadd.f32 %v8244, %v8052
  %v8246 = vadd.f32 %v8245, %v8057
  %v8247 = vadd.f32 %v8246, %v8062
  %v8248 = vadd.f32 %v8247, %v8067
  %v8249 = vadd.f32 %v8248, %v8072
  %v8250 = vadd.f32 %v8249, %v8077
  %v8251 = vadd.f32 %v8250, %v8082
  %v8252 = vadd.f32 %v8251, %v8087
  %v8253 = vadd.f32 %v8252, %v8092
  %v8254 = vadd.f32 %v8253, %v8097
  %v8255 = vadd.f32 %v8254, %v8102
  %v8256 = vadd.f32 %v8255, %v8107
  %v8257 = vadd.f32 %v8256, %v8112
  %v8258 = vadd.f32 %v8257, %v8117
  %v8259 = vadd.f32 %v8258, %v8122
  %v8260 = vadd.f32 %v8259, %v8127
  %v8261 = vadd.f32 %v8260, %v8132
  %v8262 = vadd.f32 %v8261, %v8137
  %v8263 = vadd.f32 %v8262, %v8142
  %v8264 = vadd.f32 %v8263, %v8147
  %v8265 = vadd.f32 %v8264, %v8152
  %v8266 = vadd.f32 %v8265, %v8157
  %v8267 = vadd.f32 %v8266, %v8162
  %v8268 = vadd.f32 %v8267, %v8167
  %v8269 = vadd.f32 %v8268, %v8172
  %v8270 = vadd.f32 %v8269, %v8177
  %v8271 = vadd.f32 %v8270, %v8182
  %v8272 = vadd.f32 %v8271, %v8187
  %v8273 = vadd.f32 %v8272, %v8192
  %v8274 = vadd.f32 %v8273, %v8197
  %v8275 = vadd.f32 %v8274, %v8202
  %v8276 = vadd.f32 %v8275, %v8207
  %v8277 = vadd.f32 %v8276, %v8212
  %v8278 = vrot.slane %v8277, 4
  %v8279 = vadd.f32 %v8277, %v8278
  %v8280 = vrot.slane %v8279, 2
  %v8281 = vadd.f32 %v8279, %v8280
  %v8282 = vrot.slane %v8281, 1
  %v8283 = vadd.f32 %v8281, %v8282
  %v8284 = vmul.f32 %v8283, %v555
  %v8285 = vsub.f32 %v7897, %v8284
  %v8286 = vsub.f32 %v7902, %v8284
  %v8287 = vsub.f32 %v7907, %v8284
  %v8288 = vsub.f32 %v7912, %v8284
  %v8289 = vsub.f32 %v7917, %v8284
  %v8290 = vsub.f32 %v7922, %v8284
  %v8291 = vsub.f32 %v7927, %v8284
  %v8292 = vsub.f32 %v7932, %v8284
  %v8293 = vsub.f32 %v7937, %v8284
  %v8294 = vsub.f32 %v7942, %v8284
  %v8295 = vsub.f32 %v7947, %v8284
  %v8296 = vsub.f32 %v7952, %v8284
  %v8297 = vsub.f32 %v7957, %v8284
  %v8298 = vsub.f32 %v7962, %v8284
  %v8299 = vsub.f32 %v7967, %v8284
  %v8300 = vsub.f32 %v7972, %v8284
  %v8301 = vsub.f32 %v7977, %v8284
  %v8302 = vsub.f32 %v7982, %v8284
  %v8303 = vsub.f32 %v7987, %v8284
  %v8304 = vsub.f32 %v7992, %v8284
  %v8305 = vsub.f32 %v7997, %v8284
  %v8306 = vsub.f32 %v8002, %v8284
  %v8307 = vsub.f32 %v8007, %v8284
  %v8308 = vsub.f32 %v8012, %v8284
  %v8309 = vsub.f32 %v8017, %v8284
  %v8310 = vsub.f32 %v8022, %v8284
  %v8311 = vsub.f32 %v8027, %v8284
  %v8312 = vsub.f32 %v8032, %v8284
  %v8313 = vsub.f32 %v8037, %v8284
  %v8314 = vsub.f32 %v8042, %v8284
  %v8315 = vsub.f32 %v8047, %v8284
  %v8316 = vsub.f32 %v8052, %v8284
  %v8317 = vsub.f32 %v8057, %v8284
  %v8318 = vsub.f32 %v8062, %v8284
  %v8319 = vsub.f32 %v8067, %v8284
  %v8320 = vsub.f32 %v8072, %v8284
  %v8321 = vsub.f32 %v8077, %v8284
  %v8322 = vsub.f32 %v8082, %v8284
  %v8323 = vsub.f32 %v8087, %v8284
  %v8324 = vsub.f32 %v8092, %v8284
  %v8325 = vsub.f32 %v8097, %v8284
  %v8326 = vsub.f32 %v8102, %v8284
  %v8327 = vsub.f32 %v8107, %v8284
  %v8328 = vsub.f32 %v8112, %v8284
  %v8329 = vsub.f32 %v8117, %v8284
  %v8330 = vsub.f32 %v8122, %v8284
  %v8331 = vsub.f32 %v8127, %v8284
  %v8332 = vsub.f32 %v8132, %v8284
  %v8333 = vsub.f32 %v8137, %v8284
  %v8334 = vsub.f32 %v8142, %v8284
  %v8335 = vsub.f32 %v8147, %v8284
  %v8336 = vsub.f32 %v8152, %v8284
  %v8337 = vsub.f32 %v8157, %v8284
  %v8338 = vsub.f32 %v8162, %v8284
  %v8339 = vsub.f32 %v8167, %v8284
  %v8340 = vsub.f32 %v8172, %v8284
  %v8341 = vsub.f32 %v8177, %v8284
  %v8342 = vsub.f32 %v8182, %v8284
  %v8343 = vsub.f32 %v8187, %v8284
  %v8344 = vsub.f32 %v8192, %v8284
  %v8345 = vsub.f32 %v8197, %v8284
  %v8346 = vsub.f32 %v8202, %v8284
  %v8347 = vsub.f32 %v8207, %v8284
  %v8348 = vsub.f32 %v8212, %v8284
  %v8349 = vmul.f32 %v8285, %v8285
  %v8350 = vmul.f32 %v8286, %v8286
  %v8351 = vmul.f32 %v8287, %v8287
  %v8352 = vmul.f32 %v8288, %v8288
  %v8353 = vmul.f32 %v8289, %v8289
  %v8354 = vmul.f32 %v8290, %v8290
  %v8355 = vmul.f32 %v8291, %v8291
  %v8356 = vmul.f32 %v8292, %v8292
  %v8357 = vmul.f32 %v8293, %v8293
  %v8358 = vmul.f32 %v8294, %v8294
  %v8359 = vmul.f32 %v8295, %v8295
  %v8360 = vmul.f32 %v8296, %v8296
  %v8361 = vmul.f32 %v8297, %v8297
  %v8362 = vmul.f32 %v8298, %v8298
  %v8363 = vmul.f32 %v8299, %v8299
  %v8364 = vmul.f32 %v8300, %v8300
  %v8365 = vmul.f32 %v8301, %v8301
  %v8366 = vmul.f32 %v8302, %v8302
  %v8367 = vmul.f32 %v8303, %v8303
  %v8368 = vmul.f32 %v8304, %v8304
  %v8369 = vmul.f32 %v8305, %v8305
  %v8370 = vmul.f32 %v8306, %v8306
  %v8371 = vmul.f32 %v8307, %v8307
  %v8372 = vmul.f32 %v8308, %v8308
  %v8373 = vmul.f32 %v8309, %v8309
  %v8374 = vmul.f32 %v8310, %v8310
  %v8375 = vmul.f32 %v8311, %v8311
  %v8376 = vmul.f32 %v8312, %v8312
  %v8377 = vmul.f32 %v8313, %v8313
  %v8378 = vmul.f32 %v8314, %v8314
  %v8379 = vmul.f32 %v8315, %v8315
  %v8380 = vmul.f32 %v8316, %v8316
  %v8381 = vmul.f32 %v8317, %v8317
  %v8382 = vmul.f32 %v8318, %v8318
  %v8383 = vmul.f32 %v8319, %v8319
  %v8384 = vmul.f32 %v8320, %v8320
  %v8385 = vmul.f32 %v8321, %v8321
  %v8386 = vmul.f32 %v8322, %v8322
  %v8387 = vmul.f32 %v8323, %v8323
  %v8388 = vmul.f32 %v8324, %v8324
  %v8389 = vmul.f32 %v8325, %v8325
  %v8390 = vmul.f32 %v8326, %v8326
  %v8391 = vmul.f32 %v8327, %v8327
  %v8392 = vmul.f32 %v8328, %v8328
  %v8393 = vmul.f32 %v8329, %v8329
  %v8394 = vmul.f32 %v8330, %v8330
  %v8395 = vmul.f32 %v8331, %v8331
  %v8396 = vmul.f32 %v8332, %v8332
  %v8397 = vmul.f32 %v8333, %v8333
  %v8398 = vmul.f32 %v8334, %v8334
  %v8399 = vmul.f32 %v8335, %v8335
  %v8400 = vmul.f32 %v8336, %v8336
  %v8401 = vmul.f32 %v8337, %v8337
  %v8402 = vmul.f32 %v8338, %v8338
  %v8403 = vmul.f32 %v8339, %v8339
  %v8404 = vmul.f32 %v8340, %v8340
  %v8405 = vmul.f32 %v8341, %v8341
  %v8406 = vmul.f32 %v8342, %v8342
  %v8407 = vmul.f32 %v8343, %v8343
  %v8408 = vmul.f32 %v8344, %v8344
  %v8409 = vmul.f32 %v8345, %v8345
  %v8410 = vmul.f32 %v8346, %v8346
  %v8411 = vmul.f32 %v8347, %v8347
  %v8412 = vmul.f32 %v8348, %v8348
  %v8413 = vadd.f32 %v8349, %v8350
  %v8414 = vadd.f32 %v8413, %v8351
  %v8415 = vadd.f32 %v8414, %v8352
  %v8416 = vadd.f32 %v8415, %v8353
  %v8417 = vadd.f32 %v8416, %v8354
  %v8418 = vadd.f32 %v8417, %v8355
  %v8419 = vadd.f32 %v8418, %v8356
  %v8420 = vadd.f32 %v8419, %v8357
  %v8421 = vadd.f32 %v8420, %v8358
  %v8422 = vadd.f32 %v8421, %v8359
  %v8423 = vadd.f32 %v8422, %v8360
  %v8424 = vadd.f32 %v8423, %v8361
  %v8425 = vadd.f32 %v8424, %v8362
  %v8426 = vadd.f32 %v8425, %v8363
  %v8427 = vadd.f32 %v8426, %v8364
  %v8428 = vadd.f32 %v8427, %v8365
  %v8429 = vadd.f32 %v8428, %v8366
  %v8430 = vadd.f32 %v8429, %v8367
  %v8431 = vadd.f32 %v8430, %v8368
  %v8432 = vadd.f32 %v8431, %v8369
  %v8433 = vadd.f32 %v8432, %v8370
  %v8434 = vadd.f32 %v8433, %v8371
  %v8435 = vadd.f32 %v8434, %v8372
  %v8436 = vadd.f32 %v8435, %v8373
  %v8437 = vadd.f32 %v8436, %v8374
  %v8438 = vadd.f32 %v8437, %v8375
  %v8439 = vadd.f32 %v8438, %v8376
  %v8440 = vadd.f32 %v8439, %v8377
  %v8441 = vadd.f32 %v8440, %v8378
  %v8442 = vadd.f32 %v8441, %v8379
  %v8443 = vadd.f32 %v8442, %v8380
  %v8444 = vadd.f32 %v8443, %v8381
  %v8445 = vadd.f32 %v8444, %v8382
  %v8446 = vadd.f32 %v8445, %v8383
  %v8447 = vadd.f32 %v8446, %v8384
  %v8448 = vadd.f32 %v8447, %v8385
  %v8449 = vadd.f32 %v8448, %v8386
  %v8450 = vadd.f32 %v8449, %v8387
  %v8451 = vadd.f32 %v8450, %v8388
  %v8452 = vadd.f32 %v8451, %v8389
  %v8453 = vadd.f32 %v8452, %v8390
  %v8454 = vadd.f32 %v8453, %v8391
  %v8455 = vadd.f32 %v8454, %v8392
  %v8456 = vadd.f32 %v8455, %v8393
  %v8457 = vadd.f32 %v8456, %v8394
  %v8458 = vadd.f32 %v8457, %v8395
  %v8459 = vadd.f32 %v8458, %v8396
  %v8460 = vadd.f32 %v8459, %v8397
  %v8461 = vadd.f32 %v8460, %v8398
  %v8462 = vadd.f32 %v8461, %v8399
  %v8463 = vadd.f32 %v8462, %v8400
  %v8464 = vadd.f32 %v8463, %v8401
  %v8465 = vadd.f32 %v8464, %v8402
  %v8466 = vadd.f32 %v8465, %v8403
  %v8467 = vadd.f32 %v8466, %v8404
  %v8468 = vadd.f32 %v8467, %v8405
  %v8469 = vadd.f32 %v8468, %v8406
  %v8470 = vadd.f32 %v8469, %v8407
  %v8471 = vadd.f32 %v8470, %v8408
  %v8472 = vadd.f32 %v8471, %v8409
  %v8473 = vadd.f32 %v8472, %v8410
  %v8474 = vadd.f32 %v8473, %v8411
  %v8475 = vadd.f32 %v8474, %v8412
  %v8476 = vrot.slane %v8475, 4
  %v8477 = vadd.f32 %v8475, %v8476
  %v8478 = vrot.slane %v8477, 2
  %v8479 = vadd.f32 %v8477, %v8478
  %v8480 = vrot.slane %v8479, 1
  %v8481 = vadd.f32 %v8479, %v8480
  %v8482 = vmul.f32 %v8481, %v555
  %v8483 = vadd.f32 %v8482, 1e-05
  %v8484 = vrsqrt.pop %v8483
  %v8485 = vmul.f32 %v8285, %v8484
  %v8486 = vmul.f32 %v8286, %v8484
  %v8487 = vmul.f32 %v8287, %v8484
  %v8488 = vmul.f32 %v8288, %v8484
  %v8489 = vmul.f32 %v8289, %v8484
  %v8490 = vmul.f32 %v8290, %v8484
  %v8491 = vmul.f32 %v8291, %v8484
  %v8492 = vmul.f32 %v8292, %v8484
  %v8493 = vmul.f32 %v8293, %v8484
  %v8494 = vmul.f32 %v8294, %v8484
  %v8495 = vmul.f32 %v8295, %v8484
  %v8496 = vmul.f32 %v8296, %v8484
  %v8497 = vmul.f32 %v8297, %v8484
  %v8498 = vmul.f32 %v8298, %v8484
  %v8499 = vmul.f32 %v8299, %v8484
  %v8500 = vmul.f32 %v8300, %v8484
  %v8501 = vmul.f32 %v8301, %v8484
  %v8502 = vmul.f32 %v8302, %v8484
  %v8503 = vmul.f32 %v8303, %v8484
  %v8504 = vmul.f32 %v8304, %v8484
  %v8505 = vmul.f32 %v8305, %v8484
  %v8506 = vmul.f32 %v8306, %v8484
  %v8507 = vmul.f32 %v8307, %v8484
  %v8508 = vmul.f32 %v8308, %v8484
  %v8509 = vmul.f32 %v8309, %v8484
  %v8510 = vmul.f32 %v8310, %v8484
  %v8511 = vmul.f32 %v8311, %v8484
  %v8512 = vmul.f32 %v8312, %v8484
  %v8513 = vmul.f32 %v8313, %v8484
  %v8514 = vmul.f32 %v8314, %v8484
  %v8515 = vmul.f32 %v8315, %v8484
  %v8516 = vmul.f32 %v8316, %v8484
  %v8517 = vmul.f32 %v8317, %v8484
  %v8518 = vmul.f32 %v8318, %v8484
  %v8519 = vmul.f32 %v8319, %v8484
  %v8520 = vmul.f32 %v8320, %v8484
  %v8521 = vmul.f32 %v8321, %v8484
  %v8522 = vmul.f32 %v8322, %v8484
  %v8523 = vmul.f32 %v8323, %v8484
  %v8524 = vmul.f32 %v8324, %v8484
  %v8525 = vmul.f32 %v8325, %v8484
  %v8526 = vmul.f32 %v8326, %v8484
  %v8527 = vmul.f32 %v8327, %v8484
  %v8528 = vmul.f32 %v8328, %v8484
  %v8529 = vmul.f32 %v8329, %v8484
  %v8530 = vmul.f32 %v8330, %v8484
  %v8531 = vmul.f32 %v8331, %v8484
  %v8532 = vmul.f32 %v8332, %v8484
  %v8533 = vmul.f32 %v8333, %v8484
  %v8534 = vmul.f32 %v8334, %v8484
  %v8535 = vmul.f32 %v8335, %v8484
  %v8536 = vmul.f32 %v8336, %v8484
  %v8537 = vmul.f32 %v8337, %v8484
  %v8538 = vmul.f32 %v8338, %v8484
  %v8539 = vmul.f32 %v8339, %v8484
  %v8540 = vmul.f32 %v8340, %v8484
  %v8541 = vmul.f32 %v8341, %v8484
  %v8542 = vmul.f32 %v8342, %v8484
  %v8543 = vmul.f32 %v8343, %v8484
  %v8544 = vmul.f32 %v8344, %v8484
  %v8545 = vmul.f32 %v8345, %v8484
  %v8546 = vmul.f32 %v8346, %v8484
  %v8547 = vmul.f32 %v8347, %v8484
  %v8548 = vmul.f32 %v8348, %v8484
  %v8549 = vlaneseq
  %v8550 = vshrl.u32 %v8549, 7
  %v8551 = vsub.s32 4, %v8550
  %v8552 = vrot.slane %v20, %v8551
  %v8553 = vmul.f32 %v8485, %v8552
  %v8554 = vmul.f32 %v8486, %v8552
  %v8555 = vmul.f32 %v8487, %v8552
  %v8556 = vmul.f32 %v8488, %v8552
  %v8557 = vmul.f32 %v8489, %v8552
  %v8558 = vmul.f32 %v8490, %v8552
  %v8559 = vmul.f32 %v8491, %v8552
  %v8560 = vmul.f32 %v8492, %v8552
  %v8561 = vmul.f32 %v8493, %v8552
  %v8562 = vmul.f32 %v8494, %v8552
  %v8563 = vmul.f32 %v8495, %v8552
  %v8564 = vmul.f32 %v8496, %v8552
  %v8565 = vmul.f32 %v8497, %v8552
  %v8566 = vmul.f32 %v8498, %v8552
  %v8567 = vmul.f32 %v8499, %v8552
  %v8568 = vmul.f32 %v8500, %v8552
  %v8569 = vmul.f32 %v8501, %v8552
  %v8570 = vmul.f32 %v8502, %v8552
  %v8571 = vmul.f32 %v8503, %v8552
  %v8572 = vmul.f32 %v8504, %v8552
  %v8573 = vmul.f32 %v8505, %v8552
  %v8574 = vmul.f32 %v8506, %v8552
  %v8575 = vmul.f32 %v8507, %v8552
  %v8576 = vmul.f32 %v8508, %v8552
  %v8577 = vmul.f32 %v8509, %v8552
  %v8578 = vmul.f32 %v8510, %v8552
  %v8579 = vmul.f32 %v8511, %v8552
  %v8580 = vmul.f32 %v8512, %v8552
  %v8581 = vmul.f32 %v8513, %v8552
  %v8582 = vmul.f32 %v8514, %v8552
  %v8583 = vmul.f32 %v8515, %v8552
  %v8584 = vmul.f32 %v8516, %v8552
  %v8585 = vmul.f32 %v8517, %v8552
  %v8586 = vmul.f32 %v8518, %v8552
  %v8587 = vmul.f32 %v8519, %v8552
  %v8588 = vmul.f32 %v8520, %v8552
  %v8589 = vmul.f32 %v8521, %v8552
  %v8590 = vmul.f32 %v8522, %v8552
  %v8591 = vmul.f32 %v8523, %v8552
  %v8592 = vmul.f32 %v8524, %v8552
  %v8593 = vmul.f32 %v8525, %v8552
  %v8594 = vmul.f32 %v8526, %v8552
  %v8595 = vmul.f32 %v8527, %v8552
  %v8596 = vmul.f32 %v8528, %v8552
  %v8597 = vmul.f32 %v8529, %v8552
  %v8598 = vmul.f32 %v8530, %v8552
  %v8599 = vmul.f32 %v8531, %v8552
  %v8600 = vmul.f32 %v8532, %v8552
  %v8601 = vmul.f32 %v8533, %v8552
  %v8602 = vmul.f32 %v8534, %v8552
  %v8603 = vmul.f32 %v8535, %v8552
  %v8604 = vmul.f32 %v8536, %v8552
  %v8605 = vmul.f32 %v8537, %v8552
  %v8606 = vmul.f32 %v8538, %v8552
  %v8607 = vmul.f32 %v8539, %v8552
  %v8608 = vmul.f32 %v8540, %v8552
  %v8609 = vmul.f32 %v8541, %v8552
  %v8610 = vmul.f32 %v8542, %v8552
  %v8611 = vmul.f32 %v8543, %v8552
  %v8612 = vmul.f32 %v8544, %v8552
  %v8613 = vmul.f32 %v8545, %v8552
  %v8614 = vmul.f32 %v8546, %v8552
  %v8615 = vmul.f32 %v8547, %v8552
  %v8616 = vmul.f32 %v8548, %v8552
  %v8617 = vlaneseq
  %v8618 = vshrl.u32 %v8617, 7
  %v8619 = vsub.s32 5, %v8618
  %v8620 = vrot.slane %v20, %v8619
  %v8621 = vadd.f32 %v8553, %v8620
  %v8622 = vadd.f32 %v8554, %v8620
  %v8623 = vadd.f32 %v8555, %v8620
  %v8624 = vadd.f32 %v8556, %v8620
  %v8625 = vadd.f32 %v8557, %v8620
  %v8626 = vadd.f32 %v8558, %v8620
  %v8627 = vadd.f32 %v8559, %v8620
  %v8628 = vadd.f32 %v8560, %v8620
  %v8629 = vadd.f32 %v8561, %v8620
  %v8630 = vadd.f32 %v8562, %v8620
  %v8631 = vadd.f32 %v8563, %v8620
  %v8632 = vadd.f32 %v8564, %v8620
  %v8633 = vadd.f32 %v8565, %v8620
  %v8634 = vadd.f32 %v8566, %v8620
  %v8635 = vadd.f32 %v8567, %v8620
  %v8636 = vadd.f32 %v8568, %v8620
  %v8637 = vadd.f32 %v8569, %v8620
  %v8638 = vadd.f32 %v8570, %v8620
  %v8639 = vadd.f32 %v8571, %v8620
  %v8640 = vadd.f32 %v8572, %v8620
  %v8641 = vadd.f32 %v8573, %v8620
  %v8642 = vadd.f32 %v8574, %v8620
  %v8643 = vadd.f32 %v8575, %v8620
  %v8644 = vadd.f32 %v8576, %v8620
  %v8645 = vadd.f32 %v8577, %v8620
  %v8646 = vadd.f32 %v8578, %v8620
  %v8647 = vadd.f32 %v8579, %v8620
  %v8648 = vadd.f32 %v8580, %v8620
  %v8649 = vadd.f32 %v8581, %v8620
  %v8650 = vadd.f32 %v8582, %v8620
  %v8651 = vadd.f32 %v8583, %v8620
  %v8652 = vadd.f32 %v8584, %v8620
  %v8653 = vadd.f32 %v8585, %v8620
  %v8654 = vadd.f32 %v8586, %v8620
  %v8655 = vadd.f32 %v8587, %v8620
  %v8656 = vadd.f32 %v8588, %v8620
  %v8657 = vadd.f32 %v8589, %v8620
  %v8658 = vadd.f32 %v8590, %v8620
  %v8659 = vadd.f32 %v8591, %v8620
  %v8660 = vadd.f32 %v8592, %v8620
  %v8661 = vadd.f32 %v8593, %v8620
  %v8662 = vadd.f32 %v8594, %v8620
  %v8663 = vadd.f32 %v8595, %v8620
  %v8664 = vadd.f32 %v8596, %v8620
  %v8665 = vadd.f32 %v8597, %v8620
  %v8666 = vadd.f32 %v8598, %v8620
  %v8667 = vadd.f32 %v8599, %v8620
  %v8668 = vadd.f32 %v8600, %v8620
  %v8669 = vadd.f32 %v8601, %v8620
  %v8670 = vadd.f32 %v8602, %v8620
  %v8671 = vadd.f32 %v8603, %v8620
  %v8672 = vadd.f32 %v8604, %v8620
  %v8673 = vadd.f32 %v8605, %v8620
  %v8674 = vadd.f32 %v8606, %v8620
  %v8675 = vadd.f32 %v8607, %v8620
  %v8676 = vadd.f32 %v8608, %v8620
  %v8677 = vadd.f32 %v8609, %v8620
  %v8678 = vadd.f32 %v8610, %v8620
  %v8679 = vadd.f32 %v8611, %v8620
  %v8680 = vadd.f32 %v8612, %v8620
  %v8681 = vadd.f32 %v8613, %v8620
  %v8682 = vadd.f32 %v8614, %v8620
  %v8683 = vadd.f32 %v8615, %v8620
  %v8684 = vadd.f32 %v8616, %v8620
  %v8685 = vld [vmem:[%s0] sm:$0xff]
  %v8686 = vld [vmem:[%s0 + $0x8] sm:$0xff]
  %v8687 = vld [vmem:[%s0 + $0x10] sm:$0xff]
  %v8688 = vld [vmem:[%s0 + $0x18] sm:$0xff]
  %v8689 = vld [vmem:[%s0 + $0x20] sm:$0xff]
  %v8690 = vld [vmem:[%s0 + $0x28] sm:$0xff]
  %v8691 = vld [vmem:[%s0 + $0x30] sm:$0xff]
  %v8692 = vld [vmem:[%s0 + $0x38] sm:$0xff]
  %v8693 = vld [vmem:[%s0 + $0x40] sm:$0xff]
  %v8694 = vld [vmem:[%s0 + $0x48] sm:$0xff]
  %v8695 = vld [vmem:[%s0 + $0x50] sm:$0xff]
  %v8696 = vld [vmem:[%s0 + $0x58] sm:$0xff]
  %v8697 = vld [vmem:[%s0 + $0x60] sm:$0xff]
  %v8698 = vld [vmem:[%s0 + $0x68] sm:$0xff]
  %v8699 = vld [vmem:[%s0 + $0x70] sm:$0xff]
  %v8700 = vld [vmem:[%s0 + $0x78] sm:$0xff]
  %v8701 = vld [vmem:[%s0 + $0x80] sm:$0xff]
  %v8702 = vld [vmem:[%s0 + $0x88] sm:$0xff]
  %v8703 = vld [vmem:[%s0 + $0x90] sm:$0xff]
  %v8704 = vld [vmem:[%s0 + $0x98] sm:$0xff]
  %v8705 = vld [vmem:[%s0 + $0xa0] sm:$0xff]
  %v8706 = vld [vmem:[%s0 + $0xa8] sm:$0xff]
  %v8707 = vld [vmem:[%s0 + $0xb0] sm:$0xff]
  %v8708 = vld [vmem:[%s0 + $0xb8] sm:$0xff]
  %v8709 = vld [vmem:[%s0 + $0xc0] sm:$0xff]
  %v8710 = vld [vmem:[%s0 + $0xc8] sm:$0xff]
  %v8711 = vld [vmem:[%s0 + $0xd0] sm:$0xff]
  %v8712 = vld [vmem:[%s0 + $0xd8] sm:$0xff]
  %v8713 = vld [vmem:[%s0 + $0xe0] sm:$0xff]
  %v8714 = vld [vmem:[%s0 + $0xe8] sm:$0xff]
  %v8715 = vld [vmem:[%s0 + $0xf0] sm:$0xff]
  %v8716 = vld [vmem:[%s0 + $0xf8] sm:$0xff]
  %v8717 = vld [vmem:[%s0 + $0x100] sm:$0xff]
  %v8718 = vld [vmem:[%s0 + $0x108] sm:$0xff]
  %v8719 = vld [vmem:[%s0 + $0x110] sm:$0xff]
  %v8720 = vld [vmem:[%s0 + $0x118] sm:$0xff]
  %v8721 = vld [vmem:[%s0 + $0x120] sm:$0xff]
  %v8722 = vld [vmem:[%s0 + $0x128] sm:$0xff]
  %v8723 = vld [vmem:[%s0 + $0x130] sm:$0xff]
  %v8724 = vld [vmem:[%s0 + $0x138] sm:$0xff]
  %v8725 = vld [vmem:[%s0 + $0x140] sm:$0xff]
  %v8726 = vld [vmem:[%s0 + $0x148] sm:$0xff]
  %v8727 = vld [vmem:[%s0 + $0x150] sm:$0xff]
  %v8728 = vld [vmem:[%s0 + $0x158] sm:$0xff]
  %v8729 = vld [vmem:[%s0 + $0x160] sm:$0xff]
  %v8730 = vld [vmem:[%s0 + $0x168] sm:$0xff]
  %v8731 = vld [vmem:[%s0 + $0x170] sm:$0xff]
  %v8732 = vld [vmem:[%s0 + $0x178] sm:$0xff]
  %v8733 = vld [vmem:[%s0 + $0x180] sm:$0xff]
  %v8734 = vld [vmem:[%s0 + $0x188] sm:$0xff]
  %v8735 = vld [vmem:[%s0 + $0x190] sm:$0xff]
  %v8736 = vld [vmem:[%s0 + $0x198] sm:$0xff]
  %v8737 = vld [vmem:[%s0 + $0x1a0] sm:$0xff]
  %v8738 = vld [vmem:[%s0 + $0x1a8] sm:$0xff]
  %v8739 = vld [vmem:[%s0 + $0x1b0] sm:$0xff]
  %v8740 = vld [vmem:[%s0 + $0x1b8] sm:$0xff]
  %v8741 = vld [vmem:[%s0 + $0x1c0] sm:$0xff]
  %v8742 = vld [vmem:[%s0 + $0x1c8] sm:$0xff]
  %v8743 = vld [vmem:[%s0 + $0x1d0] sm:$0xff]
  %v8744 = vld [vmem:[%s0 + $0x1d8] sm:$0xff]
  %v8745 = vld [vmem:[%s0 + $0x1e0] sm:$0xff]
  %v8746 = vld [vmem:[%s0 + $0x1e8] sm:$0xff]
  %v8747 = vld [vmem:[%s0 + $0x1f0] sm:$0xff]
  %v8748 = vld [vmem:[%s0 + $0x1f8] sm:$0xff]
  %v8749 = vadd.f32 %v8621, %v8685
  %v8750 = vadd.f32 %v8622, %v8686
  %v8751 = vadd.f32 %v8623, %v8687
  %v8752 = vadd.f32 %v8624, %v8688
  %v8753 = vadd.f32 %v8625, %v8689
  %v8754 = vadd.f32 %v8626, %v8690
  %v8755 = vadd.f32 %v8627, %v8691
  %v8756 = vadd.f32 %v8628, %v8692
  %v8757 = vadd.f32 %v8629, %v8693
  %v8758 = vadd.f32 %v8630, %v8694
  %v8759 = vadd.f32 %v8631, %v8695
  %v8760 = vadd.f32 %v8632, %v8696
  %v8761 = vadd.f32 %v8633, %v8697
  %v8762 = vadd.f32 %v8634, %v8698
  %v8763 = vadd.f32 %v8635, %v8699
  %v8764 = vadd.f32 %v8636, %v8700
  %v8765 = vadd.f32 %v8637, %v8701
  %v8766 = vadd.f32 %v8638, %v8702
  %v8767 = vadd.f32 %v8639, %v8703
  %v8768 = vadd.f32 %v8640, %v8704
  %v8769 = vadd.f32 %v8641, %v8705
  %v8770 = vadd.f32 %v8642, %v8706
  %v8771 = vadd.f32 %v8643, %v8707
  %v8772 = vadd.f32 %v8644, %v8708
  %v8773 = vadd.f32 %v8645, %v8709
  %v8774 = vadd.f32 %v8646, %v8710
  %v8775 = vadd.f32 %v8647, %v8711
  %v8776 = vadd.f32 %v8648, %v8712
  %v8777 = vadd.f32 %v8649, %v8713
  %v8778 = vadd.f32 %v8650, %v8714
  %v8779 = vadd.f32 %v8651, %v8715
  %v8780 = vadd.f32 %v8652, %v8716
  %v8781 = vadd.f32 %v8653, %v8717
  %v8782 = vadd.f32 %v8654, %v8718
  %v8783 = vadd.f32 %v8655, %v8719
  %v8784 = vadd.f32 %v8656, %v8720
  %v8785 = vadd.f32 %v8657, %v8721
  %v8786 = vadd.f32 %v8658, %v8722
  %v8787 = vadd.f32 %v8659, %v8723
  %v8788 = vadd.f32 %v8660, %v8724
  %v8789 = vadd.f32 %v8661, %v8725
  %v8790 = vadd.f32 %v8662, %v8726
  %v8791 = vadd.f32 %v8663, %v8727
  %v8792 = vadd.f32 %v8664, %v8728
  %v8793 = vadd.f32 %v8665, %v8729
  %v8794 = vadd.f32 %v8666, %v8730
  %v8795 = vadd.f32 %v8667, %v8731
  %v8796 = vadd.f32 %v8668, %v8732
  %v8797 = vadd.f32 %v8669, %v8733
  %v8798 = vadd.f32 %v8670, %v8734
  %v8799 = vadd.f32 %v8671, %v8735
  %v8800 = vadd.f32 %v8672, %v8736
  %v8801 = vadd.f32 %v8673, %v8737
  %v8802 = vadd.f32 %v8674, %v8738
  %v8803 = vadd.f32 %v8675, %v8739
  %v8804 = vadd.f32 %v8676, %v8740
  %v8805 = vadd.f32 %v8677, %v8741
  %v8806 = vadd.f32 %v8678, %v8742
  %v8807 = vadd.f32 %v8679, %v8743
  %v8808 = vadd.f32 %v8680, %v8744
  %v8809 = vadd.f32 %v8681, %v8745
  %v8810 = vadd.f32 %v8682, %v8746
  %v8811 = vadd.f32 %v8683, %v8747
  %v8812 = vadd.f32 %v8684, %v8748
  %v8813 = vmax.f32 %v8749, 0.0
  %v8814 = vmax.f32 %v8750, 0.0
  %v8815 = vmax.f32 %v8751, 0.0
  %v8816 = vmax.f32 %v8752, 0.0
  %v8817 = vmax.f32 %v8753, 0.0
  %v8818 = vmax.f32 %v8754, 0.0
  %v8819 = vmax.f32 %v8755, 0.0
  %v8820 = vmax.f32 %v8756, 0.0
  %v8821 = vmax.f32 %v8757, 0.0
  %v8822 = vmax.f32 %v8758, 0.0
  %v8823 = vmax.f32 %v8759, 0.0
  %v8824 = vmax.f32 %v8760, 0.0
  %v8825 = vmax.f32 %v8761, 0.0
  %v8826 = vmax.f32 %v8762, 0.0
  %v8827 = vmax.f32 %v8763, 0.0
  %v8828 = vmax.f32 %v8764, 0.0
  %v8829 = vmax.f32 %v8765, 0.0
  %v8830 = vmax.f32 %v8766, 0.0
  %v8831 = vmax.f32 %v8767, 0.0
  %v8832 = vmax.f32 %v8768, 0.0
  %v8833 = vmax.f32 %v8769, 0.0
  %v8834 = vmax.f32 %v8770, 0.0
  %v8835 = vmax.f32 %v8771, 0.0
  %v8836 = vmax.f32 %v8772, 0.0
  %v8837 = vmax.f32 %v8773, 0.0
  %v8838 = vmax.f32 %v8774, 0.0
  %v8839 = vmax.f32 %v8775, 0.0
  %v8840 = vmax.f32 %v8776, 0.0
  %v8841 = vmax.f32 %v8777, 0.0
  %v8842 = vmax.f32 %v8778, 0.0
  %v8843 = vmax.f32 %v8779, 0.0
  %v8844 = vmax.f32 %v8780, 0.0
  %v8845 = vmax.f32 %v8781, 0.0
  %v8846 = vmax.f32 %v8782, 0.0
  %v8847 = vmax.f32 %v8783, 0.0
  %v8848 = vmax.f32 %v8784, 0.0
  %v8849 = vmax.f32 %v8785, 0.0
  %v8850 = vmax.f32 %v8786, 0.0
  %v8851 = vmax.f32 %v8787, 0.0
  %v8852 = vmax.f32 %v8788, 0.0
  %v8853 = vmax.f32 %v8789, 0.0
  %v8854 = vmax.f32 %v8790, 0.0
  %v8855 = vmax.f32 %v8791, 0.0
  %v8856 = vmax.f32 %v8792, 0.0
  %v8857 = vmax.f32 %v8793, 0.0
  %v8858 = vmax.f32 %v8794, 0.0
  %v8859 = vmax.f32 %v8795, 0.0
  %v8860 = vmax.f32 %v8796, 0.0
  %v8861 = vmax.f32 %v8797, 0.0
  %v8862 = vmax.f32 %v8798, 0.0
  %v8863 = vmax.f32 %v8799, 0.0
  %v8864 = vmax.f32 %v8800, 0.0
  %v8865 = vmax.f32 %v8801, 0.0
  %v8866 = vmax.f32 %v8802, 0.0
  %v8867 = vmax.f32 %v8803, 0.0
  %v8868 = vmax.f32 %v8804, 0.0
  %v8869 = vmax.f32 %v8805, 0.0
  %v8870 = vmax.f32 %v8806, 0.0
  %v8871 = vmax.f32 %v8807, 0.0
  %v8872 = vmax.f32 %v8808, 0.0
  %v8873 = vmax.f32 %v8809, 0.0
  %v8874 = vmax.f32 %v8810, 0.0
  %v8875 = vmax.f32 %v8811, 0.0
  %v8876 = vmax.f32 %v8812, 0.0
  %8877 = vst [vmem:[%s5] sm:$0xff] %v8813
  %8878 = vst [vmem:[%s5 + $0x8] sm:$0xff] %v8814
  %8879 = vst [vmem:[%s5 + $0x10] sm:$0xff] %v8815
  %8880 = vst [vmem:[%s5 + $0x18] sm:$0xff] %v8816
  %8881 = vst [vmem:[%s5 + $0x20] sm:$0xff] %v8817
  %8882 = vst [vmem:[%s5 + $0x28] sm:$0xff] %v8818
  %8883 = vst [vmem:[%s5 + $0x30] sm:$0xff] %v8819
  %8884 = vst [vmem:[%s5 + $0x38] sm:$0xff] %v8820
  %8885 = vst [vmem:[%s5 + $0x40] sm:$0xff] %v8821
  %8886 = vst [vmem:[%s5 + $0x48] sm:$0xff] %v8822
  %8887 = vst [vmem:[%s5 + $0x50] sm:$0xff] %v8823
  %8888 = vst [vmem:[%s5 + $0x58] sm:$0xff] %v8824
  %8889 = vst [vmem:[%s5 + $0x60] sm:$0xff] %v8825
  %8890 = vst [vmem:[%s5 + $0x68] sm:$0xff] %v8826
  %8891 = vst [vmem:[%s5 + $0x70] sm:$0xff] %v8827
  %8892 = vst [vmem:[%s5 + $0x78] sm:$0xff] %v8828
  %8893 = vst [vmem:[%s5 + $0x80] sm:$0xff] %v8829
  %8894 = vst [vmem:[%s5 + $0x88] sm:$0xff] %v8830
  %8895 = vst [vmem:[%s5 + $0x90] sm:$0xff] %v8831
  %8896 = vst [vmem:[%s5 + $0x98] sm:$0xff] %v8832
  %8897 = vst [vmem:[%s5 + $0xa0] sm:$0xff] %v8833
  %8898 = vst [vmem:[%s5 + $0xa8] sm:$0xff] %v8834
  %8899 = vst [vmem:[%s5 + $0xb0] sm:$0xff] %v8835
  %8900 = vst [vmem:[%s5 + $0xb8] sm:$0xff] %v8836
  %8901 = vst [vmem:[%s5 + $0xc0] sm:$0xff] %v8837
  %8902 = vst [vmem:[%s5 + $0xc8] sm:$0xff] %v8838
  %8903 = vst [vmem:[%s5 + $0xd0] sm:$0xff] %v8839
  %8904 = vst [vmem:[%s5 + $0xd8] sm:$0xff] %v8840
  %8905 = vst [vmem:[%s5 + $0xe0] sm:$0xff] %v8841
  %8906 = vst [vmem:[%s5 + $0xe8] sm:$0xff] %v8842
  %8907 = vst [vmem:[%s5 + $0xf0] sm:$0xff] %v8843
  %8908 = vst [vmem:[%s5 + $0xf8] sm:$0xff] %v8844
  %8909 = vst [vmem:[%s5 + $0x100] sm:$0xff] %v8845
  %8910 = vst [vmem:[%s5 + $0x108] sm:$0xff] %v8846
  %8911 = vst [vmem:[%s5 + $0x110] sm:$0xff] %v8847
  %8912 = vst [vmem:[%s5 + $0x118] sm:$0xff] %v8848
  %8913 = vst [vmem:[%s5 + $0x120] sm:$0xff] %v8849
  %8914 = vst [vmem:[%s5 + $0x128] sm:$0xff] %v8850
  %8915 = vst [vmem:[%s5 + $0x130] sm:$0xff] %v8851
  %8916 = vst [vmem:[%s5 + $0x138] sm:$0xff] %v8852
  %8917 = vst [vmem:[%s5 + $0x140] sm:$0xff] %v8853
  %8918 = vst [vmem:[%s5 + $0x148] sm:$0xff] %v8854
  %8919 = vst [vmem:[%s5 + $0x150] sm:$0xff] %v8855
  %8920 = vst [vmem:[%s5 + $0x158] sm:$0xff] %v8856
  %8921 = vst [vmem:[%s5 + $0x160] sm:$0xff] %v8857
  %8922 = vst [vmem:[%s5 + $0x168] sm:$0xff] %v8858
  %8923 = vst [vmem:[%s5 + $0x170] sm:$0xff] %v8859
  %8924 = vst [vmem:[%s5 + $0x178] sm:$0xff] %v8860
  %8925 = vst [vmem:[%s5 + $0x180] sm:$0xff] %v8861
  %8926 = vst [vmem:[%s5 + $0x188] sm:$0xff] %v8862
  %8927 = vst [vmem:[%s5 + $0x190] sm:$0xff] %v8863
  %8928 = vst [vmem:[%s5 + $0x198] sm:$0xff] %v8864
  %8929 = vst [vmem:[%s5 + $0x1a0] sm:$0xff] %v8865
  %8930 = vst [vmem:[%s5 + $0x1a8] sm:$0xff] %v8866
  %8931 = vst [vmem:[%s5 + $0x1b0] sm:$0xff] %v8867
  %8932 = vst [vmem:[%s5 + $0x1b8] sm:$0xff] %v8868
  %8933 = vst [vmem:[%s5 + $0x1c0] sm:$0xff] %v8869
  %8934 = vst [vmem:[%s5 + $0x1c8] sm:$0xff] %v8870
  %8935 = vst [vmem:[%s5 + $0x1d0] sm:$0xff] %v8871
  %8936 = vst [vmem:[%s5 + $0x1d8] sm:$0xff] %v8872
  %8937 = vst [vmem:[%s5 + $0x1e0] sm:$0xff] %v8873
  %8938 = vst [vmem:[%s5 + $0x1e8] sm:$0xff] %v8874
  %8939 = vst [vmem:[%s5 + $0x1f0] sm:$0xff] %v8875
  %8940 = vst [vmem:[%s5 + $0x1f8] sm:$0xff] %v8876
  // Predicated region
  $region22: #{residual_block_forward.1} parent=0 // pred_check
    _
  $region23: #{residual_block_forward.1} parent=0 // pred_check_branch
    %8942 = sbr.rel (0) target = $region25
  $region24: #{residual_block_forward.1} parent=0 // pred_region
    _
  $region25: #{residual_block_forward.1} parent=0 // pred_fallthru
    _
  // Predicated region
  $region26: #{residual_block_forward.1} parent=0 // pred_check
    _
  $region27: #{residual_block_forward.1} parent=0 // pred_check_branch
    %8944 = sbr.rel (0) target = $region29
  $region28: #{residual_block_forward.1} parent=0 // pred_region
    _
  $region29: #{residual_block_forward.1} parent=0 // pred_fallthru
    _

</llo_original>
